<compile_context>
chip_gen: v6e
topology: v6e:2x2x1
jax: 0.10.0
libtpu: 0.0.40
codegen_flags: <defaults>
</compile_context>

<pallas_src>
import functools

import jax
import jax.numpy as jnp
from jax import lax
from jax.experimental import pallas as pl
from jax.experimental.pallas import tpu as pltpu


def _ta_lstm_kernel(T, B, D, H, x_ref, wih_ref, whh_ref, bg_ref, wta_ref,
                    bta_ref, out_ref, xz_ref, hall_ref):
    """TA-LSTM forward for one block of B instances (state-major layout).

    x_ref   : (D, T*B)    input for this block, column index = t*B + b
    wih_ref : (4H, D)     LSTMCell input->gates weight (i/f/o rows pre-scaled 0.5)
    whh_ref : (4H, H)     LSTMCell hidden->gates weight (i/f/o rows pre-scaled 0.5)
    bg_ref  : (4H, 1)     (b_ih + b_hh), i/f/o rows pre-scaled 0.5
    wta_ref : (T, T*H)    temporal-attention Linear weight (PyTorch layout)
    bta_ref : (T, 1)      temporal-attention bias
    out_ref : (H, B)      attention-pooled hidden state (output block)
    xz_ref  : (4H, T*B)   VMEM scratch: x_t @ W_ih^T + b for all t
    hall_ref: (T*H, B)    VMEM scratch: every h_t, rows [t*H, (t+1)*H)
    """
    f32 = jnp.float32

    # ---- hoisted input projection for ALL timesteps: one big MXU matmul ----
    xz_ref[...] = (jnp.dot(wih_ref[...], x_ref[...], preferred_element_type=f32)
                   + bg_ref[...])                                  # (4H, T*B)

    whh = whh_ref[...]                                             # (4H, H)

    # ---- LSTMCell recurrence over time (serial chain on the TC) ------------
    # Gate rows along 4H: [ i | f | g | o ].  Because the i/f/o rows of the
    # weights/bias were pre-scaled by 0.5, a single tanh over the full (4H, B)
    # slab gives tanh(0.5*z) on i/f/o rows and tanh(z) on g rows; the sigmoid
    # is finished with one affine per gate slice (full-lane VPU work).
    def step(t, carry):
        h, c = carry                                               # (H,B),(H,B)
        col0 = pl.multiple_of(t * B, B)
        z = xz_ref[:, pl.ds(col0, B)] + jnp.dot(
            whh, h, preferred_element_type=f32)                    # (4H, B)
        th = jnp.tanh(z)                       # one EUP op for all four gates
        i_g = 0.5 * th[0 * H:1 * H, :] + 0.5   # sigmoid(i)
        f_g = 0.5 * th[1 * H:2 * H, :] + 0.5   # sigmoid(f)
        g_g = th[2 * H:3 * H, :]               # tanh(g)
        o_g = 0.5 * th[3 * H:4 * H, :] + 0.5   # sigmoid(o)
        c_new = f_g * c + i_g * g_g
        h_new = o_g * jnp.tanh(c_new)
        hall_ref[pl.ds(pl.multiple_of(t * H, H), H), :] = h_new
        return (h_new, c_new)

    h0 = jnp.zeros((H, B), f32)
    c0 = jnp.zeros((H, B), f32)
    lax.fori_loop(0, T, step, (h0, c0), unroll=True)

    # ---- attention logits: ONE epilogue matmul over all stored h_t ---------
    logits = jnp.dot(wta_ref[...], hall_ref[...],
                     preferred_element_type=f32) + bta_ref[...]    # (T, B)

    # ---- beta = softmax(relu(logits)) over the T (sublane) axis ------------
    beta = jnp.maximum(logits, 0.0)
    beta = beta - jnp.max(beta, axis=0, keepdims=True)
    e = jnp.exp(beta)
    beta = e * pl.reciprocal(jnp.sum(e, axis=0, keepdims=True), approx=True)

    # ---- attention-weighted sum of hidden states ----------------------------
    acc = jnp.zeros((H, B), f32)
    for t in range(T):                       # short static epilogue loop
        acc = acc + hall_ref[pl.ds(t * H, H), :] * beta[t:t + 1, :]
    out_ref[...] = acc


def ta_lstm_pallas(x, w_ih, w_hh, b_ih, b_hh, w_ta, b_ta, *, block_b=128):
    """x: (T, B_total, D) float32.  Weights in native PyTorch layout:
    w_ih (4H, D), w_hh (4H, H), b_ih/b_hh (4H,), w_ta (T, T*H), b_ta (T,)."""
    T, B_total, D = x.shape
    H = w_hh.shape[1]
    block_b = min(block_b, B_total)
    assert B_total % block_b == 0, "B_total must be a multiple of block_b"
    n_blk = B_total // block_b

    # ---- one-time wrapper-side layout / parameter plumbing -----------------
    # x -> (n_blk, D, T*block_b), column index = t*block_b + b_local.
    x_sm = (x.reshape(T, n_blk, block_b, D)
             .transpose(1, 3, 0, 2)
             .reshape(n_blk, D, T * block_b))
    # Fold the 0.5 sigmoid pre-scale for the i/f/o gate rows into the weights
    # (one-time parameter transform; g rows untouched).
    gate_scale = jnp.concatenate([
        jnp.full((H,), 0.5), jnp.full((H,), 0.5),
        jnp.ones((H,)), jnp.full((H,), 0.5)]).astype(jnp.float32)
    w_ih_s = w_ih * gate_scale[:, None]
    w_hh_s = w_hh * gate_scale[:, None]
    b_gates = ((b_ih + b_hh) * gate_scale).reshape(4 * H, 1)
    b_ta2 = b_ta.reshape(T, 1)

    kernel = functools.partial(_ta_lstm_kernel, T, block_b, D, H)

    # VMEM per block: xz (4H, T*block_b) f32 + hall (T*H, block_b) f32 plus the
    # double-buffered (D, T*block_b) input block -- ~1.8 MiB at block_b=128,
    # comfortably inside v7x's 64 MiB as well as v5e/v6e's 128 MiB.  block_b is
    # the knob to re-derive per generation if the instance count grows.
    out_hb = pl.pallas_call(
        kernel,
        out_shape=jax.ShapeDtypeStruct((H, B_total), jnp.float32),
        grid_spec=pltpu.PrefetchScalarGridSpec(
            num_scalar_prefetch=0,
            grid=(n_blk,),
            in_specs=[
                pl.BlockSpec((None, D, T * block_b), lambda i: (i, 0, 0)),
                pl.BlockSpec((4 * H, D), lambda i: (0, 0)),
                pl.BlockSpec((4 * H, H), lambda i: (0, 0)),
                pl.BlockSpec((4 * H, 1), lambda i: (0, 0)),
                pl.BlockSpec((T, T * H), lambda i: (0, 0)),
                pl.BlockSpec((T, 1), lambda i: (0, 0)),
            ],
            out_specs=pl.BlockSpec((H, block_b), lambda i: (0, i)),
            scratch_shapes=[
                pltpu.VMEM((4 * H, T * block_b), jnp.float32),  # x@W_ih^T + b
                pltpu.VMEM((T * H, block_b), jnp.float32),      # all h_t
            ],
        ),
        compiler_params=pltpu.CompilerParams(
            dimension_semantics=("parallel",)),   # v7x: split blocks over 2 TCs
    )(x_sm, w_ih_s, w_hh_s, b_gates, w_ta, b_ta2)

    return out_hb.T   # (B_total, H), matching the PyTorch module's output


def ta_lstm_ref(x, w_ih, w_hh, b_ih, b_hh, w_ta, b_ta):
    """Pure-JAX reference mirroring the PyTorch forward exactly."""
    T, B, D = x.shape
    H = w_hh.shape[1]
    hi = jax.lax.Precision.HIGHEST
    h = jnp.zeros((B, H), jnp.float32)
    c = jnp.zeros((B, H), jnp.float32)
    hs = []
    for t in range(T):
        z = (jnp.dot(x[t], w_ih.T, precision=hi) + b_ih
             + jnp.dot(h, w_hh.T, precision=hi) + b_hh)
        i_g = jax.nn.sigmoid(z[:, 0 * H:1 * H])
        f_g = jax.nn.sigmoid(z[:, 1 * H:2 * H])
        g_g = jnp.tanh(z[:, 2 * H:3 * H])
        o_g = jax.nn.sigmoid(z[:, 3 * H:4 * H])
        c = f_g * c + i_g * g_g
        h = o_g * jnp.tanh(c)
        hs.append(h)
    total_ht = jnp.concatenate(hs, axis=1)                       # (B, T*H)
    beta = jax.nn.softmax(
        jax.nn.relu(jnp.dot(total_ht, w_ta.T, precision=hi) + b_ta), axis=-1)
    out = jnp.zeros((B, H), jnp.float32)
    for t in range(T):
        out = out + hs[t] * beta[:, t:t + 1]
    return out


if __name__ == "__main__":
    # Module-implied shapes: TA_LSTM(total_embedding_size, 16, encoder_size)
    # -> sequence_length T = 16.  Small stand-ins for the feature dims; the
    # batch axis (number of vehicles) is widened to 256 and split into two
    # 128-instance blocks so the batched/parallel-grid path is exercised.
    T, B, D, H = 16, 256, 32, 32

    key = jax.random.PRNGKey(0)
    kx, k1, k2, k3, k4, k5, k6 = jax.random.split(key, 7)
    scale = 1.0 / jnp.sqrt(jnp.float32(H))

    x = jax.random.normal(kx, (T, B, D), dtype=jnp.float32)

    # LSTMCell parameters in native PyTorch layout.
    w_ih = jax.random.uniform(k1, (4 * H, D), jnp.float32, -1.0, 1.0) * scale
    w_hh = jax.random.uniform(k2, (4 * H, H), jnp.float32, -1.0, 1.0) * scale
    b_ih = jax.random.uniform(k3, (4 * H,), jnp.float32, -1.0, 1.0) * scale
    b_hh = jax.random.uniform(k4, (4 * H,), jnp.float32, -1.0, 1.0) * scale

    # Temporal-attention Linear(T*H -> T), native PyTorch layout (T, T*H).
    w_ta = jax.random.uniform(k5, (T, T * H), jnp.float32, -1.0, 1.0) * scale
    b_ta = jax.random.uniform(k6, (T,), jnp.float32, -1.0, 1.0) * scale

    out = ta_lstm_pallas(x, w_ih, w_hh, b_ih, b_hh, w_ta, b_ta, block_b=128)
    out = jax.block_until_ready(out)

    ref = ta_lstm_ref(x, w_ih, w_hh, b_ih, b_hh, w_ta, b_ta)
    ref = jax.block_until_ready(ref)

    assert out.shape == (B, H), out.shape
    assert jnp.allclose(out, ref, atol=5e-3, rtol=5e-3), \
        f"max abs err {jnp.max(jnp.abs(out - ref))}"
    print("KERNEL_OK")
</pallas_src>

<mosaic_0001>
module attributes {stable_mosaic.version = 11 : i64} {
  func.func @_ta_lstm_kernel(%arg0: i32, %arg1: memref<1x32x2048xf32, #tpu.memory_space<vmem>>, %arg2: memref<128x32xf32, #tpu.memory_space<vmem>>, %arg3: memref<128x32xf32, #tpu.memory_space<vmem>>, %arg4: memref<128x1xf32, #tpu.memory_space<vmem>>, %arg5: memref<16x512xf32, #tpu.memory_space<vmem>>, %arg6: memref<16x1xf32, #tpu.memory_space<vmem>>, %arg7: memref<32x128xf32, #tpu.memory_space<vmem>>, %arg8: memref<128x2048xf32, #tpu.memory_space<vmem>>, %arg9: memref<512x128xf32, #tpu.memory_space<vmem>>) attributes {dimension_semantics = [#tpu.dimension_semantics<parallel>], iteration_bounds = array<i64: 2>, scalar_prefetch = 0 : i64, scratch_operands = 2 : i64, tpu.core_type = #tpu.core_type<tc>, window_params = [{transform_indices = @transform_0, window_bounds = array<i64: 1, 32, 2048>}, {pipeline_mode = #tpu.pipeline_mode<synchronous>, transform_indices = @transform_1, window_bounds = array<i64: 128, 32>}, {pipeline_mode = #tpu.pipeline_mode<synchronous>, transform_indices = @transform_2, window_bounds = array<i64: 128, 32>}, {pipeline_mode = #tpu.pipeline_mode<synchronous>, transform_indices = @transform_3, window_bounds = array<i64: 128, 1>}, {pipeline_mode = #tpu.pipeline_mode<synchronous>, transform_indices = @transform_4, window_bounds = array<i64: 16, 512>}, {pipeline_mode = #tpu.pipeline_mode<synchronous>, transform_indices = @transform_5, window_bounds = array<i64: 16, 1>}, {transform_indices = @transform_6, window_bounds = array<i64: 32, 128>}]} {
    %c0 = arith.constant 0 : index
    %c0_0 = arith.constant 0 : index
    %0 = vector.load %arg2[%c0, %c0_0] : memref<128x32xf32, #tpu.memory_space<vmem>>, vector<128x32xf32>
    %c0_1 = arith.constant 0 : index
    %c0_2 = arith.constant 0 : index
    %c0_3 = arith.constant 0 : index
    %1 = vector.load %arg1[%c0_1, %c0_2, %c0_3] : memref<1x32x2048xf32, #tpu.memory_space<vmem>>, vector<1x32x2048xf32>
    %2 = vector.shape_cast %1 : vector<1x32x2048xf32> to vector<32x2048xf32>
    %cst = arith.constant dense<0.000000e+00> : vector<128x2048xf32>
    %3 = tpu.matmul %0, %2, %cst {dimension_numbers = #tpu.dot_dimension_numbers<[1], [0], [0], [1], [0, 0, 1, 1], [], []>} : vector<128x32xf32>, vector<32x2048xf32>, vector<128x2048xf32> -> vector<128x2048xf32>
    %c0_4 = arith.constant 0 : index
    %c0_5 = arith.constant 0 : index
    %4 = vector.load %arg4[%c0_4, %c0_5] : memref<128x1xf32, #tpu.memory_space<vmem>>, vector<128x1xf32>
    %5 = vector.broadcast %4 : vector<128x1xf32> to vector<128x2048xf32>
    %6 = arith.addf %3, %5 : vector<128x2048xf32>
    %c0_6 = arith.constant 0 : index
    %c0_7 = arith.constant 0 : index
    %7 = vector.load %arg8[%c0_6, %c0_7] : memref<128x2048xf32, #tpu.memory_space<vmem>>, vector<128x2048xf32>
    tpu.vector_store %arg8[%c0_6, %c0_7], %6 {strides = array<i32>} : memref<128x2048xf32, #tpu.memory_space<vmem>>, vector<128x2048xf32>,
    %c0_8 = arith.constant 0 : index
    %c0_9 = arith.constant 0 : index
    %8 = vector.load %arg3[%c0_8, %c0_9] : memref<128x32xf32, #tpu.memory_space<vmem>>, vector<128x32xf32>
    %cst_10 = arith.constant 0.000000e+00 : f32
    %9 = vector.broadcast %cst_10 : f32 to vector<32x128xf32>
    %cst_11 = arith.constant 0.000000e+00 : f32
    %10 = vector.broadcast %cst_11 : f32 to vector<32x128xf32>
    %c0_i32 = arith.constant 0 : i32
    %c128_i32 = arith.constant 128 : i32
    %11 = arith.muli %c0_i32, %c128_i32 : i32
    %12 = tpu.assume_multiple %11, 128 : i32
    %c0_12 = arith.constant 0 : index
    %13 = arith.index_cast %12 : i32 to index
    %14 = vector.load %arg8[%c0_12, %13] : memref<128x2048xf32, #tpu.memory_space<vmem>>, vector<128x128xf32>
    %cst_13 = arith.constant dense<0.000000e+00> : vector<128x128xf32>
    %15 = tpu.matmul %8, %9, %cst_13 {dimension_numbers = #tpu.dot_dimension_numbers<[1], [0], [0], [1], [0, 0, 1, 1], [], []>} : vector<128x32xf32>, vector<32x128xf32>, vector<128x128xf32> -> vector<128x128xf32>
    %16 = arith.addf %14, %15 : vector<128x128xf32>
    %17 = math.tanh %16 : vector<128x128xf32>
    %18 = vector.extract_strided_slice %17 {offsets = [0, 0], sizes = [32, 128], strides = [1, 1]} : vector<128x128xf32> to vector<32x128xf32>
    %cst_14 = arith.constant 5.000000e-01 : f32
    %19 = vector.broadcast %cst_14 : f32 to vector<32x128xf32>
    %20 = arith.mulf %19, %18 : vector<32x128xf32>
    %cst_15 = arith.constant 5.000000e-01 : f32
    %21 = vector.broadcast %cst_15 : f32 to vector<32x128xf32>
    %22 = arith.addf %20, %21 : vector<32x128xf32>
    %23 = vector.extract_strided_slice %17 {offsets = [32, 0], sizes = [32, 128], strides = [1, 1]} : vector<128x128xf32> to vector<32x128xf32>
    %cst_16 = arith.constant 5.000000e-01 : f32
    %24 = vector.broadcast %cst_16 : f32 to vector<32x128xf32>
    %25 = arith.mulf %24, %23 : vector<32x128xf32>
    %cst_17 = arith.constant 5.000000e-01 : f32
    %26 = vector.broadcast %cst_17 : f32 to vector<32x128xf32>
    %27 = arith.addf %25, %26 : vector<32x128xf32>
    %28 = vector.extract_strided_slice %17 {offsets = [64, 0], sizes = [32, 128], strides = [1, 1]} : vector<128x128xf32> to vector<32x128xf32>
    %29 = vector.extract_strided_slice %17 {offsets = [96, 0], sizes = [32, 128], strides = [1, 1]} : vector<128x128xf32> to vector<32x128xf32>
    %cst_18 = arith.constant 5.000000e-01 : f32
    %30 = vector.broadcast %cst_18 : f32 to vector<32x128xf32>
    %31 = arith.mulf %30, %29 : vector<32x128xf32>
    %cst_19 = arith.constant 5.000000e-01 : f32
    %32 = vector.broadcast %cst_19 : f32 to vector<32x128xf32>
    %33 = arith.addf %31, %32 : vector<32x128xf32>
    %34 = arith.mulf %27, %10 : vector<32x128xf32>
    %35 = arith.mulf %22, %28 : vector<32x128xf32>
    %36 = arith.addf %34, %35 : vector<32x128xf32>
    %37 = math.tanh %36 : vector<32x128xf32>
    %38 = arith.mulf %33, %37 : vector<32x128xf32>
    %c32_i32 = arith.constant 32 : i32
    %39 = arith.muli %c0_i32, %c32_i32 : i32
    %40 = tpu.assume_multiple %39, 32 : i32
    %41 = arith.index_cast %40 : i32 to index
    %c0_20 = arith.constant 0 : index
    %42 = vector.load %arg9[%41, %c0_20] : memref<512x128xf32, #tpu.memory_space<vmem>>, vector<32x128xf32>
    tpu.vector_store %arg9[%41, %c0_20], %38 {strides = array<i32>} : memref<512x128xf32, #tpu.memory_space<vmem>>, vector<32x128xf32>,
    %c1_i32 = arith.constant 1 : i32
    %c128_i32_21 = arith.constant 128 : i32
    %43 = arith.muli %c1_i32, %c128_i32_21 : i32
    %44 = tpu.assume_multiple %43, 128 : i32
    %c0_22 = arith.constant 0 : index
    %45 = arith.index_cast %44 : i32 to index
    %46 = vector.load %arg8[%c0_22, %45] : memref<128x2048xf32, #tpu.memory_space<vmem>>, vector<128x128xf32>
    %cst_23 = arith.constant dense<0.000000e+00> : vector<128x128xf32>
    %47 = tpu.matmul %8, %38, %cst_23 {dimension_numbers = #tpu.dot_dimension_numbers<[1], [0], [0], [1], [0, 0, 1, 1], [], []>} : vector<128x32xf32>, vector<32x128xf32>, vector<128x128xf32> -> vector<128x128xf32>
    %48 = arith.addf %46, %47 : vector<128x128xf32>
    %49 = math.tanh %48 : vector<128x128xf32>
    %50 = vector.extract_strided_slice %49 {offsets = [0, 0], sizes = [32, 128], strides = [1, 1]} : vector<128x128xf32> to vector<32x128xf32>
    %cst_24 = arith.constant 5.000000e-01 : f32
    %51 = vector.broadcast %cst_24 : f32 to vector<32x128xf32>
    %52 = arith.mulf %51, %50 : vector<32x128xf32>
    %cst_25 = arith.constant 5.000000e-01 : f32
    %53 = vector.broadcast %cst_25 : f32 to vector<32x128xf32>
    %54 = arith.addf %52, %53 : vector<32x128xf32>
    %55 = vector.extract_strided_slice %49 {offsets = [32, 0], sizes = [32, 128], strides = [1, 1]} : vector<128x128xf32> to vector<32x128xf32>
    %cst_26 = arith.constant 5.000000e-01 : f32
    %56 = vector.broadcast %cst_26 : f32 to vector<32x128xf32>
    %57 = arith.mulf %56, %55 : vector<32x128xf32>
    %cst_27 = arith.constant 5.000000e-01 : f32
    %58 = vector.broadcast %cst_27 : f32 to vector<32x128xf32>
    %59 = arith.addf %57, %58 : vector<32x128xf32>
    %60 = vector.extract_strided_slice %49 {offsets = [64, 0], sizes = [32, 128], strides = [1, 1]} : vector<128x128xf32> to vector<32x128xf32>
    %61 = vector.extract_strided_slice %49 {offsets = [96, 0], sizes = [32, 128], strides = [1, 1]} : vector<128x128xf32> to vector<32x128xf32>
    %cst_28 = arith.constant 5.000000e-01 : f32
    %62 = vector.broadcast %cst_28 : f32 to vector<32x128xf32>
    %63 = arith.mulf %62, %61 : vector<32x128xf32>
    %cst_29 = arith.constant 5.000000e-01 : f32
    %64 = vector.broadcast %cst_29 : f32 to vector<32x128xf32>
    %65 = arith.addf %63, %64 : vector<32x128xf32>
    %66 = arith.mulf %59, %36 : vector<32x128xf32>
    %67 = arith.mulf %54, %60 : vector<32x128xf32>
    %68 = arith.addf %66, %67 : vector<32x128xf32>
    %69 = math.tanh %68 : vector<32x128xf32>
    %70 = arith.mulf %65, %69 : vector<32x128xf32>
    %c32_i32_30 = arith.constant 32 : i32
    %71 = arith.muli %c1_i32, %c32_i32_30 : i32
    %72 = tpu.assume_multiple %71, 32 : i32
    %73 = arith.index_cast %72 : i32 to index
    %c0_31 = arith.constant 0 : index
    %74 = vector.load %arg9[%73, %c0_31] : memref<512x128xf32, #tpu.memory_space<vmem>>, vector<32x128xf32>
    tpu.vector_store %arg9[%73, %c0_31], %70 {strides = array<i32>} : memref<512x128xf32, #tpu.memory_space<vmem>>, vector<32x128xf32>,
    %c2_i32 = arith.constant 2 : i32
    %c128_i32_32 = arith.constant 128 : i32
    %75 = arith.muli %c2_i32, %c128_i32_32 : i32
    %76 = tpu.assume_multiple %75, 128 : i32
    %c0_33 = arith.constant 0 : index
    %77 = arith.index_cast %76 : i32 to index
    %78 = vector.load %arg8[%c0_33, %77] : memref<128x2048xf32, #tpu.memory_space<vmem>>, vector<128x128xf32>
    %cst_34 = arith.constant dense<0.000000e+00> : vector<128x128xf32>
    %79 = tpu.matmul %8, %70, %cst_34 {dimension_numbers = #tpu.dot_dimension_numbers<[1], [0], [0], [1], [0, 0, 1, 1], [], []>} : vector<128x32xf32>, vector<32x128xf32>, vector<128x128xf32> -> vector<128x128xf32>
    %80 = arith.addf %78, %79 : vector<128x128xf32>
    %81 = math.tanh %80 : vector<128x128xf32>
    %82 = vector.extract_strided_slice %81 {offsets = [0, 0], sizes = [32, 128], strides = [1, 1]} : vector<128x128xf32> to vector<32x128xf32>
    %cst_35 = arith.constant 5.000000e-01 : f32
    %83 = vector.broadcast %cst_35 : f32 to vector<32x128xf32>
    %84 = arith.mulf %83, %82 : vector<32x128xf32>
    %cst_36 = arith.constant 5.000000e-01 : f32
    %85 = vector.broadcast %cst_36 : f32 to vector<32x128xf32>
    %86 = arith.addf %84, %85 : vector<32x128xf32>
    %87 = vector.extract_strided_slice %81 {offsets = [32, 0], sizes = [32, 128], strides = [1, 1]} : vector<128x128xf32> to vector<32x128xf32>
    %cst_37 = arith.constant 5.000000e-01 : f32
    %88 = vector.broadcast %cst_37 : f32 to vector<32x128xf32>
    %89 = arith.mulf %88, %87 : vector<32x128xf32>
    %cst_38 = arith.constant 5.000000e-01 : f32
    %90 = vector.broadcast %cst_38 : f32 to vector<32x128xf32>
    %91 = arith.addf %89, %90 : vector<32x128xf32>
    %92 = vector.extract_strided_slice %81 {offsets = [64, 0], sizes = [32, 128], strides = [1, 1]} : vector<128x128xf32> to vector<32x128xf32>
    %93 = vector.extract_strided_slice %81 {offsets = [96, 0], sizes = [32, 128], strides = [1, 1]} : vector<128x128xf32> to vector<32x128xf32>
    %cst_39 = arith.constant 5.000000e-01 : f32
    %94 = vector.broadcast %cst_39 : f32 to vector<32x128xf32>
    %95 = arith.mulf %94, %93 : vector<32x128xf32>
    %cst_40 = arith.constant 5.000000e-01 : f32
    %96 = vector.broadcast %cst_40 : f32 to vector<32x128xf32>
    %97 = arith.addf %95, %96 : vector<32x128xf32>
    %98 = arith.mulf %91, %68 : vector<32x128xf32>
    %99 = arith.mulf %86, %92 : vector<32x128xf32>
    %100 = arith.addf %98, %99 : vector<32x128xf32>
    %101 = math.tanh %100 : vector<32x128xf32>
    %102 = arith.mulf %97, %101 : vector<32x128xf32>
    %c32_i32_41 = arith.constant 32 : i32
    %103 = arith.muli %c2_i32, %c32_i32_41 : i32
    %104 = tpu.assume_multiple %103, 32 : i32
    %105 = arith.index_cast %104 : i32 to index
    %c0_42 = arith.constant 0 : index
    %106 = vector.load %arg9[%105, %c0_42] : memref<512x128xf32, #tpu.memory_space<vmem>>, vector<32x128xf32>
    tpu.vector_store %arg9[%105, %c0_42], %102 {strides = array<i32>} : memref<512x128xf32, #tpu.memory_space<vmem>>, vector<32x128xf32>,
    %c3_i32 = arith.constant 3 : i32
    %c128_i32_43 = arith.constant 128 : i32
    %107 = arith.muli %c3_i32, %c128_i32_43 : i32
    %108 = tpu.assume_multiple %107, 128 : i32
    %c0_44 = arith.constant 0 : index
    %109 = arith.index_cast %108 : i32 to index
    %110 = vector.load %arg8[%c0_44, %109] : memref<128x2048xf32, #tpu.memory_space<vmem>>, vector<128x128xf32>
    %cst_45 = arith.constant dense<0.000000e+00> : vector<128x128xf32>
    %111 = tpu.matmul %8, %102, %cst_45 {dimension_numbers = #tpu.dot_dimension_numbers<[1], [0], [0], [1], [0, 0, 1, 1], [], []>} : vector<128x32xf32>, vector<32x128xf32>, vector<128x128xf32> -> vector<128x128xf32>
    %112 = arith.addf %110, %111 : vector<128x128xf32>
    %113 = math.tanh %112 : vector<128x128xf32>
    %114 = vector.extract_strided_slice %113 {offsets = [0, 0], sizes = [32, 128], strides = [1, 1]} : vector<128x128xf32> to vector<32x128xf32>
    %cst_46 = arith.constant 5.000000e-01 : f32
    %115 = vector.broadcast %cst_46 : f32 to vector<32x128xf32>
    %116 = arith.mulf %115, %114 : vector<32x128xf32>
    %cst_47 = arith.constant 5.000000e-01 : f32
    %117 = vector.broadcast %cst_47 : f32 to vector<32x128xf32>
    %118 = arith.addf %116, %117 : vector<32x128xf32>
    %119 = vector.extract_strided_slice %113 {offsets = [32, 0], sizes = [32, 128], strides = [1, 1]} : vector<128x128xf32> to vector<32x128xf32>
    %cst_48 = arith.constant 5.000000e-01 : f32
    %120 = vector.broadcast %cst_48 : f32 to vector<32x128xf32>
    %121 = arith.mulf %120, %119 : vector<32x128xf32>
    %cst_49 = arith.constant 5.000000e-01 : f32
    %122 = vector.broadcast %cst_49 : f32 to vector<32x128xf32>
    %123 = arith.addf %121, %122 : vector<32x128xf32>
    %124 = vector.extract_strided_slice %113 {offsets = [64, 0], sizes = [32, 128], strides = [1, 1]} : vector<128x128xf32> to vector<32x128xf32>
    %125 = vector.extract_strided_slice %113 {offsets = [96, 0], sizes = [32, 128], strides = [1, 1]} : vector<128x128xf32> to vector<32x128xf32>
    %cst_50 = arith.constant 5.000000e-01 : f32
    %126 = vector.broadcast %cst_50 : f32 to vector<32x128xf32>
    %127 = arith.mulf %126, %125 : vector<32x128xf32>
    %cst_51 = arith.constant 5.000000e-01 : f32
    %128 = vector.broadcast %cst_51 : f32 to vector<32x128xf32>
    %129 = arith.addf %127, %128 : vector<32x128xf32>
    %130 = arith.mulf %123, %100 : vector<32x128xf32>
    %131 = arith.mulf %118, %124 : vector<32x128xf32>
    %132 = arith.addf %130, %131 : vector<32x128xf32>
    %133 = math.tanh %132 : vector<32x128xf32>
    %134 = arith.mulf %129, %133 : vector<32x128xf32>
    %c32_i32_52 = arith.constant 32 : i32
    %135 = arith.muli %c3_i32, %c32_i32_52 : i32
    %136 = tpu.assume_multiple %135, 32 : i32
    %137 = arith.index_cast %136 : i32 to index
    %c0_53 = arith.constant 0 : index
    %138 = vector.load %arg9[%137, %c0_53] : memref<512x128xf32, #tpu.memory_space<vmem>>, vector<32x128xf32>
    tpu.vector_store %arg9[%137, %c0_53], %134 {strides = array<i32>} : memref<512x128xf32, #tpu.memory_space<vmem>>, vector<32x128xf32>,
    %c4_i32 = arith.constant 4 : i32
    %c128_i32_54 = arith.constant 128 : i32
    %139 = arith.muli %c4_i32, %c128_i32_54 : i32
    %140 = tpu.assume_multiple %139, 128 : i32
    %c0_55 = arith.constant 0 : index
    %141 = arith.index_cast %140 : i32 to index
    %142 = vector.load %arg8[%c0_55, %141] : memref<128x2048xf32, #tpu.memory_space<vmem>>, vector<128x128xf32>
    %cst_56 = arith.constant dense<0.000000e+00> : vector<128x128xf32>
    %143 = tpu.matmul %8, %134, %cst_56 {dimension_numbers = #tpu.dot_dimension_numbers<[1], [0], [0], [1], [0, 0, 1, 1], [], []>} : vector<128x32xf32>, vector<32x128xf32>, vector<128x128xf32> -> vector<128x128xf32>
    %144 = arith.addf %142, %143 : vector<128x128xf32>
    %145 = math.tanh %144 : vector<128x128xf32>
    %146 = vector.extract_strided_slice %145 {offsets = [0, 0], sizes = [32, 128], strides = [1, 1]} : vector<128x128xf32> to vector<32x128xf32>
    %cst_57 = arith.constant 5.000000e-01 : f32
    %147 = vector.broadcast %cst_57 : f32 to vector<32x128xf32>
    %148 = arith.mulf %147, %146 : vector<32x128xf32>
    %cst_58 = arith.constant 5.000000e-01 : f32
    %149 = vector.broadcast %cst_58 : f32 to vector<32x128xf32>
    %150 = arith.addf %148, %149 : vector<32x128xf32>
    %151 = vector.extract_strided_slice %145 {offsets = [32, 0], sizes = [32, 128], strides = [1, 1]} : vector<128x128xf32> to vector<32x128xf32>
    %cst_59 = arith.constant 5.000000e-01 : f32
    %152 = vector.broadcast %cst_59 : f32 to vector<32x128xf32>
    %153 = arith.mulf %152, %151 : vector<32x128xf32>
    %cst_60 = arith.constant 5.000000e-01 : f32
    %154 = vector.broadcast %cst_60 : f32 to vector<32x128xf32>
    %155 = arith.addf %153, %154 : vector<32x128xf32>
    %156 = vector.extract_strided_slice %145 {offsets = [64, 0], sizes = [32, 128], strides = [1, 1]} : vector<128x128xf32> to vector<32x128xf32>
    %157 = vector.extract_strided_slice %145 {offsets = [96, 0], sizes = [32, 128], strides = [1, 1]} : vector<128x128xf32> to vector<32x128xf32>
    %cst_61 = arith.constant 5.000000e-01 : f32
    %158 = vector.broadcast %cst_61 : f32 to vector<32x128xf32>
    %159 = arith.mulf %158, %157 : vector<32x128xf32>
    %cst_62 = arith.constant 5.000000e-01 : f32
    %160 = vector.broadcast %cst_62 : f32 to vector<32x128xf32>
    %161 = arith.addf %159, %160 : vector<32x128xf32>
    %162 = arith.mulf %155, %132 : vector<32x128xf32>
    %163 = arith.mulf %150, %156 : vector<32x128xf32>
    %164 = arith.addf %162, %163 : vector<32x128xf32>
    %165 = math.tanh %164 : vector<32x128xf32>
    %166 = arith.mulf %161, %165 : vector<32x128xf32>
    %c32_i32_63 = arith.constant 32 : i32
    %167 = arith.muli %c4_i32, %c32_i32_63 : i32
    %168 = tpu.assume_multiple %167, 32 : i32
    %169 = arith.index_cast %168 : i32 to index
    %c0_64 = arith.constant 0 : index
    %170 = vector.load %arg9[%169, %c0_64] : memref<512x128xf32, #tpu.memory_space<vmem>>, vector<32x128xf32>
    tpu.vector_store %arg9[%169, %c0_64], %166 {strides = array<i32>} : memref<512x128xf32, #tpu.memory_space<vmem>>, vector<32x128xf32>,
    %c5_i32 = arith.constant 5 : i32
    %c128_i32_65 = arith.constant 128 : i32
    %171 = arith.muli %c5_i32, %c128_i32_65 : i32
    %172 = tpu.assume_multiple %171, 128 : i32
    %c0_66 = arith.constant 0 : index
    %173 = arith.index_cast %172 : i32 to index
    %174 = vector.load %arg8[%c0_66, %173] : memref<128x2048xf32, #tpu.memory_space<vmem>>, vector<128x128xf32>
    %cst_67 = arith.constant dense<0.000000e+00> : vector<128x128xf32>
    %175 = tpu.matmul %8, %166, %cst_67 {dimension_numbers = #tpu.dot_dimension_numbers<[1], [0], [0], [1], [0, 0, 1, 1], [], []>} : vector<128x32xf32>, vector<32x128xf32>, vector<128x128xf32> -> vector<128x128xf32>
    %176 = arith.addf %174, %175 : vector<128x128xf32>
    %177 = math.tanh %176 : vector<128x128xf32>
    %178 = vector.extract_strided_slice %177 {offsets = [0, 0], sizes = [32, 128], strides = [1, 1]} : vector<128x128xf32> to vector<32x128xf32>
    %cst_68 = arith.constant 5.000000e-01 : f32
    %179 = vector.broadcast %cst_68 : f32 to vector<32x128xf32>
    %180 = arith.mulf %179, %178 : vector<32x128xf32>
    %cst_69 = arith.constant 5.000000e-01 : f32
    %181 = vector.broadcast %cst_69 : f32 to vector<32x128xf32>
    %182 = arith.addf %180, %181 : vector<32x128xf32>
    %183 = vector.extract_strided_slice %177 {offsets = [32, 0], sizes = [32, 128], strides = [1, 1]} : vector<128x128xf32> to vector<32x128xf32>
    %cst_70 = arith.constant 5.000000e-01 : f32
    %184 = vector.broadcast %cst_70 : f32 to vector<32x128xf32>
    %185 = arith.mulf %184, %183 : vector<32x128xf32>
    %cst_71 = arith.constant 5.000000e-01 : f32
    %186 = vector.broadcast %cst_71 : f32 to vector<32x128xf32>
    %187 = arith.addf %185, %186 : vector<32x128xf32>
    %188 = vector.extract_strided_slice %177 {offsets = [64, 0], sizes = [32, 128], strides = [1, 1]} : vector<128x128xf32> to vector<32x128xf32>
    %189 = vector.extract_strided_slice %177 {offsets = [96, 0], sizes = [32, 128], strides = [1, 1]} : vector<128x128xf32> to vector<32x128xf32>
    %cst_72 = arith.constant 5.000000e-01 : f32
    %190 = vector.broadcast %cst_72 : f32 to vector<32x128xf32>
    %191 = arith.mulf %190, %189 : vector<32x128xf32>
    %cst_73 = arith.constant 5.000000e-01 : f32
    %192 = vector.broadcast %cst_73 : f32 to vector<32x128xf32>
    %193 = arith.addf %191, %192 : vector<32x128xf32>
    %194 = arith.mulf %187, %164 : vector<32x128xf32>
    %195 = arith.mulf %182, %188 : vector<32x128xf32>
    %196 = arith.addf %194, %195 : vector<32x128xf32>
    %197 = math.tanh %196 : vector<32x128xf32>
    %198 = arith.mulf %193, %197 : vector<32x128xf32>
    %c32_i32_74 = arith.constant 32 : i32
    %199 = arith.muli %c5_i32, %c32_i32_74 : i32
    %200 = tpu.assume_multiple %199, 32 : i32
    %201 = arith.index_cast %200 : i32 to index
    %c0_75 = arith.constant 0 : index
    %202 = vector.load %arg9[%201, %c0_75] : memref<512x128xf32, #tpu.memory_space<vmem>>, vector<32x128xf32>
    tpu.vector_store %arg9[%201, %c0_75], %198 {strides = array<i32>} : memref<512x128xf32, #tpu.memory_space<vmem>>, vector<32x128xf32>,
    %c6_i32 = arith.constant 6 : i32
    %c128_i32_76 = arith.constant 128 : i32
    %203 = arith.muli %c6_i32, %c128_i32_76 : i32
    %204 = tpu.assume_multiple %203, 128 : i32
    %c0_77 = arith.constant 0 : index
    %205 = arith.index_cast %204 : i32 to index
    %206 = vector.load %arg8[%c0_77, %205] : memref<128x2048xf32, #tpu.memory_space<vmem>>, vector<128x128xf32>
    %cst_78 = arith.constant dense<0.000000e+00> : vector<128x128xf32>
    %207 = tpu.matmul %8, %198, %cst_78 {dimension_numbers = #tpu.dot_dimension_numbers<[1], [0], [0], [1], [0, 0, 1, 1], [], []>} : vector<128x32xf32>, vector<32x128xf32>, vector<128x128xf32> -> vector<128x128xf32>
    %208 = arith.addf %206, %207 : vector<128x128xf32>
    %209 = math.tanh %208 : vector<128x128xf32>
    %210 = vector.extract_strided_slice %209 {offsets = [0, 0], sizes = [32, 128], strides = [1, 1]} : vector<128x128xf32> to vector<32x128xf32>
    %cst_79 = arith.constant 5.000000e-01 : f32
    %211 = vector.broadcast %cst_79 : f32 to vector<32x128xf32>
    %212 = arith.mulf %211, %210 : vector<32x128xf32>
    %cst_80 = arith.constant 5.000000e-01 : f32
    %213 = vector.broadcast %cst_80 : f32 to vector<32x128xf32>
    %214 = arith.addf %212, %213 : vector<32x128xf32>
    %215 = vector.extract_strided_slice %209 {offsets = [32, 0], sizes = [32, 128], strides = [1, 1]} : vector<128x128xf32> to vector<32x128xf32>
    %cst_81 = arith.constant 5.000000e-01 : f32
    %216 = vector.broadcast %cst_81 : f32 to vector<32x128xf32>
    %217 = arith.mulf %216, %215 : vector<32x128xf32>
    %cst_82 = arith.constant 5.000000e-01 : f32
    %218 = vector.broadcast %cst_82 : f32 to vector<32x128xf32>
    %219 = arith.addf %217, %218 : vector<32x128xf32>
    %220 = vector.extract_strided_slice %209 {offsets = [64, 0], sizes = [32, 128], strides = [1, 1]} : vector<128x128xf32> to vector<32x128xf32>
    %221 = vector.extract_strided_slice %209 {offsets = [96, 0], sizes = [32, 128], strides = [1, 1]} : vector<128x128xf32> to vector<32x128xf32>
    %cst_83 = arith.constant 5.000000e-01 : f32
    %222 = vector.broadcast %cst_83 : f32 to vector<32x128xf32>
    %223 = arith.mulf %222, %221 : vector<32x128xf32>
    %cst_84 = arith.constant 5.000000e-01 : f32
    %224 = vector.broadcast %cst_84 : f32 to vector<32x128xf32>
    %225 = arith.addf %223, %224 : vector<32x128xf32>
    %226 = arith.mulf %219, %196 : vector<32x128xf32>
    %227 = arith.mulf %214, %220 : vector<32x128xf32>
    %228 = arith.addf %226, %227 : vector<32x128xf32>
    %229 = math.tanh %228 : vector<32x128xf32>
    %230 = arith.mulf %225, %229 : vector<32x128xf32>
    %c32_i32_85 = arith.constant 32 : i32
    %231 = arith.muli %c6_i32, %c32_i32_85 : i32
    %232 = tpu.assume_multiple %231, 32 : i32
    %233 = arith.index_cast %232 : i32 to index
    %c0_86 = arith.constant 0 : index
    %234 = vector.load %arg9[%233, %c0_86] : memref<512x128xf32, #tpu.memory_space<vmem>>, vector<32x128xf32>
    tpu.vector_store %arg9[%233, %c0_86], %230 {strides = array<i32>} : memref<512x128xf32, #tpu.memory_space<vmem>>, vector<32x128xf32>,
    %c7_i32 = arith.constant 7 : i32
    %c128_i32_87 = arith.constant 128 : i32
    %235 = arith.muli %c7_i32, %c128_i32_87 : i32
    %236 = tpu.assume_multiple %235, 128 : i32
    %c0_88 = arith.constant 0 : index
    %237 = arith.index_cast %236 : i32 to index
    %238 = vector.load %arg8[%c0_88, %237] : memref<128x2048xf32, #tpu.memory_space<vmem>>, vector<128x128xf32>
    %cst_89 = arith.constant dense<0.000000e+00> : vector<128x128xf32>
    %239 = tpu.matmul %8, %230, %cst_89 {dimension_numbers = #tpu.dot_dimension_numbers<[1], [0], [0], [1], [0, 0, 1, 1], [], []>} : vector<128x32xf32>, vector<32x128xf32>, vector<128x128xf32> -> vector<128x128xf32>
    %240 = arith.addf %238, %239 : vector<128x128xf32>
    %241 = math.tanh %240 : vector<128x128xf32>
    %242 = vector.extract_strided_slice %241 {offsets = [0, 0], sizes = [32, 128], strides = [1, 1]} : vector<128x128xf32> to vector<32x128xf32>
    %cst_90 = arith.constant 5.000000e-01 : f32
    %243 = vector.broadcast %cst_90 : f32 to vector<32x128xf32>
    %244 = arith.mulf %243, %242 : vector<32x128xf32>
    %cst_91 = arith.constant 5.000000e-01 : f32
    %245 = vector.broadcast %cst_91 : f32 to vector<32x128xf32>
    %246 = arith.addf %244, %245 : vector<32x128xf32>
    %247 = vector.extract_strided_slice %241 {offsets = [32, 0], sizes = [32, 128], strides = [1, 1]} : vector<128x128xf32> to vector<32x128xf32>
    %cst_92 = arith.constant 5.000000e-01 : f32
    %248 = vector.broadcast %cst_92 : f32 to vector<32x128xf32>
    %249 = arith.mulf %248, %247 : vector<32x128xf32>
    %cst_93 = arith.constant 5.000000e-01 : f32
    %250 = vector.broadcast %cst_93 : f32 to vector<32x128xf32>
    %251 = arith.addf %249, %250 : vector<32x128xf32>
    %252 = vector.extract_strided_slice %241 {offsets = [64, 0], sizes = [32, 128], strides = [1, 1]} : vector<128x128xf32> to vector<32x128xf32>
    %253 = vector.extract_strided_slice %241 {offsets = [96, 0], sizes = [32, 128], strides = [1, 1]} : vector<128x128xf32> to vector<32x128xf32>
    %cst_94 = arith.constant 5.000000e-01 : f32
    %254 = vector.broadcast %cst_94 : f32 to vector<32x128xf32>
    %255 = arith.mulf %254, %253 : vector<32x128xf32>
    %cst_95 = arith.constant 5.000000e-01 : f32
    %256 = vector.broadcast %cst_95 : f32 to vector<32x128xf32>
    %257 = arith.addf %255, %256 : vector<32x128xf32>
    %258 = arith.mulf %251, %228 : vector<32x128xf32>
    %259 = arith.mulf %246, %252 : vector<32x128xf32>
    %260 = arith.addf %258, %259 : vector<32x128xf32>
    %261 = math.tanh %260 : vector<32x128xf32>
    %262 = arith.mulf %257, %261 : vector<32x128xf32>
    %c32_i32_96 = arith.constant 32 : i32
    %263 = arith.muli %c7_i32, %c32_i32_96 : i32
    %264 = tpu.assume_multiple %263, 32 : i32
    %265 = arith.index_cast %264 : i32 to index
    %c0_97 = arith.constant 0 : index
    %266 = vector.load %arg9[%265, %c0_97] : memref<512x128xf32, #tpu.memory_space<vmem>>, vector<32x128xf32>
    tpu.vector_store %arg9[%265, %c0_97], %262 {strides = array<i32>} : memref<512x128xf32, #tpu.memory_space<vmem>>, vector<32x128xf32>,
    %c8_i32 = arith.constant 8 : i32
    %c128_i32_98 = arith.constant 128 : i32
    %267 = arith.muli %c8_i32, %c128_i32_98 : i32
    %268 = tpu.assume_multiple %267, 128 : i32
    %c0_99 = arith.constant 0 : index
    %269 = arith.index_cast %268 : i32 to index
    %270 = vector.load %arg8[%c0_99, %269] : memref<128x2048xf32, #tpu.memory_space<vmem>>, vector<128x128xf32>
    %cst_100 = arith.constant dense<0.000000e+00> : vector<128x128xf32>
    %271 = tpu.matmul %8, %262, %cst_100 {dimension_numbers = #tpu.dot_dimension_numbers<[1], [0], [0], [1], [0, 0, 1, 1], [], []>} : vector<128x32xf32>, vector<32x128xf32>, vector<128x128xf32> -> vector<128x128xf32>
    %272 = arith.addf %270, %271 : vector<128x128xf32>
    %273 = math.tanh %272 : vector<128x128xf32>
    %274 = vector.extract_strided_slice %273 {offsets = [0, 0], sizes = [32, 128], strides = [1, 1]} : vector<128x128xf32> to vector<32x128xf32>
    %cst_101 = arith.constant 5.000000e-01 : f32
    %275 = vector.broadcast %cst_101 : f32 to vector<32x128xf32>
    %276 = arith.mulf %275, %274 : vector<32x128xf32>
    %cst_102 = arith.constant 5.000000e-01 : f32
    %277 = vector.broadcast %cst_102 : f32 to vector<32x128xf32>
    %278 = arith.addf %276, %277 : vector<32x128xf32>
    %279 = vector.extract_strided_slice %273 {offsets = [32, 0], sizes = [32, 128], strides = [1, 1]} : vector<128x128xf32> to vector<32x128xf32>
    %cst_103 = arith.constant 5.000000e-01 : f32
    %280 = vector.broadcast %cst_103 : f32 to vector<32x128xf32>
    %281 = arith.mulf %280, %279 : vector<32x128xf32>
    %cst_104 = arith.constant 5.000000e-01 : f32
    %282 = vector.broadcast %cst_104 : f32 to vector<32x128xf32>
    %283 = arith.addf %281, %282 : vector<32x128xf32>
    %284 = vector.extract_strided_slice %273 {offsets = [64, 0], sizes = [32, 128], strides = [1, 1]} : vector<128x128xf32> to vector<32x128xf32>
    %285 = vector.extract_strided_slice %273 {offsets = [96, 0], sizes = [32, 128], strides = [1, 1]} : vector<128x128xf32> to vector<32x128xf32>
    %cst_105 = arith.constant 5.000000e-01 : f32
    %286 = vector.broadcast %cst_105 : f32 to vector<32x128xf32>
    %287 = arith.mulf %286, %285 : vector<32x128xf32>
    %cst_106 = arith.constant 5.000000e-01 : f32
    %288 = vector.broadcast %cst_106 : f32 to vector<32x128xf32>
    %289 = arith.addf %287, %288 : vector<32x128xf32>
    %290 = arith.mulf %283, %260 : vector<32x128xf32>
    %291 = arith.mulf %278, %284 : vector<32x128xf32>
    %292 = arith.addf %290, %291 : vector<32x128xf32>
    %293 = math.tanh %292 : vector<32x128xf32>
    %294 = arith.mulf %289, %293 : vector<32x128xf32>
    %c32_i32_107 = arith.constant 32 : i32
    %295 = arith.muli %c8_i32, %c32_i32_107 : i32
    %296 = tpu.assume_multiple %295, 32 : i32
    %297 = arith.index_cast %296 : i32 to index
    %c0_108 = arith.constant 0 : index
    %298 = vector.load %arg9[%297, %c0_108] : memref<512x128xf32, #tpu.memory_space<vmem>>, vector<32x128xf32>
    tpu.vector_store %arg9[%297, %c0_108], %294 {strides = array<i32>} : memref<512x128xf32, #tpu.memory_space<vmem>>, vector<32x128xf32>,
    %c9_i32 = arith.constant 9 : i32
    %c128_i32_109 = arith.constant 128 : i32
    %299 = arith.muli %c9_i32, %c128_i32_109 : i32
    %300 = tpu.assume_multiple %299, 128 : i32
    %c0_110 = arith.constant 0 : index
    %301 = arith.index_cast %300 : i32 to index
    %302 = vector.load %arg8[%c0_110, %301] : memref<128x2048xf32, #tpu.memory_space<vmem>>, vector<128x128xf32>
    %cst_111 = arith.constant dense<0.000000e+00> : vector<128x128xf32>
    %303 = tpu.matmul %8, %294, %cst_111 {dimension_numbers = #tpu.dot_dimension_numbers<[1], [0], [0], [1], [0, 0, 1, 1], [], []>} : vector<128x32xf32>, vector<32x128xf32>, vector<128x128xf32> -> vector<128x128xf32>
    %304 = arith.addf %302, %303 : vector<128x128xf32>
    %305 = math.tanh %304 : vector<128x128xf32>
    %306 = vector.extract_strided_slice %305 {offsets = [0, 0], sizes = [32, 128], strides = [1, 1]} : vector<128x128xf32> to vector<32x128xf32>
    %cst_112 = arith.constant 5.000000e-01 : f32
    %307 = vector.broadcast %cst_112 : f32 to vector<32x128xf32>
    %308 = arith.mulf %307, %306 : vector<32x128xf32>
    %cst_113 = arith.constant 5.000000e-01 : f32
    %309 = vector.broadcast %cst_113 : f32 to vector<32x128xf32>
    %310 = arith.addf %308, %309 : vector<32x128xf32>
    %311 = vector.extract_strided_slice %305 {offsets = [32, 0], sizes = [32, 128], strides = [1, 1]} : vector<128x128xf32> to vector<32x128xf32>
    %cst_114 = arith.constant 5.000000e-01 : f32
    %312 = vector.broadcast %cst_114 : f32 to vector<32x128xf32>
    %313 = arith.mulf %312, %311 : vector<32x128xf32>
    %cst_115 = arith.constant 5.000000e-01 : f32
    %314 = vector.broadcast %cst_115 : f32 to vector<32x128xf32>
    %315 = arith.addf %313, %314 : vector<32x128xf32>
    %316 = vector.extract_strided_slice %305 {offsets = [64, 0], sizes = [32, 128], strides = [1, 1]} : vector<128x128xf32> to vector<32x128xf32>
    %317 = vector.extract_strided_slice %305 {offsets = [96, 0], sizes = [32, 128], strides = [1, 1]} : vector<128x128xf32> to vector<32x128xf32>
    %cst_116 = arith.constant 5.000000e-01 : f32
    %318 = vector.broadcast %cst_116 : f32 to vector<32x128xf32>
    %319 = arith.mulf %318, %317 : vector<32x128xf32>
    %cst_117 = arith.constant 5.000000e-01 : f32
    %320 = vector.broadcast %cst_117 : f32 to vector<32x128xf32>
    %321 = arith.addf %319, %320 : vector<32x128xf32>
    %322 = arith.mulf %315, %292 : vector<32x128xf32>
    %323 = arith.mulf %310, %316 : vector<32x128xf32>
    %324 = arith.addf %322, %323 : vector<32x128xf32>
    %325 = math.tanh %324 : vector<32x128xf32>
    %326 = arith.mulf %321, %325 : vector<32x128xf32>
    %c32_i32_118 = arith.constant 32 : i32
    %327 = arith.muli %c9_i32, %c32_i32_118 : i32
    %328 = tpu.assume_multiple %327, 32 : i32
    %329 = arith.index_cast %328 : i32 to index
    %c0_119 = arith.constant 0 : index
    %330 = vector.load %arg9[%329, %c0_119] : memref<512x128xf32, #tpu.memory_space<vmem>>, vector<32x128xf32>
    tpu.vector_store %arg9[%329, %c0_119], %326 {strides = array<i32>} : memref<512x128xf32, #tpu.memory_space<vmem>>, vector<32x128xf32>,
    %c10_i32 = arith.constant 10 : i32
    %c128_i32_120 = arith.constant 128 : i32
    %331 = arith.muli %c10_i32, %c128_i32_120 : i32
    %332 = tpu.assume_multiple %331, 128 : i32
    %c0_121 = arith.constant 0 : index
    %333 = arith.index_cast %332 : i32 to index
    %334 = vector.load %arg8[%c0_121, %333] : memref<128x2048xf32, #tpu.memory_space<vmem>>, vector<128x128xf32>
    %cst_122 = arith.constant dense<0.000000e+00> : vector<128x128xf32>
    %335 = tpu.matmul %8, %326, %cst_122 {dimension_numbers = #tpu.dot_dimension_numbers<[1], [0], [0], [1], [0, 0, 1, 1], [], []>} : vector<128x32xf32>, vector<32x128xf32>, vector<128x128xf32> -> vector<128x128xf32>
    %336 = arith.addf %334, %335 : vector<128x128xf32>
    %337 = math.tanh %336 : vector<128x128xf32>
    %338 = vector.extract_strided_slice %337 {offsets = [0, 0], sizes = [32, 128], strides = [1, 1]} : vector<128x128xf32> to vector<32x128xf32>
    %cst_123 = arith.constant 5.000000e-01 : f32
    %339 = vector.broadcast %cst_123 : f32 to vector<32x128xf32>
    %340 = arith.mulf %339, %338 : vector<32x128xf32>
    %cst_124 = arith.constant 5.000000e-01 : f32
    %341 = vector.broadcast %cst_124 : f32 to vector<32x128xf32>
    %342 = arith.addf %340, %341 : vector<32x128xf32>
    %343 = vector.extract_strided_slice %337 {offsets = [32, 0], sizes = [32, 128], strides = [1, 1]} : vector<128x128xf32> to vector<32x128xf32>
    %cst_125 = arith.constant 5.000000e-01 : f32
    %344 = vector.broadcast %cst_125 : f32 to vector<32x128xf32>
    %345 = arith.mulf %344, %343 : vector<32x128xf32>
    %cst_126 = arith.constant 5.000000e-01 : f32
    %346 = vector.broadcast %cst_126 : f32 to vector<32x128xf32>
    %347 = arith.addf %345, %346 : vector<32x128xf32>
    %348 = vector.extract_strided_slice %337 {offsets = [64, 0], sizes = [32, 128], strides = [1, 1]} : vector<128x128xf32> to vector<32x128xf32>
    %349 = vector.extract_strided_slice %337 {offsets = [96, 0], sizes = [32, 128], strides = [1, 1]} : vector<128x128xf32> to vector<32x128xf32>
    %cst_127 = arith.constant 5.000000e-01 : f32
    %350 = vector.broadcast %cst_127 : f32 to vector<32x128xf32>
    %351 = arith.mulf %350, %349 : vector<32x128xf32>
    %cst_128 = arith.constant 5.000000e-01 : f32
    %352 = vector.broadcast %cst_128 : f32 to vector<32x128xf32>
    %353 = arith.addf %351, %352 : vector<32x128xf32>
    %354 = arith.mulf %347, %324 : vector<32x128xf32>
    %355 = arith.mulf %342, %348 : vector<32x128xf32>
    %356 = arith.addf %354, %355 : vector<32x128xf32>
    %357 = math.tanh %356 : vector<32x128xf32>
    %358 = arith.mulf %353, %357 : vector<32x128xf32>
    %c32_i32_129 = arith.constant 32 : i32
    %359 = arith.muli %c10_i32, %c32_i32_129 : i32
    %360 = tpu.assume_multiple %359, 32 : i32
    %361 = arith.index_cast %360 : i32 to index
    %c0_130 = arith.constant 0 : index
    %362 = vector.load %arg9[%361, %c0_130] : memref<512x128xf32, #tpu.memory_space<vmem>>, vector<32x128xf32>
    tpu.vector_store %arg9[%361, %c0_130], %358 {strides = array<i32>} : memref<512x128xf32, #tpu.memory_space<vmem>>, vector<32x128xf32>,
    %c11_i32 = arith.constant 11 : i32
    %c128_i32_131 = arith.constant 128 : i32
    %363 = arith.muli %c11_i32, %c128_i32_131 : i32
    %364 = tpu.assume_multiple %363, 128 : i32
    %c0_132 = arith.constant 0 : index
    %365 = arith.index_cast %364 : i32 to index
    %366 = vector.load %arg8[%c0_132, %365] : memref<128x2048xf32, #tpu.memory_space<vmem>>, vector<128x128xf32>
    %cst_133 = arith.constant dense<0.000000e+00> : vector<128x128xf32>
    %367 = tpu.matmul %8, %358, %cst_133 {dimension_numbers = #tpu.dot_dimension_numbers<[1], [0], [0], [1], [0, 0, 1, 1], [], []>} : vector<128x32xf32>, vector<32x128xf32>, vector<128x128xf32> -> vector<128x128xf32>
    %368 = arith.addf %366, %367 : vector<128x128xf32>
    %369 = math.tanh %368 : vector<128x128xf32>
    %370 = vector.extract_strided_slice %369 {offsets = [0, 0], sizes = [32, 128], strides = [1, 1]} : vector<128x128xf32> to vector<32x128xf32>
    %cst_134 = arith.constant 5.000000e-01 : f32
    %371 = vector.broadcast %cst_134 : f32 to vector<32x128xf32>
    %372 = arith.mulf %371, %370 : vector<32x128xf32>
    %cst_135 = arith.constant 5.000000e-01 : f32
    %373 = vector.broadcast %cst_135 : f32 to vector<32x128xf32>
    %374 = arith.addf %372, %373 : vector<32x128xf32>
    %375 = vector.extract_strided_slice %369 {offsets = [32, 0], sizes = [32, 128], strides = [1, 1]} : vector<128x128xf32> to vector<32x128xf32>
    %cst_136 = arith.constant 5.000000e-01 : f32
    %376 = vector.broadcast %cst_136 : f32 to vector<32x128xf32>
    %377 = arith.mulf %376, %375 : vector<32x128xf32>
    %cst_137 = arith.constant 5.000000e-01 : f32
    %378 = vector.broadcast %cst_137 : f32 to vector<32x128xf32>
    %379 = arith.addf %377, %378 : vector<32x128xf32>
    %380 = vector.extract_strided_slice %369 {offsets = [64, 0], sizes = [32, 128], strides = [1, 1]} : vector<128x128xf32> to vector<32x128xf32>
    %381 = vector.extract_strided_slice %369 {offsets = [96, 0], sizes = [32, 128], strides = [1, 1]} : vector<128x128xf32> to vector<32x128xf32>
    %cst_138 = arith.constant 5.000000e-01 : f32
    %382 = vector.broadcast %cst_138 : f32 to vector<32x128xf32>
    %383 = arith.mulf %382, %381 : vector<32x128xf32>
    %cst_139 = arith.constant 5.000000e-01 : f32
    %384 = vector.broadcast %cst_139 : f32 to vector<32x128xf32>
    %385 = arith.addf %383, %384 : vector<32x128xf32>
    %386 = arith.mulf %379, %356 : vector<32x128xf32>
    %387 = arith.mulf %374, %380 : vector<32x128xf32>
    %388 = arith.addf %386, %387 : vector<32x128xf32>
    %389 = math.tanh %388 : vector<32x128xf32>
    %390 = arith.mulf %385, %389 : vector<32x128xf32>
    %c32_i32_140 = arith.constant 32 : i32
    %391 = arith.muli %c11_i32, %c32_i32_140 : i32
    %392 = tpu.assume_multiple %391, 32 : i32
    %393 = arith.index_cast %392 : i32 to index
    %c0_141 = arith.constant 0 : index
    %394 = vector.load %arg9[%393, %c0_141] : memref<512x128xf32, #tpu.memory_space<vmem>>, vector<32x128xf32>
    tpu.vector_store %arg9[%393, %c0_141], %390 {strides = array<i32>} : memref<512x128xf32, #tpu.memory_space<vmem>>, vector<32x128xf32>,
    %c12_i32 = arith.constant 12 : i32
    %c128_i32_142 = arith.constant 128 : i32
    %395 = arith.muli %c12_i32, %c128_i32_142 : i32
    %396 = tpu.assume_multiple %395, 128 : i32
    %c0_143 = arith.constant 0 : index
    %397 = arith.index_cast %396 : i32 to index
    %398 = vector.load %arg8[%c0_143, %397] : memref<128x2048xf32, #tpu.memory_space<vmem>>, vector<128x128xf32>
    %cst_144 = arith.constant dense<0.000000e+00> : vector<128x128xf32>
    %399 = tpu.matmul %8, %390, %cst_144 {dimension_numbers = #tpu.dot_dimension_numbers<[1], [0], [0], [1], [0, 0, 1, 1], [], []>} : vector<128x32xf32>, vector<32x128xf32>, vector<128x128xf32> -> vector<128x128xf32>
    %400 = arith.addf %398, %399 : vector<128x128xf32>
    %401 = math.tanh %400 : vector<128x128xf32>
    %402 = vector.extract_strided_slice %401 {offsets = [0, 0], sizes = [32, 128], strides = [1, 1]} : vector<128x128xf32> to vector<32x128xf32>
    %cst_145 = arith.constant 5.000000e-01 : f32
    %403 = vector.broadcast %cst_145 : f32 to vector<32x128xf32>
    %404 = arith.mulf %403, %402 : vector<32x128xf32>
    %cst_146 = arith.constant 5.000000e-01 : f32
    %405 = vector.broadcast %cst_146 : f32 to vector<32x128xf32>
    %406 = arith.addf %404, %405 : vector<32x128xf32>
    %407 = vector.extract_strided_slice %401 {offsets = [32, 0], sizes = [32, 128], strides = [1, 1]} : vector<128x128xf32> to vector<32x128xf32>
    %cst_147 = arith.constant 5.000000e-01 : f32
    %408 = vector.broadcast %cst_147 : f32 to vector<32x128xf32>
    %409 = arith.mulf %408, %407 : vector<32x128xf32>
    %cst_148 = arith.constant 5.000000e-01 : f32
    %410 = vector.broadcast %cst_148 : f32 to vector<32x128xf32>
    %411 = arith.addf %409, %410 : vector<32x128xf32>
    %412 = vector.extract_strided_slice %401 {offsets = [64, 0], sizes = [32, 128], strides = [1, 1]} : vector<128x128xf32> to vector<32x128xf32>
    %413 = vector.extract_strided_slice %401 {offsets = [96, 0], sizes = [32, 128], strides = [1, 1]} : vector<128x128xf32> to vector<32x128xf32>
    %cst_149 = arith.constant 5.000000e-01 : f32
    %414 = vector.broadcast %cst_149 : f32 to vector<32x128xf32>
    %415 = arith.mulf %414, %413 : vector<32x128xf32>
    %cst_150 = arith.constant 5.000000e-01 : f32
    %416 = vector.broadcast %cst_150 : f32 to vector<32x128xf32>
    %417 = arith.addf %415, %416 : vector<32x128xf32>
    %418 = arith.mulf %411, %388 : vector<32x128xf32>
    %419 = arith.mulf %406, %412 : vector<32x128xf32>
    %420 = arith.addf %418, %419 : vector<32x128xf32>
    %421 = math.tanh %420 : vector<32x128xf32>
    %422 = arith.mulf %417, %421 : vector<32x128xf32>
    %c32_i32_151 = arith.constant 32 : i32
    %423 = arith.muli %c12_i32, %c32_i32_151 : i32
    %424 = tpu.assume_multiple %423, 32 : i32
    %425 = arith.index_cast %424 : i32 to index
    %c0_152 = arith.constant 0 : index
    %426 = vector.load %arg9[%425, %c0_152] : memref<512x128xf32, #tpu.memory_space<vmem>>, vector<32x128xf32>
    tpu.vector_store %arg9[%425, %c0_152], %422 {strides = array<i32>} : memref<512x128xf32, #tpu.memory_space<vmem>>, vector<32x128xf32>,
    %c13_i32 = arith.constant 13 : i32
    %c128_i32_153 = arith.constant 128 : i32
    %427 = arith.muli %c13_i32, %c128_i32_153 : i32
    %428 = tpu.assume_multiple %427, 128 : i32
    %c0_154 = arith.constant 0 : index
    %429 = arith.index_cast %428 : i32 to index
    %430 = vector.load %arg8[%c0_154, %429] : memref<128x2048xf32, #tpu.memory_space<vmem>>, vector<128x128xf32>
    %cst_155 = arith.constant dense<0.000000e+00> : vector<128x128xf32>
    %431 = tpu.matmul %8, %422, %cst_155 {dimension_numbers = #tpu.dot_dimension_numbers<[1], [0], [0], [1], [0, 0, 1, 1], [], []>} : vector<128x32xf32>, vector<32x128xf32>, vector<128x128xf32> -> vector<128x128xf32>
    %432 = arith.addf %430, %431 : vector<128x128xf32>
    %433 = math.tanh %432 : vector<128x128xf32>
    %434 = vector.extract_strided_slice %433 {offsets = [0, 0], sizes = [32, 128], strides = [1, 1]} : vector<128x128xf32> to vector<32x128xf32>
    %cst_156 = arith.constant 5.000000e-01 : f32
    %435 = vector.broadcast %cst_156 : f32 to vector<32x128xf32>
    %436 = arith.mulf %435, %434 : vector<32x128xf32>
    %cst_157 = arith.constant 5.000000e-01 : f32
    %437 = vector.broadcast %cst_157 : f32 to vector<32x128xf32>
    %438 = arith.addf %436, %437 : vector<32x128xf32>
    %439 = vector.extract_strided_slice %433 {offsets = [32, 0], sizes = [32, 128], strides = [1, 1]} : vector<128x128xf32> to vector<32x128xf32>
    %cst_158 = arith.constant 5.000000e-01 : f32
    %440 = vector.broadcast %cst_158 : f32 to vector<32x128xf32>
    %441 = arith.mulf %440, %439 : vector<32x128xf32>
    %cst_159 = arith.constant 5.000000e-01 : f32
    %442 = vector.broadcast %cst_159 : f32 to vector<32x128xf32>
    %443 = arith.addf %441, %442 : vector<32x128xf32>
    %444 = vector.extract_strided_slice %433 {offsets = [64, 0], sizes = [32, 128], strides = [1, 1]} : vector<128x128xf32> to vector<32x128xf32>
    %445 = vector.extract_strided_slice %433 {offsets = [96, 0], sizes = [32, 128], strides = [1, 1]} : vector<128x128xf32> to vector<32x128xf32>
    %cst_160 = arith.constant 5.000000e-01 : f32
    %446 = vector.broadcast %cst_160 : f32 to vector<32x128xf32>
    %447 = arith.mulf %446, %445 : vector<32x128xf32>
    %cst_161 = arith.constant 5.000000e-01 : f32
    %448 = vector.broadcast %cst_161 : f32 to vector<32x128xf32>
    %449 = arith.addf %447, %448 : vector<32x128xf32>
    %450 = arith.mulf %443, %420 : vector<32x128xf32>
    %451 = arith.mulf %438, %444 : vector<32x128xf32>
    %452 = arith.addf %450, %451 : vector<32x128xf32>
    %453 = math.tanh %452 : vector<32x128xf32>
    %454 = arith.mulf %449, %453 : vector<32x128xf32>
    %c32_i32_162 = arith.constant 32 : i32
    %455 = arith.muli %c13_i32, %c32_i32_162 : i32
    %456 = tpu.assume_multiple %455, 32 : i32
    %457 = arith.index_cast %456 : i32 to index
    %c0_163 = arith.constant 0 : index
    %458 = vector.load %arg9[%457, %c0_163] : memref<512x128xf32, #tpu.memory_space<vmem>>, vector<32x128xf32>
    tpu.vector_store %arg9[%457, %c0_163], %454 {strides = array<i32>} : memref<512x128xf32, #tpu.memory_space<vmem>>, vector<32x128xf32>,
    %c14_i32 = arith.constant 14 : i32
    %c128_i32_164 = arith.constant 128 : i32
    %459 = arith.muli %c14_i32, %c128_i32_164 : i32
    %460 = tpu.assume_multiple %459, 128 : i32
    %c0_165 = arith.constant 0 : index
    %461 = arith.index_cast %460 : i32 to index
    %462 = vector.load %arg8[%c0_165, %461] : memref<128x2048xf32, #tpu.memory_space<vmem>>, vector<128x128xf32>
    %cst_166 = arith.constant dense<0.000000e+00> : vector<128x128xf32>
    %463 = tpu.matmul %8, %454, %cst_166 {dimension_numbers = #tpu.dot_dimension_numbers<[1], [0], [0], [1], [0, 0, 1, 1], [], []>} : vector<128x32xf32>, vector<32x128xf32>, vector<128x128xf32> -> vector<128x128xf32>
    %464 = arith.addf %462, %463 : vector<128x128xf32>
    %465 = math.tanh %464 : vector<128x128xf32>
    %466 = vector.extract_strided_slice %465 {offsets = [0, 0], sizes = [32, 128], strides = [1, 1]} : vector<128x128xf32> to vector<32x128xf32>
    %cst_167 = arith.constant 5.000000e-01 : f32
    %467 = vector.broadcast %cst_167 : f32 to vector<32x128xf32>
    %468 = arith.mulf %467, %466 : vector<32x128xf32>
    %cst_168 = arith.constant 5.000000e-01 : f32
    %469 = vector.broadcast %cst_168 : f32 to vector<32x128xf32>
    %470 = arith.addf %468, %469 : vector<32x128xf32>
    %471 = vector.extract_strided_slice %465 {offsets = [32, 0], sizes = [32, 128], strides = [1, 1]} : vector<128x128xf32> to vector<32x128xf32>
    %cst_169 = arith.constant 5.000000e-01 : f32
    %472 = vector.broadcast %cst_169 : f32 to vector<32x128xf32>
    %473 = arith.mulf %472, %471 : vector<32x128xf32>
    %cst_170 = arith.constant 5.000000e-01 : f32
    %474 = vector.broadcast %cst_170 : f32 to vector<32x128xf32>
    %475 = arith.addf %473, %474 : vector<32x128xf32>
    %476 = vector.extract_strided_slice %465 {offsets = [64, 0], sizes = [32, 128], strides = [1, 1]} : vector<128x128xf32> to vector<32x128xf32>
    %477 = vector.extract_strided_slice %465 {offsets = [96, 0], sizes = [32, 128], strides = [1, 1]} : vector<128x128xf32> to vector<32x128xf32>
    %cst_171 = arith.constant 5.000000e-01 : f32
    %478 = vector.broadcast %cst_171 : f32 to vector<32x128xf32>
    %479 = arith.mulf %478, %477 : vector<32x128xf32>
    %cst_172 = arith.constant 5.000000e-01 : f32
    %480 = vector.broadcast %cst_172 : f32 to vector<32x128xf32>
    %481 = arith.addf %479, %480 : vector<32x128xf32>
    %482 = arith.mulf %475, %452 : vector<32x128xf32>
    %483 = arith.mulf %470, %476 : vector<32x128xf32>
    %484 = arith.addf %482, %483 : vector<32x128xf32>
    %485 = math.tanh %484 : vector<32x128xf32>
    %486 = arith.mulf %481, %485 : vector<32x128xf32>
    %c32_i32_173 = arith.constant 32 : i32
    %487 = arith.muli %c14_i32, %c32_i32_173 : i32
    %488 = tpu.assume_multiple %487, 32 : i32
    %489 = arith.index_cast %488 : i32 to index
    %c0_174 = arith.constant 0 : index
    %490 = vector.load %arg9[%489, %c0_174] : memref<512x128xf32, #tpu.memory_space<vmem>>, vector<32x128xf32>
    tpu.vector_store %arg9[%489, %c0_174], %486 {strides = array<i32>} : memref<512x128xf32, #tpu.memory_space<vmem>>, vector<32x128xf32>,
    %c15_i32 = arith.constant 15 : i32
    %c128_i32_175 = arith.constant 128 : i32
    %491 = arith.muli %c15_i32, %c128_i32_175 : i32
    %492 = tpu.assume_multiple %491, 128 : i32
    %c0_176 = arith.constant 0 : index
    %493 = arith.index_cast %492 : i32 to index
    %494 = vector.load %arg8[%c0_176, %493] : memref<128x2048xf32, #tpu.memory_space<vmem>>, vector<128x128xf32>
    %cst_177 = arith.constant dense<0.000000e+00> : vector<128x128xf32>
    %495 = tpu.matmul %8, %486, %cst_177 {dimension_numbers = #tpu.dot_dimension_numbers<[1], [0], [0], [1], [0, 0, 1, 1], [], []>} : vector<128x32xf32>, vector<32x128xf32>, vector<128x128xf32> -> vector<128x128xf32>
    %496 = arith.addf %494, %495 : vector<128x128xf32>
    %497 = math.tanh %496 : vector<128x128xf32>
    %498 = vector.extract_strided_slice %497 {offsets = [0, 0], sizes = [32, 128], strides = [1, 1]} : vector<128x128xf32> to vector<32x128xf32>
    %cst_178 = arith.constant 5.000000e-01 : f32
    %499 = vector.broadcast %cst_178 : f32 to vector<32x128xf32>
    %500 = arith.mulf %499, %498 : vector<32x128xf32>
    %cst_179 = arith.constant 5.000000e-01 : f32
    %501 = vector.broadcast %cst_179 : f32 to vector<32x128xf32>
    %502 = arith.addf %500, %501 : vector<32x128xf32>
    %503 = vector.extract_strided_slice %497 {offsets = [32, 0], sizes = [32, 128], strides = [1, 1]} : vector<128x128xf32> to vector<32x128xf32>
    %cst_180 = arith.constant 5.000000e-01 : f32
    %504 = vector.broadcast %cst_180 : f32 to vector<32x128xf32>
    %505 = arith.mulf %504, %503 : vector<32x128xf32>
    %cst_181 = arith.constant 5.000000e-01 : f32
    %506 = vector.broadcast %cst_181 : f32 to vector<32x128xf32>
    %507 = arith.addf %505, %506 : vector<32x128xf32>
    %508 = vector.extract_strided_slice %497 {offsets = [64, 0], sizes = [32, 128], strides = [1, 1]} : vector<128x128xf32> to vector<32x128xf32>
    %509 = vector.extract_strided_slice %497 {offsets = [96, 0], sizes = [32, 128], strides = [1, 1]} : vector<128x128xf32> to vector<32x128xf32>
    %cst_182 = arith.constant 5.000000e-01 : f32
    %510 = vector.broadcast %cst_182 : f32 to vector<32x128xf32>
    %511 = arith.mulf %510, %509 : vector<32x128xf32>
    %cst_183 = arith.constant 5.000000e-01 : f32
    %512 = vector.broadcast %cst_183 : f32 to vector<32x128xf32>
    %513 = arith.addf %511, %512 : vector<32x128xf32>
    %514 = arith.mulf %507, %484 : vector<32x128xf32>
    %515 = arith.mulf %502, %508 : vector<32x128xf32>
    %516 = arith.addf %514, %515 : vector<32x128xf32>
    %517 = math.tanh %516 : vector<32x128xf32>
    %518 = arith.mulf %513, %517 : vector<32x128xf32>
    %c32_i32_184 = arith.constant 32 : i32
    %519 = arith.muli %c15_i32, %c32_i32_184 : i32
    %520 = tpu.assume_multiple %519, 32 : i32
    %521 = arith.index_cast %520 : i32 to index
    %c0_185 = arith.constant 0 : index
    %522 = vector.load %arg9[%521, %c0_185] : memref<512x128xf32, #tpu.memory_space<vmem>>, vector<32x128xf32>
    tpu.vector_store %arg9[%521, %c0_185], %518 {strides = array<i32>} : memref<512x128xf32, #tpu.memory_space<vmem>>, vector<32x128xf32>,
    %c16_i32 = arith.constant 16 : i32
    %c0_186 = arith.constant 0 : index
    %c0_187 = arith.constant 0 : index
    %523 = vector.load %arg5[%c0_186, %c0_187] : memref<16x512xf32, #tpu.memory_space<vmem>>, vector<16x512xf32>
    %c0_188 = arith.constant 0 : index
    %c0_189 = arith.constant 0 : index
    %524 = vector.load %arg9[%c0_188, %c0_189] : memref<512x128xf32, #tpu.memory_space<vmem>>, vector<512x128xf32>
    %cst_190 = arith.constant dense<0.000000e+00> : vector<16x128xf32>
    %525 = tpu.matmul %523, %524, %cst_190 {dimension_numbers = #tpu.dot_dimension_numbers<[1], [0], [0], [1], [0, 0, 1, 1], [], []>} : vector<16x512xf32>, vector<512x128xf32>, vector<16x128xf32> -> vector<16x128xf32>
    %c0_191 = arith.constant 0 : index
    %c0_192 = arith.constant 0 : index
    %526 = vector.load %arg6[%c0_191, %c0_192] : memref<16x1xf32, #tpu.memory_space<vmem>>, vector<16x1xf32>
    %527 = vector.broadcast %526 : vector<16x1xf32> to vector<16x128xf32>
    %528 = arith.addf %525, %527 : vector<16x128xf32>
    %cst_193 = arith.constant 0.000000e+00 : f32
    %529 = vector.broadcast %cst_193 : f32 to vector<16x128xf32>
    %530 = arith.maximumf %528, %529 : vector<16x128xf32>
    %cst_194 = arith.constant dense<0xFF800000> : vector<128xf32>
    %531 = vector.multi_reduction <maximumf>, %530, %cst_194 [0] : vector<16x128xf32> to vector<128xf32>
    %532 = vector.shape_cast %531 : vector<128xf32> to vector<1x128xf32>
    %533 = vector.broadcast %532 : vector<1x128xf32> to vector<16x128xf32>
    %534 = arith.subf %530, %533 : vector<16x128xf32>
    %535 = math.exp %534 : vector<16x128xf32>
    %cst_195 = arith.constant dense<0.000000e+00> : vector<128xf32>
    %536 = vector.multi_reduction <add>, %535, %cst_195 [0] : vector<16x128xf32> to vector<128xf32>
    %537 = vector.shape_cast %536 : vector<128xf32> to vector<1x128xf32>
    %538 = tpu.reciprocal %537 {approx = true} : vector<1x128xf32> -> vector<1x128xf32>
    %539 = vector.broadcast %538 : vector<1x128xf32> to vector<16x128xf32>
    %540 = arith.mulf %535, %539 : vector<16x128xf32>
    %cst_196 = arith.constant 0.000000e+00 : f32
    %541 = vector.broadcast %cst_196 : f32 to vector<32x128xf32>
    %c0_197 = arith.constant 0 : index
    %c0_198 = arith.constant 0 : index
    %542 = vector.load %arg9[%c0_197, %c0_198] : memref<512x128xf32, #tpu.memory_space<vmem>>, vector<32x128xf32>
    %543 = vector.extract_strided_slice %540 {offsets = [0, 0], sizes = [1, 128], strides = [1, 1]} : vector<16x128xf32> to vector<1x128xf32>
    %544 = vector.broadcast %543 : vector<1x128xf32> to vector<32x128xf32>
    %545 = arith.mulf %542, %544 : vector<32x128xf32>
    %546 = arith.addf %541, %545 : vector<32x128xf32>
    %c32 = arith.constant 32 : index
    %c0_199 = arith.constant 0 : index
    %547 = vector.load %arg9[%c32, %c0_199] : memref<512x128xf32, #tpu.memory_space<vmem>>, vector<32x128xf32>
    %548 = vector.extract_strided_slice %540 {offsets = [1, 0], sizes = [1, 128], strides = [1, 1]} : vector<16x128xf32> to vector<1x128xf32>
    %549 = vector.broadcast %548 : vector<1x128xf32> to vector<32x128xf32>
    %550 = arith.mulf %547, %549 : vector<32x128xf32>
    %551 = arith.addf %546, %550 : vector<32x128xf32>
    %c64 = arith.constant 64 : index
    %c0_200 = arith.constant 0 : index
    %552 = vector.load %arg9[%c64, %c0_200] : memref<512x128xf32, #tpu.memory_space<vmem>>, vector<32x128xf32>
    %553 = vector.extract_strided_slice %540 {offsets = [2, 0], sizes = [1, 128], strides = [1, 1]} : vector<16x128xf32> to vector<1x128xf32>
    %554 = vector.broadcast %553 : vector<1x128xf32> to vector<32x128xf32>
    %555 = arith.mulf %552, %554 : vector<32x128xf32>
    %556 = arith.addf %551, %555 : vector<32x128xf32>
    %c96 = arith.constant 96 : index
    %c0_201 = arith.constant 0 : index
    %557 = vector.load %arg9[%c96, %c0_201] : memref<512x128xf32, #tpu.memory_space<vmem>>, vector<32x128xf32>
    %558 = vector.extract_strided_slice %540 {offsets = [3, 0], sizes = [1, 128], strides = [1, 1]} : vector<16x128xf32> to vector<1x128xf32>
    %559 = vector.broadcast %558 : vector<1x128xf32> to vector<32x128xf32>
    %560 = arith.mulf %557, %559 : vector<32x128xf32>
    %561 = arith.addf %556, %560 : vector<32x128xf32>
    %c128 = arith.constant 128 : index
    %c0_202 = arith.constant 0 : index
    %562 = vector.load %arg9[%c128, %c0_202] : memref<512x128xf32, #tpu.memory_space<vmem>>, vector<32x128xf32>
    %563 = vector.extract_strided_slice %540 {offsets = [4, 0], sizes = [1, 128], strides = [1, 1]} : vector<16x128xf32> to vector<1x128xf32>
    %564 = vector.broadcast %563 : vector<1x128xf32> to vector<32x128xf32>
    %565 = arith.mulf %562, %564 : vector<32x128xf32>
    %566 = arith.addf %561, %565 : vector<32x128xf32>
    %c160 = arith.constant 160 : index
    %c0_203 = arith.constant 0 : index
    %567 = vector.load %arg9[%c160, %c0_203] : memref<512x128xf32, #tpu.memory_space<vmem>>, vector<32x128xf32>
    %568 = vector.extract_strided_slice %540 {offsets = [5, 0], sizes = [1, 128], strides = [1, 1]} : vector<16x128xf32> to vector<1x128xf32>
    %569 = vector.broadcast %568 : vector<1x128xf32> to vector<32x128xf32>
    %570 = arith.mulf %567, %569 : vector<32x128xf32>
    %571 = arith.addf %566, %570 : vector<32x128xf32>
    %c192 = arith.constant 192 : index
    %c0_204 = arith.constant 0 : index
    %572 = vector.load %arg9[%c192, %c0_204] : memref<512x128xf32, #tpu.memory_space<vmem>>, vector<32x128xf32>
    %573 = vector.extract_strided_slice %540 {offsets = [6, 0], sizes = [1, 128], strides = [1, 1]} : vector<16x128xf32> to vector<1x128xf32>
    %574 = vector.broadcast %573 : vector<1x128xf32> to vector<32x128xf32>
    %575 = arith.mulf %572, %574 : vector<32x128xf32>
    %576 = arith.addf %571, %575 : vector<32x128xf32>
    %c224 = arith.constant 224 : index
    %c0_205 = arith.constant 0 : index
    %577 = vector.load %arg9[%c224, %c0_205] : memref<512x128xf32, #tpu.memory_space<vmem>>, vector<32x128xf32>
    %578 = vector.extract_strided_slice %540 {offsets = [7, 0], sizes = [1, 128], strides = [1, 1]} : vector<16x128xf32> to vector<1x128xf32>
    %579 = vector.broadcast %578 : vector<1x128xf32> to vector<32x128xf32>
    %580 = arith.mulf %577, %579 : vector<32x128xf32>
    %581 = arith.addf %576, %580 : vector<32x128xf32>
    %c256 = arith.constant 256 : index
    %c0_206 = arith.constant 0 : index
    %582 = vector.load %arg9[%c256, %c0_206] : memref<512x128xf32, #tpu.memory_space<vmem>>, vector<32x128xf32>
    %583 = vector.extract_strided_slice %540 {offsets = [8, 0], sizes = [1, 128], strides = [1, 1]} : vector<16x128xf32> to vector<1x128xf32>
    %584 = vector.broadcast %583 : vector<1x128xf32> to vector<32x128xf32>
    %585 = arith.mulf %582, %584 : vector<32x128xf32>
    %586 = arith.addf %581, %585 : vector<32x128xf32>
    %c288 = arith.constant 288 : index
    %c0_207 = arith.constant 0 : index
    %587 = vector.load %arg9[%c288, %c0_207] : memref<512x128xf32, #tpu.memory_space<vmem>>, vector<32x128xf32>
    %588 = vector.extract_strided_slice %540 {offsets = [9, 0], sizes = [1, 128], strides = [1, 1]} : vector<16x128xf32> to vector<1x128xf32>
    %589 = vector.broadcast %588 : vector<1x128xf32> to vector<32x128xf32>
    %590 = arith.mulf %587, %589 : vector<32x128xf32>
    %591 = arith.addf %586, %590 : vector<32x128xf32>
    %c320 = arith.constant 320 : index
    %c0_208 = arith.constant 0 : index
    %592 = vector.load %arg9[%c320, %c0_208] : memref<512x128xf32, #tpu.memory_space<vmem>>, vector<32x128xf32>
    %593 = vector.extract_strided_slice %540 {offsets = [10, 0], sizes = [1, 128], strides = [1, 1]} : vector<16x128xf32> to vector<1x128xf32>
    %594 = vector.broadcast %593 : vector<1x128xf32> to vector<32x128xf32>
    %595 = arith.mulf %592, %594 : vector<32x128xf32>
    %596 = arith.addf %591, %595 : vector<32x128xf32>
    %c352 = arith.constant 352 : index
    %c0_209 = arith.constant 0 : index
    %597 = vector.load %arg9[%c352, %c0_209] : memref<512x128xf32, #tpu.memory_space<vmem>>, vector<32x128xf32>
    %598 = vector.extract_strided_slice %540 {offsets = [11, 0], sizes = [1, 128], strides = [1, 1]} : vector<16x128xf32> to vector<1x128xf32>
    %599 = vector.broadcast %598 : vector<1x128xf32> to vector<32x128xf32>
    %600 = arith.mulf %597, %599 : vector<32x128xf32>
    %601 = arith.addf %596, %600 : vector<32x128xf32>
    %c384 = arith.constant 384 : index
    %c0_210 = arith.constant 0 : index
    %602 = vector.load %arg9[%c384, %c0_210] : memref<512x128xf32, #tpu.memory_space<vmem>>, vector<32x128xf32>
    %603 = vector.extract_strided_slice %540 {offsets = [12, 0], sizes = [1, 128], strides = [1, 1]} : vector<16x128xf32> to vector<1x128xf32>
    %604 = vector.broadcast %603 : vector<1x128xf32> to vector<32x128xf32>
    %605 = arith.mulf %602, %604 : vector<32x128xf32>
    %606 = arith.addf %601, %605 : vector<32x128xf32>
    %c416 = arith.constant 416 : index
    %c0_211 = arith.constant 0 : index
    %607 = vector.load %arg9[%c416, %c0_211] : memref<512x128xf32, #tpu.memory_space<vmem>>, vector<32x128xf32>
    %608 = vector.extract_strided_slice %540 {offsets = [13, 0], sizes = [1, 128], strides = [1, 1]} : vector<16x128xf32> to vector<1x128xf32>
    %609 = vector.broadcast %608 : vector<1x128xf32> to vector<32x128xf32>
    %610 = arith.mulf %607, %609 : vector<32x128xf32>
    %611 = arith.addf %606, %610 : vector<32x128xf32>
    %c448 = arith.constant 448 : index
    %c0_212 = arith.constant 0 : index
    %612 = vector.load %arg9[%c448, %c0_212] : memref<512x128xf32, #tpu.memory_space<vmem>>, vector<32x128xf32>
    %613 = vector.extract_strided_slice %540 {offsets = [14, 0], sizes = [1, 128], strides = [1, 1]} : vector<16x128xf32> to vector<1x128xf32>
    %614 = vector.broadcast %613 : vector<1x128xf32> to vector<32x128xf32>
    %615 = arith.mulf %612, %614 : vector<32x128xf32>
    %616 = arith.addf %611, %615 : vector<32x128xf32>
    %c480 = arith.constant 480 : index
    %c0_213 = arith.constant 0 : index
    %617 = vector.load %arg9[%c480, %c0_213] : memref<512x128xf32, #tpu.memory_space<vmem>>, vector<32x128xf32>
    %618 = vector.extract_strided_slice %540 {offsets = [15, 0], sizes = [1, 128], strides = [1, 1]} : vector<16x128xf32> to vector<1x128xf32>
    %619 = vector.broadcast %618 : vector<1x128xf32> to vector<32x128xf32>
    %620 = arith.mulf %617, %619 : vector<32x128xf32>
    %621 = arith.addf %616, %620 : vector<32x128xf32>
    %c0_214 = arith.constant 0 : index
    %c0_215 = arith.constant 0 : index
    %622 = vector.load %arg7[%c0_214, %c0_215] : memref<32x128xf32, #tpu.memory_space<vmem>>, vector<32x128xf32>
    tpu.vector_store %arg7[%c0_214, %c0_215], %621 {strides = array<i32>} : memref<32x128xf32, #tpu.memory_space<vmem>>, vector<32x128xf32>,
    return
  }
  func.func @transform_0(%arg0: i32) -> (i32, i32, i32) {
    %c0_i32 = arith.constant 0 : i32
    %c0_i32_0 = arith.constant 0 : i32
    %c0_i32_1 = arith.constant 0 : i32
    return %arg0, %c0_i32, %c0_i32_0 : i32, i32, i32
  }
  func.func @transform_1(%arg0: i32) -> (i32, i32) {
    %c0_i32 = arith.constant 0 : i32
    %c0_i32_0 = arith.constant 0 : i32
    %c0_i32_1 = arith.constant 0 : i32
    return %c0_i32, %c0_i32_0 : i32, i32
  }
  func.func @transform_2(%arg0: i32) -> (i32, i32) {
    %c0_i32 = arith.constant 0 : i32
    %c0_i32_0 = arith.constant 0 : i32
    %c0_i32_1 = arith.constant 0 : i32
    return %c0_i32, %c0_i32_0 : i32, i32
  }
  func.func @transform_3(%arg0: i32) -> (i32, i32) {
    %c0_i32 = arith.constant 0 : i32
    %c0_i32_0 = arith.constant 0 : i32
    %c0_i32_1 = arith.constant 0 : i32
    return %c0_i32, %c0_i32_0 : i32, i32
  }
  func.func @transform_4(%arg0: i32) -> (i32, i32) {
    %c0_i32 = arith.constant 0 : i32
    %c0_i32_0 = arith.constant 0 : i32
    %c0_i32_1 = arith.constant 0 : i32
    return %c0_i32, %c0_i32_0 : i32, i32
  }
  func.func @transform_5(%arg0: i32) -> (i32, i32) {
    %c0_i32 = arith.constant 0 : i32
    %c0_i32_0 = arith.constant 0 : i32
    %c0_i32_1 = arith.constant 0 : i32
    return %c0_i32, %c0_i32_0 : i32, i32
  }
  func.func @transform_6(%arg0: i32) -> (i32, i32) {
    %c0_i32 = arith.constant 0 : i32
    %c0_i32_0 = arith.constant 0 : i32
    return %c0_i32, %arg0 : i32, i32
  }
}

</mosaic_0001>

<llo_original>
// kernel: tpu_custom_call.1
$region0: #{tpu_custom_call.1}
  #allocation0 [shape = 'u32[]', space=smem, size = 0x4, offset = 0x4, fixed_abs, tag = 'smem constant byte address 0x4 - core index']
  #allocation1 [shape = 'u32[144,128]{1,0:T(1,128)}', space=vmem, size = 0x12000, scoped, tag = 'internal scratch']
  #allocation2 [shape = 'f32[128,2048]{1,0:T(8,128)}', space=vmem, size = 0x100000, scoped, tag = 'scratch operand']
  #allocation3 [shape = 'f32[512,128]{1,0:T(8,128)}', space=vmem, size = 0x40000, scoped, tag = 'scratch operand']
  %s0 = inlined_call_operand.hbm [shape: f32[2,32,2048], index: 0, kind: input, shape index: {}]
  %s1 = inlined_call_operand.vmem [shape: f32[128,32], index: 1, kind: input, shape index: {}]
  %s2 = inlined_call_operand.vmem [shape: f32[128,32], index: 2, kind: input, shape index: {}]
  %s3 = inlined_call_operand.vmem [shape: f32[128,1], index: 3, kind: input, shape index: {}]
  %s4 = inlined_call_operand.vmem [shape: f32[16,512], index: 4, kind: input, shape index: {}]
  %s5 = inlined_call_operand.vmem [shape: f32[16,1], index: 5, kind: input, shape index: {}]
  %s6 = inlined_call_operand.hbm [shape: f32[32,256], index: 6, kind: output, shape index: {}]
  %s7 = sld [smem:[#allocation0]]
  $region61: #{tpu_custom_call.1} parent=0
    _
  %s9 = ssub.s32 1, %s7
  %s10 = scalar_select 0, %s9, %s7
  $region1: #{tpu_custom_call.1} parent=0
    #allocation4 [shape = 'u8[524288]{0}', space=vmem, size = 0x80000, scoped, tag = 'input window, operand 0']
    #allocation5 [shape = 's32[2]{0}', space=sflag, size = 0x8, scoped, tag = 'scoped memory for tpu_custom_call.1']
    #allocation6 [shape = 's32[2]{0}', space=sflag, size = 0x8, scoped, tag = 'scoped memory for tpu_custom_call.1']
    #allocation7 [shape = 'u8[32768]{0}', space=vmem, size = 0x8000, scoped, tag = 'output window, operand 0']
    %11 = vsyncpa [#allocation5], 0
    %s12 = scalar_lea.sflag [#allocation5], 1
    %13 = vsyncpa %s12, 0
    %14 = vsyncpa [#allocation6], 0
    %s15 = scalar_lea.sflag [#allocation6], 1
    %16 = vsyncpa %s15, 0
    loop: start=0, step=1, limit=4
    $region2: #{tpu_custom_call.1} parent=1 // loop_pre_header
      _
    $region3: #{tpu_custom_call.1} parent=1 // loop_header
      %s18 = sphi 0, %s22
      %p19 = scmp.ge.s32.totalorder %s18, 4
      %s28 = sphi 0, %s30
      %s31 = sphi 0, %s28
      %s32 = sphi 0, %s31
      %s48 = sphi 0, %s32
      %s52 = sphi 0, %s52
      %s54 = sphi 0, %s52
      %s55 = sphi 0, %s54
      %s69 = sphi 0, %s55
      %s73 = sphi 0, %s73
      %s75 = sphi 0, %s73
      %s76 = sphi 0, %s75
      %s90 = sphi 0, %s76
      %s94 = sphi 0, %s94
      %s96 = sphi 0, %s94
      %s97 = sphi 0, %s96
      %s111 = sphi 0, %s97
      %s115 = sphi 0, %s115
      %s117 = sphi 0, %s115
      %s118 = sphi 0, %s117
      %s132 = sphi 0, %s118
      %s136 = sphi 0, %s136
      %s138 = sphi 0, %s136
      %s139 = sphi 0, %s138
      %s153 = sphi 0, %s139
      %s159 = sphi 0, %s161
      %s162 = sphi 0, %s159
      %s163 = sphi 0, %s162
      %s179 = sphi 0, %s163
    $region4: #{tpu_custom_call.1} parent=1 // loop_header_branch
      %21 = sbr.rel (%p19) target = $region8
    $region5: #{tpu_custom_call.1} parent=1 // loop_body
      %s23 = ssub.s32 %s18, 1
      %s24 = ssub.s32 %s18, 2
      %s25 = sadd.s32 %s18, 1
      %s26 = ssub.s32 %s18, %s25
      %p27 = scmp.eq.s32.totalorder %s26, 0
      %s29 = sadd.s32 %s28, 1
      %s30 = scalar_select %p27, %s28, %s29
      %p33 = pneg %p27
      %p34 = scmp.eq.s32.totalorder %s18, 1
      %p35 = por %p33, %p34
      %p36 = scmp.ne.s32.totalorder %s28, %s31
      %p37 = scmp.eq.s32.totalorder %s18, 0
      %p38 = por %p36, %p37
      %p39 = scmp.ne.s32.totalorder %s28, %s31
      %p40 = scmp.eq.s32.totalorder %s23, 1
      %p41 = por %p39, %p40
      %p42 = scmp.ne.s32.totalorder %s31, %s32
      %p43 = scmp.eq.s32.totalorder %s23, 0
      %p44 = por %p42, %p43
      %p45 = scmp.ne.s32.totalorder %s31, %s32
      %p46 = scmp.eq.s32.totalorder %s24, 1
      %p47 = por %p45, %p46
      %p49 = scmp.ne.s32.totalorder %s32, %s48
      %p50 = scmp.eq.s32.totalorder %s24, 0
      %p51 = por %p49, %p50
      %s53 = sadd.s32 %s52, 1
      %p56 = scmp.eq.s32.totalorder %s18, 1
      %p57 = scmp.ne.s32.totalorder %s52, %s54
      %p58 = scmp.eq.s32.totalorder %s18, 0
      %p59 = por %p57, %p58
      %p60 = scmp.ne.s32.totalorder %s52, %s54
      %p61 = scmp.eq.s32.totalorder %s23, 1
      %p62 = por %p60, %p61
      %p63 = scmp.ne.s32.totalorder %s54, %s55
      %p64 = scmp.eq.s32.totalorder %s23, 0
      %p65 = por %p63, %p64
      %p66 = scmp.ne.s32.totalorder %s54, %s55
      %p67 = scmp.eq.s32.totalorder %s24, 1
      %p68 = por %p66, %p67
      %p70 = scmp.ne.s32.totalorder %s55, %s69
      %p71 = scmp.eq.s32.totalorder %s24, 0
      %p72 = por %p70, %p71
      %s74 = sadd.s32 %s73, 1
      %p77 = scmp.eq.s32.totalorder %s18, 1
      %p78 = scmp.ne.s32.totalorder %s73, %s75
      %p79 = scmp.eq.s32.totalorder %s18, 0
      %p80 = por %p78, %p79
      %p81 = scmp.ne.s32.totalorder %s73, %s75
      %p82 = scmp.eq.s32.totalorder %s23, 1
      %p83 = por %p81, %p82
      %p84 = scmp.ne.s32.totalorder %s75, %s76
      %p85 = scmp.eq.s32.totalorder %s23, 0
      %p86 = por %p84, %p85
      %p87 = scmp.ne.s32.totalorder %s75, %s76
      %p88 = scmp.eq.s32.totalorder %s24, 1
      %p89 = por %p87, %p88
      %p91 = scmp.ne.s32.totalorder %s76, %s90
      %p92 = scmp.eq.s32.totalorder %s24, 0
      %p93 = por %p91, %p92
      %s95 = sadd.s32 %s94, 1
      %p98 = scmp.eq.s32.totalorder %s18, 1
      %p99 = scmp.ne.s32.totalorder %s94, %s96
      %p100 = scmp.eq.s32.totalorder %s18, 0
      %p101 = por %p99, %p100
      %p102 = scmp.ne.s32.totalorder %s94, %s96
      %p103 = scmp.eq.s32.totalorder %s23, 1
      %p104 = por %p102, %p103
      %p105 = scmp.ne.s32.totalorder %s96, %s97
      %p106 = scmp.eq.s32.totalorder %s23, 0
      %p107 = por %p105, %p106
      %p108 = scmp.ne.s32.totalorder %s96, %s97
      %p109 = scmp.eq.s32.totalorder %s24, 1
      %p110 = por %p108, %p109
      %p112 = scmp.ne.s32.totalorder %s97, %s111
      %p113 = scmp.eq.s32.totalorder %s24, 0
      %p114 = por %p112, %p113
      %s116 = sadd.s32 %s115, 1
      %p119 = scmp.eq.s32.totalorder %s18, 1
      %p120 = scmp.ne.s32.totalorder %s115, %s117
      %p121 = scmp.eq.s32.totalorder %s18, 0
      %p122 = por %p120, %p121
      %p123 = scmp.ne.s32.totalorder %s115, %s117
      %p124 = scmp.eq.s32.totalorder %s23, 1
      %p125 = por %p123, %p124
      %p126 = scmp.ne.s32.totalorder %s117, %s118
      %p127 = scmp.eq.s32.totalorder %s23, 0
      %p128 = por %p126, %p127
      %p129 = scmp.ne.s32.totalorder %s117, %s118
      %p130 = scmp.eq.s32.totalorder %s24, 1
      %p131 = por %p129, %p130
      %p133 = scmp.ne.s32.totalorder %s118, %s132
      %p134 = scmp.eq.s32.totalorder %s24, 0
      %p135 = por %p133, %p134
      %s137 = sadd.s32 %s136, 1
      %p140 = scmp.eq.s32.totalorder %s18, 1
      %p141 = scmp.ne.s32.totalorder %s136, %s138
      %p142 = scmp.eq.s32.totalorder %s18, 0
      %p143 = por %p141, %p142
      %p144 = scmp.ne.s32.totalorder %s136, %s138
      %p145 = scmp.eq.s32.totalorder %s23, 1
      %p146 = por %p144, %p145
      %p147 = scmp.ne.s32.totalorder %s138, %s139
      %p148 = scmp.eq.s32.totalorder %s23, 0
      %p149 = por %p147, %p148
      %p150 = scmp.ne.s32.totalorder %s138, %s139
      %p151 = scmp.eq.s32.totalorder %s24, 1
      %p152 = por %p150, %p151
      %p154 = scmp.ne.s32.totalorder %s139, %s153
      %p155 = scmp.eq.s32.totalorder %s24, 0
      %p156 = por %p154, %p155
      %s157 = ssub.s32 %s18, %s25
      %p158 = scmp.eq.s32.totalorder %s157, 0
      %s160 = sadd.s32 %s159, 1
      %s161 = scalar_select %p158, %s159, %s160
      %p164 = pneg %p158
      %p165 = scmp.eq.s32.totalorder %s18, 1
      %p166 = por %p164, %p165
      %p167 = scmp.ne.s32.totalorder %s159, %s162
      %p168 = scmp.eq.s32.totalorder %s18, 0
      %p169 = por %p167, %p168
      %p170 = scmp.ne.s32.totalorder %s159, %s162
      %p171 = scmp.eq.s32.totalorder %s23, 1
      %p172 = por %p170, %p171
      %p173 = scmp.ne.s32.totalorder %s162, %s163
      %p174 = scmp.eq.s32.totalorder %s23, 0
      %p175 = por %p173, %p174
      %p176 = scmp.ne.s32.totalorder %s162, %s163
      %p177 = scmp.eq.s32.totalorder %s24, 1
      %p178 = por %p176, %p177
      %p180 = scmp.ne.s32.totalorder %s163, %s179
      %p181 = scmp.eq.s32.totalorder %s24, 0
      %p182 = por %p180, %p181
      %p183 = scmp.le.s32.totalorder 1, %s18
      %p184 = scmp.lt.s32.totalorder %s18, 3
      %p185 = pnand %p183, %p184
      %p186 = pneg %p185
      // Predicated region
      $region9: #{tpu_custom_call.1} parent=5 // pred_check
        _
      $region10: #{tpu_custom_call.1} parent=5 // pred_check_branch
        %188 = sbr.rel (%p185) target = $region12
      $region11: #{tpu_custom_call.1} parent=5 // pred_region
        %s189 = ssub.s32 %s18, 1
        // Predicated region
        $region13: #{tpu_custom_call.1} parent=11 // pred_check
          %p190 = pneg %p65
        $region14: #{tpu_custom_call.1} parent=11 // pred_check_branch
          %192 = sbr.rel (%p190) target = $region16
        $region15: #{tpu_custom_call.1} parent=11 // pred_region
          _
        $region16: #{tpu_custom_call.1} parent=11 // pred_fallthru
          _
        // Predicated region
        $region17: #{tpu_custom_call.1} parent=11 // pred_check
          %p193 = pneg %p86
        $region18: #{tpu_custom_call.1} parent=11 // pred_check_branch
          %195 = sbr.rel (%p193) target = $region20
        $region19: #{tpu_custom_call.1} parent=11 // pred_region
          _
        $region20: #{tpu_custom_call.1} parent=11 // pred_fallthru
          _
        // Predicated region
        $region21: #{tpu_custom_call.1} parent=11 // pred_check
          %p196 = pneg %p107
        $region22: #{tpu_custom_call.1} parent=11 // pred_check_branch
          %198 = sbr.rel (%p196) target = $region24
        $region23: #{tpu_custom_call.1} parent=11 // pred_region
          _
        $region24: #{tpu_custom_call.1} parent=11 // pred_fallthru
          _
        // Predicated region
        $region25: #{tpu_custom_call.1} parent=11 // pred_check
          %p199 = pneg %p128
        $region26: #{tpu_custom_call.1} parent=11 // pred_check_branch
          %201 = sbr.rel (%p199) target = $region28
        $region27: #{tpu_custom_call.1} parent=11 // pred_region
          _
        $region28: #{tpu_custom_call.1} parent=11 // pred_fallthru
          _
        // Predicated region
        $region29: #{tpu_custom_call.1} parent=11 // pred_check
          %p202 = pneg %p149
        $region30: #{tpu_custom_call.1} parent=11 // pred_check_branch
          %204 = sbr.rel (%p202) target = $region32
        $region31: #{tpu_custom_call.1} parent=11 // pred_region
          _
        $region32: #{tpu_custom_call.1} parent=11 // pred_fallthru
          _
      $region12: #{tpu_custom_call.1} parent=5 // pred_fallthru
        _
      %p205 = scmp.lt.s32.totalorder %s18, 2
      // Predicated region
      $region33: #{tpu_custom_call.1} parent=5 // pred_check
        %p206 = pneg %p205
      $region34: #{tpu_custom_call.1} parent=5 // pred_check_branch
        %208 = sbr.rel (%p206) target = $region36
      $region35: #{tpu_custom_call.1} parent=5 // pred_region
        // Predicated region
        $region37: #{tpu_custom_call.1} parent=35 // pred_check
          %p209 = pneg %p38
        $region38: #{tpu_custom_call.1} parent=35 // pred_check_branch
          %211 = sbr.rel (%p209) target = $region40
        $region39: #{tpu_custom_call.1} parent=35 // pred_region
          %s212 = sand.u32 %s28, 1
          %s213 = scalar_lea.sflag [#allocation5], %s212
          %s214 = sand.u32 %s28, 1
          %s215 = smul.addr %s214, 512
          %s216 = scalar_lea.vmem [#allocation4], %s215
          %s218 = ssub.s32 8192, 8192
          %219 = vsyncadd %s213, %s218
          %s220 = smul.addr %s18, 64
          %s221 = smul.addr %s220, 128
          %s222 = scalar_lea.hbm %s0, %s221
          %s223 = sshll.u32 %s216, 4
          %s224 = int_to_ptr.vmem [resolvable:$true] %s223
          %229 = dma.hbm_to_vmem [thread:$0]  %s222, 8192, %s224, %s213, 2048, 2048, 128
        $region40: #{tpu_custom_call.1} parent=35 // pred_fallthru
          _
      $region36: #{tpu_custom_call.1} parent=5 // pred_fallthru
        _
      %p230 = scmp.le.s32.totalorder 1, %s18
      %p231 = scmp.lt.s32.totalorder %s18, 3
      %p232 = pnand %p230, %p231
      %p233 = pneg %p232
      // Predicated region
      $region41: #{tpu_custom_call.1} parent=5 // pred_check
        _
      $region42: #{tpu_custom_call.1} parent=5 // pred_check_branch
        %235 = sbr.rel (%p232) target = $region44
      $region43: #{tpu_custom_call.1} parent=5 // pred_region
        %s236 = ssub.s32 %s18, 1
        %s237 = sand.u32 %s31, 1
        %s238 = scalar_lea.sflag [#allocation5], %s237
        %s239 = sand.u32 %s31, 1
        %s240 = smul.addr %s239, 512
        %s241 = scalar_lea.vmem [#allocation4], %s240
        // Predicated region
        $region45: #{tpu_custom_call.1} parent=43 // pred_check
          %p242 = pneg %p44
        $region46: #{tpu_custom_call.1} parent=43 // pred_check_branch
          %244 = sbr.rel (%p242) target = $region48
        $region47: #{tpu_custom_call.1} parent=43 // pred_region
          %245 = dma.done %s238, 8192
        $region48: #{tpu_custom_call.1} parent=43 // pred_fallthru
          _
        %s246 = sand.u32 %s31, 1
        %s247 = scalar_lea.sflag [#allocation5], %s246
        %s248 = sand.u32 %s31, 1
        %s249 = smul.addr %s248, 512
        %s250 = scalar_lea.vmem [#allocation4], %s249
        %p251 = pneg %p44
        %p252 = pneg %p41
        %p253 = pneg %p65
        %p254 = pneg %p62
        %p255 = pneg %p86
        %p256 = pneg %p83
        %p257 = pneg %p107
        %p258 = pneg %p104
        %p259 = pneg %p128
        %p260 = pneg %p125
        %p261 = pneg %p149
        %p262 = pneg %p146
        %p263 = pneg %p175
        %p264 = pneg %p172
        %s265 = sand.u32 %s162, 1
        %s266 = scalar_lea.sflag [#allocation6], %s265
        %s267 = sand.u32 %s162, 1
        %s268 = smul.addr %s267, 32
        %s269 = scalar_lea.vmem [#allocation7], %s268
        %v270 = vld [vmem:[%s1] sm:$0xff]
        %v271 = vld [vmem:[%s1 + $0x8] sm:$0xff]
        %v272 = vld [vmem:[%s1 + $0x10] sm:$0xff]
        %v273 = vld [vmem:[%s1 + $0x18] sm:$0xff]
        %v274 = vld [vmem:[%s1 + $0x20] sm:$0xff]
        %v275 = vld [vmem:[%s1 + $0x28] sm:$0xff]
        %v276 = vld [vmem:[%s1 + $0x30] sm:$0xff]
        %v277 = vld [vmem:[%s1 + $0x38] sm:$0xff]
        %v278 = vld [vmem:[%s1 + $0x40] sm:$0xff]
        %v279 = vld [vmem:[%s1 + $0x48] sm:$0xff]
        %v280 = vld [vmem:[%s1 + $0x50] sm:$0xff]
        %v281 = vld [vmem:[%s1 + $0x58] sm:$0xff]
        %v282 = vld [vmem:[%s1 + $0x60] sm:$0xff]
        %v283 = vld [vmem:[%s1 + $0x68] sm:$0xff]
        %v284 = vld [vmem:[%s1 + $0x70] sm:$0xff]
        %v285 = vld [vmem:[%s1 + $0x78] sm:$0xff]
        %v286 = vld [vmem:[%s241] sm:$0xff]
        %v287 = vld [vmem:[%s241 + $0x8] sm:$0xff]
        %v288 = vld [vmem:[%s241 + $0x10] sm:$0xff]
        %v289 = vld [vmem:[%s241 + $0x18] sm:$0xff]
        %v290 = vld [vmem:[%s241 + $0x20] sm:$0xff]
        %v291 = vld [vmem:[%s241 + $0x28] sm:$0xff]
        %v292 = vld [vmem:[%s241 + $0x30] sm:$0xff]
        %v293 = vld [vmem:[%s241 + $0x38] sm:$0xff]
        %v294 = vld [vmem:[%s241 + $0x40] sm:$0xff]
        %v295 = vld [vmem:[%s241 + $0x48] sm:$0xff]
        %v296 = vld [vmem:[%s241 + $0x50] sm:$0xff]
        %v297 = vld [vmem:[%s241 + $0x58] sm:$0xff]
        %v298 = vld [vmem:[%s241 + $0x60] sm:$0xff]
        %v299 = vld [vmem:[%s241 + $0x68] sm:$0xff]
        %v300 = vld [vmem:[%s241 + $0x70] sm:$0xff]
        %v301 = vld [vmem:[%s241 + $0x78] sm:$0xff]
        %v302 = vld [vmem:[%s241 + $0x80] sm:$0xff]
        %v303 = vld [vmem:[%s241 + $0x88] sm:$0xff]
        %v304 = vld [vmem:[%s241 + $0x90] sm:$0xff]
        %v305 = vld [vmem:[%s241 + $0x98] sm:$0xff]
        %v306 = vld [vmem:[%s241 + $0xa0] sm:$0xff]
        %v307 = vld [vmem:[%s241 + $0xa8] sm:$0xff]
        %v308 = vld [vmem:[%s241 + $0xb0] sm:$0xff]
        %v309 = vld [vmem:[%s241 + $0xb8] sm:$0xff]
        %v310 = vld [vmem:[%s241 + $0xc0] sm:$0xff]
        %v311 = vld [vmem:[%s241 + $0xc8] sm:$0xff]
        %v312 = vld [vmem:[%s241 + $0xd0] sm:$0xff]
        %v313 = vld [vmem:[%s241 + $0xd8] sm:$0xff]
        %v314 = vld [vmem:[%s241 + $0xe0] sm:$0xff]
        %v315 = vld [vmem:[%s241 + $0xe8] sm:$0xff]
        %v316 = vld [vmem:[%s241 + $0xf0] sm:$0xff]
        %v317 = vld [vmem:[%s241 + $0xf8] sm:$0xff]
        %v318 = vld [vmem:[%s241 + $0x100] sm:$0xff]
        %v319 = vld [vmem:[%s241 + $0x108] sm:$0xff]
        %v320 = vld [vmem:[%s241 + $0x110] sm:$0xff]
        %v321 = vld [vmem:[%s241 + $0x118] sm:$0xff]
        %v322 = vld [vmem:[%s241 + $0x120] sm:$0xff]
        %v323 = vld [vmem:[%s241 + $0x128] sm:$0xff]
        %v324 = vld [vmem:[%s241 + $0x130] sm:$0xff]
        %v325 = vld [vmem:[%s241 + $0x138] sm:$0xff]
        %v326 = vld [vmem:[%s241 + $0x140] sm:$0xff]
        %v327 = vld [vmem:[%s241 + $0x148] sm:$0xff]
        %v328 = vld [vmem:[%s241 + $0x150] sm:$0xff]
        %v329 = vld [vmem:[%s241 + $0x158] sm:$0xff]
        %v330 = vld [vmem:[%s241 + $0x160] sm:$0xff]
        %v331 = vld [vmem:[%s241 + $0x168] sm:$0xff]
        %v332 = vld [vmem:[%s241 + $0x170] sm:$0xff]
        %v333 = vld [vmem:[%s241 + $0x178] sm:$0xff]
        %v334 = vld [vmem:[%s241 + $0x180] sm:$0xff]
        %v335 = vld [vmem:[%s241 + $0x188] sm:$0xff]
        %v336 = vld [vmem:[%s241 + $0x190] sm:$0xff]
        %v337 = vld [vmem:[%s241 + $0x198] sm:$0xff]
        %v338 = vld [vmem:[%s241 + $0x1a0] sm:$0xff]
        %v339 = vld [vmem:[%s241 + $0x1a8] sm:$0xff]
        %v340 = vld [vmem:[%s241 + $0x1b0] sm:$0xff]
        %v341 = vld [vmem:[%s241 + $0x1b8] sm:$0xff]
        %v342 = vld [vmem:[%s241 + $0x1c0] sm:$0xff]
        %v343 = vld [vmem:[%s241 + $0x1c8] sm:$0xff]
        %v344 = vld [vmem:[%s241 + $0x1d0] sm:$0xff]
        %v345 = vld [vmem:[%s241 + $0x1d8] sm:$0xff]
        %v346 = vld [vmem:[%s241 + $0x1e0] sm:$0xff]
        %v347 = vld [vmem:[%s241 + $0x1e8] sm:$0xff]
        %v348 = vld [vmem:[%s241 + $0x1f0] sm:$0xff]
        %v349 = vld [vmem:[%s241 + $0x1f8] sm:$0xff]
        %v350 = vld [vmem:[%s3] sm:$0xff]
        %v351 = vld [vmem:[%s3 + $0x8] sm:$0xff]
        %v352 = vld [vmem:[%s3 + $0x10] sm:$0xff]
        %v353 = vld [vmem:[%s3 + $0x18] sm:$0xff]
        %v354 = vld [vmem:[%s3 + $0x20] sm:$0xff]
        %v355 = vld [vmem:[%s3 + $0x28] sm:$0xff]
        %v356 = vld [vmem:[%s3 + $0x30] sm:$0xff]
        %v357 = vld [vmem:[%s3 + $0x38] sm:$0xff]
        %v358 = vld [vmem:[%s3 + $0x40] sm:$0xff]
        %v359 = vld [vmem:[%s3 + $0x48] sm:$0xff]
        %v360 = vld [vmem:[%s3 + $0x50] sm:$0xff]
        %v361 = vld [vmem:[%s3 + $0x58] sm:$0xff]
        %v362 = vld [vmem:[%s3 + $0x60] sm:$0xff]
        %v363 = vld [vmem:[%s3 + $0x68] sm:$0xff]
        %v364 = vld [vmem:[%s3 + $0x70] sm:$0xff]
        %v365 = vld [vmem:[%s3 + $0x78] sm:$0xff]
        %367 = vset.pattern.permute.xlu0 0
        %368 = vperm.xlu0 %367, %v350
        %v369 = vpop.permute.xlu0 %368
        %372 = vset.pattern.permute.xlu0 0
        %373 = vperm.xlu0 %372, %v351
        %v374 = vpop.permute.xlu0 %373
        %377 = vset.pattern.permute.xlu0 0
        %378 = vperm.xlu0 %377, %v352
        %v379 = vpop.permute.xlu0 %378
        %382 = vset.pattern.permute.xlu0 0
        %383 = vperm.xlu0 %382, %v353
        %v384 = vpop.permute.xlu0 %383
        %387 = vset.pattern.permute.xlu0 0
        %388 = vperm.xlu0 %387, %v354
        %v389 = vpop.permute.xlu0 %388
        %392 = vset.pattern.permute.xlu0 0
        %393 = vperm.xlu0 %392, %v355
        %v394 = vpop.permute.xlu0 %393
        %397 = vset.pattern.permute.xlu0 0
        %398 = vperm.xlu0 %397, %v356
        %v399 = vpop.permute.xlu0 %398
        %402 = vset.pattern.permute.xlu0 0
        %403 = vperm.xlu0 %402, %v357
        %v404 = vpop.permute.xlu0 %403
        %407 = vset.pattern.permute.xlu0 0
        %408 = vperm.xlu0 %407, %v358
        %v409 = vpop.permute.xlu0 %408
        %412 = vset.pattern.permute.xlu0 0
        %413 = vperm.xlu0 %412, %v359
        %v414 = vpop.permute.xlu0 %413
        %417 = vset.pattern.permute.xlu0 0
        %418 = vperm.xlu0 %417, %v360
        %v419 = vpop.permute.xlu0 %418
        %422 = vset.pattern.permute.xlu0 0
        %423 = vperm.xlu0 %422, %v361
        %v424 = vpop.permute.xlu0 %423
        %427 = vset.pattern.permute.xlu0 0
        %428 = vperm.xlu0 %427, %v362
        %v429 = vpop.permute.xlu0 %428
        %432 = vset.pattern.permute.xlu0 0
        %433 = vperm.xlu0 %432, %v363
        %v434 = vpop.permute.xlu0 %433
        %437 = vset.pattern.permute.xlu0 0
        %438 = vperm.xlu0 %437, %v364
        %v439 = vpop.permute.xlu0 %438
        %442 = vset.pattern.permute.xlu0 0
        %443 = vperm.xlu0 %442, %v365
        %v444 = vpop.permute.xlu0 %443
        %vm446 = vcmask 261120
        %v448 = vsel %vm446, %v270, 0
        %v451 = vsel %vm446, %v271, 0
        %v454 = vsel %vm446, %v272, 0
        %v457 = vsel %vm446, %v273, 0
        %v460 = vsel %vm446, %v274, 0
        %v463 = vsel %vm446, %v275, 0
        %v466 = vsel %vm446, %v276, 0
        %v469 = vsel %vm446, %v277, 0
        %v472 = vsel %vm446, %v278, 0
        %v475 = vsel %vm446, %v279, 0
        %v478 = vsel %vm446, %v280, 0
        %v481 = vsel %vm446, %v281, 0
        %v484 = vsel %vm446, %v282, 0
        %v487 = vsel %vm446, %v283, 0
        %v490 = vsel %vm446, %v284, 0
        %v493 = vsel %vm446, %v285, 0
        %495 = vmatprep.subr.mxu0 0.0
        %496 = vmatpush1.msra.mxu0 0.0
        %497 = vmatprep.subr.mxu0 0.0
        %498 = vmatpush1.msra.mxu0 0.0
        %499 = vmatprep.subr.mxu0 0.0
        %500 = vmatpush1.msra.mxu0 0.0
        %501 = vmatprep.subr.mxu0 0.0
        %502 = vmatpush1.msra.mxu0 0.0
        %503 = vmatprep.subr.mxu0 0.0
        %504 = vmatpush1.msra.mxu0 0.0
        %505 = vmatprep.subr.mxu0 0.0
        %506 = vmatpush1.msra.mxu0 0.0
        %507 = vmatprep.subr.mxu0 0.0
        %508 = vmatpush1.msra.mxu0 0.0
        %509 = vmatprep.subr.mxu0 0.0
        %510 = vmatpush1.msra.mxu0 0.0
        %511 = vmatprep.subr.mxu0 0.0
        %512 = vmatpush1.msra.mxu0 0.0
        %513 = vmatprep.subr.mxu0 0.0
        %514 = vmatpush1.msra.mxu0 0.0
        %515 = vmatprep.subr.mxu0 0.0
        %516 = vmatpush1.msra.mxu0 0.0
        %517 = vmatprep.subr.mxu0 0.0
        %518 = vmatpush1.msra.mxu0 0.0
        %519 = vmatprep.subr.mxu0 %v335
        %520 = vmatpush1.msra.mxu0 %v334
        %521 = vmatprep.subr.mxu0 %v319
        %522 = vmatpush1.msra.mxu0 %v318
        %523 = vmatprep.subr.mxu0 %v303
        %524 = vmatpush1.msra.mxu0 %v302
        %525 = vmatprep.subr.mxu0 %v287
        %526 = vmatpush1.msra.mxu0 %v286
        %527 = vmatprep.subr.mxu0 0.0
        %528 = vmatpush2.msra.mxu0 0.0
        %529 = vmatprep.subr.mxu0 0.0
        %530 = vmatpush2.msra.mxu0 0.0
        %531 = vmatprep.subr.mxu0 0.0
        %532 = vmatpush2.msra.mxu0 0.0
        %533 = vmatprep.subr.mxu0 0.0
        %534 = vmatpush2.msra.mxu0 0.0
        %535 = vmatprep.subr.mxu0 0.0
        %536 = vmatpush2.msra.mxu0 0.0
        %537 = vmatprep.subr.mxu0 0.0
        %538 = vmatpush2.msra.mxu0 0.0
        %539 = vmatprep.subr.mxu0 0.0
        %540 = vmatpush2.msra.mxu0 0.0
        %541 = vmatprep.subr.mxu0 0.0
        %542 = vmatpush2.msra.mxu0 0.0
        %543 = vmatprep.subr.mxu0 0.0
        %544 = vmatpush2.msra.mxu0 0.0
        %545 = vmatprep.subr.mxu0 0.0
        %546 = vmatpush2.msra.mxu0 0.0
        %547 = vmatprep.subr.mxu0 0.0
        %548 = vmatpush2.msra.mxu0 0.0
        %549 = vmatprep.subr.mxu0 0.0
        %550 = vmatpush2.msra.mxu0 0.0
        %551 = vmatprep.subr.mxu0 0.0
        %552 = vmatpush2.msra.mxu0 0.0
        %553 = vmatprep.subr.mxu0 0.0
        %554 = vmatpush2.msra.mxu0 0.0
        %555 = vmatprep.subr.mxu0 0.0
        %556 = vmatpush2.msra.mxu0 0.0
        %557 = vmatprep.subr.mxu0 0.0
        %558 = vmatpush2.msra.mxu0 0.0
        %559 = vmatprep.mubr.f32.mxu0 0.0
        %560 = vmatmul.mubr.f32.gmra.mxu0 %v448
        %v561 = vpop.f32.mrf.mxu0
        %v562 = vadd.f32 %v369, %v561
        %v563 = vpop.f32.mrf.mxu0
        %v564 = vadd.f32 %v369, %v563
        %565 = vmatprep.mubr.f32.mxu0 0.0
        %566 = vmatmul.mubr.f32.gmra.mxu0 %v451
        %v567 = vpop.f32.mrf.mxu0
        %v568 = vadd.f32 %v374, %v567
        %v569 = vpop.f32.mrf.mxu0
        %v570 = vadd.f32 %v374, %v569
        %571 = vmatprep.mubr.f32.mxu0 0.0
        %572 = vmatmul.mubr.f32.gmra.mxu0 %v454
        %v573 = vpop.f32.mrf.mxu0
        %v574 = vadd.f32 %v379, %v573
        %v575 = vpop.f32.mrf.mxu0
        %v576 = vadd.f32 %v379, %v575
        %577 = vmatprep.mubr.f32.mxu0 0.0
        %578 = vmatmul.mubr.f32.gmra.mxu0 %v457
        %v579 = vpop.f32.mrf.mxu0
        %v580 = vadd.f32 %v384, %v579
        %v581 = vpop.f32.mrf.mxu0
        %v582 = vadd.f32 %v384, %v581
        %583 = vmatprep.mubr.f32.mxu0 0.0
        %584 = vmatmul.mubr.f32.gmra.mxu0 %v460
        %v585 = vpop.f32.mrf.mxu0
        %v586 = vadd.f32 %v389, %v585
        %v587 = vpop.f32.mrf.mxu0
        %v588 = vadd.f32 %v389, %v587
        %589 = vmatprep.mubr.f32.mxu0 0.0
        %590 = vmatmul.mubr.f32.gmra.mxu0 %v463
        %v591 = vpop.f32.mrf.mxu0
        %v592 = vadd.f32 %v394, %v591
        %v593 = vpop.f32.mrf.mxu0
        %v594 = vadd.f32 %v394, %v593
        %595 = vmatprep.mubr.f32.mxu0 0.0
        %596 = vmatmul.mubr.f32.gmra.mxu0 %v466
        %v597 = vpop.f32.mrf.mxu0
        %v598 = vadd.f32 %v399, %v597
        %v599 = vpop.f32.mrf.mxu0
        %v600 = vadd.f32 %v399, %v599
        %601 = vmatprep.mubr.f32.mxu0 0.0
        %602 = vmatmul.mubr.f32.gmra.mxu0 %v469
        %v603 = vpop.f32.mrf.mxu0
        %v604 = vadd.f32 %v404, %v603
        %v605 = vpop.f32.mrf.mxu0
        %v606 = vadd.f32 %v404, %v605
        %607 = vmatprep.mubr.f32.mxu0 0.0
        %608 = vmatmul.mubr.f32.gmra.mxu0 %v472
        %v609 = vpop.f32.mrf.mxu0
        %v610 = vadd.f32 %v409, %v609
        %v611 = vpop.f32.mrf.mxu0
        %v612 = vadd.f32 %v409, %v611
        %613 = vmatprep.mubr.f32.mxu0 0.0
        %614 = vmatmul.mubr.f32.gmra.mxu0 %v475
        %v615 = vpop.f32.mrf.mxu0
        %v616 = vadd.f32 %v414, %v615
        %v617 = vpop.f32.mrf.mxu0
        %v618 = vadd.f32 %v414, %v617
        %619 = vmatprep.mubr.f32.mxu0 0.0
        %620 = vmatmul.mubr.f32.gmra.mxu0 %v478
        %v621 = vpop.f32.mrf.mxu0
        %v622 = vadd.f32 %v419, %v621
        %v623 = vpop.f32.mrf.mxu0
        %v624 = vadd.f32 %v419, %v623
        %625 = vmatprep.mubr.f32.mxu0 0.0
        %626 = vmatmul.mubr.f32.gmra.mxu0 %v481
        %v627 = vpop.f32.mrf.mxu0
        %v628 = vadd.f32 %v424, %v627
        %v629 = vpop.f32.mrf.mxu0
        %v630 = vadd.f32 %v424, %v629
        %631 = vmatprep.mubr.f32.mxu0 0.0
        %632 = vmatmul.mubr.f32.gmra.mxu0 %v484
        %v633 = vpop.f32.mrf.mxu0
        %v634 = vadd.f32 %v429, %v633
        %v635 = vpop.f32.mrf.mxu0
        %v636 = vadd.f32 %v429, %v635
        %637 = vmatprep.mubr.f32.mxu0 0.0
        %638 = vmatmul.mubr.f32.gmra.mxu0 %v487
        %v639 = vpop.f32.mrf.mxu0
        %v640 = vadd.f32 %v434, %v639
        %v641 = vpop.f32.mrf.mxu0
        %v642 = vadd.f32 %v434, %v641
        %643 = vmatprep.mubr.f32.mxu0 0.0
        %644 = vmatmul.mubr.f32.gmra.mxu0 %v490
        %v645 = vpop.f32.mrf.mxu0
        %v646 = vadd.f32 %v439, %v645
        %v647 = vpop.f32.mrf.mxu0
        %v648 = vadd.f32 %v439, %v647
        %649 = vmatprep.mubr.f32.mxu0 0.0
        %650 = vmatmul.mubr.f32.gmra.mxu0 %v493
        %v651 = vpop.f32.mrf.mxu0
        %v652 = vadd.f32 %v444, %v651
        %v653 = vpop.f32.mrf.mxu0
        %v654 = vadd.f32 %v444, %v653
        %655 = vdwg.mxu0
        %656 = vmatprep.subr.mxu0 0.0
        %657 = vmatpush1.msra.mxu0 0.0
        %658 = vmatprep.subr.mxu0 0.0
        %659 = vmatpush1.msra.mxu0 0.0
        %660 = vmatprep.subr.mxu0 0.0
        %661 = vmatpush1.msra.mxu0 0.0
        %662 = vmatprep.subr.mxu0 0.0
        %663 = vmatpush1.msra.mxu0 0.0
        %664 = vmatprep.subr.mxu0 0.0
        %665 = vmatpush1.msra.mxu0 0.0
        %666 = vmatprep.subr.mxu0 0.0
        %667 = vmatpush1.msra.mxu0 0.0
        %668 = vmatprep.subr.mxu0 0.0
        %669 = vmatpush1.msra.mxu0 0.0
        %670 = vmatprep.subr.mxu0 0.0
        %671 = vmatpush1.msra.mxu0 0.0
        %672 = vmatprep.subr.mxu0 0.0
        %673 = vmatpush1.msra.mxu0 0.0
        %674 = vmatprep.subr.mxu0 0.0
        %675 = vmatpush1.msra.mxu0 0.0
        %676 = vmatprep.subr.mxu0 0.0
        %677 = vmatpush1.msra.mxu0 0.0
        %678 = vmatprep.subr.mxu0 0.0
        %679 = vmatpush1.msra.mxu0 0.0
        %680 = vmatprep.subr.mxu0 %v337
        %681 = vmatpush1.msra.mxu0 %v336
        %682 = vmatprep.subr.mxu0 %v321
        %683 = vmatpush1.msra.mxu0 %v320
        %684 = vmatprep.subr.mxu0 %v305
        %685 = vmatpush1.msra.mxu0 %v304
        %686 = vmatprep.subr.mxu0 %v289
        %687 = vmatpush1.msra.mxu0 %v288
        %688 = vmatprep.subr.mxu0 0.0
        %689 = vmatpush2.msra.mxu0 0.0
        %690 = vmatprep.subr.mxu0 0.0
        %691 = vmatpush2.msra.mxu0 0.0
        %692 = vmatprep.subr.mxu0 0.0
        %693 = vmatpush2.msra.mxu0 0.0
        %694 = vmatprep.subr.mxu0 0.0
        %695 = vmatpush2.msra.mxu0 0.0
        %696 = vmatprep.subr.mxu0 0.0
        %697 = vmatpush2.msra.mxu0 0.0
        %698 = vmatprep.subr.mxu0 0.0
        %699 = vmatpush2.msra.mxu0 0.0
        %700 = vmatprep.subr.mxu0 0.0
        %701 = vmatpush2.msra.mxu0 0.0
        %702 = vmatprep.subr.mxu0 0.0
        %703 = vmatpush2.msra.mxu0 0.0
        %704 = vmatprep.subr.mxu0 0.0
        %705 = vmatpush2.msra.mxu0 0.0
        %706 = vmatprep.subr.mxu0 0.0
        %707 = vmatpush2.msra.mxu0 0.0
        %708 = vmatprep.subr.mxu0 0.0
        %709 = vmatpush2.msra.mxu0 0.0
        %710 = vmatprep.subr.mxu0 0.0
        %711 = vmatpush2.msra.mxu0 0.0
        %712 = vmatprep.subr.mxu0 0.0
        %713 = vmatpush2.msra.mxu0 0.0
        %714 = vmatprep.subr.mxu0 0.0
        %715 = vmatpush2.msra.mxu0 0.0
        %716 = vmatprep.subr.mxu0 0.0
        %717 = vmatpush2.msra.mxu0 0.0
        %718 = vmatprep.subr.mxu0 0.0
        %719 = vmatpush2.msra.mxu0 0.0
        %720 = vmatprep.mubr.f32.mxu0 0.0
        %721 = vmatmul.mubr.f32.gmra.mxu0 %v448
        %v722 = vpop.f32.mrf.mxu0
        %v723 = vadd.f32 %v369, %v722
        %v724 = vpop.f32.mrf.mxu0
        %v725 = vadd.f32 %v369, %v724
        %726 = vmatprep.mubr.f32.mxu0 0.0
        %727 = vmatmul.mubr.f32.gmra.mxu0 %v451
        %v728 = vpop.f32.mrf.mxu0
        %v729 = vadd.f32 %v374, %v728
        %v730 = vpop.f32.mrf.mxu0
        %v731 = vadd.f32 %v374, %v730
        %732 = vmatprep.mubr.f32.mxu0 0.0
        %733 = vmatmul.mubr.f32.gmra.mxu0 %v454
        %v734 = vpop.f32.mrf.mxu0
        %v735 = vadd.f32 %v379, %v734
        %v736 = vpop.f32.mrf.mxu0
        %v737 = vadd.f32 %v379, %v736
        %738 = vmatprep.mubr.f32.mxu0 0.0
        %739 = vmatmul.mubr.f32.gmra.mxu0 %v457
        %v740 = vpop.f32.mrf.mxu0
        %v741 = vadd.f32 %v384, %v740
        %v742 = vpop.f32.mrf.mxu0
        %v743 = vadd.f32 %v384, %v742
        %744 = vmatprep.mubr.f32.mxu0 0.0
        %745 = vmatmul.mubr.f32.gmra.mxu0 %v460
        %v746 = vpop.f32.mrf.mxu0
        %v747 = vadd.f32 %v389, %v746
        %v748 = vpop.f32.mrf.mxu0
        %v749 = vadd.f32 %v389, %v748
        %750 = vmatprep.mubr.f32.mxu0 0.0
        %751 = vmatmul.mubr.f32.gmra.mxu0 %v463
        %v752 = vpop.f32.mrf.mxu0
        %v753 = vadd.f32 %v394, %v752
        %v754 = vpop.f32.mrf.mxu0
        %v755 = vadd.f32 %v394, %v754
        %756 = vmatprep.mubr.f32.mxu0 0.0
        %757 = vmatmul.mubr.f32.gmra.mxu0 %v466
        %v758 = vpop.f32.mrf.mxu0
        %v759 = vadd.f32 %v399, %v758
        %v760 = vpop.f32.mrf.mxu0
        %v761 = vadd.f32 %v399, %v760
        %762 = vmatprep.mubr.f32.mxu0 0.0
        %763 = vmatmul.mubr.f32.gmra.mxu0 %v469
        %v764 = vpop.f32.mrf.mxu0
        %v765 = vadd.f32 %v404, %v764
        %v766 = vpop.f32.mrf.mxu0
        %v767 = vadd.f32 %v404, %v766
        %768 = vmatprep.mubr.f32.mxu0 0.0
        %769 = vmatmul.mubr.f32.gmra.mxu0 %v472
        %v770 = vpop.f32.mrf.mxu0
        %v771 = vadd.f32 %v409, %v770
        %v772 = vpop.f32.mrf.mxu0
        %v773 = vadd.f32 %v409, %v772
        %774 = vmatprep.mubr.f32.mxu0 0.0
        %775 = vmatmul.mubr.f32.gmra.mxu0 %v475
        %v776 = vpop.f32.mrf.mxu0
        %v777 = vadd.f32 %v414, %v776
        %v778 = vpop.f32.mrf.mxu0
        %v779 = vadd.f32 %v414, %v778
        %780 = vmatprep.mubr.f32.mxu0 0.0
        %781 = vmatmul.mubr.f32.gmra.mxu0 %v478
        %v782 = vpop.f32.mrf.mxu0
        %v783 = vadd.f32 %v419, %v782
        %v784 = vpop.f32.mrf.mxu0
        %v785 = vadd.f32 %v419, %v784
        %786 = vmatprep.mubr.f32.mxu0 0.0
        %787 = vmatmul.mubr.f32.gmra.mxu0 %v481
        %v788 = vpop.f32.mrf.mxu0
        %v789 = vadd.f32 %v424, %v788
        %v790 = vpop.f32.mrf.mxu0
        %v791 = vadd.f32 %v424, %v790
        %792 = vmatprep.mubr.f32.mxu0 0.0
        %793 = vmatmul.mubr.f32.gmra.mxu0 %v484
        %v794 = vpop.f32.mrf.mxu0
        %v795 = vadd.f32 %v429, %v794
        %v796 = vpop.f32.mrf.mxu0
        %v797 = vadd.f32 %v429, %v796
        %798 = vmatprep.mubr.f32.mxu0 0.0
        %799 = vmatmul.mubr.f32.gmra.mxu0 %v487
        %v800 = vpop.f32.mrf.mxu0
        %v801 = vadd.f32 %v434, %v800
        %v802 = vpop.f32.mrf.mxu0
        %v803 = vadd.f32 %v434, %v802
        %804 = vmatprep.mubr.f32.mxu0 0.0
        %805 = vmatmul.mubr.f32.gmra.mxu0 %v490
        %v806 = vpop.f32.mrf.mxu0
        %v807 = vadd.f32 %v439, %v806
        %v808 = vpop.f32.mrf.mxu0
        %v809 = vadd.f32 %v439, %v808
        %810 = vmatprep.mubr.f32.mxu0 0.0
        %811 = vmatmul.mubr.f32.gmra.mxu0 %v493
        %v812 = vpop.f32.mrf.mxu0
        %v813 = vadd.f32 %v444, %v812
        %v814 = vpop.f32.mrf.mxu0
        %v815 = vadd.f32 %v444, %v814
        %816 = vdwg.mxu0
        %817 = vmatprep.subr.mxu0 0.0
        %818 = vmatpush1.msra.mxu0 0.0
        %819 = vmatprep.subr.mxu0 0.0
        %820 = vmatpush1.msra.mxu0 0.0
        %821 = vmatprep.subr.mxu0 0.0
        %822 = vmatpush1.msra.mxu0 0.0
        %823 = vmatprep.subr.mxu0 0.0
        %824 = vmatpush1.msra.mxu0 0.0
        %825 = vmatprep.subr.mxu0 0.0
        %826 = vmatpush1.msra.mxu0 0.0
        %827 = vmatprep.subr.mxu0 0.0
        %828 = vmatpush1.msra.mxu0 0.0
        %829 = vmatprep.subr.mxu0 0.0
        %830 = vmatpush1.msra.mxu0 0.0
        %831 = vmatprep.subr.mxu0 0.0
        %832 = vmatpush1.msra.mxu0 0.0
        %833 = vmatprep.subr.mxu0 0.0
        %834 = vmatpush1.msra.mxu0 0.0
        %835 = vmatprep.subr.mxu0 0.0
        %836 = vmatpush1.msra.mxu0 0.0
        %837 = vmatprep.subr.mxu0 0.0
        %838 = vmatpush1.msra.mxu0 0.0
        %839 = vmatprep.subr.mxu0 0.0
        %840 = vmatpush1.msra.mxu0 0.0
        %841 = vmatprep.subr.mxu0 %v339
        %842 = vmatpush1.msra.mxu0 %v338
        %843 = vmatprep.subr.mxu0 %v323
        %844 = vmatpush1.msra.mxu0 %v322
        %845 = vmatprep.subr.mxu0 %v307
        %846 = vmatpush1.msra.mxu0 %v306
        %847 = vmatprep.subr.mxu0 %v291
        %848 = vmatpush1.msra.mxu0 %v290
        %849 = vmatprep.subr.mxu0 0.0
        %850 = vmatpush2.msra.mxu0 0.0
        %851 = vmatprep.subr.mxu0 0.0
        %852 = vmatpush2.msra.mxu0 0.0
        %853 = vmatprep.subr.mxu0 0.0
        %854 = vmatpush2.msra.mxu0 0.0
        %855 = vmatprep.subr.mxu0 0.0
        %856 = vmatpush2.msra.mxu0 0.0
        %857 = vmatprep.subr.mxu0 0.0
        %858 = vmatpush2.msra.mxu0 0.0
        %859 = vmatprep.subr.mxu0 0.0
        %860 = vmatpush2.msra.mxu0 0.0
        %861 = vmatprep.subr.mxu0 0.0
        %862 = vmatpush2.msra.mxu0 0.0
        %863 = vmatprep.subr.mxu0 0.0
        %864 = vmatpush2.msra.mxu0 0.0
        %865 = vmatprep.subr.mxu0 0.0
        %866 = vmatpush2.msra.mxu0 0.0
        %867 = vmatprep.subr.mxu0 0.0
        %868 = vmatpush2.msra.mxu0 0.0
        %869 = vmatprep.subr.mxu0 0.0
        %870 = vmatpush2.msra.mxu0 0.0
        %871 = vmatprep.subr.mxu0 0.0
        %872 = vmatpush2.msra.mxu0 0.0
        %873 = vmatprep.subr.mxu0 0.0
        %874 = vmatpush2.msra.mxu0 0.0
        %875 = vmatprep.subr.mxu0 0.0
        %876 = vmatpush2.msra.mxu0 0.0
        %877 = vmatprep.subr.mxu0 0.0
        %878 = vmatpush2.msra.mxu0 0.0
        %879 = vmatprep.subr.mxu0 0.0
        %880 = vmatpush2.msra.mxu0 0.0
        %881 = vmatprep.mubr.f32.mxu0 0.0
        %882 = vmatmul.mubr.f32.gmra.mxu0 %v448
        %v883 = vpop.f32.mrf.mxu0
        %v884 = vadd.f32 %v369, %v883
        %v885 = vpop.f32.mrf.mxu0
        %v886 = vadd.f32 %v369, %v885
        %887 = vmatprep.mubr.f32.mxu0 0.0
        %888 = vmatmul.mubr.f32.gmra.mxu0 %v451
        %v889 = vpop.f32.mrf.mxu0
        %v890 = vadd.f32 %v374, %v889
        %v891 = vpop.f32.mrf.mxu0
        %v892 = vadd.f32 %v374, %v891
        %893 = vmatprep.mubr.f32.mxu0 0.0
        %894 = vmatmul.mubr.f32.gmra.mxu0 %v454
        %v895 = vpop.f32.mrf.mxu0
        %v896 = vadd.f32 %v379, %v895
        %v897 = vpop.f32.mrf.mxu0
        %v898 = vadd.f32 %v379, %v897
        %899 = vmatprep.mubr.f32.mxu0 0.0
        %900 = vmatmul.mubr.f32.gmra.mxu0 %v457
        %v901 = vpop.f32.mrf.mxu0
        %v902 = vadd.f32 %v384, %v901
        %v903 = vpop.f32.mrf.mxu0
        %v904 = vadd.f32 %v384, %v903
        %905 = vmatprep.mubr.f32.mxu0 0.0
        %906 = vmatmul.mubr.f32.gmra.mxu0 %v460
        %v907 = vpop.f32.mrf.mxu0
        %v908 = vadd.f32 %v389, %v907
        %v909 = vpop.f32.mrf.mxu0
        %v910 = vadd.f32 %v389, %v909
        %911 = vmatprep.mubr.f32.mxu0 0.0
        %912 = vmatmul.mubr.f32.gmra.mxu0 %v463
        %v913 = vpop.f32.mrf.mxu0
        %v914 = vadd.f32 %v394, %v913
        %v915 = vpop.f32.mrf.mxu0
        %v916 = vadd.f32 %v394, %v915
        %917 = vmatprep.mubr.f32.mxu0 0.0
        %918 = vmatmul.mubr.f32.gmra.mxu0 %v466
        %v919 = vpop.f32.mrf.mxu0
        %v920 = vadd.f32 %v399, %v919
        %v921 = vpop.f32.mrf.mxu0
        %v922 = vadd.f32 %v399, %v921
        %923 = vmatprep.mubr.f32.mxu0 0.0
        %924 = vmatmul.mubr.f32.gmra.mxu0 %v469
        %v925 = vpop.f32.mrf.mxu0
        %v926 = vadd.f32 %v404, %v925
        %v927 = vpop.f32.mrf.mxu0
        %v928 = vadd.f32 %v404, %v927
        %929 = vmatprep.mubr.f32.mxu0 0.0
        %930 = vmatmul.mubr.f32.gmra.mxu0 %v472
        %v931 = vpop.f32.mrf.mxu0
        %v932 = vadd.f32 %v409, %v931
        %v933 = vpop.f32.mrf.mxu0
        %v934 = vadd.f32 %v409, %v933
        %935 = vmatprep.mubr.f32.mxu0 0.0
        %936 = vmatmul.mubr.f32.gmra.mxu0 %v475
        %v937 = vpop.f32.mrf.mxu0
        %v938 = vadd.f32 %v414, %v937
        %v939 = vpop.f32.mrf.mxu0
        %v940 = vadd.f32 %v414, %v939
        %941 = vmatprep.mubr.f32.mxu0 0.0
        %942 = vmatmul.mubr.f32.gmra.mxu0 %v478
        %v943 = vpop.f32.mrf.mxu0
        %v944 = vadd.f32 %v419, %v943
        %v945 = vpop.f32.mrf.mxu0
        %v946 = vadd.f32 %v419, %v945
        %947 = vmatprep.mubr.f32.mxu0 0.0
        %948 = vmatmul.mubr.f32.gmra.mxu0 %v481
        %v949 = vpop.f32.mrf.mxu0
        %v950 = vadd.f32 %v424, %v949
        %v951 = vpop.f32.mrf.mxu0
        %v952 = vadd.f32 %v424, %v951
        %953 = vmatprep.mubr.f32.mxu0 0.0
        %954 = vmatmul.mubr.f32.gmra.mxu0 %v484
        %v955 = vpop.f32.mrf.mxu0
        %v956 = vadd.f32 %v429, %v955
        %v957 = vpop.f32.mrf.mxu0
        %v958 = vadd.f32 %v429, %v957
        %959 = vmatprep.mubr.f32.mxu0 0.0
        %960 = vmatmul.mubr.f32.gmra.mxu0 %v487
        %v961 = vpop.f32.mrf.mxu0
        %v962 = vadd.f32 %v434, %v961
        %v963 = vpop.f32.mrf.mxu0
        %v964 = vadd.f32 %v434, %v963
        %965 = vmatprep.mubr.f32.mxu0 0.0
        %966 = vmatmul.mubr.f32.gmra.mxu0 %v490
        %v967 = vpop.f32.mrf.mxu0
        %v968 = vadd.f32 %v439, %v967
        %v969 = vpop.f32.mrf.mxu0
        %v970 = vadd.f32 %v439, %v969
        %971 = vmatprep.mubr.f32.mxu0 0.0
        %972 = vmatmul.mubr.f32.gmra.mxu0 %v493
        %v973 = vpop.f32.mrf.mxu0
        %v974 = vadd.f32 %v444, %v973
        %v975 = vpop.f32.mrf.mxu0
        %v976 = vadd.f32 %v444, %v975
        %977 = vdwg.mxu0
        %978 = vmatprep.subr.mxu0 0.0
        %979 = vmatpush1.msra.mxu0 0.0
        %980 = vmatprep.subr.mxu0 0.0
        %981 = vmatpush1.msra.mxu0 0.0
        %982 = vmatprep.subr.mxu0 0.0
        %983 = vmatpush1.msra.mxu0 0.0
        %984 = vmatprep.subr.mxu0 0.0
        %985 = vmatpush1.msra.mxu0 0.0
        %986 = vmatprep.subr.mxu0 0.0
        %987 = vmatpush1.msra.mxu0 0.0
        %988 = vmatprep.subr.mxu0 0.0
        %989 = vmatpush1.msra.mxu0 0.0
        %990 = vmatprep.subr.mxu0 0.0
        %991 = vmatpush1.msra.mxu0 0.0
        %992 = vmatprep.subr.mxu0 0.0
        %993 = vmatpush1.msra.mxu0 0.0
        %994 = vmatprep.subr.mxu0 0.0
        %995 = vmatpush1.msra.mxu0 0.0
        %996 = vmatprep.subr.mxu0 0.0
        %997 = vmatpush1.msra.mxu0 0.0
        %998 = vmatprep.subr.mxu0 0.0
        %999 = vmatpush1.msra.mxu0 0.0
        %1000 = vmatprep.subr.mxu0 0.0
        %1001 = vmatpush1.msra.mxu0 0.0
        %1002 = vmatprep.subr.mxu0 %v341
        %1003 = vmatpush1.msra.mxu0 %v340
        %1004 = vmatprep.subr.mxu0 %v325
        %1005 = vmatpush1.msra.mxu0 %v324
        %1006 = vmatprep.subr.mxu0 %v309
        %1007 = vmatpush1.msra.mxu0 %v308
        %1008 = vmatprep.subr.mxu0 %v293
        %1009 = vmatpush1.msra.mxu0 %v292
        %1010 = vmatprep.subr.mxu0 0.0
        %1011 = vmatpush2.msra.mxu0 0.0
        %1012 = vmatprep.subr.mxu0 0.0
        %1013 = vmatpush2.msra.mxu0 0.0
        %1014 = vmatprep.subr.mxu0 0.0
        %1015 = vmatpush2.msra.mxu0 0.0
        %1016 = vmatprep.subr.mxu0 0.0
        %1017 = vmatpush2.msra.mxu0 0.0
        %1018 = vmatprep.subr.mxu0 0.0
        %1019 = vmatpush2.msra.mxu0 0.0
        %1020 = vmatprep.subr.mxu0 0.0
        %1021 = vmatpush2.msra.mxu0 0.0
        %1022 = vmatprep.subr.mxu0 0.0
        %1023 = vmatpush2.msra.mxu0 0.0
        %1024 = vmatprep.subr.mxu0 0.0
        %1025 = vmatpush2.msra.mxu0 0.0
        %1026 = vmatprep.subr.mxu0 0.0
        %1027 = vmatpush2.msra.mxu0 0.0
        %1028 = vmatprep.subr.mxu0 0.0
        %1029 = vmatpush2.msra.mxu0 0.0
        %1030 = vmatprep.subr.mxu0 0.0
        %1031 = vmatpush2.msra.mxu0 0.0
        %1032 = vmatprep.subr.mxu0 0.0
        %1033 = vmatpush2.msra.mxu0 0.0
        %1034 = vmatprep.subr.mxu0 0.0
        %1035 = vmatpush2.msra.mxu0 0.0
        %1036 = vmatprep.subr.mxu0 0.0
        %1037 = vmatpush2.msra.mxu0 0.0
        %1038 = vmatprep.subr.mxu0 0.0
        %1039 = vmatpush2.msra.mxu0 0.0
        %1040 = vmatprep.subr.mxu0 0.0
        %1041 = vmatpush2.msra.mxu0 0.0
        %1042 = vmatprep.mubr.f32.mxu0 0.0
        %1043 = vmatmul.mubr.f32.gmra.mxu0 %v448
        %v1044 = vpop.f32.mrf.mxu0
        %v1045 = vadd.f32 %v369, %v1044
        %v1046 = vpop.f32.mrf.mxu0
        %v1047 = vadd.f32 %v369, %v1046
        %1048 = vmatprep.mubr.f32.mxu0 0.0
        %1049 = vmatmul.mubr.f32.gmra.mxu0 %v451
        %v1050 = vpop.f32.mrf.mxu0
        %v1051 = vadd.f32 %v374, %v1050
        %v1052 = vpop.f32.mrf.mxu0
        %v1053 = vadd.f32 %v374, %v1052
        %1054 = vmatprep.mubr.f32.mxu0 0.0
        %1055 = vmatmul.mubr.f32.gmra.mxu0 %v454
        %v1056 = vpop.f32.mrf.mxu0
        %v1057 = vadd.f32 %v379, %v1056
        %v1058 = vpop.f32.mrf.mxu0
        %v1059 = vadd.f32 %v379, %v1058
        %1060 = vmatprep.mubr.f32.mxu0 0.0
        %1061 = vmatmul.mubr.f32.gmra.mxu0 %v457
        %v1062 = vpop.f32.mrf.mxu0
        %v1063 = vadd.f32 %v384, %v1062
        %v1064 = vpop.f32.mrf.mxu0
        %v1065 = vadd.f32 %v384, %v1064
        %1066 = vmatprep.mubr.f32.mxu0 0.0
        %1067 = vmatmul.mubr.f32.gmra.mxu0 %v460
        %v1068 = vpop.f32.mrf.mxu0
        %v1069 = vadd.f32 %v389, %v1068
        %v1070 = vpop.f32.mrf.mxu0
        %v1071 = vadd.f32 %v389, %v1070
        %1072 = vmatprep.mubr.f32.mxu0 0.0
        %1073 = vmatmul.mubr.f32.gmra.mxu0 %v463
        %v1074 = vpop.f32.mrf.mxu0
        %v1075 = vadd.f32 %v394, %v1074
        %v1076 = vpop.f32.mrf.mxu0
        %v1077 = vadd.f32 %v394, %v1076
        %1078 = vmatprep.mubr.f32.mxu0 0.0
        %1079 = vmatmul.mubr.f32.gmra.mxu0 %v466
        %v1080 = vpop.f32.mrf.mxu0
        %v1081 = vadd.f32 %v399, %v1080
        %v1082 = vpop.f32.mrf.mxu0
        %v1083 = vadd.f32 %v399, %v1082
        %1084 = vmatprep.mubr.f32.mxu0 0.0
        %1085 = vmatmul.mubr.f32.gmra.mxu0 %v469
        %v1086 = vpop.f32.mrf.mxu0
        %v1087 = vadd.f32 %v404, %v1086
        %v1088 = vpop.f32.mrf.mxu0
        %v1089 = vadd.f32 %v404, %v1088
        %1090 = vmatprep.mubr.f32.mxu0 0.0
        %1091 = vmatmul.mubr.f32.gmra.mxu0 %v472
        %v1092 = vpop.f32.mrf.mxu0
        %v1093 = vadd.f32 %v409, %v1092
        %v1094 = vpop.f32.mrf.mxu0
        %v1095 = vadd.f32 %v409, %v1094
        %1096 = vmatprep.mubr.f32.mxu0 0.0
        %1097 = vmatmul.mubr.f32.gmra.mxu0 %v475
        %v1098 = vpop.f32.mrf.mxu0
        %v1099 = vadd.f32 %v414, %v1098
        %v1100 = vpop.f32.mrf.mxu0
        %v1101 = vadd.f32 %v414, %v1100
        %1102 = vmatprep.mubr.f32.mxu0 0.0
        %1103 = vmatmul.mubr.f32.gmra.mxu0 %v478
        %v1104 = vpop.f32.mrf.mxu0
        %v1105 = vadd.f32 %v419, %v1104
        %v1106 = vpop.f32.mrf.mxu0
        %v1107 = vadd.f32 %v419, %v1106
        %1108 = vmatprep.mubr.f32.mxu0 0.0
        %1109 = vmatmul.mubr.f32.gmra.mxu0 %v481
        %v1110 = vpop.f32.mrf.mxu0
        %v1111 = vadd.f32 %v424, %v1110
        %v1112 = vpop.f32.mrf.mxu0
        %v1113 = vadd.f32 %v424, %v1112
        %1114 = vmatprep.mubr.f32.mxu0 0.0
        %1115 = vmatmul.mubr.f32.gmra.mxu0 %v484
        %v1116 = vpop.f32.mrf.mxu0
        %v1117 = vadd.f32 %v429, %v1116
        %v1118 = vpop.f32.mrf.mxu0
        %v1119 = vadd.f32 %v429, %v1118
        %1120 = vmatprep.mubr.f32.mxu0 0.0
        %1121 = vmatmul.mubr.f32.gmra.mxu0 %v487
        %v1122 = vpop.f32.mrf.mxu0
        %v1123 = vadd.f32 %v434, %v1122
        %v1124 = vpop.f32.mrf.mxu0
        %v1125 = vadd.f32 %v434, %v1124
        %1126 = vmatprep.mubr.f32.mxu0 0.0
        %1127 = vmatmul.mubr.f32.gmra.mxu0 %v490
        %v1128 = vpop.f32.mrf.mxu0
        %v1129 = vadd.f32 %v439, %v1128
        %v1130 = vpop.f32.mrf.mxu0
        %v1131 = vadd.f32 %v439, %v1130
        %1132 = vmatprep.mubr.f32.mxu0 0.0
        %1133 = vmatmul.mubr.f32.gmra.mxu0 %v493
        %v1134 = vpop.f32.mrf.mxu0
        %v1135 = vadd.f32 %v444, %v1134
        %v1136 = vpop.f32.mrf.mxu0
        %v1137 = vadd.f32 %v444, %v1136
        %1138 = vdwg.mxu0
        %1139 = vmatprep.subr.mxu0 0.0
        %1140 = vmatpush1.msra.mxu0 0.0
        %1141 = vmatprep.subr.mxu0 0.0
        %1142 = vmatpush1.msra.mxu0 0.0
        %1143 = vmatprep.subr.mxu0 0.0
        %1144 = vmatpush1.msra.mxu0 0.0
        %1145 = vmatprep.subr.mxu0 0.0
        %1146 = vmatpush1.msra.mxu0 0.0
        %1147 = vmatprep.subr.mxu0 0.0
        %1148 = vmatpush1.msra.mxu0 0.0
        %1149 = vmatprep.subr.mxu0 0.0
        %1150 = vmatpush1.msra.mxu0 0.0
        %1151 = vmatprep.subr.mxu0 0.0
        %1152 = vmatpush1.msra.mxu0 0.0
        %1153 = vmatprep.subr.mxu0 0.0
        %1154 = vmatpush1.msra.mxu0 0.0
        %1155 = vmatprep.subr.mxu0 0.0
        %1156 = vmatpush1.msra.mxu0 0.0
        %1157 = vmatprep.subr.mxu0 0.0
        %1158 = vmatpush1.msra.mxu0 0.0
        %1159 = vmatprep.subr.mxu0 0.0
        %1160 = vmatpush1.msra.mxu0 0.0
        %1161 = vmatprep.subr.mxu0 0.0
        %1162 = vmatpush1.msra.mxu0 0.0
        %1163 = vmatprep.subr.mxu0 %v343
        %1164 = vmatpush1.msra.mxu0 %v342
        %1165 = vmatprep.subr.mxu0 %v327
        %1166 = vmatpush1.msra.mxu0 %v326
        %1167 = vmatprep.subr.mxu0 %v311
        %1168 = vmatpush1.msra.mxu0 %v310
        %1169 = vmatprep.subr.mxu0 %v295
        %1170 = vmatpush1.msra.mxu0 %v294
        %1171 = vmatprep.subr.mxu0 0.0
        %1172 = vmatpush2.msra.mxu0 0.0
        %1173 = vmatprep.subr.mxu0 0.0
        %1174 = vmatpush2.msra.mxu0 0.0
        %1175 = vmatprep.subr.mxu0 0.0
        %1176 = vmatpush2.msra.mxu0 0.0
        %1177 = vmatprep.subr.mxu0 0.0
        %1178 = vmatpush2.msra.mxu0 0.0
        %1179 = vmatprep.subr.mxu0 0.0
        %1180 = vmatpush2.msra.mxu0 0.0
        %1181 = vmatprep.subr.mxu0 0.0
        %1182 = vmatpush2.msra.mxu0 0.0
        %1183 = vmatprep.subr.mxu0 0.0
        %1184 = vmatpush2.msra.mxu0 0.0
        %1185 = vmatprep.subr.mxu0 0.0
        %1186 = vmatpush2.msra.mxu0 0.0
        %1187 = vmatprep.subr.mxu0 0.0
        %1188 = vmatpush2.msra.mxu0 0.0
        %1189 = vmatprep.subr.mxu0 0.0
        %1190 = vmatpush2.msra.mxu0 0.0
        %1191 = vmatprep.subr.mxu0 0.0
        %1192 = vmatpush2.msra.mxu0 0.0
        %1193 = vmatprep.subr.mxu0 0.0
        %1194 = vmatpush2.msra.mxu0 0.0
        %1195 = vmatprep.subr.mxu0 0.0
        %1196 = vmatpush2.msra.mxu0 0.0
        %1197 = vmatprep.subr.mxu0 0.0
        %1198 = vmatpush2.msra.mxu0 0.0
        %1199 = vmatprep.subr.mxu0 0.0
        %1200 = vmatpush2.msra.mxu0 0.0
        %1201 = vmatprep.subr.mxu0 0.0
        %1202 = vmatpush2.msra.mxu0 0.0
        %1203 = vmatprep.mubr.f32.mxu0 0.0
        %1204 = vmatmul.mubr.f32.gmra.mxu0 %v448
        %v1205 = vpop.f32.mrf.mxu0
        %v1206 = vadd.f32 %v369, %v1205
        %v1207 = vpop.f32.mrf.mxu0
        %v1208 = vadd.f32 %v369, %v1207
        %1209 = vmatprep.mubr.f32.mxu0 0.0
        %1210 = vmatmul.mubr.f32.gmra.mxu0 %v451
        %v1211 = vpop.f32.mrf.mxu0
        %v1212 = vadd.f32 %v374, %v1211
        %v1213 = vpop.f32.mrf.mxu0
        %v1214 = vadd.f32 %v374, %v1213
        %1215 = vmatprep.mubr.f32.mxu0 0.0
        %1216 = vmatmul.mubr.f32.gmra.mxu0 %v454
        %v1217 = vpop.f32.mrf.mxu0
        %v1218 = vadd.f32 %v379, %v1217
        %v1219 = vpop.f32.mrf.mxu0
        %v1220 = vadd.f32 %v379, %v1219
        %1221 = vmatprep.mubr.f32.mxu0 0.0
        %1222 = vmatmul.mubr.f32.gmra.mxu0 %v457
        %v1223 = vpop.f32.mrf.mxu0
        %v1224 = vadd.f32 %v384, %v1223
        %v1225 = vpop.f32.mrf.mxu0
        %v1226 = vadd.f32 %v384, %v1225
        %1227 = vmatprep.mubr.f32.mxu0 0.0
        %1228 = vmatmul.mubr.f32.gmra.mxu0 %v460
        %v1229 = vpop.f32.mrf.mxu0
        %v1230 = vadd.f32 %v389, %v1229
        %v1231 = vpop.f32.mrf.mxu0
        %v1232 = vadd.f32 %v389, %v1231
        %1233 = vmatprep.mubr.f32.mxu0 0.0
        %1234 = vmatmul.mubr.f32.gmra.mxu0 %v463
        %v1235 = vpop.f32.mrf.mxu0
        %v1236 = vadd.f32 %v394, %v1235
        %v1237 = vpop.f32.mrf.mxu0
        %v1238 = vadd.f32 %v394, %v1237
        %1239 = vmatprep.mubr.f32.mxu0 0.0
        %1240 = vmatmul.mubr.f32.gmra.mxu0 %v466
        %v1241 = vpop.f32.mrf.mxu0
        %v1242 = vadd.f32 %v399, %v1241
        %v1243 = vpop.f32.mrf.mxu0
        %v1244 = vadd.f32 %v399, %v1243
        %1245 = vmatprep.mubr.f32.mxu0 0.0
        %1246 = vmatmul.mubr.f32.gmra.mxu0 %v469
        %v1247 = vpop.f32.mrf.mxu0
        %v1248 = vadd.f32 %v404, %v1247
        %v1249 = vpop.f32.mrf.mxu0
        %v1250 = vadd.f32 %v404, %v1249
        %1251 = vmatprep.mubr.f32.mxu0 0.0
        %1252 = vmatmul.mubr.f32.gmra.mxu0 %v472
        %v1253 = vpop.f32.mrf.mxu0
        %v1254 = vadd.f32 %v409, %v1253
        %v1255 = vpop.f32.mrf.mxu0
        %v1256 = vadd.f32 %v409, %v1255
        %1257 = vmatprep.mubr.f32.mxu0 0.0
        %1258 = vmatmul.mubr.f32.gmra.mxu0 %v475
        %v1259 = vpop.f32.mrf.mxu0
        %v1260 = vadd.f32 %v414, %v1259
        %v1261 = vpop.f32.mrf.mxu0
        %v1262 = vadd.f32 %v414, %v1261
        %1263 = vmatprep.mubr.f32.mxu0 0.0
        %1264 = vmatmul.mubr.f32.gmra.mxu0 %v478
        %v1265 = vpop.f32.mrf.mxu0
        %v1266 = vadd.f32 %v419, %v1265
        %v1267 = vpop.f32.mrf.mxu0
        %v1268 = vadd.f32 %v419, %v1267
        %1269 = vmatprep.mubr.f32.mxu0 0.0
        %1270 = vmatmul.mubr.f32.gmra.mxu0 %v481
        %v1271 = vpop.f32.mrf.mxu0
        %v1272 = vadd.f32 %v424, %v1271
        %v1273 = vpop.f32.mrf.mxu0
        %v1274 = vadd.f32 %v424, %v1273
        %1275 = vmatprep.mubr.f32.mxu0 0.0
        %1276 = vmatmul.mubr.f32.gmra.mxu0 %v484
        %v1277 = vpop.f32.mrf.mxu0
        %v1278 = vadd.f32 %v429, %v1277
        %v1279 = vpop.f32.mrf.mxu0
        %v1280 = vadd.f32 %v429, %v1279
        %1281 = vmatprep.mubr.f32.mxu0 0.0
        %1282 = vmatmul.mubr.f32.gmra.mxu0 %v487
        %v1283 = vpop.f32.mrf.mxu0
        %v1284 = vadd.f32 %v434, %v1283
        %v1285 = vpop.f32.mrf.mxu0
        %v1286 = vadd.f32 %v434, %v1285
        %1287 = vmatprep.mubr.f32.mxu0 0.0
        %1288 = vmatmul.mubr.f32.gmra.mxu0 %v490
        %v1289 = vpop.f32.mrf.mxu0
        %v1290 = vadd.f32 %v439, %v1289
        %v1291 = vpop.f32.mrf.mxu0
        %v1292 = vadd.f32 %v439, %v1291
        %1293 = vmatprep.mubr.f32.mxu0 0.0
        %1294 = vmatmul.mubr.f32.gmra.mxu0 %v493
        %v1295 = vpop.f32.mrf.mxu0
        %v1296 = vadd.f32 %v444, %v1295
        %v1297 = vpop.f32.mrf.mxu0
        %v1298 = vadd.f32 %v444, %v1297
        %1299 = vdwg.mxu0
        %1300 = vmatprep.subr.mxu0 0.0
        %1301 = vmatpush1.msra.mxu0 0.0
        %1302 = vmatprep.subr.mxu0 0.0
        %1303 = vmatpush1.msra.mxu0 0.0
        %1304 = vmatprep.subr.mxu0 0.0
        %1305 = vmatpush1.msra.mxu0 0.0
        %1306 = vmatprep.subr.mxu0 0.0
        %1307 = vmatpush1.msra.mxu0 0.0
        %1308 = vmatprep.subr.mxu0 0.0
        %1309 = vmatpush1.msra.mxu0 0.0
        %1310 = vmatprep.subr.mxu0 0.0
        %1311 = vmatpush1.msra.mxu0 0.0
        %1312 = vmatprep.subr.mxu0 0.0
        %1313 = vmatpush1.msra.mxu0 0.0
        %1314 = vmatprep.subr.mxu0 0.0
        %1315 = vmatpush1.msra.mxu0 0.0
        %1316 = vmatprep.subr.mxu0 0.0
        %1317 = vmatpush1.msra.mxu0 0.0
        %1318 = vmatprep.subr.mxu0 0.0
        %1319 = vmatpush1.msra.mxu0 0.0
        %1320 = vmatprep.subr.mxu0 0.0
        %1321 = vmatpush1.msra.mxu0 0.0
        %1322 = vmatprep.subr.mxu0 0.0
        %1323 = vmatpush1.msra.mxu0 0.0
        %1324 = vmatprep.subr.mxu0 %v345
        %1325 = vmatpush1.msra.mxu0 %v344
        %1326 = vmatprep.subr.mxu0 %v329
        %1327 = vmatpush1.msra.mxu0 %v328
        %1328 = vmatprep.subr.mxu0 %v313
        %1329 = vmatpush1.msra.mxu0 %v312
        %1330 = vmatprep.subr.mxu0 %v297
        %1331 = vmatpush1.msra.mxu0 %v296
        %1332 = vmatprep.subr.mxu0 0.0
        %1333 = vmatpush2.msra.mxu0 0.0
        %1334 = vmatprep.subr.mxu0 0.0
        %1335 = vmatpush2.msra.mxu0 0.0
        %1336 = vmatprep.subr.mxu0 0.0
        %1337 = vmatpush2.msra.mxu0 0.0
        %1338 = vmatprep.subr.mxu0 0.0
        %1339 = vmatpush2.msra.mxu0 0.0
        %1340 = vmatprep.subr.mxu0 0.0
        %1341 = vmatpush2.msra.mxu0 0.0
        %1342 = vmatprep.subr.mxu0 0.0
        %1343 = vmatpush2.msra.mxu0 0.0
        %1344 = vmatprep.subr.mxu0 0.0
        %1345 = vmatpush2.msra.mxu0 0.0
        %1346 = vmatprep.subr.mxu0 0.0
        %1347 = vmatpush2.msra.mxu0 0.0
        %1348 = vmatprep.subr.mxu0 0.0
        %1349 = vmatpush2.msra.mxu0 0.0
        %1350 = vmatprep.subr.mxu0 0.0
        %1351 = vmatpush2.msra.mxu0 0.0
        %1352 = vmatprep.subr.mxu0 0.0
        %1353 = vmatpush2.msra.mxu0 0.0
        %1354 = vmatprep.subr.mxu0 0.0
        %1355 = vmatpush2.msra.mxu0 0.0
        %1356 = vmatprep.subr.mxu0 0.0
        %1357 = vmatpush2.msra.mxu0 0.0
        %1358 = vmatprep.subr.mxu0 0.0
        %1359 = vmatpush2.msra.mxu0 0.0
        %1360 = vmatprep.subr.mxu0 0.0
        %1361 = vmatpush2.msra.mxu0 0.0
        %1362 = vmatprep.subr.mxu0 0.0
        %1363 = vmatpush2.msra.mxu0 0.0
        %1364 = vmatprep.mubr.f32.mxu0 0.0
        %1365 = vmatmul.mubr.f32.gmra.mxu0 %v448
        %v1366 = vpop.f32.mrf.mxu0
        %v1367 = vadd.f32 %v369, %v1366
        %v1368 = vpop.f32.mrf.mxu0
        %v1369 = vadd.f32 %v369, %v1368
        %1370 = vmatprep.mubr.f32.mxu0 0.0
        %1371 = vmatmul.mubr.f32.gmra.mxu0 %v451
        %v1372 = vpop.f32.mrf.mxu0
        %v1373 = vadd.f32 %v374, %v1372
        %v1374 = vpop.f32.mrf.mxu0
        %v1375 = vadd.f32 %v374, %v1374
        %1376 = vmatprep.mubr.f32.mxu0 0.0
        %1377 = vmatmul.mubr.f32.gmra.mxu0 %v454
        %v1378 = vpop.f32.mrf.mxu0
        %v1379 = vadd.f32 %v379, %v1378
        %v1380 = vpop.f32.mrf.mxu0
        %v1381 = vadd.f32 %v379, %v1380
        %1382 = vmatprep.mubr.f32.mxu0 0.0
        %1383 = vmatmul.mubr.f32.gmra.mxu0 %v457
        %v1384 = vpop.f32.mrf.mxu0
        %v1385 = vadd.f32 %v384, %v1384
        %v1386 = vpop.f32.mrf.mxu0
        %v1387 = vadd.f32 %v384, %v1386
        %1388 = vmatprep.mubr.f32.mxu0 0.0
        %1389 = vmatmul.mubr.f32.gmra.mxu0 %v460
        %v1390 = vpop.f32.mrf.mxu0
        %v1391 = vadd.f32 %v389, %v1390
        %v1392 = vpop.f32.mrf.mxu0
        %v1393 = vadd.f32 %v389, %v1392
        %1394 = vmatprep.mubr.f32.mxu0 0.0
        %1395 = vmatmul.mubr.f32.gmra.mxu0 %v463
        %v1396 = vpop.f32.mrf.mxu0
        %v1397 = vadd.f32 %v394, %v1396
        %v1398 = vpop.f32.mrf.mxu0
        %v1399 = vadd.f32 %v394, %v1398
        %1400 = vmatprep.mubr.f32.mxu0 0.0
        %1401 = vmatmul.mubr.f32.gmra.mxu0 %v466
        %v1402 = vpop.f32.mrf.mxu0
        %v1403 = vadd.f32 %v399, %v1402
        %v1404 = vpop.f32.mrf.mxu0
        %v1405 = vadd.f32 %v399, %v1404
        %1406 = vmatprep.mubr.f32.mxu0 0.0
        %1407 = vmatmul.mubr.f32.gmra.mxu0 %v469
        %v1408 = vpop.f32.mrf.mxu0
        %v1409 = vadd.f32 %v404, %v1408
        %v1410 = vpop.f32.mrf.mxu0
        %v1411 = vadd.f32 %v404, %v1410
        %1412 = vmatprep.mubr.f32.mxu0 0.0
        %1413 = vmatmul.mubr.f32.gmra.mxu0 %v472
        %v1414 = vpop.f32.mrf.mxu0
        %v1415 = vadd.f32 %v409, %v1414
        %v1416 = vpop.f32.mrf.mxu0
        %v1417 = vadd.f32 %v409, %v1416
        %1418 = vmatprep.mubr.f32.mxu0 0.0
        %1419 = vmatmul.mubr.f32.gmra.mxu0 %v475
        %v1420 = vpop.f32.mrf.mxu0
        %v1421 = vadd.f32 %v414, %v1420
        %v1422 = vpop.f32.mrf.mxu0
        %v1423 = vadd.f32 %v414, %v1422
        %1424 = vmatprep.mubr.f32.mxu0 0.0
        %1425 = vmatmul.mubr.f32.gmra.mxu0 %v478
        %v1426 = vpop.f32.mrf.mxu0
        %v1427 = vadd.f32 %v419, %v1426
        %v1428 = vpop.f32.mrf.mxu0
        %v1429 = vadd.f32 %v419, %v1428
        %1430 = vmatprep.mubr.f32.mxu0 0.0
        %1431 = vmatmul.mubr.f32.gmra.mxu0 %v481
        %v1432 = vpop.f32.mrf.mxu0
        %v1433 = vadd.f32 %v424, %v1432
        %v1434 = vpop.f32.mrf.mxu0
        %v1435 = vadd.f32 %v424, %v1434
        %1436 = vmatprep.mubr.f32.mxu0 0.0
        %1437 = vmatmul.mubr.f32.gmra.mxu0 %v484
        %v1438 = vpop.f32.mrf.mxu0
        %v1439 = vadd.f32 %v429, %v1438
        %v1440 = vpop.f32.mrf.mxu0
        %v1441 = vadd.f32 %v429, %v1440
        %1442 = vmatprep.mubr.f32.mxu0 0.0
        %1443 = vmatmul.mubr.f32.gmra.mxu0 %v487
        %v1444 = vpop.f32.mrf.mxu0
        %v1445 = vadd.f32 %v434, %v1444
        %v1446 = vpop.f32.mrf.mxu0
        %v1447 = vadd.f32 %v434, %v1446
        %1448 = vmatprep.mubr.f32.mxu0 0.0
        %1449 = vmatmul.mubr.f32.gmra.mxu0 %v490
        %v1450 = vpop.f32.mrf.mxu0
        %v1451 = vadd.f32 %v439, %v1450
        %v1452 = vpop.f32.mrf.mxu0
        %v1453 = vadd.f32 %v439, %v1452
        %1454 = vmatprep.mubr.f32.mxu0 0.0
        %1455 = vmatmul.mubr.f32.gmra.mxu0 %v493
        %v1456 = vpop.f32.mrf.mxu0
        %v1457 = vadd.f32 %v444, %v1456
        %v1458 = vpop.f32.mrf.mxu0
        %v1459 = vadd.f32 %v444, %v1458
        %1460 = vdwg.mxu0
        %1461 = vmatprep.subr.mxu0 0.0
        %1462 = vmatpush1.msra.mxu0 0.0
        %1463 = vmatprep.subr.mxu0 0.0
        %1464 = vmatpush1.msra.mxu0 0.0
        %1465 = vmatprep.subr.mxu0 0.0
        %1466 = vmatpush1.msra.mxu0 0.0
        %1467 = vmatprep.subr.mxu0 0.0
        %1468 = vmatpush1.msra.mxu0 0.0
        %1469 = vmatprep.subr.mxu0 0.0
        %1470 = vmatpush1.msra.mxu0 0.0
        %1471 = vmatprep.subr.mxu0 0.0
        %1472 = vmatpush1.msra.mxu0 0.0
        %1473 = vmatprep.subr.mxu0 0.0
        %1474 = vmatpush1.msra.mxu0 0.0
        %1475 = vmatprep.subr.mxu0 0.0
        %1476 = vmatpush1.msra.mxu0 0.0
        %1477 = vmatprep.subr.mxu0 0.0
        %1478 = vmatpush1.msra.mxu0 0.0
        %1479 = vmatprep.subr.mxu0 0.0
        %1480 = vmatpush1.msra.mxu0 0.0
        %1481 = vmatprep.subr.mxu0 0.0
        %1482 = vmatpush1.msra.mxu0 0.0
        %1483 = vmatprep.subr.mxu0 0.0
        %1484 = vmatpush1.msra.mxu0 0.0
        %1485 = vmatprep.subr.mxu0 %v347
        %1486 = vmatpush1.msra.mxu0 %v346
        %1487 = vmatprep.subr.mxu0 %v331
        %1488 = vmatpush1.msra.mxu0 %v330
        %1489 = vmatprep.subr.mxu0 %v315
        %1490 = vmatpush1.msra.mxu0 %v314
        %1491 = vmatprep.subr.mxu0 %v299
        %1492 = vmatpush1.msra.mxu0 %v298
        %1493 = vmatprep.subr.mxu0 0.0
        %1494 = vmatpush2.msra.mxu0 0.0
        %1495 = vmatprep.subr.mxu0 0.0
        %1496 = vmatpush2.msra.mxu0 0.0
        %1497 = vmatprep.subr.mxu0 0.0
        %1498 = vmatpush2.msra.mxu0 0.0
        %1499 = vmatprep.subr.mxu0 0.0
        %1500 = vmatpush2.msra.mxu0 0.0
        %1501 = vmatprep.subr.mxu0 0.0
        %1502 = vmatpush2.msra.mxu0 0.0
        %1503 = vmatprep.subr.mxu0 0.0
        %1504 = vmatpush2.msra.mxu0 0.0
        %1505 = vmatprep.subr.mxu0 0.0
        %1506 = vmatpush2.msra.mxu0 0.0
        %1507 = vmatprep.subr.mxu0 0.0
        %1508 = vmatpush2.msra.mxu0 0.0
        %1509 = vmatprep.subr.mxu0 0.0
        %1510 = vmatpush2.msra.mxu0 0.0
        %1511 = vmatprep.subr.mxu0 0.0
        %1512 = vmatpush2.msra.mxu0 0.0
        %1513 = vmatprep.subr.mxu0 0.0
        %1514 = vmatpush2.msra.mxu0 0.0
        %1515 = vmatprep.subr.mxu0 0.0
        %1516 = vmatpush2.msra.mxu0 0.0
        %1517 = vmatprep.subr.mxu0 0.0
        %1518 = vmatpush2.msra.mxu0 0.0
        %1519 = vmatprep.subr.mxu0 0.0
        %1520 = vmatpush2.msra.mxu0 0.0
        %1521 = vmatprep.subr.mxu0 0.0
        %1522 = vmatpush2.msra.mxu0 0.0
        %1523 = vmatprep.subr.mxu0 0.0
        %1524 = vmatpush2.msra.mxu0 0.0
        %1525 = vmatprep.mubr.f32.mxu0 0.0
        %1526 = vmatmul.mubr.f32.gmra.mxu0 %v448
        %v1527 = vpop.f32.mrf.mxu0
        %v1528 = vadd.f32 %v369, %v1527
        %v1529 = vpop.f32.mrf.mxu0
        %v1530 = vadd.f32 %v369, %v1529
        %1531 = vmatprep.mubr.f32.mxu0 0.0
        %1532 = vmatmul.mubr.f32.gmra.mxu0 %v451
        %v1533 = vpop.f32.mrf.mxu0
        %v1534 = vadd.f32 %v374, %v1533
        %v1535 = vpop.f32.mrf.mxu0
        %v1536 = vadd.f32 %v374, %v1535
        %1537 = vmatprep.mubr.f32.mxu0 0.0
        %1538 = vmatmul.mubr.f32.gmra.mxu0 %v454
        %v1539 = vpop.f32.mrf.mxu0
        %v1540 = vadd.f32 %v379, %v1539
        %v1541 = vpop.f32.mrf.mxu0
        %v1542 = vadd.f32 %v379, %v1541
        %1543 = vmatprep.mubr.f32.mxu0 0.0
        %1544 = vmatmul.mubr.f32.gmra.mxu0 %v457
        %v1545 = vpop.f32.mrf.mxu0
        %v1546 = vadd.f32 %v384, %v1545
        %v1547 = vpop.f32.mrf.mxu0
        %v1548 = vadd.f32 %v384, %v1547
        %1549 = vmatprep.mubr.f32.mxu0 0.0
        %1550 = vmatmul.mubr.f32.gmra.mxu0 %v460
        %v1551 = vpop.f32.mrf.mxu0
        %v1552 = vadd.f32 %v389, %v1551
        %v1553 = vpop.f32.mrf.mxu0
        %v1554 = vadd.f32 %v389, %v1553
        %1555 = vmatprep.mubr.f32.mxu0 0.0
        %1556 = vmatmul.mubr.f32.gmra.mxu0 %v463
        %v1557 = vpop.f32.mrf.mxu0
        %v1558 = vadd.f32 %v394, %v1557
        %v1559 = vpop.f32.mrf.mxu0
        %v1560 = vadd.f32 %v394, %v1559
        %1561 = vmatprep.mubr.f32.mxu0 0.0
        %1562 = vmatmul.mubr.f32.gmra.mxu0 %v466
        %v1563 = vpop.f32.mrf.mxu0
        %v1564 = vadd.f32 %v399, %v1563
        %v1565 = vpop.f32.mrf.mxu0
        %v1566 = vadd.f32 %v399, %v1565
        %1567 = vmatprep.mubr.f32.mxu0 0.0
        %1568 = vmatmul.mubr.f32.gmra.mxu0 %v469
        %v1569 = vpop.f32.mrf.mxu0
        %v1570 = vadd.f32 %v404, %v1569
        %v1571 = vpop.f32.mrf.mxu0
        %v1572 = vadd.f32 %v404, %v1571
        %1573 = vmatprep.mubr.f32.mxu0 0.0
        %1574 = vmatmul.mubr.f32.gmra.mxu0 %v472
        %v1575 = vpop.f32.mrf.mxu0
        %v1576 = vadd.f32 %v409, %v1575
        %v1577 = vpop.f32.mrf.mxu0
        %v1578 = vadd.f32 %v409, %v1577
        %1579 = vmatprep.mubr.f32.mxu0 0.0
        %1580 = vmatmul.mubr.f32.gmra.mxu0 %v475
        %v1581 = vpop.f32.mrf.mxu0
        %v1582 = vadd.f32 %v414, %v1581
        %v1583 = vpop.f32.mrf.mxu0
        %v1584 = vadd.f32 %v414, %v1583
        %1585 = vmatprep.mubr.f32.mxu0 0.0
        %1586 = vmatmul.mubr.f32.gmra.mxu0 %v478
        %v1587 = vpop.f32.mrf.mxu0
        %v1588 = vadd.f32 %v419, %v1587
        %v1589 = vpop.f32.mrf.mxu0
        %v1590 = vadd.f32 %v419, %v1589
        %1591 = vmatprep.mubr.f32.mxu0 0.0
        %1592 = vmatmul.mubr.f32.gmra.mxu0 %v481
        %v1593 = vpop.f32.mrf.mxu0
        %v1594 = vadd.f32 %v424, %v1593
        %v1595 = vpop.f32.mrf.mxu0
        %v1596 = vadd.f32 %v424, %v1595
        %1597 = vmatprep.mubr.f32.mxu0 0.0
        %1598 = vmatmul.mubr.f32.gmra.mxu0 %v484
        %v1599 = vpop.f32.mrf.mxu0
        %v1600 = vadd.f32 %v429, %v1599
        %v1601 = vpop.f32.mrf.mxu0
        %v1602 = vadd.f32 %v429, %v1601
        %1603 = vmatprep.mubr.f32.mxu0 0.0
        %1604 = vmatmul.mubr.f32.gmra.mxu0 %v487
        %v1605 = vpop.f32.mrf.mxu0
        %v1606 = vadd.f32 %v434, %v1605
        %v1607 = vpop.f32.mrf.mxu0
        %v1608 = vadd.f32 %v434, %v1607
        %1609 = vmatprep.mubr.f32.mxu0 0.0
        %1610 = vmatmul.mubr.f32.gmra.mxu0 %v490
        %v1611 = vpop.f32.mrf.mxu0
        %v1612 = vadd.f32 %v439, %v1611
        %v1613 = vpop.f32.mrf.mxu0
        %v1614 = vadd.f32 %v439, %v1613
        %1615 = vmatprep.mubr.f32.mxu0 0.0
        %1616 = vmatmul.mubr.f32.gmra.mxu0 %v493
        %v1617 = vpop.f32.mrf.mxu0
        %v1618 = vadd.f32 %v444, %v1617
        %v1619 = vpop.f32.mrf.mxu0
        %v1620 = vadd.f32 %v444, %v1619
        %1621 = vdwg.mxu0
        %1622 = vmatprep.subr.mxu0 0.0
        %1623 = vmatpush1.msra.mxu0 0.0
        %1624 = vmatprep.subr.mxu0 0.0
        %1625 = vmatpush1.msra.mxu0 0.0
        %1626 = vmatprep.subr.mxu0 0.0
        %1627 = vmatpush1.msra.mxu0 0.0
        %1628 = vmatprep.subr.mxu0 0.0
        %1629 = vmatpush1.msra.mxu0 0.0
        %1630 = vmatprep.subr.mxu0 0.0
        %1631 = vmatpush1.msra.mxu0 0.0
        %1632 = vmatprep.subr.mxu0 0.0
        %1633 = vmatpush1.msra.mxu0 0.0
        %1634 = vmatprep.subr.mxu0 0.0
        %1635 = vmatpush1.msra.mxu0 0.0
        %1636 = vmatprep.subr.mxu0 0.0
        %1637 = vmatpush1.msra.mxu0 0.0
        %1638 = vmatprep.subr.mxu0 0.0
        %1639 = vmatpush1.msra.mxu0 0.0
        %1640 = vmatprep.subr.mxu0 0.0
        %1641 = vmatpush1.msra.mxu0 0.0
        %1642 = vmatprep.subr.mxu0 0.0
        %1643 = vmatpush1.msra.mxu0 0.0
        %1644 = vmatprep.subr.mxu0 0.0
        %1645 = vmatpush1.msra.mxu0 0.0
        %1646 = vmatprep.subr.mxu0 %v349
        %1647 = vmatpush1.msra.mxu0 %v348
        %1648 = vmatprep.subr.mxu0 %v333
        %1649 = vmatpush1.msra.mxu0 %v332
        %1650 = vmatprep.subr.mxu0 %v317
        %1651 = vmatpush1.msra.mxu0 %v316
        %1652 = vmatprep.subr.mxu0 %v301
        %1653 = vmatpush1.msra.mxu0 %v300
        %1654 = vmatprep.subr.mxu0 0.0
        %1655 = vmatpush2.msra.mxu0 0.0
        %1656 = vmatprep.subr.mxu0 0.0
        %1657 = vmatpush2.msra.mxu0 0.0
        %1658 = vmatprep.subr.mxu0 0.0
        %1659 = vmatpush2.msra.mxu0 0.0
        %1660 = vmatprep.subr.mxu0 0.0
        %1661 = vmatpush2.msra.mxu0 0.0
        %1662 = vmatprep.subr.mxu0 0.0
        %1663 = vmatpush2.msra.mxu0 0.0
        %1664 = vmatprep.subr.mxu0 0.0
        %1665 = vmatpush2.msra.mxu0 0.0
        %1666 = vmatprep.subr.mxu0 0.0
        %1667 = vmatpush2.msra.mxu0 0.0
        %1668 = vmatprep.subr.mxu0 0.0
        %1669 = vmatpush2.msra.mxu0 0.0
        %1670 = vmatprep.subr.mxu0 0.0
        %1671 = vmatpush2.msra.mxu0 0.0
        %1672 = vmatprep.subr.mxu0 0.0
        %1673 = vmatpush2.msra.mxu0 0.0
        %1674 = vmatprep.subr.mxu0 0.0
        %1675 = vmatpush2.msra.mxu0 0.0
        %1676 = vmatprep.subr.mxu0 0.0
        %1677 = vmatpush2.msra.mxu0 0.0
        %1678 = vmatprep.subr.mxu0 0.0
        %1679 = vmatpush2.msra.mxu0 0.0
        %1680 = vmatprep.subr.mxu0 0.0
        %1681 = vmatpush2.msra.mxu0 0.0
        %1682 = vmatprep.subr.mxu0 0.0
        %1683 = vmatpush2.msra.mxu0 0.0
        %1684 = vmatprep.subr.mxu0 0.0
        %1685 = vmatpush2.msra.mxu0 0.0
        %1686 = vmatprep.mubr.f32.mxu0 0.0
        %1687 = vmatmul.mubr.f32.gmra.mxu0 %v448
        %v1688 = vpop.f32.mrf.mxu0
        %v1689 = vadd.f32 %v369, %v1688
        %v1690 = vpop.f32.mrf.mxu0
        %v1691 = vadd.f32 %v369, %v1690
        %1692 = vmatprep.mubr.f32.mxu0 0.0
        %1693 = vmatmul.mubr.f32.gmra.mxu0 %v451
        %v1694 = vpop.f32.mrf.mxu0
        %v1695 = vadd.f32 %v374, %v1694
        %v1696 = vpop.f32.mrf.mxu0
        %v1697 = vadd.f32 %v374, %v1696
        %1698 = vmatprep.mubr.f32.mxu0 0.0
        %1699 = vmatmul.mubr.f32.gmra.mxu0 %v454
        %v1700 = vpop.f32.mrf.mxu0
        %v1701 = vadd.f32 %v379, %v1700
        %v1702 = vpop.f32.mrf.mxu0
        %v1703 = vadd.f32 %v379, %v1702
        %1704 = vmatprep.mubr.f32.mxu0 0.0
        %1705 = vmatmul.mubr.f32.gmra.mxu0 %v457
        %v1706 = vpop.f32.mrf.mxu0
        %v1707 = vadd.f32 %v384, %v1706
        %v1708 = vpop.f32.mrf.mxu0
        %v1709 = vadd.f32 %v384, %v1708
        %1710 = vmatprep.mubr.f32.mxu0 0.0
        %1711 = vmatmul.mubr.f32.gmra.mxu0 %v460
        %v1712 = vpop.f32.mrf.mxu0
        %v1713 = vadd.f32 %v389, %v1712
        %v1714 = vpop.f32.mrf.mxu0
        %v1715 = vadd.f32 %v389, %v1714
        %1716 = vmatprep.mubr.f32.mxu0 0.0
        %1717 = vmatmul.mubr.f32.gmra.mxu0 %v463
        %v1718 = vpop.f32.mrf.mxu0
        %v1719 = vadd.f32 %v394, %v1718
        %v1720 = vpop.f32.mrf.mxu0
        %v1721 = vadd.f32 %v394, %v1720
        %1722 = vmatprep.mubr.f32.mxu0 0.0
        %1723 = vmatmul.mubr.f32.gmra.mxu0 %v466
        %v1724 = vpop.f32.mrf.mxu0
        %v1725 = vadd.f32 %v399, %v1724
        %v1726 = vpop.f32.mrf.mxu0
        %v1727 = vadd.f32 %v399, %v1726
        %1728 = vmatprep.mubr.f32.mxu0 0.0
        %1729 = vmatmul.mubr.f32.gmra.mxu0 %v469
        %v1730 = vpop.f32.mrf.mxu0
        %v1731 = vadd.f32 %v404, %v1730
        %v1732 = vpop.f32.mrf.mxu0
        %v1733 = vadd.f32 %v404, %v1732
        %1734 = vmatprep.mubr.f32.mxu0 0.0
        %1735 = vmatmul.mubr.f32.gmra.mxu0 %v472
        %v1736 = vpop.f32.mrf.mxu0
        %v1737 = vadd.f32 %v409, %v1736
        %v1738 = vpop.f32.mrf.mxu0
        %v1739 = vadd.f32 %v409, %v1738
        %1740 = vmatprep.mubr.f32.mxu0 0.0
        %1741 = vmatmul.mubr.f32.gmra.mxu0 %v475
        %v1742 = vpop.f32.mrf.mxu0
        %v1743 = vadd.f32 %v414, %v1742
        %v1744 = vpop.f32.mrf.mxu0
        %v1745 = vadd.f32 %v414, %v1744
        %1746 = vmatprep.mubr.f32.mxu0 0.0
        %1747 = vmatmul.mubr.f32.gmra.mxu0 %v478
        %v1748 = vpop.f32.mrf.mxu0
        %v1749 = vadd.f32 %v419, %v1748
        %v1750 = vpop.f32.mrf.mxu0
        %v1751 = vadd.f32 %v419, %v1750
        %1752 = vmatprep.mubr.f32.mxu0 0.0
        %1753 = vmatmul.mubr.f32.gmra.mxu0 %v481
        %v1754 = vpop.f32.mrf.mxu0
        %v1755 = vadd.f32 %v424, %v1754
        %v1756 = vpop.f32.mrf.mxu0
        %v1757 = vadd.f32 %v424, %v1756
        %1758 = vmatprep.mubr.f32.mxu0 0.0
        %1759 = vmatmul.mubr.f32.gmra.mxu0 %v484
        %v1760 = vpop.f32.mrf.mxu0
        %v1761 = vadd.f32 %v429, %v1760
        %v1762 = vpop.f32.mrf.mxu0
        %v1763 = vadd.f32 %v429, %v1762
        %1764 = vmatprep.mubr.f32.mxu0 0.0
        %1765 = vmatmul.mubr.f32.gmra.mxu0 %v487
        %v1766 = vpop.f32.mrf.mxu0
        %v1767 = vadd.f32 %v434, %v1766
        %v1768 = vpop.f32.mrf.mxu0
        %v1769 = vadd.f32 %v434, %v1768
        %1770 = vmatprep.mubr.f32.mxu0 0.0
        %1771 = vmatmul.mubr.f32.gmra.mxu0 %v490
        %v1772 = vpop.f32.mrf.mxu0
        %v1773 = vadd.f32 %v439, %v1772
        %v1774 = vpop.f32.mrf.mxu0
        %v1775 = vadd.f32 %v439, %v1774
        %1776 = vmatprep.mubr.f32.mxu0 0.0
        %1777 = vmatmul.mubr.f32.gmra.mxu0 %v493
        %v1778 = vpop.f32.mrf.mxu0
        %v1779 = vadd.f32 %v444, %v1778
        %v1780 = vpop.f32.mrf.mxu0
        %v1781 = vadd.f32 %v444, %v1780
        %1782 = vdwg.mxu0
        %1783 = vst [vmem:[#allocation2] sm:$0xff] %v562
        %1784 = vst [vmem:[#allocation2 + $0x8] sm:$0xff] %v564
        %1785 = vst [vmem:[#allocation2 + $0x10] sm:$0xff] %v723
        %1786 = vst [vmem:[#allocation2 + $0x18] sm:$0xff] %v725
        %1787 = vst [vmem:[#allocation2 + $0x20] sm:$0xff] %v884
        %1788 = vst [vmem:[#allocation2 + $0x28] sm:$0xff] %v886
        %1789 = vst [vmem:[#allocation2 + $0x30] sm:$0xff] %v1045
        %1790 = vst [vmem:[#allocation2 + $0x38] sm:$0xff] %v1047
        %1791 = vst [vmem:[#allocation2 + $0x40] sm:$0xff] %v1206
        %1792 = vst [vmem:[#allocation2 + $0x48] sm:$0xff] %v1208
        %1793 = vst [vmem:[#allocation2 + $0x50] sm:$0xff] %v1367
        %1794 = vst [vmem:[#allocation2 + $0x58] sm:$0xff] %v1369
        %1795 = vst [vmem:[#allocation2 + $0x60] sm:$0xff] %v1528
        %1796 = vst [vmem:[#allocation2 + $0x68] sm:$0xff] %v1530
        %1797 = vst [vmem:[#allocation2 + $0x70] sm:$0xff] %v1689
        %1798 = vst [vmem:[#allocation2 + $0x78] sm:$0xff] %v1691
        %1799 = vst [vmem:[#allocation2 + $0x80] sm:$0xff] %v568
        %1800 = vst [vmem:[#allocation2 + $0x88] sm:$0xff] %v570
        %1801 = vst [vmem:[#allocation2 + $0x90] sm:$0xff] %v729
        %1802 = vst [vmem:[#allocation2 + $0x98] sm:$0xff] %v731
        %1803 = vst [vmem:[#allocation2 + $0xa0] sm:$0xff] %v890
        %1804 = vst [vmem:[#allocation2 + $0xa8] sm:$0xff] %v892
        %1805 = vst [vmem:[#allocation2 + $0xb0] sm:$0xff] %v1051
        %1806 = vst [vmem:[#allocation2 + $0xb8] sm:$0xff] %v1053
        %1807 = vst [vmem:[#allocation2 + $0xc0] sm:$0xff] %v1212
        %1808 = vst [vmem:[#allocation2 + $0xc8] sm:$0xff] %v1214
        %1809 = vst [vmem:[#allocation2 + $0xd0] sm:$0xff] %v1373
        %1810 = vst [vmem:[#allocation2 + $0xd8] sm:$0xff] %v1375
        %1811 = vst [vmem:[#allocation2 + $0xe0] sm:$0xff] %v1534
        %1812 = vst [vmem:[#allocation2 + $0xe8] sm:$0xff] %v1536
        %1813 = vst [vmem:[#allocation2 + $0xf0] sm:$0xff] %v1695
        %1814 = vst [vmem:[#allocation2 + $0xf8] sm:$0xff] %v1697
        %1815 = vst [vmem:[#allocation2 + $0x100] sm:$0xff] %v574
        %1816 = vst [vmem:[#allocation2 + $0x108] sm:$0xff] %v576
        %1817 = vst [vmem:[#allocation2 + $0x110] sm:$0xff] %v735
        %1818 = vst [vmem:[#allocation2 + $0x118] sm:$0xff] %v737
        %1819 = vst [vmem:[#allocation2 + $0x120] sm:$0xff] %v896
        %1820 = vst [vmem:[#allocation2 + $0x128] sm:$0xff] %v898
        %1821 = vst [vmem:[#allocation2 + $0x130] sm:$0xff] %v1057
        %1822 = vst [vmem:[#allocation2 + $0x138] sm:$0xff] %v1059
        %1823 = vst [vmem:[#allocation2 + $0x140] sm:$0xff] %v1218
        %1824 = vst [vmem:[#allocation2 + $0x148] sm:$0xff] %v1220
        %1825 = vst [vmem:[#allocation2 + $0x150] sm:$0xff] %v1379
        %1826 = vst [vmem:[#allocation2 + $0x158] sm:$0xff] %v1381
        %1827 = vst [vmem:[#allocation2 + $0x160] sm:$0xff] %v1540
        %1828 = vst [vmem:[#allocation2 + $0x168] sm:$0xff] %v1542
        %1829 = vst [vmem:[#allocation2 + $0x170] sm:$0xff] %v1701
        %1830 = vst [vmem:[#allocation2 + $0x178] sm:$0xff] %v1703
        %1831 = vst [vmem:[#allocation2 + $0x180] sm:$0xff] %v580
        %1832 = vst [vmem:[#allocation2 + $0x188] sm:$0xff] %v582
        %1833 = vst [vmem:[#allocation2 + $0x190] sm:$0xff] %v741
        %1834 = vst [vmem:[#allocation2 + $0x198] sm:$0xff] %v743
        %1835 = vst [vmem:[#allocation2 + $0x1a0] sm:$0xff] %v902
        %1836 = vst [vmem:[#allocation2 + $0x1a8] sm:$0xff] %v904
        %1837 = vst [vmem:[#allocation2 + $0x1b0] sm:$0xff] %v1063
        %1838 = vst [vmem:[#allocation2 + $0x1b8] sm:$0xff] %v1065
        %1839 = vst [vmem:[#allocation2 + $0x1c0] sm:$0xff] %v1224
        %1840 = vst [vmem:[#allocation2 + $0x1c8] sm:$0xff] %v1226
        %1841 = vst [vmem:[#allocation2 + $0x1d0] sm:$0xff] %v1385
        %1842 = vst [vmem:[#allocation2 + $0x1d8] sm:$0xff] %v1387
        %1843 = vst [vmem:[#allocation2 + $0x1e0] sm:$0xff] %v1546
        %1844 = vst [vmem:[#allocation2 + $0x1e8] sm:$0xff] %v1548
        %1845 = vst [vmem:[#allocation2 + $0x1f0] sm:$0xff] %v1707
        %1846 = vst [vmem:[#allocation2 + $0x1f8] sm:$0xff] %v1709
        %1847 = vst [vmem:[#allocation2 + $0x200] sm:$0xff] %v586
        %1848 = vst [vmem:[#allocation2 + $0x208] sm:$0xff] %v588
        %1849 = vst [vmem:[#allocation2 + $0x210] sm:$0xff] %v747
        %1850 = vst [vmem:[#allocation2 + $0x218] sm:$0xff] %v749
        %1851 = vst [vmem:[#allocation2 + $0x220] sm:$0xff] %v908
        %1852 = vst [vmem:[#allocation2 + $0x228] sm:$0xff] %v910
        %1853 = vst [vmem:[#allocation2 + $0x230] sm:$0xff] %v1069
        %1854 = vst [vmem:[#allocation2 + $0x238] sm:$0xff] %v1071
        %1855 = vst [vmem:[#allocation2 + $0x240] sm:$0xff] %v1230
        %1856 = vst [vmem:[#allocation2 + $0x248] sm:$0xff] %v1232
        %1857 = vst [vmem:[#allocation2 + $0x250] sm:$0xff] %v1391
        %1858 = vst [vmem:[#allocation2 + $0x258] sm:$0xff] %v1393
        %1859 = vst [vmem:[#allocation2 + $0x260] sm:$0xff] %v1552
        %1860 = vst [vmem:[#allocation2 + $0x268] sm:$0xff] %v1554
        %1861 = vst [vmem:[#allocation2 + $0x270] sm:$0xff] %v1713
        %1862 = vst [vmem:[#allocation2 + $0x278] sm:$0xff] %v1715
        %1863 = vst [vmem:[#allocation2 + $0x280] sm:$0xff] %v592
        %1864 = vst [vmem:[#allocation2 + $0x288] sm:$0xff] %v594
        %1865 = vst [vmem:[#allocation2 + $0x290] sm:$0xff] %v753
        %1866 = vst [vmem:[#allocation2 + $0x298] sm:$0xff] %v755
        %1867 = vst [vmem:[#allocation2 + $0x2a0] sm:$0xff] %v914
        %1868 = vst [vmem:[#allocation2 + $0x2a8] sm:$0xff] %v916
        %1869 = vst [vmem:[#allocation2 + $0x2b0] sm:$0xff] %v1075
        %1870 = vst [vmem:[#allocation2 + $0x2b8] sm:$0xff] %v1077
        %1871 = vst [vmem:[#allocation2 + $0x2c0] sm:$0xff] %v1236
        %1872 = vst [vmem:[#allocation2 + $0x2c8] sm:$0xff] %v1238
        %1873 = vst [vmem:[#allocation2 + $0x2d0] sm:$0xff] %v1397
        %1874 = vst [vmem:[#allocation2 + $0x2d8] sm:$0xff] %v1399
        %1875 = vst [vmem:[#allocation2 + $0x2e0] sm:$0xff] %v1558
        %1876 = vst [vmem:[#allocation2 + $0x2e8] sm:$0xff] %v1560
        %1877 = vst [vmem:[#allocation2 + $0x2f0] sm:$0xff] %v1719
        %1878 = vst [vmem:[#allocation2 + $0x2f8] sm:$0xff] %v1721
        %1879 = vst [vmem:[#allocation2 + $0x300] sm:$0xff] %v598
        %1880 = vst [vmem:[#allocation2 + $0x308] sm:$0xff] %v600
        %1881 = vst [vmem:[#allocation2 + $0x310] sm:$0xff] %v759
        %1882 = vst [vmem:[#allocation2 + $0x318] sm:$0xff] %v761
        %1883 = vst [vmem:[#allocation2 + $0x320] sm:$0xff] %v920
        %1884 = vst [vmem:[#allocation2 + $0x328] sm:$0xff] %v922
        %1885 = vst [vmem:[#allocation2 + $0x330] sm:$0xff] %v1081
        %1886 = vst [vmem:[#allocation2 + $0x338] sm:$0xff] %v1083
        %1887 = vst [vmem:[#allocation2 + $0x340] sm:$0xff] %v1242
        %1888 = vst [vmem:[#allocation2 + $0x348] sm:$0xff] %v1244
        %1889 = vst [vmem:[#allocation2 + $0x350] sm:$0xff] %v1403
        %1890 = vst [vmem:[#allocation2 + $0x358] sm:$0xff] %v1405
        %1891 = vst [vmem:[#allocation2 + $0x360] sm:$0xff] %v1564
        %1892 = vst [vmem:[#allocation2 + $0x368] sm:$0xff] %v1566
        %1893 = vst [vmem:[#allocation2 + $0x370] sm:$0xff] %v1725
        %1894 = vst [vmem:[#allocation2 + $0x378] sm:$0xff] %v1727
        %1895 = vst [vmem:[#allocation2 + $0x380] sm:$0xff] %v604
        %1896 = vst [vmem:[#allocation2 + $0x388] sm:$0xff] %v606
        %1897 = vst [vmem:[#allocation2 + $0x390] sm:$0xff] %v765
        %1898 = vst [vmem:[#allocation2 + $0x398] sm:$0xff] %v767
        %1899 = vst [vmem:[#allocation2 + $0x3a0] sm:$0xff] %v926
        %1900 = vst [vmem:[#allocation2 + $0x3a8] sm:$0xff] %v928
        %1901 = vst [vmem:[#allocation2 + $0x3b0] sm:$0xff] %v1087
        %1902 = vst [vmem:[#allocation2 + $0x3b8] sm:$0xff] %v1089
        %1903 = vst [vmem:[#allocation2 + $0x3c0] sm:$0xff] %v1248
        %1904 = vst [vmem:[#allocation2 + $0x3c8] sm:$0xff] %v1250
        %1905 = vst [vmem:[#allocation2 + $0x3d0] sm:$0xff] %v1409
        %1906 = vst [vmem:[#allocation2 + $0x3d8] sm:$0xff] %v1411
        %1907 = vst [vmem:[#allocation2 + $0x3e0] sm:$0xff] %v1570
        %1908 = vst [vmem:[#allocation2 + $0x3e8] sm:$0xff] %v1572
        %1909 = vst [vmem:[#allocation2 + $0x3f0] sm:$0xff] %v1731
        %1910 = vst [vmem:[#allocation2 + $0x3f8] sm:$0xff] %v1733
        %1911 = vst [vmem:[#allocation2 + $0x400] sm:$0xff] %v610
        %1912 = vst [vmem:[#allocation2 + $0x408] sm:$0xff] %v612
        %1913 = vst [vmem:[#allocation2 + $0x410] sm:$0xff] %v771
        %1914 = vst [vmem:[#allocation2 + $0x418] sm:$0xff] %v773
        %1915 = vst [vmem:[#allocation2 + $0x420] sm:$0xff] %v932
        %1916 = vst [vmem:[#allocation2 + $0x428] sm:$0xff] %v934
        %1917 = vst [vmem:[#allocation2 + $0x430] sm:$0xff] %v1093
        %1918 = vst [vmem:[#allocation2 + $0x438] sm:$0xff] %v1095
        %1919 = vst [vmem:[#allocation2 + $0x440] sm:$0xff] %v1254
        %1920 = vst [vmem:[#allocation2 + $0x448] sm:$0xff] %v1256
        %1921 = vst [vmem:[#allocation2 + $0x450] sm:$0xff] %v1415
        %1922 = vst [vmem:[#allocation2 + $0x458] sm:$0xff] %v1417
        %1923 = vst [vmem:[#allocation2 + $0x460] sm:$0xff] %v1576
        %1924 = vst [vmem:[#allocation2 + $0x468] sm:$0xff] %v1578
        %1925 = vst [vmem:[#allocation2 + $0x470] sm:$0xff] %v1737
        %1926 = vst [vmem:[#allocation2 + $0x478] sm:$0xff] %v1739
        %1927 = vst [vmem:[#allocation2 + $0x480] sm:$0xff] %v616
        %1928 = vst [vmem:[#allocation2 + $0x488] sm:$0xff] %v618
        %1929 = vst [vmem:[#allocation2 + $0x490] sm:$0xff] %v777
        %1930 = vst [vmem:[#allocation2 + $0x498] sm:$0xff] %v779
        %1931 = vst [vmem:[#allocation2 + $0x4a0] sm:$0xff] %v938
        %1932 = vst [vmem:[#allocation2 + $0x4a8] sm:$0xff] %v940
        %1933 = vst [vmem:[#allocation2 + $0x4b0] sm:$0xff] %v1099
        %1934 = vst [vmem:[#allocation2 + $0x4b8] sm:$0xff] %v1101
        %1935 = vst [vmem:[#allocation2 + $0x4c0] sm:$0xff] %v1260
        %1936 = vst [vmem:[#allocation2 + $0x4c8] sm:$0xff] %v1262
        %1937 = vst [vmem:[#allocation2 + $0x4d0] sm:$0xff] %v1421
        %1938 = vst [vmem:[#allocation2 + $0x4d8] sm:$0xff] %v1423
        %1939 = vst [vmem:[#allocation2 + $0x4e0] sm:$0xff] %v1582
        %1940 = vst [vmem:[#allocation2 + $0x4e8] sm:$0xff] %v1584
        %1941 = vst [vmem:[#allocation2 + $0x4f0] sm:$0xff] %v1743
        %1942 = vst [vmem:[#allocation2 + $0x4f8] sm:$0xff] %v1745
        %1943 = vst [vmem:[#allocation2 + $0x500] sm:$0xff] %v622
        %1944 = vst [vmem:[#allocation2 + $0x508] sm:$0xff] %v624
        %1945 = vst [vmem:[#allocation2 + $0x510] sm:$0xff] %v783
        %1946 = vst [vmem:[#allocation2 + $0x518] sm:$0xff] %v785
        %1947 = vst [vmem:[#allocation2 + $0x520] sm:$0xff] %v944
        %1948 = vst [vmem:[#allocation2 + $0x528] sm:$0xff] %v946
        %1949 = vst [vmem:[#allocation2 + $0x530] sm:$0xff] %v1105
        %1950 = vst [vmem:[#allocation2 + $0x538] sm:$0xff] %v1107
        %1951 = vst [vmem:[#allocation2 + $0x540] sm:$0xff] %v1266
        %1952 = vst [vmem:[#allocation2 + $0x548] sm:$0xff] %v1268
        %1953 = vst [vmem:[#allocation2 + $0x550] sm:$0xff] %v1427
        %1954 = vst [vmem:[#allocation2 + $0x558] sm:$0xff] %v1429
        %1955 = vst [vmem:[#allocation2 + $0x560] sm:$0xff] %v1588
        %1956 = vst [vmem:[#allocation2 + $0x568] sm:$0xff] %v1590
        %1957 = vst [vmem:[#allocation2 + $0x570] sm:$0xff] %v1749
        %1958 = vst [vmem:[#allocation2 + $0x578] sm:$0xff] %v1751
        %1959 = vst [vmem:[#allocation2 + $0x580] sm:$0xff] %v628
        %1960 = vst [vmem:[#allocation2 + $0x588] sm:$0xff] %v630
        %1961 = vst [vmem:[#allocation2 + $0x590] sm:$0xff] %v789
        %1962 = vst [vmem:[#allocation2 + $0x598] sm:$0xff] %v791
        %1963 = vst [vmem:[#allocation2 + $0x5a0] sm:$0xff] %v950
        %1964 = vst [vmem:[#allocation2 + $0x5a8] sm:$0xff] %v952
        %1965 = vst [vmem:[#allocation2 + $0x5b0] sm:$0xff] %v1111
        %1966 = vst [vmem:[#allocation2 + $0x5b8] sm:$0xff] %v1113
        %1967 = vst [vmem:[#allocation2 + $0x5c0] sm:$0xff] %v1272
        %1968 = vst [vmem:[#allocation2 + $0x5c8] sm:$0xff] %v1274
        %1969 = vst [vmem:[#allocation2 + $0x5d0] sm:$0xff] %v1433
        %1970 = vst [vmem:[#allocation2 + $0x5d8] sm:$0xff] %v1435
        %1971 = vst [vmem:[#allocation2 + $0x5e0] sm:$0xff] %v1594
        %1972 = vst [vmem:[#allocation2 + $0x5e8] sm:$0xff] %v1596
        %1973 = vst [vmem:[#allocation2 + $0x5f0] sm:$0xff] %v1755
        %1974 = vst [vmem:[#allocation2 + $0x5f8] sm:$0xff] %v1757
        %1975 = vst [vmem:[#allocation2 + $0x600] sm:$0xff] %v634
        %1976 = vst [vmem:[#allocation2 + $0x608] sm:$0xff] %v636
        %1977 = vst [vmem:[#allocation2 + $0x610] sm:$0xff] %v795
        %1978 = vst [vmem:[#allocation2 + $0x618] sm:$0xff] %v797
        %1979 = vst [vmem:[#allocation2 + $0x620] sm:$0xff] %v956
        %1980 = vst [vmem:[#allocation2 + $0x628] sm:$0xff] %v958
        %1981 = vst [vmem:[#allocation2 + $0x630] sm:$0xff] %v1117
        %1982 = vst [vmem:[#allocation2 + $0x638] sm:$0xff] %v1119
        %1983 = vst [vmem:[#allocation2 + $0x640] sm:$0xff] %v1278
        %1984 = vst [vmem:[#allocation2 + $0x648] sm:$0xff] %v1280
        %1985 = vst [vmem:[#allocation2 + $0x650] sm:$0xff] %v1439
        %1986 = vst [vmem:[#allocation2 + $0x658] sm:$0xff] %v1441
        %1987 = vst [vmem:[#allocation2 + $0x660] sm:$0xff] %v1600
        %1988 = vst [vmem:[#allocation2 + $0x668] sm:$0xff] %v1602
        %1989 = vst [vmem:[#allocation2 + $0x670] sm:$0xff] %v1761
        %1990 = vst [vmem:[#allocation2 + $0x678] sm:$0xff] %v1763
        %1991 = vst [vmem:[#allocation2 + $0x680] sm:$0xff] %v640
        %1992 = vst [vmem:[#allocation2 + $0x688] sm:$0xff] %v642
        %1993 = vst [vmem:[#allocation2 + $0x690] sm:$0xff] %v801
        %1994 = vst [vmem:[#allocation2 + $0x698] sm:$0xff] %v803
        %1995 = vst [vmem:[#allocation2 + $0x6a0] sm:$0xff] %v962
        %1996 = vst [vmem:[#allocation2 + $0x6a8] sm:$0xff] %v964
        %1997 = vst [vmem:[#allocation2 + $0x6b0] sm:$0xff] %v1123
        %1998 = vst [vmem:[#allocation2 + $0x6b8] sm:$0xff] %v1125
        %1999 = vst [vmem:[#allocation2 + $0x6c0] sm:$0xff] %v1284
        %2000 = vst [vmem:[#allocation2 + $0x6c8] sm:$0xff] %v1286
        %2001 = vst [vmem:[#allocation2 + $0x6d0] sm:$0xff] %v1445
        %2002 = vst [vmem:[#allocation2 + $0x6d8] sm:$0xff] %v1447
        %2003 = vst [vmem:[#allocation2 + $0x6e0] sm:$0xff] %v1606
        %2004 = vst [vmem:[#allocation2 + $0x6e8] sm:$0xff] %v1608
        %2005 = vst [vmem:[#allocation2 + $0x6f0] sm:$0xff] %v1767
        %2006 = vst [vmem:[#allocation2 + $0x6f8] sm:$0xff] %v1769
        %2007 = vst [vmem:[#allocation2 + $0x700] sm:$0xff] %v646
        %2008 = vst [vmem:[#allocation2 + $0x708] sm:$0xff] %v648
        %2009 = vst [vmem:[#allocation2 + $0x710] sm:$0xff] %v807
        %2010 = vst [vmem:[#allocation2 + $0x718] sm:$0xff] %v809
        %2011 = vst [vmem:[#allocation2 + $0x720] sm:$0xff] %v968
        %2012 = vst [vmem:[#allocation2 + $0x728] sm:$0xff] %v970
        %2013 = vst [vmem:[#allocation2 + $0x730] sm:$0xff] %v1129
        %2014 = vst [vmem:[#allocation2 + $0x738] sm:$0xff] %v1131
        %2015 = vst [vmem:[#allocation2 + $0x740] sm:$0xff] %v1290
        %2016 = vst [vmem:[#allocation2 + $0x748] sm:$0xff] %v1292
        %2017 = vst [vmem:[#allocation2 + $0x750] sm:$0xff] %v1451
        %2018 = vst [vmem:[#allocation2 + $0x758] sm:$0xff] %v1453
        %2019 = vst [vmem:[#allocation2 + $0x760] sm:$0xff] %v1612
        %2020 = vst [vmem:[#allocation2 + $0x768] sm:$0xff] %v1614
        %2021 = vst [vmem:[#allocation2 + $0x770] sm:$0xff] %v1773
        %2022 = vst [vmem:[#allocation2 + $0x778] sm:$0xff] %v1775
        %2023 = vst [vmem:[#allocation2 + $0x780] sm:$0xff] %v652
        %2024 = vst [vmem:[#allocation2 + $0x788] sm:$0xff] %v654
        %2025 = vst [vmem:[#allocation2 + $0x790] sm:$0xff] %v813
        %2026 = vst [vmem:[#allocation2 + $0x798] sm:$0xff] %v815
        %2027 = vst [vmem:[#allocation2 + $0x7a0] sm:$0xff] %v974
        %2028 = vst [vmem:[#allocation2 + $0x7a8] sm:$0xff] %v976
        %2029 = vst [vmem:[#allocation2 + $0x7b0] sm:$0xff] %v1135
        %2030 = vst [vmem:[#allocation2 + $0x7b8] sm:$0xff] %v1137
        %2031 = vst [vmem:[#allocation2 + $0x7c0] sm:$0xff] %v1296
        %2032 = vst [vmem:[#allocation2 + $0x7c8] sm:$0xff] %v1298
        %2033 = vst [vmem:[#allocation2 + $0x7d0] sm:$0xff] %v1457
        %2034 = vst [vmem:[#allocation2 + $0x7d8] sm:$0xff] %v1459
        %2035 = vst [vmem:[#allocation2 + $0x7e0] sm:$0xff] %v1618
        %2036 = vst [vmem:[#allocation2 + $0x7e8] sm:$0xff] %v1620
        %2037 = vst [vmem:[#allocation2 + $0x7f0] sm:$0xff] %v1779
        %2038 = vst [vmem:[#allocation2 + $0x7f8] sm:$0xff] %v1781
        %v2039 = vld [vmem:[%s2] sm:$0xff]
        %v2040 = vld [vmem:[%s2 + $0x8] sm:$0xff]
        %v2041 = vld [vmem:[%s2 + $0x10] sm:$0xff]
        %v2042 = vld [vmem:[%s2 + $0x18] sm:$0xff]
        %v2043 = vld [vmem:[%s2 + $0x20] sm:$0xff]
        %v2044 = vld [vmem:[%s2 + $0x28] sm:$0xff]
        %v2045 = vld [vmem:[%s2 + $0x30] sm:$0xff]
        %v2046 = vld [vmem:[%s2 + $0x38] sm:$0xff]
        %v2047 = vld [vmem:[%s2 + $0x40] sm:$0xff]
        %v2048 = vld [vmem:[%s2 + $0x48] sm:$0xff]
        %v2049 = vld [vmem:[%s2 + $0x50] sm:$0xff]
        %v2050 = vld [vmem:[%s2 + $0x58] sm:$0xff]
        %v2051 = vld [vmem:[%s2 + $0x60] sm:$0xff]
        %v2052 = vld [vmem:[%s2 + $0x68] sm:$0xff]
        %v2053 = vld [vmem:[%s2 + $0x70] sm:$0xff]
        %v2054 = vld [vmem:[%s2 + $0x78] sm:$0xff]
        %v2055 = vld [vmem:[#allocation2] sm:$0xff]
        %v2056 = vld [vmem:[#allocation2 + $0x80] sm:$0xff]
        %v2057 = vld [vmem:[#allocation2 + $0x100] sm:$0xff]
        %v2058 = vld [vmem:[#allocation2 + $0x180] sm:$0xff]
        %v2059 = vld [vmem:[#allocation2 + $0x200] sm:$0xff]
        %v2060 = vld [vmem:[#allocation2 + $0x280] sm:$0xff]
        %v2061 = vld [vmem:[#allocation2 + $0x300] sm:$0xff]
        %v2062 = vld [vmem:[#allocation2 + $0x380] sm:$0xff]
        %v2063 = vld [vmem:[#allocation2 + $0x400] sm:$0xff]
        %v2064 = vld [vmem:[#allocation2 + $0x480] sm:$0xff]
        %v2065 = vld [vmem:[#allocation2 + $0x500] sm:$0xff]
        %v2066 = vld [vmem:[#allocation2 + $0x580] sm:$0xff]
        %v2067 = vld [vmem:[#allocation2 + $0x600] sm:$0xff]
        %v2068 = vld [vmem:[#allocation2 + $0x680] sm:$0xff]
        %v2069 = vld [vmem:[#allocation2 + $0x700] sm:$0xff]
        %v2070 = vld [vmem:[#allocation2 + $0x780] sm:$0xff]
        %v2072 = vsel %vm446, %v2039, 0
        %v2075 = vsel %vm446, %v2040, 0
        %v2078 = vsel %vm446, %v2041, 0
        %v2081 = vsel %vm446, %v2042, 0
        %v2084 = vsel %vm446, %v2043, 0
        %v2087 = vsel %vm446, %v2044, 0
        %v2090 = vsel %vm446, %v2045, 0
        %v2093 = vsel %vm446, %v2046, 0
        %v2096 = vsel %vm446, %v2047, 0
        %v2099 = vsel %vm446, %v2048, 0
        %v2102 = vsel %vm446, %v2049, 0
        %v2105 = vsel %vm446, %v2050, 0
        %v2108 = vsel %vm446, %v2051, 0
        %v2111 = vsel %vm446, %v2052, 0
        %v2114 = vsel %vm446, %v2053, 0
        %v2117 = vsel %vm446, %v2054, 0
        %2119 = vmatprep.subr.mxu0 0.0
        %2120 = vmatpush1.msra.mxu0 0.0
        %2121 = vmatprep.subr.mxu0 0.0
        %2122 = vmatpush1.msra.mxu0 0.0
        %2123 = vmatprep.subr.mxu0 0.0
        %2124 = vmatpush1.msra.mxu0 0.0
        %2125 = vmatprep.subr.mxu0 0.0
        %2126 = vmatpush1.msra.mxu0 0.0
        %2127 = vmatprep.subr.mxu0 0.0
        %2128 = vmatpush1.msra.mxu0 0.0
        %2129 = vmatprep.subr.mxu0 0.0
        %2130 = vmatpush1.msra.mxu0 0.0
        %2131 = vmatprep.subr.mxu0 0.0
        %2132 = vmatpush1.msra.mxu0 0.0
        %2133 = vmatprep.subr.mxu0 0.0
        %2134 = vmatpush1.msra.mxu0 0.0
        %2135 = vmatprep.subr.mxu0 0.0
        %2136 = vmatpush1.msra.mxu0 0.0
        %2137 = vmatprep.subr.mxu0 0.0
        %2138 = vmatpush1.msra.mxu0 0.0
        %2139 = vmatprep.subr.mxu0 0.0
        %2140 = vmatpush1.msra.mxu0 0.0
        %2141 = vmatprep.subr.mxu0 0.0
        %2142 = vmatpush1.msra.mxu0 0.0
        %2143 = vmatprep.subr.mxu0 0.0
        %2144 = vmatpush1.msra.mxu0 0.0
        %2145 = vmatprep.subr.mxu0 0.0
        %2146 = vmatpush1.msra.mxu0 0.0
        %2147 = vmatprep.subr.mxu0 0.0
        %2148 = vmatpush1.msra.mxu0 0.0
        %2149 = vmatprep.subr.mxu0 0.0
        %2150 = vmatpush1.msra.mxu0 0.0
        %2151 = vmatprep.subr.mxu0 0.0
        %2152 = vmatpush2.msra.mxu0 0.0
        %2153 = vmatprep.subr.mxu0 0.0
        %2154 = vmatpush2.msra.mxu0 0.0
        %2155 = vmatprep.subr.mxu0 0.0
        %2156 = vmatpush2.msra.mxu0 0.0
        %2157 = vmatprep.subr.mxu0 0.0
        %2158 = vmatpush2.msra.mxu0 0.0
        %2159 = vmatprep.subr.mxu0 0.0
        %2160 = vmatpush2.msra.mxu0 0.0
        %2161 = vmatprep.subr.mxu0 0.0
        %2162 = vmatpush2.msra.mxu0 0.0
        %2163 = vmatprep.subr.mxu0 0.0
        %2164 = vmatpush2.msra.mxu0 0.0
        %2165 = vmatprep.subr.mxu0 0.0
        %2166 = vmatpush2.msra.mxu0 0.0
        %2167 = vmatprep.subr.mxu0 0.0
        %2168 = vmatpush2.msra.mxu0 0.0
        %2169 = vmatprep.subr.mxu0 0.0
        %2170 = vmatpush2.msra.mxu0 0.0
        %2171 = vmatprep.subr.mxu0 0.0
        %2172 = vmatpush2.msra.mxu0 0.0
        %2173 = vmatprep.subr.mxu0 0.0
        %2174 = vmatpush2.msra.mxu0 0.0
        %2175 = vmatprep.subr.mxu0 0.0
        %2176 = vmatpush2.msra.mxu0 0.0
        %2177 = vmatprep.subr.mxu0 0.0
        %2178 = vmatpush2.msra.mxu0 0.0
        %2179 = vmatprep.subr.mxu0 0.0
        %2180 = vmatpush2.msra.mxu0 0.0
        %2181 = vmatprep.subr.mxu0 0.0
        %2182 = vmatpush2.msra.mxu0 0.0
        %2183 = vmatprep.mubr.f32.mxu0 0.0
        %2184 = vmatmul.mubr.f32.gmra.mxu0 %v2072
        %v2185 = vpop.f32.mrf.mxu0
        %v2186 = vadd.f32 0.0, %v2185
        %v2187 = vpop.f32.mrf.mxu0
        %2188 = vmatprep.mubr.f32.mxu0 0.0
        %2189 = vmatmul.mubr.f32.gmra.mxu0 %v2075
        %v2190 = vpop.f32.mrf.mxu0
        %v2191 = vadd.f32 0.0, %v2190
        %v2192 = vpop.f32.mrf.mxu0
        %2193 = vmatprep.mubr.f32.mxu0 0.0
        %2194 = vmatmul.mubr.f32.gmra.mxu0 %v2078
        %v2195 = vpop.f32.mrf.mxu0
        %v2196 = vadd.f32 0.0, %v2195
        %v2197 = vpop.f32.mrf.mxu0
        %2198 = vmatprep.mubr.f32.mxu0 0.0
        %2199 = vmatmul.mubr.f32.gmra.mxu0 %v2081
        %v2200 = vpop.f32.mrf.mxu0
        %v2201 = vadd.f32 0.0, %v2200
        %v2202 = vpop.f32.mrf.mxu0
        %2203 = vmatprep.mubr.f32.mxu0 0.0
        %2204 = vmatmul.mubr.f32.gmra.mxu0 %v2084
        %v2205 = vpop.f32.mrf.mxu0
        %v2206 = vadd.f32 0.0, %v2205
        %v2207 = vpop.f32.mrf.mxu0
        %2208 = vmatprep.mubr.f32.mxu0 0.0
        %2209 = vmatmul.mubr.f32.gmra.mxu0 %v2087
        %v2210 = vpop.f32.mrf.mxu0
        %v2211 = vadd.f32 0.0, %v2210
        %v2212 = vpop.f32.mrf.mxu0
        %2213 = vmatprep.mubr.f32.mxu0 0.0
        %2214 = vmatmul.mubr.f32.gmra.mxu0 %v2090
        %v2215 = vpop.f32.mrf.mxu0
        %v2216 = vadd.f32 0.0, %v2215
        %v2217 = vpop.f32.mrf.mxu0
        %2218 = vmatprep.mubr.f32.mxu0 0.0
        %2219 = vmatmul.mubr.f32.gmra.mxu0 %v2093
        %v2220 = vpop.f32.mrf.mxu0
        %v2221 = vadd.f32 0.0, %v2220
        %v2222 = vpop.f32.mrf.mxu0
        %2223 = vmatprep.mubr.f32.mxu0 0.0
        %2224 = vmatmul.mubr.f32.gmra.mxu0 %v2096
        %v2225 = vpop.f32.mrf.mxu0
        %v2226 = vadd.f32 0.0, %v2225
        %v2227 = vpop.f32.mrf.mxu0
        %2228 = vmatprep.mubr.f32.mxu0 0.0
        %2229 = vmatmul.mubr.f32.gmra.mxu0 %v2099
        %v2230 = vpop.f32.mrf.mxu0
        %v2231 = vadd.f32 0.0, %v2230
        %v2232 = vpop.f32.mrf.mxu0
        %2233 = vmatprep.mubr.f32.mxu0 0.0
        %2234 = vmatmul.mubr.f32.gmra.mxu0 %v2102
        %v2235 = vpop.f32.mrf.mxu0
        %v2236 = vadd.f32 0.0, %v2235
        %v2237 = vpop.f32.mrf.mxu0
        %2238 = vmatprep.mubr.f32.mxu0 0.0
        %2239 = vmatmul.mubr.f32.gmra.mxu0 %v2105
        %v2240 = vpop.f32.mrf.mxu0
        %v2241 = vadd.f32 0.0, %v2240
        %v2242 = vpop.f32.mrf.mxu0
        %2243 = vmatprep.mubr.f32.mxu0 0.0
        %2244 = vmatmul.mubr.f32.gmra.mxu0 %v2108
        %v2245 = vpop.f32.mrf.mxu0
        %v2246 = vadd.f32 0.0, %v2245
        %v2247 = vpop.f32.mrf.mxu0
        %2248 = vmatprep.mubr.f32.mxu0 0.0
        %2249 = vmatmul.mubr.f32.gmra.mxu0 %v2111
        %v2250 = vpop.f32.mrf.mxu0
        %v2251 = vadd.f32 0.0, %v2250
        %v2252 = vpop.f32.mrf.mxu0
        %2253 = vmatprep.mubr.f32.mxu0 0.0
        %2254 = vmatmul.mubr.f32.gmra.mxu0 %v2114
        %v2255 = vpop.f32.mrf.mxu0
        %v2256 = vadd.f32 0.0, %v2255
        %v2257 = vpop.f32.mrf.mxu0
        %2258 = vmatprep.mubr.f32.mxu0 0.0
        %2259 = vmatmul.mubr.f32.gmra.mxu0 %v2117
        %v2260 = vpop.f32.mrf.mxu0
        %v2261 = vadd.f32 0.0, %v2260
        %v2262 = vpop.f32.mrf.mxu0
        %2263 = vdwg.mxu0
        %v2264 = vadd.f32 %v2055, %v2186
        %v2265 = vadd.f32 %v2056, %v2191
        %v2266 = vadd.f32 %v2057, %v2196
        %v2267 = vadd.f32 %v2058, %v2201
        %v2268 = vadd.f32 %v2059, %v2206
        %v2269 = vadd.f32 %v2060, %v2211
        %v2270 = vadd.f32 %v2061, %v2216
        %v2271 = vadd.f32 %v2062, %v2221
        %v2272 = vadd.f32 %v2063, %v2226
        %v2273 = vadd.f32 %v2064, %v2231
        %v2274 = vadd.f32 %v2065, %v2236
        %v2275 = vadd.f32 %v2066, %v2241
        %v2276 = vadd.f32 %v2067, %v2246
        %v2277 = vadd.f32 %v2068, %v2251
        %v2278 = vadd.f32 %v2069, %v2256
        %v2279 = vadd.f32 %v2070, %v2261
        %v2280 = vtanh.pop %v2264
        %v2281 = vtanh.pop %v2265
        %v2282 = vtanh.pop %v2266
        %v2283 = vtanh.pop %v2267
        %v2284 = vtanh.pop %v2268
        %v2285 = vtanh.pop %v2269
        %v2286 = vtanh.pop %v2270
        %v2287 = vtanh.pop %v2271
        %v2288 = vtanh.pop %v2272
        %v2289 = vtanh.pop %v2273
        %v2290 = vtanh.pop %v2274
        %v2291 = vtanh.pop %v2275
        %v2292 = vtanh.pop %v2276
        %v2293 = vtanh.pop %v2277
        %v2294 = vtanh.pop %v2278
        %v2295 = vtanh.pop %v2279
        %v2296 = vmul.f32 %v2280, 0.5
        %v2297 = vmul.f32 %v2281, 0.5
        %v2298 = vmul.f32 %v2282, 0.5
        %v2299 = vmul.f32 %v2283, 0.5
        %v2300 = vadd.f32 %v2296, 0.5
        %v2301 = vadd.f32 %v2297, 0.5
        %v2302 = vadd.f32 %v2298, 0.5
        %v2303 = vadd.f32 %v2299, 0.5
        %v2304 = vmul.f32 %v2284, 0.5
        %v2305 = vmul.f32 %v2285, 0.5
        %v2306 = vmul.f32 %v2286, 0.5
        %v2307 = vmul.f32 %v2287, 0.5
        %v2308 = vadd.f32 %v2304, 0.5
        %v2309 = vadd.f32 %v2305, 0.5
        %v2310 = vadd.f32 %v2306, 0.5
        %v2311 = vadd.f32 %v2307, 0.5
        %v2312 = vmul.f32 %v2292, 0.5
        %v2313 = vmul.f32 %v2293, 0.5
        %v2314 = vmul.f32 %v2294, 0.5
        %v2315 = vmul.f32 %v2295, 0.5
        %v2316 = vadd.f32 %v2312, 0.5
        %v2317 = vadd.f32 %v2313, 0.5
        %v2318 = vadd.f32 %v2314, 0.5
        %v2319 = vadd.f32 %v2315, 0.5
        %v2320 = vmul.f32 %v2308, 0.0
        %v2321 = vmul.f32 %v2309, 0.0
        %v2322 = vmul.f32 %v2310, 0.0
        %v2323 = vmul.f32 %v2311, 0.0
        %v2324 = vmul.f32 %v2300, %v2288
        %v2325 = vmul.f32 %v2301, %v2289
        %v2326 = vmul.f32 %v2302, %v2290
        %v2327 = vmul.f32 %v2303, %v2291
        %v2328 = vadd.f32 %v2320, %v2324
        %v2329 = vadd.f32 %v2321, %v2325
        %v2330 = vadd.f32 %v2322, %v2326
        %v2331 = vadd.f32 %v2323, %v2327
        %v2332 = vtanh.pop %v2328
        %v2333 = vtanh.pop %v2329
        %v2334 = vtanh.pop %v2330
        %v2335 = vtanh.pop %v2331
        %v2336 = vmul.f32 %v2316, %v2332
        %v2337 = vmul.f32 %v2317, %v2333
        %v2338 = vmul.f32 %v2318, %v2334
        %v2339 = vmul.f32 %v2319, %v2335
        %2340 = vst [vmem:[#allocation3] sm:$0xff] %v2336
        %2341 = vst [vmem:[#allocation3 + $0x8] sm:$0xff] %v2337
        %2342 = vst [vmem:[#allocation3 + $0x10] sm:$0xff] %v2338
        %2343 = vst [vmem:[#allocation3 + $0x18] sm:$0xff] %v2339
        %s2344 = scalar_lea.vmem [#allocation2], 8
        %v2345 = vld [vmem:[%s2344] sm:$0xff]
        %v2346 = vld [vmem:[%s2344 + $0x80] sm:$0xff]
        %v2347 = vld [vmem:[%s2344 + $0x100] sm:$0xff]
        %v2348 = vld [vmem:[%s2344 + $0x180] sm:$0xff]
        %v2349 = vld [vmem:[%s2344 + $0x200] sm:$0xff]
        %v2350 = vld [vmem:[%s2344 + $0x280] sm:$0xff]
        %v2351 = vld [vmem:[%s2344 + $0x300] sm:$0xff]
        %v2352 = vld [vmem:[%s2344 + $0x380] sm:$0xff]
        %v2353 = vld [vmem:[%s2344 + $0x400] sm:$0xff]
        %v2354 = vld [vmem:[%s2344 + $0x480] sm:$0xff]
        %v2355 = vld [vmem:[%s2344 + $0x500] sm:$0xff]
        %v2356 = vld [vmem:[%s2344 + $0x580] sm:$0xff]
        %v2357 = vld [vmem:[%s2344 + $0x600] sm:$0xff]
        %v2358 = vld [vmem:[%s2344 + $0x680] sm:$0xff]
        %v2359 = vld [vmem:[%s2344 + $0x700] sm:$0xff]
        %v2360 = vld [vmem:[%s2344 + $0x780] sm:$0xff]
        %2361 = vmatprep.subr.mxu0 0.0
        %2362 = vmatpush1.msra.mxu0 0.0
        %2363 = vmatprep.subr.mxu0 0.0
        %2364 = vmatpush1.msra.mxu0 0.0
        %2365 = vmatprep.subr.mxu0 0.0
        %2366 = vmatpush1.msra.mxu0 0.0
        %2367 = vmatprep.subr.mxu0 0.0
        %2368 = vmatpush1.msra.mxu0 0.0
        %2369 = vmatprep.subr.mxu0 0.0
        %2370 = vmatpush1.msra.mxu0 0.0
        %2371 = vmatprep.subr.mxu0 0.0
        %2372 = vmatpush1.msra.mxu0 0.0
        %2373 = vmatprep.subr.mxu0 0.0
        %2374 = vmatpush1.msra.mxu0 0.0
        %2375 = vmatprep.subr.mxu0 0.0
        %2376 = vmatpush1.msra.mxu0 0.0
        %2377 = vmatprep.subr.mxu0 0.0
        %2378 = vmatpush1.msra.mxu0 0.0
        %2379 = vmatprep.subr.mxu0 0.0
        %2380 = vmatpush1.msra.mxu0 0.0
        %2381 = vmatprep.subr.mxu0 0.0
        %2382 = vmatpush1.msra.mxu0 0.0
        %2383 = vmatprep.subr.mxu0 0.0
        %2384 = vmatpush1.msra.mxu0 0.0
        %2385 = vmatprep.subr.mxu0 0.0
        %2386 = vmatpush1.msra.mxu0 %v2339
        %2387 = vmatprep.subr.mxu0 0.0
        %2388 = vmatpush1.msra.mxu0 %v2338
        %2389 = vmatprep.subr.mxu0 0.0
        %2390 = vmatpush1.msra.mxu0 %v2337
        %2391 = vmatprep.subr.mxu0 0.0
        %2392 = vmatpush1.msra.mxu0 %v2336
        %2393 = vmatprep.subr.mxu0 0.0
        %2394 = vmatpush2.msra.mxu0 0.0
        %2395 = vmatprep.subr.mxu0 0.0
        %2396 = vmatpush2.msra.mxu0 0.0
        %2397 = vmatprep.subr.mxu0 0.0
        %2398 = vmatpush2.msra.mxu0 0.0
        %2399 = vmatprep.subr.mxu0 0.0
        %2400 = vmatpush2.msra.mxu0 0.0
        %2401 = vmatprep.subr.mxu0 0.0
        %2402 = vmatpush2.msra.mxu0 0.0
        %2403 = vmatprep.subr.mxu0 0.0
        %2404 = vmatpush2.msra.mxu0 0.0
        %2405 = vmatprep.subr.mxu0 0.0
        %2406 = vmatpush2.msra.mxu0 0.0
        %2407 = vmatprep.subr.mxu0 0.0
        %2408 = vmatpush2.msra.mxu0 0.0
        %2409 = vmatprep.subr.mxu0 0.0
        %2410 = vmatpush2.msra.mxu0 0.0
        %2411 = vmatprep.subr.mxu0 0.0
        %2412 = vmatpush2.msra.mxu0 0.0
        %2413 = vmatprep.subr.mxu0 0.0
        %2414 = vmatpush2.msra.mxu0 0.0
        %2415 = vmatprep.subr.mxu0 0.0
        %2416 = vmatpush2.msra.mxu0 0.0
        %2417 = vmatprep.subr.mxu0 0.0
        %2418 = vmatpush2.msra.mxu0 0.0
        %2419 = vmatprep.subr.mxu0 0.0
        %2420 = vmatpush2.msra.mxu0 0.0
        %2421 = vmatprep.subr.mxu0 0.0
        %2422 = vmatpush2.msra.mxu0 0.0
        %2423 = vmatprep.subr.mxu0 0.0
        %2424 = vmatpush2.msra.mxu0 0.0
        %2425 = vmatprep.mubr.f32.mxu0 0.0
        %2426 = vmatmul.mubr.f32.gmra.mxu0 %v2072
        %v2427 = vpop.f32.mrf.mxu0
        %v2428 = vadd.f32 0.0, %v2427
        %v2429 = vpop.f32.mrf.mxu0
        %2430 = vmatprep.mubr.f32.mxu0 0.0
        %2431 = vmatmul.mubr.f32.gmra.mxu0 %v2075
        %v2432 = vpop.f32.mrf.mxu0
        %v2433 = vadd.f32 0.0, %v2432
        %v2434 = vpop.f32.mrf.mxu0
        %2435 = vmatprep.mubr.f32.mxu0 0.0
        %2436 = vmatmul.mubr.f32.gmra.mxu0 %v2078
        %v2437 = vpop.f32.mrf.mxu0
        %v2438 = vadd.f32 0.0, %v2437
        %v2439 = vpop.f32.mrf.mxu0
        %2440 = vmatprep.mubr.f32.mxu0 0.0
        %2441 = vmatmul.mubr.f32.gmra.mxu0 %v2081
        %v2442 = vpop.f32.mrf.mxu0
        %v2443 = vadd.f32 0.0, %v2442
        %v2444 = vpop.f32.mrf.mxu0
        %2445 = vmatprep.mubr.f32.mxu0 0.0
        %2446 = vmatmul.mubr.f32.gmra.mxu0 %v2084
        %v2447 = vpop.f32.mrf.mxu0
        %v2448 = vadd.f32 0.0, %v2447
        %v2449 = vpop.f32.mrf.mxu0
        %2450 = vmatprep.mubr.f32.mxu0 0.0
        %2451 = vmatmul.mubr.f32.gmra.mxu0 %v2087
        %v2452 = vpop.f32.mrf.mxu0
        %v2453 = vadd.f32 0.0, %v2452
        %v2454 = vpop.f32.mrf.mxu0
        %2455 = vmatprep.mubr.f32.mxu0 0.0
        %2456 = vmatmul.mubr.f32.gmra.mxu0 %v2090
        %v2457 = vpop.f32.mrf.mxu0
        %v2458 = vadd.f32 0.0, %v2457
        %v2459 = vpop.f32.mrf.mxu0
        %2460 = vmatprep.mubr.f32.mxu0 0.0
        %2461 = vmatmul.mubr.f32.gmra.mxu0 %v2093
        %v2462 = vpop.f32.mrf.mxu0
        %v2463 = vadd.f32 0.0, %v2462
        %v2464 = vpop.f32.mrf.mxu0
        %2465 = vmatprep.mubr.f32.mxu0 0.0
        %2466 = vmatmul.mubr.f32.gmra.mxu0 %v2096
        %v2467 = vpop.f32.mrf.mxu0
        %v2468 = vadd.f32 0.0, %v2467
        %v2469 = vpop.f32.mrf.mxu0
        %2470 = vmatprep.mubr.f32.mxu0 0.0
        %2471 = vmatmul.mubr.f32.gmra.mxu0 %v2099
        %v2472 = vpop.f32.mrf.mxu0
        %v2473 = vadd.f32 0.0, %v2472
        %v2474 = vpop.f32.mrf.mxu0
        %2475 = vmatprep.mubr.f32.mxu0 0.0
        %2476 = vmatmul.mubr.f32.gmra.mxu0 %v2102
        %v2477 = vpop.f32.mrf.mxu0
        %v2478 = vadd.f32 0.0, %v2477
        %v2479 = vpop.f32.mrf.mxu0
        %2480 = vmatprep.mubr.f32.mxu0 0.0
        %2481 = vmatmul.mubr.f32.gmra.mxu0 %v2105
        %v2482 = vpop.f32.mrf.mxu0
        %v2483 = vadd.f32 0.0, %v2482
        %v2484 = vpop.f32.mrf.mxu0
        %2485 = vmatprep.mubr.f32.mxu0 0.0
        %2486 = vmatmul.mubr.f32.gmra.mxu0 %v2108
        %v2487 = vpop.f32.mrf.mxu0
        %v2488 = vadd.f32 0.0, %v2487
        %v2489 = vpop.f32.mrf.mxu0
        %2490 = vmatprep.mubr.f32.mxu0 0.0
        %2491 = vmatmul.mubr.f32.gmra.mxu0 %v2111
        %v2492 = vpop.f32.mrf.mxu0
        %v2493 = vadd.f32 0.0, %v2492
        %v2494 = vpop.f32.mrf.mxu0
        %2495 = vmatprep.mubr.f32.mxu0 0.0
        %2496 = vmatmul.mubr.f32.gmra.mxu0 %v2114
        %v2497 = vpop.f32.mrf.mxu0
        %v2498 = vadd.f32 0.0, %v2497
        %v2499 = vpop.f32.mrf.mxu0
        %2500 = vmatprep.mubr.f32.mxu0 0.0
        %2501 = vmatmul.mubr.f32.gmra.mxu0 %v2117
        %v2502 = vpop.f32.mrf.mxu0
        %v2503 = vadd.f32 0.0, %v2502
        %v2504 = vpop.f32.mrf.mxu0
        %2505 = vdwg.mxu0
        %v2506 = vadd.f32 %v2345, %v2428
        %v2507 = vadd.f32 %v2346, %v2433
        %v2508 = vadd.f32 %v2347, %v2438
        %v2509 = vadd.f32 %v2348, %v2443
        %v2510 = vadd.f32 %v2349, %v2448
        %v2511 = vadd.f32 %v2350, %v2453
        %v2512 = vadd.f32 %v2351, %v2458
        %v2513 = vadd.f32 %v2352, %v2463
        %v2514 = vadd.f32 %v2353, %v2468
        %v2515 = vadd.f32 %v2354, %v2473
        %v2516 = vadd.f32 %v2355, %v2478
        %v2517 = vadd.f32 %v2356, %v2483
        %v2518 = vadd.f32 %v2357, %v2488
        %v2519 = vadd.f32 %v2358, %v2493
        %v2520 = vadd.f32 %v2359, %v2498
        %v2521 = vadd.f32 %v2360, %v2503
        %v2522 = vtanh.pop %v2506
        %v2523 = vtanh.pop %v2507
        %v2524 = vtanh.pop %v2508
        %v2525 = vtanh.pop %v2509
        %v2526 = vtanh.pop %v2510
        %v2527 = vtanh.pop %v2511
        %v2528 = vtanh.pop %v2512
        %v2529 = vtanh.pop %v2513
        %v2530 = vtanh.pop %v2514
        %v2531 = vtanh.pop %v2515
        %v2532 = vtanh.pop %v2516
        %v2533 = vtanh.pop %v2517
        %v2534 = vtanh.pop %v2518
        %v2535 = vtanh.pop %v2519
        %v2536 = vtanh.pop %v2520
        %v2537 = vtanh.pop %v2521
        %v2538 = vmul.f32 %v2522, 0.5
        %v2539 = vmul.f32 %v2523, 0.5
        %v2540 = vmul.f32 %v2524, 0.5
        %v2541 = vmul.f32 %v2525, 0.5
        %v2542 = vadd.f32 %v2538, 0.5
        %v2543 = vadd.f32 %v2539, 0.5
        %v2544 = vadd.f32 %v2540, 0.5
        %v2545 = vadd.f32 %v2541, 0.5
        %v2546 = vmul.f32 %v2526, 0.5
        %v2547 = vmul.f32 %v2527, 0.5
        %v2548 = vmul.f32 %v2528, 0.5
        %v2549 = vmul.f32 %v2529, 0.5
        %v2550 = vadd.f32 %v2546, 0.5
        %v2551 = vadd.f32 %v2547, 0.5
        %v2552 = vadd.f32 %v2548, 0.5
        %v2553 = vadd.f32 %v2549, 0.5
        %v2554 = vmul.f32 %v2534, 0.5
        %v2555 = vmul.f32 %v2535, 0.5
        %v2556 = vmul.f32 %v2536, 0.5
        %v2557 = vmul.f32 %v2537, 0.5
        %v2558 = vadd.f32 %v2554, 0.5
        %v2559 = vadd.f32 %v2555, 0.5
        %v2560 = vadd.f32 %v2556, 0.5
        %v2561 = vadd.f32 %v2557, 0.5
        %v2562 = vmul.f32 %v2550, %v2328
        %v2563 = vmul.f32 %v2551, %v2329
        %v2564 = vmul.f32 %v2552, %v2330
        %v2565 = vmul.f32 %v2553, %v2331
        %v2566 = vmul.f32 %v2542, %v2530
        %v2567 = vmul.f32 %v2543, %v2531
        %v2568 = vmul.f32 %v2544, %v2532
        %v2569 = vmul.f32 %v2545, %v2533
        %v2570 = vadd.f32 %v2562, %v2566
        %v2571 = vadd.f32 %v2563, %v2567
        %v2572 = vadd.f32 %v2564, %v2568
        %v2573 = vadd.f32 %v2565, %v2569
        %v2574 = vtanh.pop %v2570
        %v2575 = vtanh.pop %v2571
        %v2576 = vtanh.pop %v2572
        %v2577 = vtanh.pop %v2573
        %v2578 = vmul.f32 %v2558, %v2574
        %v2579 = vmul.f32 %v2559, %v2575
        %v2580 = vmul.f32 %v2560, %v2576
        %v2581 = vmul.f32 %v2561, %v2577
        %s2582 = scalar_lea.vmem [#allocation3], 32
        %2583 = vst [vmem:[%s2582] sm:$0xff] %v2578
        %2584 = vst [vmem:[%s2582 + $0x8] sm:$0xff] %v2579
        %2585 = vst [vmem:[%s2582 + $0x10] sm:$0xff] %v2580
        %2586 = vst [vmem:[%s2582 + $0x18] sm:$0xff] %v2581
        %s2587 = scalar_lea.vmem [#allocation2], 16
        %v2588 = vld [vmem:[%s2587] sm:$0xff]
        %v2589 = vld [vmem:[%s2587 + $0x80] sm:$0xff]
        %v2590 = vld [vmem:[%s2587 + $0x100] sm:$0xff]
        %v2591 = vld [vmem:[%s2587 + $0x180] sm:$0xff]
        %v2592 = vld [vmem:[%s2587 + $0x200] sm:$0xff]
        %v2593 = vld [vmem:[%s2587 + $0x280] sm:$0xff]
        %v2594 = vld [vmem:[%s2587 + $0x300] sm:$0xff]
        %v2595 = vld [vmem:[%s2587 + $0x380] sm:$0xff]
        %v2596 = vld [vmem:[%s2587 + $0x400] sm:$0xff]
        %v2597 = vld [vmem:[%s2587 + $0x480] sm:$0xff]
        %v2598 = vld [vmem:[%s2587 + $0x500] sm:$0xff]
        %v2599 = vld [vmem:[%s2587 + $0x580] sm:$0xff]
        %v2600 = vld [vmem:[%s2587 + $0x600] sm:$0xff]
        %v2601 = vld [vmem:[%s2587 + $0x680] sm:$0xff]
        %v2602 = vld [vmem:[%s2587 + $0x700] sm:$0xff]
        %v2603 = vld [vmem:[%s2587 + $0x780] sm:$0xff]
        %2604 = vmatprep.subr.mxu0 0.0
        %2605 = vmatpush1.msra.mxu0 0.0
        %2606 = vmatprep.subr.mxu0 0.0
        %2607 = vmatpush1.msra.mxu0 0.0
        %2608 = vmatprep.subr.mxu0 0.0
        %2609 = vmatpush1.msra.mxu0 0.0
        %2610 = vmatprep.subr.mxu0 0.0
        %2611 = vmatpush1.msra.mxu0 0.0
        %2612 = vmatprep.subr.mxu0 0.0
        %2613 = vmatpush1.msra.mxu0 0.0
        %2614 = vmatprep.subr.mxu0 0.0
        %2615 = vmatpush1.msra.mxu0 0.0
        %2616 = vmatprep.subr.mxu0 0.0
        %2617 = vmatpush1.msra.mxu0 0.0
        %2618 = vmatprep.subr.mxu0 0.0
        %2619 = vmatpush1.msra.mxu0 0.0
        %2620 = vmatprep.subr.mxu0 0.0
        %2621 = vmatpush1.msra.mxu0 0.0
        %2622 = vmatprep.subr.mxu0 0.0
        %2623 = vmatpush1.msra.mxu0 0.0
        %2624 = vmatprep.subr.mxu0 0.0
        %2625 = vmatpush1.msra.mxu0 0.0
        %2626 = vmatprep.subr.mxu0 0.0
        %2627 = vmatpush1.msra.mxu0 0.0
        %2628 = vmatprep.subr.mxu0 0.0
        %2629 = vmatpush1.msra.mxu0 %v2581
        %2630 = vmatprep.subr.mxu0 0.0
        %2631 = vmatpush1.msra.mxu0 %v2580
        %2632 = vmatprep.subr.mxu0 0.0
        %2633 = vmatpush1.msra.mxu0 %v2579
        %2634 = vmatprep.subr.mxu0 0.0
        %2635 = vmatpush1.msra.mxu0 %v2578
        %2636 = vmatprep.subr.mxu0 0.0
        %2637 = vmatpush2.msra.mxu0 0.0
        %2638 = vmatprep.subr.mxu0 0.0
        %2639 = vmatpush2.msra.mxu0 0.0
        %2640 = vmatprep.subr.mxu0 0.0
        %2641 = vmatpush2.msra.mxu0 0.0
        %2642 = vmatprep.subr.mxu0 0.0
        %2643 = vmatpush2.msra.mxu0 0.0
        %2644 = vmatprep.subr.mxu0 0.0
        %2645 = vmatpush2.msra.mxu0 0.0
        %2646 = vmatprep.subr.mxu0 0.0
        %2647 = vmatpush2.msra.mxu0 0.0
        %2648 = vmatprep.subr.mxu0 0.0
        %2649 = vmatpush2.msra.mxu0 0.0
        %2650 = vmatprep.subr.mxu0 0.0
        %2651 = vmatpush2.msra.mxu0 0.0
        %2652 = vmatprep.subr.mxu0 0.0
        %2653 = vmatpush2.msra.mxu0 0.0
        %2654 = vmatprep.subr.mxu0 0.0
        %2655 = vmatpush2.msra.mxu0 0.0
        %2656 = vmatprep.subr.mxu0 0.0
        %2657 = vmatpush2.msra.mxu0 0.0
        %2658 = vmatprep.subr.mxu0 0.0
        %2659 = vmatpush2.msra.mxu0 0.0
        %2660 = vmatprep.subr.mxu0 0.0
        %2661 = vmatpush2.msra.mxu0 0.0
        %2662 = vmatprep.subr.mxu0 0.0
        %2663 = vmatpush2.msra.mxu0 0.0
        %2664 = vmatprep.subr.mxu0 0.0
        %2665 = vmatpush2.msra.mxu0 0.0
        %2666 = vmatprep.subr.mxu0 0.0
        %2667 = vmatpush2.msra.mxu0 0.0
        %2668 = vmatprep.mubr.f32.mxu0 0.0
        %2669 = vmatmul.mubr.f32.gmra.mxu0 %v2072
        %v2670 = vpop.f32.mrf.mxu0
        %v2671 = vadd.f32 0.0, %v2670
        %v2672 = vpop.f32.mrf.mxu0
        %2673 = vmatprep.mubr.f32.mxu0 0.0
        %2674 = vmatmul.mubr.f32.gmra.mxu0 %v2075
        %v2675 = vpop.f32.mrf.mxu0
        %v2676 = vadd.f32 0.0, %v2675
        %v2677 = vpop.f32.mrf.mxu0
        %2678 = vmatprep.mubr.f32.mxu0 0.0
        %2679 = vmatmul.mubr.f32.gmra.mxu0 %v2078
        %v2680 = vpop.f32.mrf.mxu0
        %v2681 = vadd.f32 0.0, %v2680
        %v2682 = vpop.f32.mrf.mxu0
        %2683 = vmatprep.mubr.f32.mxu0 0.0
        %2684 = vmatmul.mubr.f32.gmra.mxu0 %v2081
        %v2685 = vpop.f32.mrf.mxu0
        %v2686 = vadd.f32 0.0, %v2685
        %v2687 = vpop.f32.mrf.mxu0
        %2688 = vmatprep.mubr.f32.mxu0 0.0
        %2689 = vmatmul.mubr.f32.gmra.mxu0 %v2084
        %v2690 = vpop.f32.mrf.mxu0
        %v2691 = vadd.f32 0.0, %v2690
        %v2692 = vpop.f32.mrf.mxu0
        %2693 = vmatprep.mubr.f32.mxu0 0.0
        %2694 = vmatmul.mubr.f32.gmra.mxu0 %v2087
        %v2695 = vpop.f32.mrf.mxu0
        %v2696 = vadd.f32 0.0, %v2695
        %v2697 = vpop.f32.mrf.mxu0
        %2698 = vmatprep.mubr.f32.mxu0 0.0
        %2699 = vmatmul.mubr.f32.gmra.mxu0 %v2090
        %v2700 = vpop.f32.mrf.mxu0
        %v2701 = vadd.f32 0.0, %v2700
        %v2702 = vpop.f32.mrf.mxu0
        %2703 = vmatprep.mubr.f32.mxu0 0.0
        %2704 = vmatmul.mubr.f32.gmra.mxu0 %v2093
        %v2705 = vpop.f32.mrf.mxu0
        %v2706 = vadd.f32 0.0, %v2705
        %v2707 = vpop.f32.mrf.mxu0
        %2708 = vmatprep.mubr.f32.mxu0 0.0
        %2709 = vmatmul.mubr.f32.gmra.mxu0 %v2096
        %v2710 = vpop.f32.mrf.mxu0
        %v2711 = vadd.f32 0.0, %v2710
        %v2712 = vpop.f32.mrf.mxu0
        %2713 = vmatprep.mubr.f32.mxu0 0.0
        %2714 = vmatmul.mubr.f32.gmra.mxu0 %v2099
        %v2715 = vpop.f32.mrf.mxu0
        %v2716 = vadd.f32 0.0, %v2715
        %v2717 = vpop.f32.mrf.mxu0
        %2718 = vmatprep.mubr.f32.mxu0 0.0
        %2719 = vmatmul.mubr.f32.gmra.mxu0 %v2102
        %v2720 = vpop.f32.mrf.mxu0
        %v2721 = vadd.f32 0.0, %v2720
        %v2722 = vpop.f32.mrf.mxu0
        %2723 = vmatprep.mubr.f32.mxu0 0.0
        %2724 = vmatmul.mubr.f32.gmra.mxu0 %v2105
        %v2725 = vpop.f32.mrf.mxu0
        %v2726 = vadd.f32 0.0, %v2725
        %v2727 = vpop.f32.mrf.mxu0
        %2728 = vmatprep.mubr.f32.mxu0 0.0
        %2729 = vmatmul.mubr.f32.gmra.mxu0 %v2108
        %v2730 = vpop.f32.mrf.mxu0
        %v2731 = vadd.f32 0.0, %v2730
        %v2732 = vpop.f32.mrf.mxu0
        %2733 = vmatprep.mubr.f32.mxu0 0.0
        %2734 = vmatmul.mubr.f32.gmra.mxu0 %v2111
        %v2735 = vpop.f32.mrf.mxu0
        %v2736 = vadd.f32 0.0, %v2735
        %v2737 = vpop.f32.mrf.mxu0
        %2738 = vmatprep.mubr.f32.mxu0 0.0
        %2739 = vmatmul.mubr.f32.gmra.mxu0 %v2114
        %v2740 = vpop.f32.mrf.mxu0
        %v2741 = vadd.f32 0.0, %v2740
        %v2742 = vpop.f32.mrf.mxu0
        %2743 = vmatprep.mubr.f32.mxu0 0.0
        %2744 = vmatmul.mubr.f32.gmra.mxu0 %v2117
        %v2745 = vpop.f32.mrf.mxu0
        %v2746 = vadd.f32 0.0, %v2745
        %v2747 = vpop.f32.mrf.mxu0
        %2748 = vdwg.mxu0
        %v2749 = vadd.f32 %v2588, %v2671
        %v2750 = vadd.f32 %v2589, %v2676
        %v2751 = vadd.f32 %v2590, %v2681
        %v2752 = vadd.f32 %v2591, %v2686
        %v2753 = vadd.f32 %v2592, %v2691
        %v2754 = vadd.f32 %v2593, %v2696
        %v2755 = vadd.f32 %v2594, %v2701
        %v2756 = vadd.f32 %v2595, %v2706
        %v2757 = vadd.f32 %v2596, %v2711
        %v2758 = vadd.f32 %v2597, %v2716
        %v2759 = vadd.f32 %v2598, %v2721
        %v2760 = vadd.f32 %v2599, %v2726
        %v2761 = vadd.f32 %v2600, %v2731
        %v2762 = vadd.f32 %v2601, %v2736
        %v2763 = vadd.f32 %v2602, %v2741
        %v2764 = vadd.f32 %v2603, %v2746
        %v2765 = vtanh.pop %v2749
        %v2766 = vtanh.pop %v2750
        %v2767 = vtanh.pop %v2751
        %v2768 = vtanh.pop %v2752
        %v2769 = vtanh.pop %v2753
        %v2770 = vtanh.pop %v2754
        %v2771 = vtanh.pop %v2755
        %v2772 = vtanh.pop %v2756
        %v2773 = vtanh.pop %v2757
        %v2774 = vtanh.pop %v2758
        %v2775 = vtanh.pop %v2759
        %v2776 = vtanh.pop %v2760
        %v2777 = vtanh.pop %v2761
        %v2778 = vtanh.pop %v2762
        %v2779 = vtanh.pop %v2763
        %v2780 = vtanh.pop %v2764
        %v2781 = vmul.f32 %v2765, 0.5
        %v2782 = vmul.f32 %v2766, 0.5
        %v2783 = vmul.f32 %v2767, 0.5
        %v2784 = vmul.f32 %v2768, 0.5
        %v2785 = vadd.f32 %v2781, 0.5
        %v2786 = vadd.f32 %v2782, 0.5
        %v2787 = vadd.f32 %v2783, 0.5
        %v2788 = vadd.f32 %v2784, 0.5
        %v2789 = vmul.f32 %v2769, 0.5
        %v2790 = vmul.f32 %v2770, 0.5
        %v2791 = vmul.f32 %v2771, 0.5
        %v2792 = vmul.f32 %v2772, 0.5
        %v2793 = vadd.f32 %v2789, 0.5
        %v2794 = vadd.f32 %v2790, 0.5
        %v2795 = vadd.f32 %v2791, 0.5
        %v2796 = vadd.f32 %v2792, 0.5
        %v2797 = vmul.f32 %v2777, 0.5
        %v2798 = vmul.f32 %v2778, 0.5
        %v2799 = vmul.f32 %v2779, 0.5
        %v2800 = vmul.f32 %v2780, 0.5
        %v2801 = vadd.f32 %v2797, 0.5
        %v2802 = vadd.f32 %v2798, 0.5
        %v2803 = vadd.f32 %v2799, 0.5
        %v2804 = vadd.f32 %v2800, 0.5
        %v2805 = vmul.f32 %v2793, %v2570
        %v2806 = vmul.f32 %v2794, %v2571
        %v2807 = vmul.f32 %v2795, %v2572
        %v2808 = vmul.f32 %v2796, %v2573
        %v2809 = vmul.f32 %v2785, %v2773
        %v2810 = vmul.f32 %v2786, %v2774
        %v2811 = vmul.f32 %v2787, %v2775
        %v2812 = vmul.f32 %v2788, %v2776
        %v2813 = vadd.f32 %v2805, %v2809
        %v2814 = vadd.f32 %v2806, %v2810
        %v2815 = vadd.f32 %v2807, %v2811
        %v2816 = vadd.f32 %v2808, %v2812
        %v2817 = vtanh.pop %v2813
        %v2818 = vtanh.pop %v2814
        %v2819 = vtanh.pop %v2815
        %v2820 = vtanh.pop %v2816
        %v2821 = vmul.f32 %v2801, %v2817
        %v2822 = vmul.f32 %v2802, %v2818
        %v2823 = vmul.f32 %v2803, %v2819
        %v2824 = vmul.f32 %v2804, %v2820
        %s2825 = scalar_lea.vmem [#allocation3], 64
        %2826 = vst [vmem:[%s2825] sm:$0xff] %v2821
        %2827 = vst [vmem:[%s2825 + $0x8] sm:$0xff] %v2822
        %2828 = vst [vmem:[%s2825 + $0x10] sm:$0xff] %v2823
        %2829 = vst [vmem:[%s2825 + $0x18] sm:$0xff] %v2824
        %s2830 = scalar_lea.vmem [#allocation2], 24
        %v2831 = vld [vmem:[%s2830] sm:$0xff]
        %v2832 = vld [vmem:[%s2830 + $0x80] sm:$0xff]
        %v2833 = vld [vmem:[%s2830 + $0x100] sm:$0xff]
        %v2834 = vld [vmem:[%s2830 + $0x180] sm:$0xff]
        %v2835 = vld [vmem:[%s2830 + $0x200] sm:$0xff]
        %v2836 = vld [vmem:[%s2830 + $0x280] sm:$0xff]
        %v2837 = vld [vmem:[%s2830 + $0x300] sm:$0xff]
        %v2838 = vld [vmem:[%s2830 + $0x380] sm:$0xff]
        %v2839 = vld [vmem:[%s2830 + $0x400] sm:$0xff]
        %v2840 = vld [vmem:[%s2830 + $0x480] sm:$0xff]
        %v2841 = vld [vmem:[%s2830 + $0x500] sm:$0xff]
        %v2842 = vld [vmem:[%s2830 + $0x580] sm:$0xff]
        %v2843 = vld [vmem:[%s2830 + $0x600] sm:$0xff]
        %v2844 = vld [vmem:[%s2830 + $0x680] sm:$0xff]
        %v2845 = vld [vmem:[%s2830 + $0x700] sm:$0xff]
        %v2846 = vld [vmem:[%s2830 + $0x780] sm:$0xff]
        %2847 = vmatprep.subr.mxu0 0.0
        %2848 = vmatpush1.msra.mxu0 0.0
        %2849 = vmatprep.subr.mxu0 0.0
        %2850 = vmatpush1.msra.mxu0 0.0
        %2851 = vmatprep.subr.mxu0 0.0
        %2852 = vmatpush1.msra.mxu0 0.0
        %2853 = vmatprep.subr.mxu0 0.0
        %2854 = vmatpush1.msra.mxu0 0.0
        %2855 = vmatprep.subr.mxu0 0.0
        %2856 = vmatpush1.msra.mxu0 0.0
        %2857 = vmatprep.subr.mxu0 0.0
        %2858 = vmatpush1.msra.mxu0 0.0
        %2859 = vmatprep.subr.mxu0 0.0
        %2860 = vmatpush1.msra.mxu0 0.0
        %2861 = vmatprep.subr.mxu0 0.0
        %2862 = vmatpush1.msra.mxu0 0.0
        %2863 = vmatprep.subr.mxu0 0.0
        %2864 = vmatpush1.msra.mxu0 0.0
        %2865 = vmatprep.subr.mxu0 0.0
        %2866 = vmatpush1.msra.mxu0 0.0
        %2867 = vmatprep.subr.mxu0 0.0
        %2868 = vmatpush1.msra.mxu0 0.0
        %2869 = vmatprep.subr.mxu0 0.0
        %2870 = vmatpush1.msra.mxu0 0.0
        %2871 = vmatprep.subr.mxu0 0.0
        %2872 = vmatpush1.msra.mxu0 %v2824
        %2873 = vmatprep.subr.mxu0 0.0
        %2874 = vmatpush1.msra.mxu0 %v2823
        %2875 = vmatprep.subr.mxu0 0.0
        %2876 = vmatpush1.msra.mxu0 %v2822
        %2877 = vmatprep.subr.mxu0 0.0
        %2878 = vmatpush1.msra.mxu0 %v2821
        %2879 = vmatprep.subr.mxu0 0.0
        %2880 = vmatpush2.msra.mxu0 0.0
        %2881 = vmatprep.subr.mxu0 0.0
        %2882 = vmatpush2.msra.mxu0 0.0
        %2883 = vmatprep.subr.mxu0 0.0
        %2884 = vmatpush2.msra.mxu0 0.0
        %2885 = vmatprep.subr.mxu0 0.0
        %2886 = vmatpush2.msra.mxu0 0.0
        %2887 = vmatprep.subr.mxu0 0.0
        %2888 = vmatpush2.msra.mxu0 0.0
        %2889 = vmatprep.subr.mxu0 0.0
        %2890 = vmatpush2.msra.mxu0 0.0
        %2891 = vmatprep.subr.mxu0 0.0
        %2892 = vmatpush2.msra.mxu0 0.0
        %2893 = vmatprep.subr.mxu0 0.0
        %2894 = vmatpush2.msra.mxu0 0.0
        %2895 = vmatprep.subr.mxu0 0.0
        %2896 = vmatpush2.msra.mxu0 0.0
        %2897 = vmatprep.subr.mxu0 0.0
        %2898 = vmatpush2.msra.mxu0 0.0
        %2899 = vmatprep.subr.mxu0 0.0
        %2900 = vmatpush2.msra.mxu0 0.0
        %2901 = vmatprep.subr.mxu0 0.0
        %2902 = vmatpush2.msra.mxu0 0.0
        %2903 = vmatprep.subr.mxu0 0.0
        %2904 = vmatpush2.msra.mxu0 0.0
        %2905 = vmatprep.subr.mxu0 0.0
        %2906 = vmatpush2.msra.mxu0 0.0
        %2907 = vmatprep.subr.mxu0 0.0
        %2908 = vmatpush2.msra.mxu0 0.0
        %2909 = vmatprep.subr.mxu0 0.0
        %2910 = vmatpush2.msra.mxu0 0.0
        %2911 = vmatprep.mubr.f32.mxu0 0.0
        %2912 = vmatmul.mubr.f32.gmra.mxu0 %v2072
        %v2913 = vpop.f32.mrf.mxu0
        %v2914 = vadd.f32 0.0, %v2913
        %v2915 = vpop.f32.mrf.mxu0
        %2916 = vmatprep.mubr.f32.mxu0 0.0
        %2917 = vmatmul.mubr.f32.gmra.mxu0 %v2075
        %v2918 = vpop.f32.mrf.mxu0
        %v2919 = vadd.f32 0.0, %v2918
        %v2920 = vpop.f32.mrf.mxu0
        %2921 = vmatprep.mubr.f32.mxu0 0.0
        %2922 = vmatmul.mubr.f32.gmra.mxu0 %v2078
        %v2923 = vpop.f32.mrf.mxu0
        %v2924 = vadd.f32 0.0, %v2923
        %v2925 = vpop.f32.mrf.mxu0
        %2926 = vmatprep.mubr.f32.mxu0 0.0
        %2927 = vmatmul.mubr.f32.gmra.mxu0 %v2081
        %v2928 = vpop.f32.mrf.mxu0
        %v2929 = vadd.f32 0.0, %v2928
        %v2930 = vpop.f32.mrf.mxu0
        %2931 = vmatprep.mubr.f32.mxu0 0.0
        %2932 = vmatmul.mubr.f32.gmra.mxu0 %v2084
        %v2933 = vpop.f32.mrf.mxu0
        %v2934 = vadd.f32 0.0, %v2933
        %v2935 = vpop.f32.mrf.mxu0
        %2936 = vmatprep.mubr.f32.mxu0 0.0
        %2937 = vmatmul.mubr.f32.gmra.mxu0 %v2087
        %v2938 = vpop.f32.mrf.mxu0
        %v2939 = vadd.f32 0.0, %v2938
        %v2940 = vpop.f32.mrf.mxu0
        %2941 = vmatprep.mubr.f32.mxu0 0.0
        %2942 = vmatmul.mubr.f32.gmra.mxu0 %v2090
        %v2943 = vpop.f32.mrf.mxu0
        %v2944 = vadd.f32 0.0, %v2943
        %v2945 = vpop.f32.mrf.mxu0
        %2946 = vmatprep.mubr.f32.mxu0 0.0
        %2947 = vmatmul.mubr.f32.gmra.mxu0 %v2093
        %v2948 = vpop.f32.mrf.mxu0
        %v2949 = vadd.f32 0.0, %v2948
        %v2950 = vpop.f32.mrf.mxu0
        %2951 = vmatprep.mubr.f32.mxu0 0.0
        %2952 = vmatmul.mubr.f32.gmra.mxu0 %v2096
        %v2953 = vpop.f32.mrf.mxu0
        %v2954 = vadd.f32 0.0, %v2953
        %v2955 = vpop.f32.mrf.mxu0
        %2956 = vmatprep.mubr.f32.mxu0 0.0
        %2957 = vmatmul.mubr.f32.gmra.mxu0 %v2099
        %v2958 = vpop.f32.mrf.mxu0
        %v2959 = vadd.f32 0.0, %v2958
        %v2960 = vpop.f32.mrf.mxu0
        %2961 = vmatprep.mubr.f32.mxu0 0.0
        %2962 = vmatmul.mubr.f32.gmra.mxu0 %v2102
        %v2963 = vpop.f32.mrf.mxu0
        %v2964 = vadd.f32 0.0, %v2963
        %v2965 = vpop.f32.mrf.mxu0
        %2966 = vmatprep.mubr.f32.mxu0 0.0
        %2967 = vmatmul.mubr.f32.gmra.mxu0 %v2105
        %v2968 = vpop.f32.mrf.mxu0
        %v2969 = vadd.f32 0.0, %v2968
        %v2970 = vpop.f32.mrf.mxu0
        %2971 = vmatprep.mubr.f32.mxu0 0.0
        %2972 = vmatmul.mubr.f32.gmra.mxu0 %v2108
        %v2973 = vpop.f32.mrf.mxu0
        %v2974 = vadd.f32 0.0, %v2973
        %v2975 = vpop.f32.mrf.mxu0
        %2976 = vmatprep.mubr.f32.mxu0 0.0
        %2977 = vmatmul.mubr.f32.gmra.mxu0 %v2111
        %v2978 = vpop.f32.mrf.mxu0
        %v2979 = vadd.f32 0.0, %v2978
        %v2980 = vpop.f32.mrf.mxu0
        %2981 = vmatprep.mubr.f32.mxu0 0.0
        %2982 = vmatmul.mubr.f32.gmra.mxu0 %v2114
        %v2983 = vpop.f32.mrf.mxu0
        %v2984 = vadd.f32 0.0, %v2983
        %v2985 = vpop.f32.mrf.mxu0
        %2986 = vmatprep.mubr.f32.mxu0 0.0
        %2987 = vmatmul.mubr.f32.gmra.mxu0 %v2117
        %v2988 = vpop.f32.mrf.mxu0
        %v2989 = vadd.f32 0.0, %v2988
        %v2990 = vpop.f32.mrf.mxu0
        %2991 = vdwg.mxu0
        %v2992 = vadd.f32 %v2831, %v2914
        %v2993 = vadd.f32 %v2832, %v2919
        %v2994 = vadd.f32 %v2833, %v2924
        %v2995 = vadd.f32 %v2834, %v2929
        %v2996 = vadd.f32 %v2835, %v2934
        %v2997 = vadd.f32 %v2836, %v2939
        %v2998 = vadd.f32 %v2837, %v2944
        %v2999 = vadd.f32 %v2838, %v2949
        %v3000 = vadd.f32 %v2839, %v2954
        %v3001 = vadd.f32 %v2840, %v2959
        %v3002 = vadd.f32 %v2841, %v2964
        %v3003 = vadd.f32 %v2842, %v2969
        %v3004 = vadd.f32 %v2843, %v2974
        %v3005 = vadd.f32 %v2844, %v2979
        %v3006 = vadd.f32 %v2845, %v2984
        %v3007 = vadd.f32 %v2846, %v2989
        %v3008 = vtanh.pop %v2992
        %v3009 = vtanh.pop %v2993
        %v3010 = vtanh.pop %v2994
        %v3011 = vtanh.pop %v2995
        %v3012 = vtanh.pop %v2996
        %v3013 = vtanh.pop %v2997
        %v3014 = vtanh.pop %v2998
        %v3015 = vtanh.pop %v2999
        %v3016 = vtanh.pop %v3000
        %v3017 = vtanh.pop %v3001
        %v3018 = vtanh.pop %v3002
        %v3019 = vtanh.pop %v3003
        %v3020 = vtanh.pop %v3004
        %v3021 = vtanh.pop %v3005
        %v3022 = vtanh.pop %v3006
        %v3023 = vtanh.pop %v3007
        %v3024 = vmul.f32 %v3008, 0.5
        %v3025 = vmul.f32 %v3009, 0.5
        %v3026 = vmul.f32 %v3010, 0.5
        %v3027 = vmul.f32 %v3011, 0.5
        %v3028 = vadd.f32 %v3024, 0.5
        %v3029 = vadd.f32 %v3025, 0.5
        %v3030 = vadd.f32 %v3026, 0.5
        %v3031 = vadd.f32 %v3027, 0.5
        %v3032 = vmul.f32 %v3012, 0.5
        %v3033 = vmul.f32 %v3013, 0.5
        %v3034 = vmul.f32 %v3014, 0.5
        %v3035 = vmul.f32 %v3015, 0.5
        %v3036 = vadd.f32 %v3032, 0.5
        %v3037 = vadd.f32 %v3033, 0.5
        %v3038 = vadd.f32 %v3034, 0.5
        %v3039 = vadd.f32 %v3035, 0.5
        %v3040 = vmul.f32 %v3020, 0.5
        %v3041 = vmul.f32 %v3021, 0.5
        %v3042 = vmul.f32 %v3022, 0.5
        %v3043 = vmul.f32 %v3023, 0.5
        %v3044 = vadd.f32 %v3040, 0.5
        %v3045 = vadd.f32 %v3041, 0.5
        %v3046 = vadd.f32 %v3042, 0.5
        %v3047 = vadd.f32 %v3043, 0.5
        %v3048 = vmul.f32 %v3036, %v2813
        %v3049 = vmul.f32 %v3037, %v2814
        %v3050 = vmul.f32 %v3038, %v2815
        %v3051 = vmul.f32 %v3039, %v2816
        %v3052 = vmul.f32 %v3028, %v3016
        %v3053 = vmul.f32 %v3029, %v3017
        %v3054 = vmul.f32 %v3030, %v3018
        %v3055 = vmul.f32 %v3031, %v3019
        %v3056 = vadd.f32 %v3048, %v3052
        %v3057 = vadd.f32 %v3049, %v3053
        %v3058 = vadd.f32 %v3050, %v3054
        %v3059 = vadd.f32 %v3051, %v3055
        %v3060 = vtanh.pop %v3056
        %v3061 = vtanh.pop %v3057
        %v3062 = vtanh.pop %v3058
        %v3063 = vtanh.pop %v3059
        %v3064 = vmul.f32 %v3044, %v3060
        %v3065 = vmul.f32 %v3045, %v3061
        %v3066 = vmul.f32 %v3046, %v3062
        %v3067 = vmul.f32 %v3047, %v3063
        %s3068 = scalar_lea.vmem [#allocation3], 96
        %3069 = vst [vmem:[%s3068] sm:$0xff] %v3064
        %3070 = vst [vmem:[%s3068 + $0x8] sm:$0xff] %v3065
        %3071 = vst [vmem:[%s3068 + $0x10] sm:$0xff] %v3066
        %3072 = vst [vmem:[%s3068 + $0x18] sm:$0xff] %v3067
        %s3073 = scalar_lea.vmem [#allocation2], 32
        %v3074 = vld [vmem:[%s3073] sm:$0xff]
        %v3075 = vld [vmem:[%s3073 + $0x80] sm:$0xff]
        %v3076 = vld [vmem:[%s3073 + $0x100] sm:$0xff]
        %v3077 = vld [vmem:[%s3073 + $0x180] sm:$0xff]
        %v3078 = vld [vmem:[%s3073 + $0x200] sm:$0xff]
        %v3079 = vld [vmem:[%s3073 + $0x280] sm:$0xff]
        %v3080 = vld [vmem:[%s3073 + $0x300] sm:$0xff]
        %v3081 = vld [vmem:[%s3073 + $0x380] sm:$0xff]
        %v3082 = vld [vmem:[%s3073 + $0x400] sm:$0xff]
        %v3083 = vld [vmem:[%s3073 + $0x480] sm:$0xff]
        %v3084 = vld [vmem:[%s3073 + $0x500] sm:$0xff]
        %v3085 = vld [vmem:[%s3073 + $0x580] sm:$0xff]
        %v3086 = vld [vmem:[%s3073 + $0x600] sm:$0xff]
        %v3087 = vld [vmem:[%s3073 + $0x680] sm:$0xff]
        %v3088 = vld [vmem:[%s3073 + $0x700] sm:$0xff]
        %v3089 = vld [vmem:[%s3073 + $0x780] sm:$0xff]
        %3090 = vmatprep.subr.mxu0 0.0
        %3091 = vmatpush1.msra.mxu0 0.0
        %3092 = vmatprep.subr.mxu0 0.0
        %3093 = vmatpush1.msra.mxu0 0.0
        %3094 = vmatprep.subr.mxu0 0.0
        %3095 = vmatpush1.msra.mxu0 0.0
        %3096 = vmatprep.subr.mxu0 0.0
        %3097 = vmatpush1.msra.mxu0 0.0
        %3098 = vmatprep.subr.mxu0 0.0
        %3099 = vmatpush1.msra.mxu0 0.0
        %3100 = vmatprep.subr.mxu0 0.0
        %3101 = vmatpush1.msra.mxu0 0.0
        %3102 = vmatprep.subr.mxu0 0.0
        %3103 = vmatpush1.msra.mxu0 0.0
        %3104 = vmatprep.subr.mxu0 0.0
        %3105 = vmatpush1.msra.mxu0 0.0
        %3106 = vmatprep.subr.mxu0 0.0
        %3107 = vmatpush1.msra.mxu0 0.0
        %3108 = vmatprep.subr.mxu0 0.0
        %3109 = vmatpush1.msra.mxu0 0.0
        %3110 = vmatprep.subr.mxu0 0.0
        %3111 = vmatpush1.msra.mxu0 0.0
        %3112 = vmatprep.subr.mxu0 0.0
        %3113 = vmatpush1.msra.mxu0 0.0
        %3114 = vmatprep.subr.mxu0 0.0
        %3115 = vmatpush1.msra.mxu0 %v3067
        %3116 = vmatprep.subr.mxu0 0.0
        %3117 = vmatpush1.msra.mxu0 %v3066
        %3118 = vmatprep.subr.mxu0 0.0
        %3119 = vmatpush1.msra.mxu0 %v3065
        %3120 = vmatprep.subr.mxu0 0.0
        %3121 = vmatpush1.msra.mxu0 %v3064
        %3122 = vmatprep.subr.mxu0 0.0
        %3123 = vmatpush2.msra.mxu0 0.0
        %3124 = vmatprep.subr.mxu0 0.0
        %3125 = vmatpush2.msra.mxu0 0.0
        %3126 = vmatprep.subr.mxu0 0.0
        %3127 = vmatpush2.msra.mxu0 0.0
        %3128 = vmatprep.subr.mxu0 0.0
        %3129 = vmatpush2.msra.mxu0 0.0
        %3130 = vmatprep.subr.mxu0 0.0
        %3131 = vmatpush2.msra.mxu0 0.0
        %3132 = vmatprep.subr.mxu0 0.0
        %3133 = vmatpush2.msra.mxu0 0.0
        %3134 = vmatprep.subr.mxu0 0.0
        %3135 = vmatpush2.msra.mxu0 0.0
        %3136 = vmatprep.subr.mxu0 0.0
        %3137 = vmatpush2.msra.mxu0 0.0
        %3138 = vmatprep.subr.mxu0 0.0
        %3139 = vmatpush2.msra.mxu0 0.0
        %3140 = vmatprep.subr.mxu0 0.0
        %3141 = vmatpush2.msra.mxu0 0.0
        %3142 = vmatprep.subr.mxu0 0.0
        %3143 = vmatpush2.msra.mxu0 0.0
        %3144 = vmatprep.subr.mxu0 0.0
        %3145 = vmatpush2.msra.mxu0 0.0
        %3146 = vmatprep.subr.mxu0 0.0
        %3147 = vmatpush2.msra.mxu0 0.0
        %3148 = vmatprep.subr.mxu0 0.0
        %3149 = vmatpush2.msra.mxu0 0.0
        %3150 = vmatprep.subr.mxu0 0.0
        %3151 = vmatpush2.msra.mxu0 0.0
        %3152 = vmatprep.subr.mxu0 0.0
        %3153 = vmatpush2.msra.mxu0 0.0
        %3154 = vmatprep.mubr.f32.mxu0 0.0
        %3155 = vmatmul.mubr.f32.gmra.mxu0 %v2072
        %v3156 = vpop.f32.mrf.mxu0
        %v3157 = vadd.f32 0.0, %v3156
        %v3158 = vpop.f32.mrf.mxu0
        %3159 = vmatprep.mubr.f32.mxu0 0.0
        %3160 = vmatmul.mubr.f32.gmra.mxu0 %v2075
        %v3161 = vpop.f32.mrf.mxu0
        %v3162 = vadd.f32 0.0, %v3161
        %v3163 = vpop.f32.mrf.mxu0
        %3164 = vmatprep.mubr.f32.mxu0 0.0
        %3165 = vmatmul.mubr.f32.gmra.mxu0 %v2078
        %v3166 = vpop.f32.mrf.mxu0
        %v3167 = vadd.f32 0.0, %v3166
        %v3168 = vpop.f32.mrf.mxu0
        %3169 = vmatprep.mubr.f32.mxu0 0.0
        %3170 = vmatmul.mubr.f32.gmra.mxu0 %v2081
        %v3171 = vpop.f32.mrf.mxu0
        %v3172 = vadd.f32 0.0, %v3171
        %v3173 = vpop.f32.mrf.mxu0
        %3174 = vmatprep.mubr.f32.mxu0 0.0
        %3175 = vmatmul.mubr.f32.gmra.mxu0 %v2084
        %v3176 = vpop.f32.mrf.mxu0
        %v3177 = vadd.f32 0.0, %v3176
        %v3178 = vpop.f32.mrf.mxu0
        %3179 = vmatprep.mubr.f32.mxu0 0.0
        %3180 = vmatmul.mubr.f32.gmra.mxu0 %v2087
        %v3181 = vpop.f32.mrf.mxu0
        %v3182 = vadd.f32 0.0, %v3181
        %v3183 = vpop.f32.mrf.mxu0
        %3184 = vmatprep.mubr.f32.mxu0 0.0
        %3185 = vmatmul.mubr.f32.gmra.mxu0 %v2090
        %v3186 = vpop.f32.mrf.mxu0
        %v3187 = vadd.f32 0.0, %v3186
        %v3188 = vpop.f32.mrf.mxu0
        %3189 = vmatprep.mubr.f32.mxu0 0.0
        %3190 = vmatmul.mubr.f32.gmra.mxu0 %v2093
        %v3191 = vpop.f32.mrf.mxu0
        %v3192 = vadd.f32 0.0, %v3191
        %v3193 = vpop.f32.mrf.mxu0
        %3194 = vmatprep.mubr.f32.mxu0 0.0
        %3195 = vmatmul.mubr.f32.gmra.mxu0 %v2096
        %v3196 = vpop.f32.mrf.mxu0
        %v3197 = vadd.f32 0.0, %v3196
        %v3198 = vpop.f32.mrf.mxu0
        %3199 = vmatprep.mubr.f32.mxu0 0.0
        %3200 = vmatmul.mubr.f32.gmra.mxu0 %v2099
        %v3201 = vpop.f32.mrf.mxu0
        %v3202 = vadd.f32 0.0, %v3201
        %v3203 = vpop.f32.mrf.mxu0
        %3204 = vmatprep.mubr.f32.mxu0 0.0
        %3205 = vmatmul.mubr.f32.gmra.mxu0 %v2102
        %v3206 = vpop.f32.mrf.mxu0
        %v3207 = vadd.f32 0.0, %v3206
        %v3208 = vpop.f32.mrf.mxu0
        %3209 = vmatprep.mubr.f32.mxu0 0.0
        %3210 = vmatmul.mubr.f32.gmra.mxu0 %v2105
        %v3211 = vpop.f32.mrf.mxu0
        %v3212 = vadd.f32 0.0, %v3211
        %v3213 = vpop.f32.mrf.mxu0
        %3214 = vmatprep.mubr.f32.mxu0 0.0
        %3215 = vmatmul.mubr.f32.gmra.mxu0 %v2108
        %v3216 = vpop.f32.mrf.mxu0
        %v3217 = vadd.f32 0.0, %v3216
        %v3218 = vpop.f32.mrf.mxu0
        %3219 = vmatprep.mubr.f32.mxu0 0.0
        %3220 = vmatmul.mubr.f32.gmra.mxu0 %v2111
        %v3221 = vpop.f32.mrf.mxu0
        %v3222 = vadd.f32 0.0, %v3221
        %v3223 = vpop.f32.mrf.mxu0
        %3224 = vmatprep.mubr.f32.mxu0 0.0
        %3225 = vmatmul.mubr.f32.gmra.mxu0 %v2114
        %v3226 = vpop.f32.mrf.mxu0
        %v3227 = vadd.f32 0.0, %v3226
        %v3228 = vpop.f32.mrf.mxu0
        %3229 = vmatprep.mubr.f32.mxu0 0.0
        %3230 = vmatmul.mubr.f32.gmra.mxu0 %v2117
        %v3231 = vpop.f32.mrf.mxu0
        %v3232 = vadd.f32 0.0, %v3231
        %v3233 = vpop.f32.mrf.mxu0
        %3234 = vdwg.mxu0
        %v3235 = vadd.f32 %v3074, %v3157
        %v3236 = vadd.f32 %v3075, %v3162
        %v3237 = vadd.f32 %v3076, %v3167
        %v3238 = vadd.f32 %v3077, %v3172
        %v3239 = vadd.f32 %v3078, %v3177
        %v3240 = vadd.f32 %v3079, %v3182
        %v3241 = vadd.f32 %v3080, %v3187
        %v3242 = vadd.f32 %v3081, %v3192
        %v3243 = vadd.f32 %v3082, %v3197
        %v3244 = vadd.f32 %v3083, %v3202
        %v3245 = vadd.f32 %v3084, %v3207
        %v3246 = vadd.f32 %v3085, %v3212
        %v3247 = vadd.f32 %v3086, %v3217
        %v3248 = vadd.f32 %v3087, %v3222
        %v3249 = vadd.f32 %v3088, %v3227
        %v3250 = vadd.f32 %v3089, %v3232
        %v3251 = vtanh.pop %v3235
        %v3252 = vtanh.pop %v3236
        %v3253 = vtanh.pop %v3237
        %v3254 = vtanh.pop %v3238
        %v3255 = vtanh.pop %v3239
        %v3256 = vtanh.pop %v3240
        %v3257 = vtanh.pop %v3241
        %v3258 = vtanh.pop %v3242
        %v3259 = vtanh.pop %v3243
        %v3260 = vtanh.pop %v3244
        %v3261 = vtanh.pop %v3245
        %v3262 = vtanh.pop %v3246
        %v3263 = vtanh.pop %v3247
        %v3264 = vtanh.pop %v3248
        %v3265 = vtanh.pop %v3249
        %v3266 = vtanh.pop %v3250
        %v3267 = vmul.f32 %v3251, 0.5
        %v3268 = vmul.f32 %v3252, 0.5
        %v3269 = vmul.f32 %v3253, 0.5
        %v3270 = vmul.f32 %v3254, 0.5
        %v3271 = vadd.f32 %v3267, 0.5
        %v3272 = vadd.f32 %v3268, 0.5
        %v3273 = vadd.f32 %v3269, 0.5
        %v3274 = vadd.f32 %v3270, 0.5
        %v3275 = vmul.f32 %v3255, 0.5
        %v3276 = vmul.f32 %v3256, 0.5
        %v3277 = vmul.f32 %v3257, 0.5
        %v3278 = vmul.f32 %v3258, 0.5
        %v3279 = vadd.f32 %v3275, 0.5
        %v3280 = vadd.f32 %v3276, 0.5
        %v3281 = vadd.f32 %v3277, 0.5
        %v3282 = vadd.f32 %v3278, 0.5
        %v3283 = vmul.f32 %v3263, 0.5
        %v3284 = vmul.f32 %v3264, 0.5
        %v3285 = vmul.f32 %v3265, 0.5
        %v3286 = vmul.f32 %v3266, 0.5
        %v3287 = vadd.f32 %v3283, 0.5
        %v3288 = vadd.f32 %v3284, 0.5
        %v3289 = vadd.f32 %v3285, 0.5
        %v3290 = vadd.f32 %v3286, 0.5
        %v3291 = vmul.f32 %v3279, %v3056
        %v3292 = vmul.f32 %v3280, %v3057
        %v3293 = vmul.f32 %v3281, %v3058
        %v3294 = vmul.f32 %v3282, %v3059
        %v3295 = vmul.f32 %v3271, %v3259
        %v3296 = vmul.f32 %v3272, %v3260
        %v3297 = vmul.f32 %v3273, %v3261
        %v3298 = vmul.f32 %v3274, %v3262
        %v3299 = vadd.f32 %v3291, %v3295
        %v3300 = vadd.f32 %v3292, %v3296
        %v3301 = vadd.f32 %v3293, %v3297
        %v3302 = vadd.f32 %v3294, %v3298
        %v3303 = vtanh.pop %v3299
        %v3304 = vtanh.pop %v3300
        %v3305 = vtanh.pop %v3301
        %v3306 = vtanh.pop %v3302
        %v3307 = vmul.f32 %v3287, %v3303
        %v3308 = vmul.f32 %v3288, %v3304
        %v3309 = vmul.f32 %v3289, %v3305
        %v3310 = vmul.f32 %v3290, %v3306
        %s3311 = scalar_lea.vmem [#allocation3], 128
        %3312 = vst [vmem:[%s3311] sm:$0xff] %v3307
        %3313 = vst [vmem:[%s3311 + $0x8] sm:$0xff] %v3308
        %3314 = vst [vmem:[%s3311 + $0x10] sm:$0xff] %v3309
        %3315 = vst [vmem:[%s3311 + $0x18] sm:$0xff] %v3310
        %s3316 = scalar_lea.vmem [#allocation2], 40
        %v3317 = vld [vmem:[%s3316] sm:$0xff]
        %v3318 = vld [vmem:[%s3316 + $0x80] sm:$0xff]
        %v3319 = vld [vmem:[%s3316 + $0x100] sm:$0xff]
        %v3320 = vld [vmem:[%s3316 + $0x180] sm:$0xff]
        %v3321 = vld [vmem:[%s3316 + $0x200] sm:$0xff]
        %v3322 = vld [vmem:[%s3316 + $0x280] sm:$0xff]
        %v3323 = vld [vmem:[%s3316 + $0x300] sm:$0xff]
        %v3324 = vld [vmem:[%s3316 + $0x380] sm:$0xff]
        %v3325 = vld [vmem:[%s3316 + $0x400] sm:$0xff]
        %v3326 = vld [vmem:[%s3316 + $0x480] sm:$0xff]
        %v3327 = vld [vmem:[%s3316 + $0x500] sm:$0xff]
        %v3328 = vld [vmem:[%s3316 + $0x580] sm:$0xff]
        %v3329 = vld [vmem:[%s3316 + $0x600] sm:$0xff]
        %v3330 = vld [vmem:[%s3316 + $0x680] sm:$0xff]
        %v3331 = vld [vmem:[%s3316 + $0x700] sm:$0xff]
        %v3332 = vld [vmem:[%s3316 + $0x780] sm:$0xff]
        %3333 = vmatprep.subr.mxu0 0.0
        %3334 = vmatpush1.msra.mxu0 0.0
        %3335 = vmatprep.subr.mxu0 0.0
        %3336 = vmatpush1.msra.mxu0 0.0
        %3337 = vmatprep.subr.mxu0 0.0
        %3338 = vmatpush1.msra.mxu0 0.0
        %3339 = vmatprep.subr.mxu0 0.0
        %3340 = vmatpush1.msra.mxu0 0.0
        %3341 = vmatprep.subr.mxu0 0.0
        %3342 = vmatpush1.msra.mxu0 0.0
        %3343 = vmatprep.subr.mxu0 0.0
        %3344 = vmatpush1.msra.mxu0 0.0
        %3345 = vmatprep.subr.mxu0 0.0
        %3346 = vmatpush1.msra.mxu0 0.0
        %3347 = vmatprep.subr.mxu0 0.0
        %3348 = vmatpush1.msra.mxu0 0.0
        %3349 = vmatprep.subr.mxu0 0.0
        %3350 = vmatpush1.msra.mxu0 0.0
        %3351 = vmatprep.subr.mxu0 0.0
        %3352 = vmatpush1.msra.mxu0 0.0
        %3353 = vmatprep.subr.mxu0 0.0
        %3354 = vmatpush1.msra.mxu0 0.0
        %3355 = vmatprep.subr.mxu0 0.0
        %3356 = vmatpush1.msra.mxu0 0.0
        %3357 = vmatprep.subr.mxu0 0.0
        %3358 = vmatpush1.msra.mxu0 %v3310
        %3359 = vmatprep.subr.mxu0 0.0
        %3360 = vmatpush1.msra.mxu0 %v3309
        %3361 = vmatprep.subr.mxu0 0.0
        %3362 = vmatpush1.msra.mxu0 %v3308
        %3363 = vmatprep.subr.mxu0 0.0
        %3364 = vmatpush1.msra.mxu0 %v3307
        %3365 = vmatprep.subr.mxu0 0.0
        %3366 = vmatpush2.msra.mxu0 0.0
        %3367 = vmatprep.subr.mxu0 0.0
        %3368 = vmatpush2.msra.mxu0 0.0
        %3369 = vmatprep.subr.mxu0 0.0
        %3370 = vmatpush2.msra.mxu0 0.0
        %3371 = vmatprep.subr.mxu0 0.0
        %3372 = vmatpush2.msra.mxu0 0.0
        %3373 = vmatprep.subr.mxu0 0.0
        %3374 = vmatpush2.msra.mxu0 0.0
        %3375 = vmatprep.subr.mxu0 0.0
        %3376 = vmatpush2.msra.mxu0 0.0
        %3377 = vmatprep.subr.mxu0 0.0
        %3378 = vmatpush2.msra.mxu0 0.0
        %3379 = vmatprep.subr.mxu0 0.0
        %3380 = vmatpush2.msra.mxu0 0.0
        %3381 = vmatprep.subr.mxu0 0.0
        %3382 = vmatpush2.msra.mxu0 0.0
        %3383 = vmatprep.subr.mxu0 0.0
        %3384 = vmatpush2.msra.mxu0 0.0
        %3385 = vmatprep.subr.mxu0 0.0
        %3386 = vmatpush2.msra.mxu0 0.0
        %3387 = vmatprep.subr.mxu0 0.0
        %3388 = vmatpush2.msra.mxu0 0.0
        %3389 = vmatprep.subr.mxu0 0.0
        %3390 = vmatpush2.msra.mxu0 0.0
        %3391 = vmatprep.subr.mxu0 0.0
        %3392 = vmatpush2.msra.mxu0 0.0
        %3393 = vmatprep.subr.mxu0 0.0
        %3394 = vmatpush2.msra.mxu0 0.0
        %3395 = vmatprep.subr.mxu0 0.0
        %3396 = vmatpush2.msra.mxu0 0.0
        %3397 = vmatprep.mubr.f32.mxu0 0.0
        %3398 = vmatmul.mubr.f32.gmra.mxu0 %v2072
        %v3399 = vpop.f32.mrf.mxu0
        %v3400 = vadd.f32 0.0, %v3399
        %v3401 = vpop.f32.mrf.mxu0
        %3402 = vmatprep.mubr.f32.mxu0 0.0
        %3403 = vmatmul.mubr.f32.gmra.mxu0 %v2075
        %v3404 = vpop.f32.mrf.mxu0
        %v3405 = vadd.f32 0.0, %v3404
        %v3406 = vpop.f32.mrf.mxu0
        %3407 = vmatprep.mubr.f32.mxu0 0.0
        %3408 = vmatmul.mubr.f32.gmra.mxu0 %v2078
        %v3409 = vpop.f32.mrf.mxu0
        %v3410 = vadd.f32 0.0, %v3409
        %v3411 = vpop.f32.mrf.mxu0
        %3412 = vmatprep.mubr.f32.mxu0 0.0
        %3413 = vmatmul.mubr.f32.gmra.mxu0 %v2081
        %v3414 = vpop.f32.mrf.mxu0
        %v3415 = vadd.f32 0.0, %v3414
        %v3416 = vpop.f32.mrf.mxu0
        %3417 = vmatprep.mubr.f32.mxu0 0.0
        %3418 = vmatmul.mubr.f32.gmra.mxu0 %v2084
        %v3419 = vpop.f32.mrf.mxu0
        %v3420 = vadd.f32 0.0, %v3419
        %v3421 = vpop.f32.mrf.mxu0
        %3422 = vmatprep.mubr.f32.mxu0 0.0
        %3423 = vmatmul.mubr.f32.gmra.mxu0 %v2087
        %v3424 = vpop.f32.mrf.mxu0
        %v3425 = vadd.f32 0.0, %v3424
        %v3426 = vpop.f32.mrf.mxu0
        %3427 = vmatprep.mubr.f32.mxu0 0.0
        %3428 = vmatmul.mubr.f32.gmra.mxu0 %v2090
        %v3429 = vpop.f32.mrf.mxu0
        %v3430 = vadd.f32 0.0, %v3429
        %v3431 = vpop.f32.mrf.mxu0
        %3432 = vmatprep.mubr.f32.mxu0 0.0
        %3433 = vmatmul.mubr.f32.gmra.mxu0 %v2093
        %v3434 = vpop.f32.mrf.mxu0
        %v3435 = vadd.f32 0.0, %v3434
        %v3436 = vpop.f32.mrf.mxu0
        %3437 = vmatprep.mubr.f32.mxu0 0.0
        %3438 = vmatmul.mubr.f32.gmra.mxu0 %v2096
        %v3439 = vpop.f32.mrf.mxu0
        %v3440 = vadd.f32 0.0, %v3439
        %v3441 = vpop.f32.mrf.mxu0
        %3442 = vmatprep.mubr.f32.mxu0 0.0
        %3443 = vmatmul.mubr.f32.gmra.mxu0 %v2099
        %v3444 = vpop.f32.mrf.mxu0
        %v3445 = vadd.f32 0.0, %v3444
        %v3446 = vpop.f32.mrf.mxu0
        %3447 = vmatprep.mubr.f32.mxu0 0.0
        %3448 = vmatmul.mubr.f32.gmra.mxu0 %v2102
        %v3449 = vpop.f32.mrf.mxu0
        %v3450 = vadd.f32 0.0, %v3449
        %v3451 = vpop.f32.mrf.mxu0
        %3452 = vmatprep.mubr.f32.mxu0 0.0
        %3453 = vmatmul.mubr.f32.gmra.mxu0 %v2105
        %v3454 = vpop.f32.mrf.mxu0
        %v3455 = vadd.f32 0.0, %v3454
        %v3456 = vpop.f32.mrf.mxu0
        %3457 = vmatprep.mubr.f32.mxu0 0.0
        %3458 = vmatmul.mubr.f32.gmra.mxu0 %v2108
        %v3459 = vpop.f32.mrf.mxu0
        %v3460 = vadd.f32 0.0, %v3459
        %v3461 = vpop.f32.mrf.mxu0
        %3462 = vmatprep.mubr.f32.mxu0 0.0
        %3463 = vmatmul.mubr.f32.gmra.mxu0 %v2111
        %v3464 = vpop.f32.mrf.mxu0
        %v3465 = vadd.f32 0.0, %v3464
        %v3466 = vpop.f32.mrf.mxu0
        %3467 = vmatprep.mubr.f32.mxu0 0.0
        %3468 = vmatmul.mubr.f32.gmra.mxu0 %v2114
        %v3469 = vpop.f32.mrf.mxu0
        %v3470 = vadd.f32 0.0, %v3469
        %v3471 = vpop.f32.mrf.mxu0
        %3472 = vmatprep.mubr.f32.mxu0 0.0
        %3473 = vmatmul.mubr.f32.gmra.mxu0 %v2117
        %v3474 = vpop.f32.mrf.mxu0
        %v3475 = vadd.f32 0.0, %v3474
        %v3476 = vpop.f32.mrf.mxu0
        %3477 = vdwg.mxu0
        %v3478 = vadd.f32 %v3317, %v3400
        %v3479 = vadd.f32 %v3318, %v3405
        %v3480 = vadd.f32 %v3319, %v3410
        %v3481 = vadd.f32 %v3320, %v3415
        %v3482 = vadd.f32 %v3321, %v3420
        %v3483 = vadd.f32 %v3322, %v3425
        %v3484 = vadd.f32 %v3323, %v3430
        %v3485 = vadd.f32 %v3324, %v3435
        %v3486 = vadd.f32 %v3325, %v3440
        %v3487 = vadd.f32 %v3326, %v3445
        %v3488 = vadd.f32 %v3327, %v3450
        %v3489 = vadd.f32 %v3328, %v3455
        %v3490 = vadd.f32 %v3329, %v3460
        %v3491 = vadd.f32 %v3330, %v3465
        %v3492 = vadd.f32 %v3331, %v3470
        %v3493 = vadd.f32 %v3332, %v3475
        %v3494 = vtanh.pop %v3478
        %v3495 = vtanh.pop %v3479
        %v3496 = vtanh.pop %v3480
        %v3497 = vtanh.pop %v3481
        %v3498 = vtanh.pop %v3482
        %v3499 = vtanh.pop %v3483
        %v3500 = vtanh.pop %v3484
        %v3501 = vtanh.pop %v3485
        %v3502 = vtanh.pop %v3486
        %v3503 = vtanh.pop %v3487
        %v3504 = vtanh.pop %v3488
        %v3505 = vtanh.pop %v3489
        %v3506 = vtanh.pop %v3490
        %v3507 = vtanh.pop %v3491
        %v3508 = vtanh.pop %v3492
        %v3509 = vtanh.pop %v3493
        %v3510 = vmul.f32 %v3494, 0.5
        %v3511 = vmul.f32 %v3495, 0.5
        %v3512 = vmul.f32 %v3496, 0.5
        %v3513 = vmul.f32 %v3497, 0.5
        %v3514 = vadd.f32 %v3510, 0.5
        %v3515 = vadd.f32 %v3511, 0.5
        %v3516 = vadd.f32 %v3512, 0.5
        %v3517 = vadd.f32 %v3513, 0.5
        %v3518 = vmul.f32 %v3498, 0.5
        %v3519 = vmul.f32 %v3499, 0.5
        %v3520 = vmul.f32 %v3500, 0.5
        %v3521 = vmul.f32 %v3501, 0.5
        %v3522 = vadd.f32 %v3518, 0.5
        %v3523 = vadd.f32 %v3519, 0.5
        %v3524 = vadd.f32 %v3520, 0.5
        %v3525 = vadd.f32 %v3521, 0.5
        %v3526 = vmul.f32 %v3506, 0.5
        %v3527 = vmul.f32 %v3507, 0.5
        %v3528 = vmul.f32 %v3508, 0.5
        %v3529 = vmul.f32 %v3509, 0.5
        %v3530 = vadd.f32 %v3526, 0.5
        %v3531 = vadd.f32 %v3527, 0.5
        %v3532 = vadd.f32 %v3528, 0.5
        %v3533 = vadd.f32 %v3529, 0.5
        %v3534 = vmul.f32 %v3522, %v3299
        %v3535 = vmul.f32 %v3523, %v3300
        %v3536 = vmul.f32 %v3524, %v3301
        %v3537 = vmul.f32 %v3525, %v3302
        %v3538 = vmul.f32 %v3514, %v3502
        %v3539 = vmul.f32 %v3515, %v3503
        %v3540 = vmul.f32 %v3516, %v3504
        %v3541 = vmul.f32 %v3517, %v3505
        %v3542 = vadd.f32 %v3534, %v3538
        %v3543 = vadd.f32 %v3535, %v3539
        %v3544 = vadd.f32 %v3536, %v3540
        %v3545 = vadd.f32 %v3537, %v3541
        %v3546 = vtanh.pop %v3542
        %v3547 = vtanh.pop %v3543
        %v3548 = vtanh.pop %v3544
        %v3549 = vtanh.pop %v3545
        %v3550 = vmul.f32 %v3530, %v3546
        %v3551 = vmul.f32 %v3531, %v3547
        %v3552 = vmul.f32 %v3532, %v3548
        %v3553 = vmul.f32 %v3533, %v3549
        %s3554 = scalar_lea.vmem [#allocation3], 160
        %3555 = vst [vmem:[%s3554] sm:$0xff] %v3550
        %3556 = vst [vmem:[%s3554 + $0x8] sm:$0xff] %v3551
        %3557 = vst [vmem:[%s3554 + $0x10] sm:$0xff] %v3552
        %3558 = vst [vmem:[%s3554 + $0x18] sm:$0xff] %v3553
        %s3559 = scalar_lea.vmem [#allocation2], 48
        %v3560 = vld [vmem:[%s3559] sm:$0xff]
        %v3561 = vld [vmem:[%s3559 + $0x80] sm:$0xff]
        %v3562 = vld [vmem:[%s3559 + $0x100] sm:$0xff]
        %v3563 = vld [vmem:[%s3559 + $0x180] sm:$0xff]
        %v3564 = vld [vmem:[%s3559 + $0x200] sm:$0xff]
        %v3565 = vld [vmem:[%s3559 + $0x280] sm:$0xff]
        %v3566 = vld [vmem:[%s3559 + $0x300] sm:$0xff]
        %v3567 = vld [vmem:[%s3559 + $0x380] sm:$0xff]
        %v3568 = vld [vmem:[%s3559 + $0x400] sm:$0xff]
        %v3569 = vld [vmem:[%s3559 + $0x480] sm:$0xff]
        %v3570 = vld [vmem:[%s3559 + $0x500] sm:$0xff]
        %v3571 = vld [vmem:[%s3559 + $0x580] sm:$0xff]
        %v3572 = vld [vmem:[%s3559 + $0x600] sm:$0xff]
        %v3573 = vld [vmem:[%s3559 + $0x680] sm:$0xff]
        %v3574 = vld [vmem:[%s3559 + $0x700] sm:$0xff]
        %v3575 = vld [vmem:[%s3559 + $0x780] sm:$0xff]
        %3576 = vmatprep.subr.mxu0 0.0
        %3577 = vmatpush1.msra.mxu0 0.0
        %3578 = vmatprep.subr.mxu0 0.0
        %3579 = vmatpush1.msra.mxu0 0.0
        %3580 = vmatprep.subr.mxu0 0.0
        %3581 = vmatpush1.msra.mxu0 0.0
        %3582 = vmatprep.subr.mxu0 0.0
        %3583 = vmatpush1.msra.mxu0 0.0
        %3584 = vmatprep.subr.mxu0 0.0
        %3585 = vmatpush1.msra.mxu0 0.0
        %3586 = vmatprep.subr.mxu0 0.0
        %3587 = vmatpush1.msra.mxu0 0.0
        %3588 = vmatprep.subr.mxu0 0.0
        %3589 = vmatpush1.msra.mxu0 0.0
        %3590 = vmatprep.subr.mxu0 0.0
        %3591 = vmatpush1.msra.mxu0 0.0
        %3592 = vmatprep.subr.mxu0 0.0
        %3593 = vmatpush1.msra.mxu0 0.0
        %3594 = vmatprep.subr.mxu0 0.0
        %3595 = vmatpush1.msra.mxu0 0.0
        %3596 = vmatprep.subr.mxu0 0.0
        %3597 = vmatpush1.msra.mxu0 0.0
        %3598 = vmatprep.subr.mxu0 0.0
        %3599 = vmatpush1.msra.mxu0 0.0
        %3600 = vmatprep.subr.mxu0 0.0
        %3601 = vmatpush1.msra.mxu0 %v3553
        %3602 = vmatprep.subr.mxu0 0.0
        %3603 = vmatpush1.msra.mxu0 %v3552
        %3604 = vmatprep.subr.mxu0 0.0
        %3605 = vmatpush1.msra.mxu0 %v3551
        %3606 = vmatprep.subr.mxu0 0.0
        %3607 = vmatpush1.msra.mxu0 %v3550
        %3608 = vmatprep.subr.mxu0 0.0
        %3609 = vmatpush2.msra.mxu0 0.0
        %3610 = vmatprep.subr.mxu0 0.0
        %3611 = vmatpush2.msra.mxu0 0.0
        %3612 = vmatprep.subr.mxu0 0.0
        %3613 = vmatpush2.msra.mxu0 0.0
        %3614 = vmatprep.subr.mxu0 0.0
        %3615 = vmatpush2.msra.mxu0 0.0
        %3616 = vmatprep.subr.mxu0 0.0
        %3617 = vmatpush2.msra.mxu0 0.0
        %3618 = vmatprep.subr.mxu0 0.0
        %3619 = vmatpush2.msra.mxu0 0.0
        %3620 = vmatprep.subr.mxu0 0.0
        %3621 = vmatpush2.msra.mxu0 0.0
        %3622 = vmatprep.subr.mxu0 0.0
        %3623 = vmatpush2.msra.mxu0 0.0
        %3624 = vmatprep.subr.mxu0 0.0
        %3625 = vmatpush2.msra.mxu0 0.0
        %3626 = vmatprep.subr.mxu0 0.0
        %3627 = vmatpush2.msra.mxu0 0.0
        %3628 = vmatprep.subr.mxu0 0.0
        %3629 = vmatpush2.msra.mxu0 0.0
        %3630 = vmatprep.subr.mxu0 0.0
        %3631 = vmatpush2.msra.mxu0 0.0
        %3632 = vmatprep.subr.mxu0 0.0
        %3633 = vmatpush2.msra.mxu0 0.0
        %3634 = vmatprep.subr.mxu0 0.0
        %3635 = vmatpush2.msra.mxu0 0.0
        %3636 = vmatprep.subr.mxu0 0.0
        %3637 = vmatpush2.msra.mxu0 0.0
        %3638 = vmatprep.subr.mxu0 0.0
        %3639 = vmatpush2.msra.mxu0 0.0
        %3640 = vmatprep.mubr.f32.mxu0 0.0
        %3641 = vmatmul.mubr.f32.gmra.mxu0 %v2072
        %v3642 = vpop.f32.mrf.mxu0
        %v3643 = vadd.f32 0.0, %v3642
        %v3644 = vpop.f32.mrf.mxu0
        %3645 = vmatprep.mubr.f32.mxu0 0.0
        %3646 = vmatmul.mubr.f32.gmra.mxu0 %v2075
        %v3647 = vpop.f32.mrf.mxu0
        %v3648 = vadd.f32 0.0, %v3647
        %v3649 = vpop.f32.mrf.mxu0
        %3650 = vmatprep.mubr.f32.mxu0 0.0
        %3651 = vmatmul.mubr.f32.gmra.mxu0 %v2078
        %v3652 = vpop.f32.mrf.mxu0
        %v3653 = vadd.f32 0.0, %v3652
        %v3654 = vpop.f32.mrf.mxu0
        %3655 = vmatprep.mubr.f32.mxu0 0.0
        %3656 = vmatmul.mubr.f32.gmra.mxu0 %v2081
        %v3657 = vpop.f32.mrf.mxu0
        %v3658 = vadd.f32 0.0, %v3657
        %v3659 = vpop.f32.mrf.mxu0
        %3660 = vmatprep.mubr.f32.mxu0 0.0
        %3661 = vmatmul.mubr.f32.gmra.mxu0 %v2084
        %v3662 = vpop.f32.mrf.mxu0
        %v3663 = vadd.f32 0.0, %v3662
        %v3664 = vpop.f32.mrf.mxu0
        %3665 = vmatprep.mubr.f32.mxu0 0.0
        %3666 = vmatmul.mubr.f32.gmra.mxu0 %v2087
        %v3667 = vpop.f32.mrf.mxu0
        %v3668 = vadd.f32 0.0, %v3667
        %v3669 = vpop.f32.mrf.mxu0
        %3670 = vmatprep.mubr.f32.mxu0 0.0
        %3671 = vmatmul.mubr.f32.gmra.mxu0 %v2090
        %v3672 = vpop.f32.mrf.mxu0
        %v3673 = vadd.f32 0.0, %v3672
        %v3674 = vpop.f32.mrf.mxu0
        %3675 = vmatprep.mubr.f32.mxu0 0.0
        %3676 = vmatmul.mubr.f32.gmra.mxu0 %v2093
        %v3677 = vpop.f32.mrf.mxu0
        %v3678 = vadd.f32 0.0, %v3677
        %v3679 = vpop.f32.mrf.mxu0
        %3680 = vmatprep.mubr.f32.mxu0 0.0
        %3681 = vmatmul.mubr.f32.gmra.mxu0 %v2096
        %v3682 = vpop.f32.mrf.mxu0
        %v3683 = vadd.f32 0.0, %v3682
        %v3684 = vpop.f32.mrf.mxu0
        %3685 = vmatprep.mubr.f32.mxu0 0.0
        %3686 = vmatmul.mubr.f32.gmra.mxu0 %v2099
        %v3687 = vpop.f32.mrf.mxu0
        %v3688 = vadd.f32 0.0, %v3687
        %v3689 = vpop.f32.mrf.mxu0
        %3690 = vmatprep.mubr.f32.mxu0 0.0
        %3691 = vmatmul.mubr.f32.gmra.mxu0 %v2102
        %v3692 = vpop.f32.mrf.mxu0
        %v3693 = vadd.f32 0.0, %v3692
        %v3694 = vpop.f32.mrf.mxu0
        %3695 = vmatprep.mubr.f32.mxu0 0.0
        %3696 = vmatmul.mubr.f32.gmra.mxu0 %v2105
        %v3697 = vpop.f32.mrf.mxu0
        %v3698 = vadd.f32 0.0, %v3697
        %v3699 = vpop.f32.mrf.mxu0
        %3700 = vmatprep.mubr.f32.mxu0 0.0
        %3701 = vmatmul.mubr.f32.gmra.mxu0 %v2108
        %v3702 = vpop.f32.mrf.mxu0
        %v3703 = vadd.f32 0.0, %v3702
        %v3704 = vpop.f32.mrf.mxu0
        %3705 = vmatprep.mubr.f32.mxu0 0.0
        %3706 = vmatmul.mubr.f32.gmra.mxu0 %v2111
        %v3707 = vpop.f32.mrf.mxu0
        %v3708 = vadd.f32 0.0, %v3707
        %v3709 = vpop.f32.mrf.mxu0
        %3710 = vmatprep.mubr.f32.mxu0 0.0
        %3711 = vmatmul.mubr.f32.gmra.mxu0 %v2114
        %v3712 = vpop.f32.mrf.mxu0
        %v3713 = vadd.f32 0.0, %v3712
        %v3714 = vpop.f32.mrf.mxu0
        %3715 = vmatprep.mubr.f32.mxu0 0.0
        %3716 = vmatmul.mubr.f32.gmra.mxu0 %v2117
        %v3717 = vpop.f32.mrf.mxu0
        %v3718 = vadd.f32 0.0, %v3717
        %v3719 = vpop.f32.mrf.mxu0
        %3720 = vdwg.mxu0
        %v3721 = vadd.f32 %v3560, %v3643
        %v3722 = vadd.f32 %v3561, %v3648
        %v3723 = vadd.f32 %v3562, %v3653
        %v3724 = vadd.f32 %v3563, %v3658
        %v3725 = vadd.f32 %v3564, %v3663
        %v3726 = vadd.f32 %v3565, %v3668
        %v3727 = vadd.f32 %v3566, %v3673
        %v3728 = vadd.f32 %v3567, %v3678
        %v3729 = vadd.f32 %v3568, %v3683
        %v3730 = vadd.f32 %v3569, %v3688
        %v3731 = vadd.f32 %v3570, %v3693
        %v3732 = vadd.f32 %v3571, %v3698
        %v3733 = vadd.f32 %v3572, %v3703
        %v3734 = vadd.f32 %v3573, %v3708
        %v3735 = vadd.f32 %v3574, %v3713
        %v3736 = vadd.f32 %v3575, %v3718
        %v3737 = vtanh.pop %v3721
        %v3738 = vtanh.pop %v3722
        %v3739 = vtanh.pop %v3723
        %v3740 = vtanh.pop %v3724
        %v3741 = vtanh.pop %v3725
        %v3742 = vtanh.pop %v3726
        %v3743 = vtanh.pop %v3727
        %v3744 = vtanh.pop %v3728
        %v3745 = vtanh.pop %v3729
        %v3746 = vtanh.pop %v3730
        %v3747 = vtanh.pop %v3731
        %v3748 = vtanh.pop %v3732
        %v3749 = vtanh.pop %v3733
        %v3750 = vtanh.pop %v3734
        %v3751 = vtanh.pop %v3735
        %v3752 = vtanh.pop %v3736
        %v3753 = vmul.f32 %v3737, 0.5
        %v3754 = vmul.f32 %v3738, 0.5
        %v3755 = vmul.f32 %v3739, 0.5
        %v3756 = vmul.f32 %v3740, 0.5
        %v3757 = vadd.f32 %v3753, 0.5
        %v3758 = vadd.f32 %v3754, 0.5
        %v3759 = vadd.f32 %v3755, 0.5
        %v3760 = vadd.f32 %v3756, 0.5
        %v3761 = vmul.f32 %v3741, 0.5
        %v3762 = vmul.f32 %v3742, 0.5
        %v3763 = vmul.f32 %v3743, 0.5
        %v3764 = vmul.f32 %v3744, 0.5
        %v3765 = vadd.f32 %v3761, 0.5
        %v3766 = vadd.f32 %v3762, 0.5
        %v3767 = vadd.f32 %v3763, 0.5
        %v3768 = vadd.f32 %v3764, 0.5
        %v3769 = vmul.f32 %v3749, 0.5
        %v3770 = vmul.f32 %v3750, 0.5
        %v3771 = vmul.f32 %v3751, 0.5
        %v3772 = vmul.f32 %v3752, 0.5
        %v3773 = vadd.f32 %v3769, 0.5
        %v3774 = vadd.f32 %v3770, 0.5
        %v3775 = vadd.f32 %v3771, 0.5
        %v3776 = vadd.f32 %v3772, 0.5
        %v3777 = vmul.f32 %v3765, %v3542
        %v3778 = vmul.f32 %v3766, %v3543
        %v3779 = vmul.f32 %v3767, %v3544
        %v3780 = vmul.f32 %v3768, %v3545
        %v3781 = vmul.f32 %v3757, %v3745
        %v3782 = vmul.f32 %v3758, %v3746
        %v3783 = vmul.f32 %v3759, %v3747
        %v3784 = vmul.f32 %v3760, %v3748
        %v3785 = vadd.f32 %v3777, %v3781
        %v3786 = vadd.f32 %v3778, %v3782
        %v3787 = vadd.f32 %v3779, %v3783
        %v3788 = vadd.f32 %v3780, %v3784
        %v3789 = vtanh.pop %v3785
        %v3790 = vtanh.pop %v3786
        %v3791 = vtanh.pop %v3787
        %v3792 = vtanh.pop %v3788
        %v3793 = vmul.f32 %v3773, %v3789
        %v3794 = vmul.f32 %v3774, %v3790
        %v3795 = vmul.f32 %v3775, %v3791
        %v3796 = vmul.f32 %v3776, %v3792
        %s3797 = scalar_lea.vmem [#allocation3], 192
        %3798 = vst [vmem:[%s3797] sm:$0xff] %v3793
        %3799 = vst [vmem:[%s3797 + $0x8] sm:$0xff] %v3794
        %3800 = vst [vmem:[%s3797 + $0x10] sm:$0xff] %v3795
        %3801 = vst [vmem:[%s3797 + $0x18] sm:$0xff] %v3796
        %s3802 = scalar_lea.vmem [#allocation2], 56
        %v3803 = vld [vmem:[%s3802] sm:$0xff]
        %v3804 = vld [vmem:[%s3802 + $0x80] sm:$0xff]
        %v3805 = vld [vmem:[%s3802 + $0x100] sm:$0xff]
        %v3806 = vld [vmem:[%s3802 + $0x180] sm:$0xff]
        %v3807 = vld [vmem:[%s3802 + $0x200] sm:$0xff]
        %v3808 = vld [vmem:[%s3802 + $0x280] sm:$0xff]
        %v3809 = vld [vmem:[%s3802 + $0x300] sm:$0xff]
        %v3810 = vld [vmem:[%s3802 + $0x380] sm:$0xff]
        %v3811 = vld [vmem:[%s3802 + $0x400] sm:$0xff]
        %v3812 = vld [vmem:[%s3802 + $0x480] sm:$0xff]
        %v3813 = vld [vmem:[%s3802 + $0x500] sm:$0xff]
        %v3814 = vld [vmem:[%s3802 + $0x580] sm:$0xff]
        %v3815 = vld [vmem:[%s3802 + $0x600] sm:$0xff]
        %v3816 = vld [vmem:[%s3802 + $0x680] sm:$0xff]
        %v3817 = vld [vmem:[%s3802 + $0x700] sm:$0xff]
        %v3818 = vld [vmem:[%s3802 + $0x780] sm:$0xff]
        %3819 = vmatprep.subr.mxu0 0.0
        %3820 = vmatpush1.msra.mxu0 0.0
        %3821 = vmatprep.subr.mxu0 0.0
        %3822 = vmatpush1.msra.mxu0 0.0
        %3823 = vmatprep.subr.mxu0 0.0
        %3824 = vmatpush1.msra.mxu0 0.0
        %3825 = vmatprep.subr.mxu0 0.0
        %3826 = vmatpush1.msra.mxu0 0.0
        %3827 = vmatprep.subr.mxu0 0.0
        %3828 = vmatpush1.msra.mxu0 0.0
        %3829 = vmatprep.subr.mxu0 0.0
        %3830 = vmatpush1.msra.mxu0 0.0
        %3831 = vmatprep.subr.mxu0 0.0
        %3832 = vmatpush1.msra.mxu0 0.0
        %3833 = vmatprep.subr.mxu0 0.0
        %3834 = vmatpush1.msra.mxu0 0.0
        %3835 = vmatprep.subr.mxu0 0.0
        %3836 = vmatpush1.msra.mxu0 0.0
        %3837 = vmatprep.subr.mxu0 0.0
        %3838 = vmatpush1.msra.mxu0 0.0
        %3839 = vmatprep.subr.mxu0 0.0
        %3840 = vmatpush1.msra.mxu0 0.0
        %3841 = vmatprep.subr.mxu0 0.0
        %3842 = vmatpush1.msra.mxu0 0.0
        %3843 = vmatprep.subr.mxu0 0.0
        %3844 = vmatpush1.msra.mxu0 %v3796
        %3845 = vmatprep.subr.mxu0 0.0
        %3846 = vmatpush1.msra.mxu0 %v3795
        %3847 = vmatprep.subr.mxu0 0.0
        %3848 = vmatpush1.msra.mxu0 %v3794
        %3849 = vmatprep.subr.mxu0 0.0
        %3850 = vmatpush1.msra.mxu0 %v3793
        %3851 = vmatprep.subr.mxu0 0.0
        %3852 = vmatpush2.msra.mxu0 0.0
        %3853 = vmatprep.subr.mxu0 0.0
        %3854 = vmatpush2.msra.mxu0 0.0
        %3855 = vmatprep.subr.mxu0 0.0
        %3856 = vmatpush2.msra.mxu0 0.0
        %3857 = vmatprep.subr.mxu0 0.0
        %3858 = vmatpush2.msra.mxu0 0.0
        %3859 = vmatprep.subr.mxu0 0.0
        %3860 = vmatpush2.msra.mxu0 0.0
        %3861 = vmatprep.subr.mxu0 0.0
        %3862 = vmatpush2.msra.mxu0 0.0
        %3863 = vmatprep.subr.mxu0 0.0
        %3864 = vmatpush2.msra.mxu0 0.0
        %3865 = vmatprep.subr.mxu0 0.0
        %3866 = vmatpush2.msra.mxu0 0.0
        %3867 = vmatprep.subr.mxu0 0.0
        %3868 = vmatpush2.msra.mxu0 0.0
        %3869 = vmatprep.subr.mxu0 0.0
        %3870 = vmatpush2.msra.mxu0 0.0
        %3871 = vmatprep.subr.mxu0 0.0
        %3872 = vmatpush2.msra.mxu0 0.0
        %3873 = vmatprep.subr.mxu0 0.0
        %3874 = vmatpush2.msra.mxu0 0.0
        %3875 = vmatprep.subr.mxu0 0.0
        %3876 = vmatpush2.msra.mxu0 0.0
        %3877 = vmatprep.subr.mxu0 0.0
        %3878 = vmatpush2.msra.mxu0 0.0
        %3879 = vmatprep.subr.mxu0 0.0
        %3880 = vmatpush2.msra.mxu0 0.0
        %3881 = vmatprep.subr.mxu0 0.0
        %3882 = vmatpush2.msra.mxu0 0.0
        %3883 = vmatprep.mubr.f32.mxu0 0.0
        %3884 = vmatmul.mubr.f32.gmra.mxu0 %v2072
        %v3885 = vpop.f32.mrf.mxu0
        %v3886 = vadd.f32 0.0, %v3885
        %v3887 = vpop.f32.mrf.mxu0
        %3888 = vmatprep.mubr.f32.mxu0 0.0
        %3889 = vmatmul.mubr.f32.gmra.mxu0 %v2075
        %v3890 = vpop.f32.mrf.mxu0
        %v3891 = vadd.f32 0.0, %v3890
        %v3892 = vpop.f32.mrf.mxu0
        %3893 = vmatprep.mubr.f32.mxu0 0.0
        %3894 = vmatmul.mubr.f32.gmra.mxu0 %v2078
        %v3895 = vpop.f32.mrf.mxu0
        %v3896 = vadd.f32 0.0, %v3895
        %v3897 = vpop.f32.mrf.mxu0
        %3898 = vmatprep.mubr.f32.mxu0 0.0
        %3899 = vmatmul.mubr.f32.gmra.mxu0 %v2081
        %v3900 = vpop.f32.mrf.mxu0
        %v3901 = vadd.f32 0.0, %v3900
        %v3902 = vpop.f32.mrf.mxu0
        %3903 = vmatprep.mubr.f32.mxu0 0.0
        %3904 = vmatmul.mubr.f32.gmra.mxu0 %v2084
        %v3905 = vpop.f32.mrf.mxu0
        %v3906 = vadd.f32 0.0, %v3905
        %v3907 = vpop.f32.mrf.mxu0
        %3908 = vmatprep.mubr.f32.mxu0 0.0
        %3909 = vmatmul.mubr.f32.gmra.mxu0 %v2087
        %v3910 = vpop.f32.mrf.mxu0
        %v3911 = vadd.f32 0.0, %v3910
        %v3912 = vpop.f32.mrf.mxu0
        %3913 = vmatprep.mubr.f32.mxu0 0.0
        %3914 = vmatmul.mubr.f32.gmra.mxu0 %v2090
        %v3915 = vpop.f32.mrf.mxu0
        %v3916 = vadd.f32 0.0, %v3915
        %v3917 = vpop.f32.mrf.mxu0
        %3918 = vmatprep.mubr.f32.mxu0 0.0
        %3919 = vmatmul.mubr.f32.gmra.mxu0 %v2093
        %v3920 = vpop.f32.mrf.mxu0
        %v3921 = vadd.f32 0.0, %v3920
        %v3922 = vpop.f32.mrf.mxu0
        %3923 = vmatprep.mubr.f32.mxu0 0.0
        %3924 = vmatmul.mubr.f32.gmra.mxu0 %v2096
        %v3925 = vpop.f32.mrf.mxu0
        %v3926 = vadd.f32 0.0, %v3925
        %v3927 = vpop.f32.mrf.mxu0
        %3928 = vmatprep.mubr.f32.mxu0 0.0
        %3929 = vmatmul.mubr.f32.gmra.mxu0 %v2099
        %v3930 = vpop.f32.mrf.mxu0
        %v3931 = vadd.f32 0.0, %v3930
        %v3932 = vpop.f32.mrf.mxu0
        %3933 = vmatprep.mubr.f32.mxu0 0.0
        %3934 = vmatmul.mubr.f32.gmra.mxu0 %v2102
        %v3935 = vpop.f32.mrf.mxu0
        %v3936 = vadd.f32 0.0, %v3935
        %v3937 = vpop.f32.mrf.mxu0
        %3938 = vmatprep.mubr.f32.mxu0 0.0
        %3939 = vmatmul.mubr.f32.gmra.mxu0 %v2105
        %v3940 = vpop.f32.mrf.mxu0
        %v3941 = vadd.f32 0.0, %v3940
        %v3942 = vpop.f32.mrf.mxu0
        %3943 = vmatprep.mubr.f32.mxu0 0.0
        %3944 = vmatmul.mubr.f32.gmra.mxu0 %v2108
        %v3945 = vpop.f32.mrf.mxu0
        %v3946 = vadd.f32 0.0, %v3945
        %v3947 = vpop.f32.mrf.mxu0
        %3948 = vmatprep.mubr.f32.mxu0 0.0
        %3949 = vmatmul.mubr.f32.gmra.mxu0 %v2111
        %v3950 = vpop.f32.mrf.mxu0
        %v3951 = vadd.f32 0.0, %v3950
        %v3952 = vpop.f32.mrf.mxu0
        %3953 = vmatprep.mubr.f32.mxu0 0.0
        %3954 = vmatmul.mubr.f32.gmra.mxu0 %v2114
        %v3955 = vpop.f32.mrf.mxu0
        %v3956 = vadd.f32 0.0, %v3955
        %v3957 = vpop.f32.mrf.mxu0
        %3958 = vmatprep.mubr.f32.mxu0 0.0
        %3959 = vmatmul.mubr.f32.gmra.mxu0 %v2117
        %v3960 = vpop.f32.mrf.mxu0
        %v3961 = vadd.f32 0.0, %v3960
        %v3962 = vpop.f32.mrf.mxu0
        %3963 = vdwg.mxu0
        %v3964 = vadd.f32 %v3803, %v3886
        %v3965 = vadd.f32 %v3804, %v3891
        %v3966 = vadd.f32 %v3805, %v3896
        %v3967 = vadd.f32 %v3806, %v3901
        %v3968 = vadd.f32 %v3807, %v3906
        %v3969 = vadd.f32 %v3808, %v3911
        %v3970 = vadd.f32 %v3809, %v3916
        %v3971 = vadd.f32 %v3810, %v3921
        %v3972 = vadd.f32 %v3811, %v3926
        %v3973 = vadd.f32 %v3812, %v3931
        %v3974 = vadd.f32 %v3813, %v3936
        %v3975 = vadd.f32 %v3814, %v3941
        %v3976 = vadd.f32 %v3815, %v3946
        %v3977 = vadd.f32 %v3816, %v3951
        %v3978 = vadd.f32 %v3817, %v3956
        %v3979 = vadd.f32 %v3818, %v3961
        %v3980 = vtanh.pop %v3964
        %v3981 = vtanh.pop %v3965
        %v3982 = vtanh.pop %v3966
        %v3983 = vtanh.pop %v3967
        %v3984 = vtanh.pop %v3968
        %v3985 = vtanh.pop %v3969
        %v3986 = vtanh.pop %v3970
        %v3987 = vtanh.pop %v3971
        %v3988 = vtanh.pop %v3972
        %v3989 = vtanh.pop %v3973
        %v3990 = vtanh.pop %v3974
        %v3991 = vtanh.pop %v3975
        %v3992 = vtanh.pop %v3976
        %v3993 = vtanh.pop %v3977
        %v3994 = vtanh.pop %v3978
        %v3995 = vtanh.pop %v3979
        %v3996 = vmul.f32 %v3980, 0.5
        %v3997 = vmul.f32 %v3981, 0.5
        %v3998 = vmul.f32 %v3982, 0.5
        %v3999 = vmul.f32 %v3983, 0.5
        %v4000 = vadd.f32 %v3996, 0.5
        %v4001 = vadd.f32 %v3997, 0.5
        %v4002 = vadd.f32 %v3998, 0.5
        %v4003 = vadd.f32 %v3999, 0.5
        %v4004 = vmul.f32 %v3984, 0.5
        %v4005 = vmul.f32 %v3985, 0.5
        %v4006 = vmul.f32 %v3986, 0.5
        %v4007 = vmul.f32 %v3987, 0.5
        %v4008 = vadd.f32 %v4004, 0.5
        %v4009 = vadd.f32 %v4005, 0.5
        %v4010 = vadd.f32 %v4006, 0.5
        %v4011 = vadd.f32 %v4007, 0.5
        %v4012 = vmul.f32 %v3992, 0.5
        %v4013 = vmul.f32 %v3993, 0.5
        %v4014 = vmul.f32 %v3994, 0.5
        %v4015 = vmul.f32 %v3995, 0.5
        %v4016 = vadd.f32 %v4012, 0.5
        %v4017 = vadd.f32 %v4013, 0.5
        %v4018 = vadd.f32 %v4014, 0.5
        %v4019 = vadd.f32 %v4015, 0.5
        %v4020 = vmul.f32 %v4008, %v3785
        %v4021 = vmul.f32 %v4009, %v3786
        %v4022 = vmul.f32 %v4010, %v3787
        %v4023 = vmul.f32 %v4011, %v3788
        %v4024 = vmul.f32 %v4000, %v3988
        %v4025 = vmul.f32 %v4001, %v3989
        %v4026 = vmul.f32 %v4002, %v3990
        %v4027 = vmul.f32 %v4003, %v3991
        %v4028 = vadd.f32 %v4020, %v4024
        %v4029 = vadd.f32 %v4021, %v4025
        %v4030 = vadd.f32 %v4022, %v4026
        %v4031 = vadd.f32 %v4023, %v4027
        %v4032 = vtanh.pop %v4028
        %v4033 = vtanh.pop %v4029
        %v4034 = vtanh.pop %v4030
        %v4035 = vtanh.pop %v4031
        %v4036 = vmul.f32 %v4016, %v4032
        %v4037 = vmul.f32 %v4017, %v4033
        %v4038 = vmul.f32 %v4018, %v4034
        %v4039 = vmul.f32 %v4019, %v4035
        %s4040 = scalar_lea.vmem [#allocation3], 224
        %4041 = vst [vmem:[%s4040] sm:$0xff] %v4036
        %4042 = vst [vmem:[%s4040 + $0x8] sm:$0xff] %v4037
        %4043 = vst [vmem:[%s4040 + $0x10] sm:$0xff] %v4038
        %4044 = vst [vmem:[%s4040 + $0x18] sm:$0xff] %v4039
        %s4045 = scalar_lea.vmem [#allocation2], 64
        %v4046 = vld [vmem:[%s4045] sm:$0xff]
        %v4047 = vld [vmem:[%s4045 + $0x80] sm:$0xff]
        %v4048 = vld [vmem:[%s4045 + $0x100] sm:$0xff]
        %v4049 = vld [vmem:[%s4045 + $0x180] sm:$0xff]
        %v4050 = vld [vmem:[%s4045 + $0x200] sm:$0xff]
        %v4051 = vld [vmem:[%s4045 + $0x280] sm:$0xff]
        %v4052 = vld [vmem:[%s4045 + $0x300] sm:$0xff]
        %v4053 = vld [vmem:[%s4045 + $0x380] sm:$0xff]
        %v4054 = vld [vmem:[%s4045 + $0x400] sm:$0xff]
        %v4055 = vld [vmem:[%s4045 + $0x480] sm:$0xff]
        %v4056 = vld [vmem:[%s4045 + $0x500] sm:$0xff]
        %v4057 = vld [vmem:[%s4045 + $0x580] sm:$0xff]
        %v4058 = vld [vmem:[%s4045 + $0x600] sm:$0xff]
        %v4059 = vld [vmem:[%s4045 + $0x680] sm:$0xff]
        %v4060 = vld [vmem:[%s4045 + $0x700] sm:$0xff]
        %v4061 = vld [vmem:[%s4045 + $0x780] sm:$0xff]
        %4062 = vmatprep.subr.mxu0 0.0
        %4063 = vmatpush1.msra.mxu0 0.0
        %4064 = vmatprep.subr.mxu0 0.0
        %4065 = vmatpush1.msra.mxu0 0.0
        %4066 = vmatprep.subr.mxu0 0.0
        %4067 = vmatpush1.msra.mxu0 0.0
        %4068 = vmatprep.subr.mxu0 0.0
        %4069 = vmatpush1.msra.mxu0 0.0
        %4070 = vmatprep.subr.mxu0 0.0
        %4071 = vmatpush1.msra.mxu0 0.0
        %4072 = vmatprep.subr.mxu0 0.0
        %4073 = vmatpush1.msra.mxu0 0.0
        %4074 = vmatprep.subr.mxu0 0.0
        %4075 = vmatpush1.msra.mxu0 0.0
        %4076 = vmatprep.subr.mxu0 0.0
        %4077 = vmatpush1.msra.mxu0 0.0
        %4078 = vmatprep.subr.mxu0 0.0
        %4079 = vmatpush1.msra.mxu0 0.0
        %4080 = vmatprep.subr.mxu0 0.0
        %4081 = vmatpush1.msra.mxu0 0.0
        %4082 = vmatprep.subr.mxu0 0.0
        %4083 = vmatpush1.msra.mxu0 0.0
        %4084 = vmatprep.subr.mxu0 0.0
        %4085 = vmatpush1.msra.mxu0 0.0
        %4086 = vmatprep.subr.mxu0 0.0
        %4087 = vmatpush1.msra.mxu0 %v4039
        %4088 = vmatprep.subr.mxu0 0.0
        %4089 = vmatpush1.msra.mxu0 %v4038
        %4090 = vmatprep.subr.mxu0 0.0
        %4091 = vmatpush1.msra.mxu0 %v4037
        %4092 = vmatprep.subr.mxu0 0.0
        %4093 = vmatpush1.msra.mxu0 %v4036
        %4094 = vmatprep.subr.mxu0 0.0
        %4095 = vmatpush2.msra.mxu0 0.0
        %4096 = vmatprep.subr.mxu0 0.0
        %4097 = vmatpush2.msra.mxu0 0.0
        %4098 = vmatprep.subr.mxu0 0.0
        %4099 = vmatpush2.msra.mxu0 0.0
        %4100 = vmatprep.subr.mxu0 0.0
        %4101 = vmatpush2.msra.mxu0 0.0
        %4102 = vmatprep.subr.mxu0 0.0
        %4103 = vmatpush2.msra.mxu0 0.0
        %4104 = vmatprep.subr.mxu0 0.0
        %4105 = vmatpush2.msra.mxu0 0.0
        %4106 = vmatprep.subr.mxu0 0.0
        %4107 = vmatpush2.msra.mxu0 0.0
        %4108 = vmatprep.subr.mxu0 0.0
        %4109 = vmatpush2.msra.mxu0 0.0
        %4110 = vmatprep.subr.mxu0 0.0
        %4111 = vmatpush2.msra.mxu0 0.0
        %4112 = vmatprep.subr.mxu0 0.0
        %4113 = vmatpush2.msra.mxu0 0.0
        %4114 = vmatprep.subr.mxu0 0.0
        %4115 = vmatpush2.msra.mxu0 0.0
        %4116 = vmatprep.subr.mxu0 0.0
        %4117 = vmatpush2.msra.mxu0 0.0
        %4118 = vmatprep.subr.mxu0 0.0
        %4119 = vmatpush2.msra.mxu0 0.0
        %4120 = vmatprep.subr.mxu0 0.0
        %4121 = vmatpush2.msra.mxu0 0.0
        %4122 = vmatprep.subr.mxu0 0.0
        %4123 = vmatpush2.msra.mxu0 0.0
        %4124 = vmatprep.subr.mxu0 0.0
        %4125 = vmatpush2.msra.mxu0 0.0
        %4126 = vmatprep.mubr.f32.mxu0 0.0
        %4127 = vmatmul.mubr.f32.gmra.mxu0 %v2072
        %v4128 = vpop.f32.mrf.mxu0
        %v4129 = vadd.f32 0.0, %v4128
        %v4130 = vpop.f32.mrf.mxu0
        %4131 = vmatprep.mubr.f32.mxu0 0.0
        %4132 = vmatmul.mubr.f32.gmra.mxu0 %v2075
        %v4133 = vpop.f32.mrf.mxu0
        %v4134 = vadd.f32 0.0, %v4133
        %v4135 = vpop.f32.mrf.mxu0
        %4136 = vmatprep.mubr.f32.mxu0 0.0
        %4137 = vmatmul.mubr.f32.gmra.mxu0 %v2078
        %v4138 = vpop.f32.mrf.mxu0
        %v4139 = vadd.f32 0.0, %v4138
        %v4140 = vpop.f32.mrf.mxu0
        %4141 = vmatprep.mubr.f32.mxu0 0.0
        %4142 = vmatmul.mubr.f32.gmra.mxu0 %v2081
        %v4143 = vpop.f32.mrf.mxu0
        %v4144 = vadd.f32 0.0, %v4143
        %v4145 = vpop.f32.mrf.mxu0
        %4146 = vmatprep.mubr.f32.mxu0 0.0
        %4147 = vmatmul.mubr.f32.gmra.mxu0 %v2084
        %v4148 = vpop.f32.mrf.mxu0
        %v4149 = vadd.f32 0.0, %v4148
        %v4150 = vpop.f32.mrf.mxu0
        %4151 = vmatprep.mubr.f32.mxu0 0.0
        %4152 = vmatmul.mubr.f32.gmra.mxu0 %v2087
        %v4153 = vpop.f32.mrf.mxu0
        %v4154 = vadd.f32 0.0, %v4153
        %v4155 = vpop.f32.mrf.mxu0
        %4156 = vmatprep.mubr.f32.mxu0 0.0
        %4157 = vmatmul.mubr.f32.gmra.mxu0 %v2090
        %v4158 = vpop.f32.mrf.mxu0
        %v4159 = vadd.f32 0.0, %v4158
        %v4160 = vpop.f32.mrf.mxu0
        %4161 = vmatprep.mubr.f32.mxu0 0.0
        %4162 = vmatmul.mubr.f32.gmra.mxu0 %v2093
        %v4163 = vpop.f32.mrf.mxu0
        %v4164 = vadd.f32 0.0, %v4163
        %v4165 = vpop.f32.mrf.mxu0
        %4166 = vmatprep.mubr.f32.mxu0 0.0
        %4167 = vmatmul.mubr.f32.gmra.mxu0 %v2096
        %v4168 = vpop.f32.mrf.mxu0
        %v4169 = vadd.f32 0.0, %v4168
        %v4170 = vpop.f32.mrf.mxu0
        %4171 = vmatprep.mubr.f32.mxu0 0.0
        %4172 = vmatmul.mubr.f32.gmra.mxu0 %v2099
        %v4173 = vpop.f32.mrf.mxu0
        %v4174 = vadd.f32 0.0, %v4173
        %v4175 = vpop.f32.mrf.mxu0
        %4176 = vmatprep.mubr.f32.mxu0 0.0
        %4177 = vmatmul.mubr.f32.gmra.mxu0 %v2102
        %v4178 = vpop.f32.mrf.mxu0
        %v4179 = vadd.f32 0.0, %v4178
        %v4180 = vpop.f32.mrf.mxu0
        %4181 = vmatprep.mubr.f32.mxu0 0.0
        %4182 = vmatmul.mubr.f32.gmra.mxu0 %v2105
        %v4183 = vpop.f32.mrf.mxu0
        %v4184 = vadd.f32 0.0, %v4183
        %v4185 = vpop.f32.mrf.mxu0
        %4186 = vmatprep.mubr.f32.mxu0 0.0
        %4187 = vmatmul.mubr.f32.gmra.mxu0 %v2108
        %v4188 = vpop.f32.mrf.mxu0
        %v4189 = vadd.f32 0.0, %v4188
        %v4190 = vpop.f32.mrf.mxu0
        %4191 = vmatprep.mubr.f32.mxu0 0.0
        %4192 = vmatmul.mubr.f32.gmra.mxu0 %v2111
        %v4193 = vpop.f32.mrf.mxu0
        %v4194 = vadd.f32 0.0, %v4193
        %v4195 = vpop.f32.mrf.mxu0
        %4196 = vmatprep.mubr.f32.mxu0 0.0
        %4197 = vmatmul.mubr.f32.gmra.mxu0 %v2114
        %v4198 = vpop.f32.mrf.mxu0
        %v4199 = vadd.f32 0.0, %v4198
        %v4200 = vpop.f32.mrf.mxu0
        %4201 = vmatprep.mubr.f32.mxu0 0.0
        %4202 = vmatmul.mubr.f32.gmra.mxu0 %v2117
        %v4203 = vpop.f32.mrf.mxu0
        %v4204 = vadd.f32 0.0, %v4203
        %v4205 = vpop.f32.mrf.mxu0
        %4206 = vdwg.mxu0
        %v4207 = vadd.f32 %v4046, %v4129
        %v4208 = vadd.f32 %v4047, %v4134
        %v4209 = vadd.f32 %v4048, %v4139
        %v4210 = vadd.f32 %v4049, %v4144
        %v4211 = vadd.f32 %v4050, %v4149
        %v4212 = vadd.f32 %v4051, %v4154
        %v4213 = vadd.f32 %v4052, %v4159
        %v4214 = vadd.f32 %v4053, %v4164
        %v4215 = vadd.f32 %v4054, %v4169
        %v4216 = vadd.f32 %v4055, %v4174
        %v4217 = vadd.f32 %v4056, %v4179
        %v4218 = vadd.f32 %v4057, %v4184
        %v4219 = vadd.f32 %v4058, %v4189
        %v4220 = vadd.f32 %v4059, %v4194
        %v4221 = vadd.f32 %v4060, %v4199
        %v4222 = vadd.f32 %v4061, %v4204
        %v4223 = vtanh.pop %v4207
        %v4224 = vtanh.pop %v4208
        %v4225 = vtanh.pop %v4209
        %v4226 = vtanh.pop %v4210
        %v4227 = vtanh.pop %v4211
        %v4228 = vtanh.pop %v4212
        %v4229 = vtanh.pop %v4213
        %v4230 = vtanh.pop %v4214
        %v4231 = vtanh.pop %v4215
        %v4232 = vtanh.pop %v4216
        %v4233 = vtanh.pop %v4217
        %v4234 = vtanh.pop %v4218
        %v4235 = vtanh.pop %v4219
        %v4236 = vtanh.pop %v4220
        %v4237 = vtanh.pop %v4221
        %v4238 = vtanh.pop %v4222
        %v4239 = vmul.f32 %v4223, 0.5
        %v4240 = vmul.f32 %v4224, 0.5
        %v4241 = vmul.f32 %v4225, 0.5
        %v4242 = vmul.f32 %v4226, 0.5
        %v4243 = vadd.f32 %v4239, 0.5
        %v4244 = vadd.f32 %v4240, 0.5
        %v4245 = vadd.f32 %v4241, 0.5
        %v4246 = vadd.f32 %v4242, 0.5
        %v4247 = vmul.f32 %v4227, 0.5
        %v4248 = vmul.f32 %v4228, 0.5
        %v4249 = vmul.f32 %v4229, 0.5
        %v4250 = vmul.f32 %v4230, 0.5
        %v4251 = vadd.f32 %v4247, 0.5
        %v4252 = vadd.f32 %v4248, 0.5
        %v4253 = vadd.f32 %v4249, 0.5
        %v4254 = vadd.f32 %v4250, 0.5
        %v4255 = vmul.f32 %v4235, 0.5
        %v4256 = vmul.f32 %v4236, 0.5
        %v4257 = vmul.f32 %v4237, 0.5
        %v4258 = vmul.f32 %v4238, 0.5
        %v4259 = vadd.f32 %v4255, 0.5
        %v4260 = vadd.f32 %v4256, 0.5
        %v4261 = vadd.f32 %v4257, 0.5
        %v4262 = vadd.f32 %v4258, 0.5
        %v4263 = vmul.f32 %v4251, %v4028
        %v4264 = vmul.f32 %v4252, %v4029
        %v4265 = vmul.f32 %v4253, %v4030
        %v4266 = vmul.f32 %v4254, %v4031
        %v4267 = vmul.f32 %v4243, %v4231
        %v4268 = vmul.f32 %v4244, %v4232
        %v4269 = vmul.f32 %v4245, %v4233
        %v4270 = vmul.f32 %v4246, %v4234
        %v4271 = vadd.f32 %v4263, %v4267
        %v4272 = vadd.f32 %v4264, %v4268
        %v4273 = vadd.f32 %v4265, %v4269
        %v4274 = vadd.f32 %v4266, %v4270
        %v4275 = vtanh.pop %v4271
        %v4276 = vtanh.pop %v4272
        %v4277 = vtanh.pop %v4273
        %v4278 = vtanh.pop %v4274
        %v4279 = vmul.f32 %v4259, %v4275
        %v4280 = vmul.f32 %v4260, %v4276
        %v4281 = vmul.f32 %v4261, %v4277
        %v4282 = vmul.f32 %v4262, %v4278
        %s4283 = scalar_lea.vmem [#allocation3], 256
        %4284 = vst [vmem:[%s4283] sm:$0xff] %v4279
        %4285 = vst [vmem:[%s4283 + $0x8] sm:$0xff] %v4280
        %4286 = vst [vmem:[%s4283 + $0x10] sm:$0xff] %v4281
        %4287 = vst [vmem:[%s4283 + $0x18] sm:$0xff] %v4282
        %s4288 = scalar_lea.vmem [#allocation2], 72
        %v4289 = vld [vmem:[%s4288] sm:$0xff]
        %v4290 = vld [vmem:[%s4288 + $0x80] sm:$0xff]
        %v4291 = vld [vmem:[%s4288 + $0x100] sm:$0xff]
        %v4292 = vld [vmem:[%s4288 + $0x180] sm:$0xff]
        %v4293 = vld [vmem:[%s4288 + $0x200] sm:$0xff]
        %v4294 = vld [vmem:[%s4288 + $0x280] sm:$0xff]
        %v4295 = vld [vmem:[%s4288 + $0x300] sm:$0xff]
        %v4296 = vld [vmem:[%s4288 + $0x380] sm:$0xff]
        %v4297 = vld [vmem:[%s4288 + $0x400] sm:$0xff]
        %v4298 = vld [vmem:[%s4288 + $0x480] sm:$0xff]
        %v4299 = vld [vmem:[%s4288 + $0x500] sm:$0xff]
        %v4300 = vld [vmem:[%s4288 + $0x580] sm:$0xff]
        %v4301 = vld [vmem:[%s4288 + $0x600] sm:$0xff]
        %v4302 = vld [vmem:[%s4288 + $0x680] sm:$0xff]
        %v4303 = vld [vmem:[%s4288 + $0x700] sm:$0xff]
        %v4304 = vld [vmem:[%s4288 + $0x780] sm:$0xff]
        %4305 = vmatprep.subr.mxu0 0.0
        %4306 = vmatpush1.msra.mxu0 0.0
        %4307 = vmatprep.subr.mxu0 0.0
        %4308 = vmatpush1.msra.mxu0 0.0
        %4309 = vmatprep.subr.mxu0 0.0
        %4310 = vmatpush1.msra.mxu0 0.0
        %4311 = vmatprep.subr.mxu0 0.0
        %4312 = vmatpush1.msra.mxu0 0.0
        %4313 = vmatprep.subr.mxu0 0.0
        %4314 = vmatpush1.msra.mxu0 0.0
        %4315 = vmatprep.subr.mxu0 0.0
        %4316 = vmatpush1.msra.mxu0 0.0
        %4317 = vmatprep.subr.mxu0 0.0
        %4318 = vmatpush1.msra.mxu0 0.0
        %4319 = vmatprep.subr.mxu0 0.0
        %4320 = vmatpush1.msra.mxu0 0.0
        %4321 = vmatprep.subr.mxu0 0.0
        %4322 = vmatpush1.msra.mxu0 0.0
        %4323 = vmatprep.subr.mxu0 0.0
        %4324 = vmatpush1.msra.mxu0 0.0
        %4325 = vmatprep.subr.mxu0 0.0
        %4326 = vmatpush1.msra.mxu0 0.0
        %4327 = vmatprep.subr.mxu0 0.0
        %4328 = vmatpush1.msra.mxu0 0.0
        %4329 = vmatprep.subr.mxu0 0.0
        %4330 = vmatpush1.msra.mxu0 %v4282
        %4331 = vmatprep.subr.mxu0 0.0
        %4332 = vmatpush1.msra.mxu0 %v4281
        %4333 = vmatprep.subr.mxu0 0.0
        %4334 = vmatpush1.msra.mxu0 %v4280
        %4335 = vmatprep.subr.mxu0 0.0
        %4336 = vmatpush1.msra.mxu0 %v4279
        %4337 = vmatprep.subr.mxu0 0.0
        %4338 = vmatpush2.msra.mxu0 0.0
        %4339 = vmatprep.subr.mxu0 0.0
        %4340 = vmatpush2.msra.mxu0 0.0
        %4341 = vmatprep.subr.mxu0 0.0
        %4342 = vmatpush2.msra.mxu0 0.0
        %4343 = vmatprep.subr.mxu0 0.0
        %4344 = vmatpush2.msra.mxu0 0.0
        %4345 = vmatprep.subr.mxu0 0.0
        %4346 = vmatpush2.msra.mxu0 0.0
        %4347 = vmatprep.subr.mxu0 0.0
        %4348 = vmatpush2.msra.mxu0 0.0
        %4349 = vmatprep.subr.mxu0 0.0
        %4350 = vmatpush2.msra.mxu0 0.0
        %4351 = vmatprep.subr.mxu0 0.0
        %4352 = vmatpush2.msra.mxu0 0.0
        %4353 = vmatprep.subr.mxu0 0.0
        %4354 = vmatpush2.msra.mxu0 0.0
        %4355 = vmatprep.subr.mxu0 0.0
        %4356 = vmatpush2.msra.mxu0 0.0
        %4357 = vmatprep.subr.mxu0 0.0
        %4358 = vmatpush2.msra.mxu0 0.0
        %4359 = vmatprep.subr.mxu0 0.0
        %4360 = vmatpush2.msra.mxu0 0.0
        %4361 = vmatprep.subr.mxu0 0.0
        %4362 = vmatpush2.msra.mxu0 0.0
        %4363 = vmatprep.subr.mxu0 0.0
        %4364 = vmatpush2.msra.mxu0 0.0
        %4365 = vmatprep.subr.mxu0 0.0
        %4366 = vmatpush2.msra.mxu0 0.0
        %4367 = vmatprep.subr.mxu0 0.0
        %4368 = vmatpush2.msra.mxu0 0.0
        %4369 = vmatprep.mubr.f32.mxu0 0.0
        %4370 = vmatmul.mubr.f32.gmra.mxu0 %v2072
        %v4371 = vpop.f32.mrf.mxu0
        %v4372 = vadd.f32 0.0, %v4371
        %v4373 = vpop.f32.mrf.mxu0
        %4374 = vmatprep.mubr.f32.mxu0 0.0
        %4375 = vmatmul.mubr.f32.gmra.mxu0 %v2075
        %v4376 = vpop.f32.mrf.mxu0
        %v4377 = vadd.f32 0.0, %v4376
        %v4378 = vpop.f32.mrf.mxu0
        %4379 = vmatprep.mubr.f32.mxu0 0.0
        %4380 = vmatmul.mubr.f32.gmra.mxu0 %v2078
        %v4381 = vpop.f32.mrf.mxu0
        %v4382 = vadd.f32 0.0, %v4381
        %v4383 = vpop.f32.mrf.mxu0
        %4384 = vmatprep.mubr.f32.mxu0 0.0
        %4385 = vmatmul.mubr.f32.gmra.mxu0 %v2081
        %v4386 = vpop.f32.mrf.mxu0
        %v4387 = vadd.f32 0.0, %v4386
        %v4388 = vpop.f32.mrf.mxu0
        %4389 = vmatprep.mubr.f32.mxu0 0.0
        %4390 = vmatmul.mubr.f32.gmra.mxu0 %v2084
        %v4391 = vpop.f32.mrf.mxu0
        %v4392 = vadd.f32 0.0, %v4391
        %v4393 = vpop.f32.mrf.mxu0
        %4394 = vmatprep.mubr.f32.mxu0 0.0
        %4395 = vmatmul.mubr.f32.gmra.mxu0 %v2087
        %v4396 = vpop.f32.mrf.mxu0
        %v4397 = vadd.f32 0.0, %v4396
        %v4398 = vpop.f32.mrf.mxu0
        %4399 = vmatprep.mubr.f32.mxu0 0.0
        %4400 = vmatmul.mubr.f32.gmra.mxu0 %v2090
        %v4401 = vpop.f32.mrf.mxu0
        %v4402 = vadd.f32 0.0, %v4401
        %v4403 = vpop.f32.mrf.mxu0
        %4404 = vmatprep.mubr.f32.mxu0 0.0
        %4405 = vmatmul.mubr.f32.gmra.mxu0 %v2093
        %v4406 = vpop.f32.mrf.mxu0
        %v4407 = vadd.f32 0.0, %v4406
        %v4408 = vpop.f32.mrf.mxu0
        %4409 = vmatprep.mubr.f32.mxu0 0.0
        %4410 = vmatmul.mubr.f32.gmra.mxu0 %v2096
        %v4411 = vpop.f32.mrf.mxu0
        %v4412 = vadd.f32 0.0, %v4411
        %v4413 = vpop.f32.mrf.mxu0
        %4414 = vmatprep.mubr.f32.mxu0 0.0
        %4415 = vmatmul.mubr.f32.gmra.mxu0 %v2099
        %v4416 = vpop.f32.mrf.mxu0
        %v4417 = vadd.f32 0.0, %v4416
        %v4418 = vpop.f32.mrf.mxu0
        %4419 = vmatprep.mubr.f32.mxu0 0.0
        %4420 = vmatmul.mubr.f32.gmra.mxu0 %v2102
        %v4421 = vpop.f32.mrf.mxu0
        %v4422 = vadd.f32 0.0, %v4421
        %v4423 = vpop.f32.mrf.mxu0
        %4424 = vmatprep.mubr.f32.mxu0 0.0
        %4425 = vmatmul.mubr.f32.gmra.mxu0 %v2105
        %v4426 = vpop.f32.mrf.mxu0
        %v4427 = vadd.f32 0.0, %v4426
        %v4428 = vpop.f32.mrf.mxu0
        %4429 = vmatprep.mubr.f32.mxu0 0.0
        %4430 = vmatmul.mubr.f32.gmra.mxu0 %v2108
        %v4431 = vpop.f32.mrf.mxu0
        %v4432 = vadd.f32 0.0, %v4431
        %v4433 = vpop.f32.mrf.mxu0
        %4434 = vmatprep.mubr.f32.mxu0 0.0
        %4435 = vmatmul.mubr.f32.gmra.mxu0 %v2111
        %v4436 = vpop.f32.mrf.mxu0
        %v4437 = vadd.f32 0.0, %v4436
        %v4438 = vpop.f32.mrf.mxu0
        %4439 = vmatprep.mubr.f32.mxu0 0.0
        %4440 = vmatmul.mubr.f32.gmra.mxu0 %v2114
        %v4441 = vpop.f32.mrf.mxu0
        %v4442 = vadd.f32 0.0, %v4441
        %v4443 = vpop.f32.mrf.mxu0
        %4444 = vmatprep.mubr.f32.mxu0 0.0
        %4445 = vmatmul.mubr.f32.gmra.mxu0 %v2117
        %v4446 = vpop.f32.mrf.mxu0
        %v4447 = vadd.f32 0.0, %v4446
        %v4448 = vpop.f32.mrf.mxu0
        %4449 = vdwg.mxu0
        %v4450 = vadd.f32 %v4289, %v4372
        %v4451 = vadd.f32 %v4290, %v4377
        %v4452 = vadd.f32 %v4291, %v4382
        %v4453 = vadd.f32 %v4292, %v4387
        %v4454 = vadd.f32 %v4293, %v4392
        %v4455 = vadd.f32 %v4294, %v4397
        %v4456 = vadd.f32 %v4295, %v4402
        %v4457 = vadd.f32 %v4296, %v4407
        %v4458 = vadd.f32 %v4297, %v4412
        %v4459 = vadd.f32 %v4298, %v4417
        %v4460 = vadd.f32 %v4299, %v4422
        %v4461 = vadd.f32 %v4300, %v4427
        %v4462 = vadd.f32 %v4301, %v4432
        %v4463 = vadd.f32 %v4302, %v4437
        %v4464 = vadd.f32 %v4303, %v4442
        %v4465 = vadd.f32 %v4304, %v4447
        %v4466 = vtanh.pop %v4450
        %v4467 = vtanh.pop %v4451
        %v4468 = vtanh.pop %v4452
        %v4469 = vtanh.pop %v4453
        %v4470 = vtanh.pop %v4454
        %v4471 = vtanh.pop %v4455
        %v4472 = vtanh.pop %v4456
        %v4473 = vtanh.pop %v4457
        %v4474 = vtanh.pop %v4458
        %v4475 = vtanh.pop %v4459
        %v4476 = vtanh.pop %v4460
        %v4477 = vtanh.pop %v4461
        %v4478 = vtanh.pop %v4462
        %v4479 = vtanh.pop %v4463
        %v4480 = vtanh.pop %v4464
        %v4481 = vtanh.pop %v4465
        %v4482 = vmul.f32 %v4466, 0.5
        %v4483 = vmul.f32 %v4467, 0.5
        %v4484 = vmul.f32 %v4468, 0.5
        %v4485 = vmul.f32 %v4469, 0.5
        %v4486 = vadd.f32 %v4482, 0.5
        %v4487 = vadd.f32 %v4483, 0.5
        %v4488 = vadd.f32 %v4484, 0.5
        %v4489 = vadd.f32 %v4485, 0.5
        %v4490 = vmul.f32 %v4470, 0.5
        %v4491 = vmul.f32 %v4471, 0.5
        %v4492 = vmul.f32 %v4472, 0.5
        %v4493 = vmul.f32 %v4473, 0.5
        %v4494 = vadd.f32 %v4490, 0.5
        %v4495 = vadd.f32 %v4491, 0.5
        %v4496 = vadd.f32 %v4492, 0.5
        %v4497 = vadd.f32 %v4493, 0.5
        %v4498 = vmul.f32 %v4478, 0.5
        %v4499 = vmul.f32 %v4479, 0.5
        %v4500 = vmul.f32 %v4480, 0.5
        %v4501 = vmul.f32 %v4481, 0.5
        %v4502 = vadd.f32 %v4498, 0.5
        %v4503 = vadd.f32 %v4499, 0.5
        %v4504 = vadd.f32 %v4500, 0.5
        %v4505 = vadd.f32 %v4501, 0.5
        %v4506 = vmul.f32 %v4494, %v4271
        %v4507 = vmul.f32 %v4495, %v4272
        %v4508 = vmul.f32 %v4496, %v4273
        %v4509 = vmul.f32 %v4497, %v4274
        %v4510 = vmul.f32 %v4486, %v4474
        %v4511 = vmul.f32 %v4487, %v4475
        %v4512 = vmul.f32 %v4488, %v4476
        %v4513 = vmul.f32 %v4489, %v4477
        %v4514 = vadd.f32 %v4506, %v4510
        %v4515 = vadd.f32 %v4507, %v4511
        %v4516 = vadd.f32 %v4508, %v4512
        %v4517 = vadd.f32 %v4509, %v4513
        %v4518 = vtanh.pop %v4514
        %v4519 = vtanh.pop %v4515
        %v4520 = vtanh.pop %v4516
        %v4521 = vtanh.pop %v4517
        %v4522 = vmul.f32 %v4502, %v4518
        %v4523 = vmul.f32 %v4503, %v4519
        %v4524 = vmul.f32 %v4504, %v4520
        %v4525 = vmul.f32 %v4505, %v4521
        %s4526 = scalar_lea.vmem [#allocation3], 288
        %4527 = vst [vmem:[%s4526] sm:$0xff] %v4522
        %4528 = vst [vmem:[%s4526 + $0x8] sm:$0xff] %v4523
        %4529 = vst [vmem:[%s4526 + $0x10] sm:$0xff] %v4524
        %4530 = vst [vmem:[%s4526 + $0x18] sm:$0xff] %v4525
        %s4531 = scalar_lea.vmem [#allocation2], 80
        %v4532 = vld [vmem:[%s4531] sm:$0xff]
        %v4533 = vld [vmem:[%s4531 + $0x80] sm:$0xff]
        %v4534 = vld [vmem:[%s4531 + $0x100] sm:$0xff]
        %v4535 = vld [vmem:[%s4531 + $0x180] sm:$0xff]
        %v4536 = vld [vmem:[%s4531 + $0x200] sm:$0xff]
        %v4537 = vld [vmem:[%s4531 + $0x280] sm:$0xff]
        %v4538 = vld [vmem:[%s4531 + $0x300] sm:$0xff]
        %v4539 = vld [vmem:[%s4531 + $0x380] sm:$0xff]
        %v4540 = vld [vmem:[%s4531 + $0x400] sm:$0xff]
        %v4541 = vld [vmem:[%s4531 + $0x480] sm:$0xff]
        %v4542 = vld [vmem:[%s4531 + $0x500] sm:$0xff]
        %v4543 = vld [vmem:[%s4531 + $0x580] sm:$0xff]
        %v4544 = vld [vmem:[%s4531 + $0x600] sm:$0xff]
        %v4545 = vld [vmem:[%s4531 + $0x680] sm:$0xff]
        %v4546 = vld [vmem:[%s4531 + $0x700] sm:$0xff]
        %v4547 = vld [vmem:[%s4531 + $0x780] sm:$0xff]
        %4548 = vmatprep.subr.mxu0 0.0
        %4549 = vmatpush1.msra.mxu0 0.0
        %4550 = vmatprep.subr.mxu0 0.0
        %4551 = vmatpush1.msra.mxu0 0.0
        %4552 = vmatprep.subr.mxu0 0.0
        %4553 = vmatpush1.msra.mxu0 0.0
        %4554 = vmatprep.subr.mxu0 0.0
        %4555 = vmatpush1.msra.mxu0 0.0
        %4556 = vmatprep.subr.mxu0 0.0
        %4557 = vmatpush1.msra.mxu0 0.0
        %4558 = vmatprep.subr.mxu0 0.0
        %4559 = vmatpush1.msra.mxu0 0.0
        %4560 = vmatprep.subr.mxu0 0.0
        %4561 = vmatpush1.msra.mxu0 0.0
        %4562 = vmatprep.subr.mxu0 0.0
        %4563 = vmatpush1.msra.mxu0 0.0
        %4564 = vmatprep.subr.mxu0 0.0
        %4565 = vmatpush1.msra.mxu0 0.0
        %4566 = vmatprep.subr.mxu0 0.0
        %4567 = vmatpush1.msra.mxu0 0.0
        %4568 = vmatprep.subr.mxu0 0.0
        %4569 = vmatpush1.msra.mxu0 0.0
        %4570 = vmatprep.subr.mxu0 0.0
        %4571 = vmatpush1.msra.mxu0 0.0
        %4572 = vmatprep.subr.mxu0 0.0
        %4573 = vmatpush1.msra.mxu0 %v4525
        %4574 = vmatprep.subr.mxu0 0.0
        %4575 = vmatpush1.msra.mxu0 %v4524
        %4576 = vmatprep.subr.mxu0 0.0
        %4577 = vmatpush1.msra.mxu0 %v4523
        %4578 = vmatprep.subr.mxu0 0.0
        %4579 = vmatpush1.msra.mxu0 %v4522
        %4580 = vmatprep.subr.mxu0 0.0
        %4581 = vmatpush2.msra.mxu0 0.0
        %4582 = vmatprep.subr.mxu0 0.0
        %4583 = vmatpush2.msra.mxu0 0.0
        %4584 = vmatprep.subr.mxu0 0.0
        %4585 = vmatpush2.msra.mxu0 0.0
        %4586 = vmatprep.subr.mxu0 0.0
        %4587 = vmatpush2.msra.mxu0 0.0
        %4588 = vmatprep.subr.mxu0 0.0
        %4589 = vmatpush2.msra.mxu0 0.0
        %4590 = vmatprep.subr.mxu0 0.0
        %4591 = vmatpush2.msra.mxu0 0.0
        %4592 = vmatprep.subr.mxu0 0.0
        %4593 = vmatpush2.msra.mxu0 0.0
        %4594 = vmatprep.subr.mxu0 0.0
        %4595 = vmatpush2.msra.mxu0 0.0
        %4596 = vmatprep.subr.mxu0 0.0
        %4597 = vmatpush2.msra.mxu0 0.0
        %4598 = vmatprep.subr.mxu0 0.0
        %4599 = vmatpush2.msra.mxu0 0.0
        %4600 = vmatprep.subr.mxu0 0.0
        %4601 = vmatpush2.msra.mxu0 0.0
        %4602 = vmatprep.subr.mxu0 0.0
        %4603 = vmatpush2.msra.mxu0 0.0
        %4604 = vmatprep.subr.mxu0 0.0
        %4605 = vmatpush2.msra.mxu0 0.0
        %4606 = vmatprep.subr.mxu0 0.0
        %4607 = vmatpush2.msra.mxu0 0.0
        %4608 = vmatprep.subr.mxu0 0.0
        %4609 = vmatpush2.msra.mxu0 0.0
        %4610 = vmatprep.subr.mxu0 0.0
        %4611 = vmatpush2.msra.mxu0 0.0
        %4612 = vmatprep.mubr.f32.mxu0 0.0
        %4613 = vmatmul.mubr.f32.gmra.mxu0 %v2072
        %v4614 = vpop.f32.mrf.mxu0
        %v4615 = vadd.f32 0.0, %v4614
        %v4616 = vpop.f32.mrf.mxu0
        %4617 = vmatprep.mubr.f32.mxu0 0.0
        %4618 = vmatmul.mubr.f32.gmra.mxu0 %v2075
        %v4619 = vpop.f32.mrf.mxu0
        %v4620 = vadd.f32 0.0, %v4619
        %v4621 = vpop.f32.mrf.mxu0
        %4622 = vmatprep.mubr.f32.mxu0 0.0
        %4623 = vmatmul.mubr.f32.gmra.mxu0 %v2078
        %v4624 = vpop.f32.mrf.mxu0
        %v4625 = vadd.f32 0.0, %v4624
        %v4626 = vpop.f32.mrf.mxu0
        %4627 = vmatprep.mubr.f32.mxu0 0.0
        %4628 = vmatmul.mubr.f32.gmra.mxu0 %v2081
        %v4629 = vpop.f32.mrf.mxu0
        %v4630 = vadd.f32 0.0, %v4629
        %v4631 = vpop.f32.mrf.mxu0
        %4632 = vmatprep.mubr.f32.mxu0 0.0
        %4633 = vmatmul.mubr.f32.gmra.mxu0 %v2084
        %v4634 = vpop.f32.mrf.mxu0
        %v4635 = vadd.f32 0.0, %v4634
        %v4636 = vpop.f32.mrf.mxu0
        %4637 = vmatprep.mubr.f32.mxu0 0.0
        %4638 = vmatmul.mubr.f32.gmra.mxu0 %v2087
        %v4639 = vpop.f32.mrf.mxu0
        %v4640 = vadd.f32 0.0, %v4639
        %v4641 = vpop.f32.mrf.mxu0
        %4642 = vmatprep.mubr.f32.mxu0 0.0
        %4643 = vmatmul.mubr.f32.gmra.mxu0 %v2090
        %v4644 = vpop.f32.mrf.mxu0
        %v4645 = vadd.f32 0.0, %v4644
        %v4646 = vpop.f32.mrf.mxu0
        %4647 = vmatprep.mubr.f32.mxu0 0.0
        %4648 = vmatmul.mubr.f32.gmra.mxu0 %v2093
        %v4649 = vpop.f32.mrf.mxu0
        %v4650 = vadd.f32 0.0, %v4649
        %v4651 = vpop.f32.mrf.mxu0
        %4652 = vmatprep.mubr.f32.mxu0 0.0
        %4653 = vmatmul.mubr.f32.gmra.mxu0 %v2096
        %v4654 = vpop.f32.mrf.mxu0
        %v4655 = vadd.f32 0.0, %v4654
        %v4656 = vpop.f32.mrf.mxu0
        %4657 = vmatprep.mubr.f32.mxu0 0.0
        %4658 = vmatmul.mubr.f32.gmra.mxu0 %v2099
        %v4659 = vpop.f32.mrf.mxu0
        %v4660 = vadd.f32 0.0, %v4659
        %v4661 = vpop.f32.mrf.mxu0
        %4662 = vmatprep.mubr.f32.mxu0 0.0
        %4663 = vmatmul.mubr.f32.gmra.mxu0 %v2102
        %v4664 = vpop.f32.mrf.mxu0
        %v4665 = vadd.f32 0.0, %v4664
        %v4666 = vpop.f32.mrf.mxu0
        %4667 = vmatprep.mubr.f32.mxu0 0.0
        %4668 = vmatmul.mubr.f32.gmra.mxu0 %v2105
        %v4669 = vpop.f32.mrf.mxu0
        %v4670 = vadd.f32 0.0, %v4669
        %v4671 = vpop.f32.mrf.mxu0
        %4672 = vmatprep.mubr.f32.mxu0 0.0
        %4673 = vmatmul.mubr.f32.gmra.mxu0 %v2108
        %v4674 = vpop.f32.mrf.mxu0
        %v4675 = vadd.f32 0.0, %v4674
        %v4676 = vpop.f32.mrf.mxu0
        %4677 = vmatprep.mubr.f32.mxu0 0.0
        %4678 = vmatmul.mubr.f32.gmra.mxu0 %v2111
        %v4679 = vpop.f32.mrf.mxu0
        %v4680 = vadd.f32 0.0, %v4679
        %v4681 = vpop.f32.mrf.mxu0
        %4682 = vmatprep.mubr.f32.mxu0 0.0
        %4683 = vmatmul.mubr.f32.gmra.mxu0 %v2114
        %v4684 = vpop.f32.mrf.mxu0
        %v4685 = vadd.f32 0.0, %v4684
        %v4686 = vpop.f32.mrf.mxu0
        %4687 = vmatprep.mubr.f32.mxu0 0.0
        %4688 = vmatmul.mubr.f32.gmra.mxu0 %v2117
        %v4689 = vpop.f32.mrf.mxu0
        %v4690 = vadd.f32 0.0, %v4689
        %v4691 = vpop.f32.mrf.mxu0
        %4692 = vdwg.mxu0
        %v4693 = vadd.f32 %v4532, %v4615
        %v4694 = vadd.f32 %v4533, %v4620
        %v4695 = vadd.f32 %v4534, %v4625
        %v4696 = vadd.f32 %v4535, %v4630
        %v4697 = vadd.f32 %v4536, %v4635
        %v4698 = vadd.f32 %v4537, %v4640
        %v4699 = vadd.f32 %v4538, %v4645
        %v4700 = vadd.f32 %v4539, %v4650
        %v4701 = vadd.f32 %v4540, %v4655
        %v4702 = vadd.f32 %v4541, %v4660
        %v4703 = vadd.f32 %v4542, %v4665
        %v4704 = vadd.f32 %v4543, %v4670
        %v4705 = vadd.f32 %v4544, %v4675
        %v4706 = vadd.f32 %v4545, %v4680
        %v4707 = vadd.f32 %v4546, %v4685
        %v4708 = vadd.f32 %v4547, %v4690
        %v4709 = vtanh.pop %v4693
        %v4710 = vtanh.pop %v4694
        %v4711 = vtanh.pop %v4695
        %v4712 = vtanh.pop %v4696
        %v4713 = vtanh.pop %v4697
        %v4714 = vtanh.pop %v4698
        %v4715 = vtanh.pop %v4699
        %v4716 = vtanh.pop %v4700
        %v4717 = vtanh.pop %v4701
        %v4718 = vtanh.pop %v4702
        %v4719 = vtanh.pop %v4703
        %v4720 = vtanh.pop %v4704
        %v4721 = vtanh.pop %v4705
        %v4722 = vtanh.pop %v4706
        %v4723 = vtanh.pop %v4707
        %v4724 = vtanh.pop %v4708
        %v4725 = vmul.f32 %v4709, 0.5
        %v4726 = vmul.f32 %v4710, 0.5
        %v4727 = vmul.f32 %v4711, 0.5
        %v4728 = vmul.f32 %v4712, 0.5
        %v4729 = vadd.f32 %v4725, 0.5
        %v4730 = vadd.f32 %v4726, 0.5
        %v4731 = vadd.f32 %v4727, 0.5
        %v4732 = vadd.f32 %v4728, 0.5
        %v4733 = vmul.f32 %v4713, 0.5
        %v4734 = vmul.f32 %v4714, 0.5
        %v4735 = vmul.f32 %v4715, 0.5
        %v4736 = vmul.f32 %v4716, 0.5
        %v4737 = vadd.f32 %v4733, 0.5
        %v4738 = vadd.f32 %v4734, 0.5
        %v4739 = vadd.f32 %v4735, 0.5
        %v4740 = vadd.f32 %v4736, 0.5
        %v4741 = vmul.f32 %v4721, 0.5
        %v4742 = vmul.f32 %v4722, 0.5
        %v4743 = vmul.f32 %v4723, 0.5
        %v4744 = vmul.f32 %v4724, 0.5
        %v4745 = vadd.f32 %v4741, 0.5
        %v4746 = vadd.f32 %v4742, 0.5
        %v4747 = vadd.f32 %v4743, 0.5
        %v4748 = vadd.f32 %v4744, 0.5
        %v4749 = vmul.f32 %v4737, %v4514
        %v4750 = vmul.f32 %v4738, %v4515
        %v4751 = vmul.f32 %v4739, %v4516
        %v4752 = vmul.f32 %v4740, %v4517
        %v4753 = vmul.f32 %v4729, %v4717
        %v4754 = vmul.f32 %v4730, %v4718
        %v4755 = vmul.f32 %v4731, %v4719
        %v4756 = vmul.f32 %v4732, %v4720
        %v4757 = vadd.f32 %v4749, %v4753
        %v4758 = vadd.f32 %v4750, %v4754
        %v4759 = vadd.f32 %v4751, %v4755
        %v4760 = vadd.f32 %v4752, %v4756
        %v4761 = vtanh.pop %v4757
        %v4762 = vtanh.pop %v4758
        %v4763 = vtanh.pop %v4759
        %v4764 = vtanh.pop %v4760
        %v4765 = vmul.f32 %v4745, %v4761
        %v4766 = vmul.f32 %v4746, %v4762
        %v4767 = vmul.f32 %v4747, %v4763
        %v4768 = vmul.f32 %v4748, %v4764
        %s4769 = scalar_lea.vmem [#allocation3], 320
        %4770 = vst [vmem:[%s4769] sm:$0xff] %v4765
        %4771 = vst [vmem:[%s4769 + $0x8] sm:$0xff] %v4766
        %4772 = vst [vmem:[%s4769 + $0x10] sm:$0xff] %v4767
        %4773 = vst [vmem:[%s4769 + $0x18] sm:$0xff] %v4768
        %s4774 = scalar_lea.vmem [#allocation2], 88
        %v4775 = vld [vmem:[%s4774] sm:$0xff]
        %v4776 = vld [vmem:[%s4774 + $0x80] sm:$0xff]
        %v4777 = vld [vmem:[%s4774 + $0x100] sm:$0xff]
        %v4778 = vld [vmem:[%s4774 + $0x180] sm:$0xff]
        %v4779 = vld [vmem:[%s4774 + $0x200] sm:$0xff]
        %v4780 = vld [vmem:[%s4774 + $0x280] sm:$0xff]
        %v4781 = vld [vmem:[%s4774 + $0x300] sm:$0xff]
        %v4782 = vld [vmem:[%s4774 + $0x380] sm:$0xff]
        %v4783 = vld [vmem:[%s4774 + $0x400] sm:$0xff]
        %v4784 = vld [vmem:[%s4774 + $0x480] sm:$0xff]
        %v4785 = vld [vmem:[%s4774 + $0x500] sm:$0xff]
        %v4786 = vld [vmem:[%s4774 + $0x580] sm:$0xff]
        %v4787 = vld [vmem:[%s4774 + $0x600] sm:$0xff]
        %v4788 = vld [vmem:[%s4774 + $0x680] sm:$0xff]
        %v4789 = vld [vmem:[%s4774 + $0x700] sm:$0xff]
        %v4790 = vld [vmem:[%s4774 + $0x780] sm:$0xff]
        %4791 = vmatprep.subr.mxu0 0.0
        %4792 = vmatpush1.msra.mxu0 0.0
        %4793 = vmatprep.subr.mxu0 0.0
        %4794 = vmatpush1.msra.mxu0 0.0
        %4795 = vmatprep.subr.mxu0 0.0
        %4796 = vmatpush1.msra.mxu0 0.0
        %4797 = vmatprep.subr.mxu0 0.0
        %4798 = vmatpush1.msra.mxu0 0.0
        %4799 = vmatprep.subr.mxu0 0.0
        %4800 = vmatpush1.msra.mxu0 0.0
        %4801 = vmatprep.subr.mxu0 0.0
        %4802 = vmatpush1.msra.mxu0 0.0
        %4803 = vmatprep.subr.mxu0 0.0
        %4804 = vmatpush1.msra.mxu0 0.0
        %4805 = vmatprep.subr.mxu0 0.0
        %4806 = vmatpush1.msra.mxu0 0.0
        %4807 = vmatprep.subr.mxu0 0.0
        %4808 = vmatpush1.msra.mxu0 0.0
        %4809 = vmatprep.subr.mxu0 0.0
        %4810 = vmatpush1.msra.mxu0 0.0
        %4811 = vmatprep.subr.mxu0 0.0
        %4812 = vmatpush1.msra.mxu0 0.0
        %4813 = vmatprep.subr.mxu0 0.0
        %4814 = vmatpush1.msra.mxu0 0.0
        %4815 = vmatprep.subr.mxu0 0.0
        %4816 = vmatpush1.msra.mxu0 %v4768
        %4817 = vmatprep.subr.mxu0 0.0
        %4818 = vmatpush1.msra.mxu0 %v4767
        %4819 = vmatprep.subr.mxu0 0.0
        %4820 = vmatpush1.msra.mxu0 %v4766
        %4821 = vmatprep.subr.mxu0 0.0
        %4822 = vmatpush1.msra.mxu0 %v4765
        %4823 = vmatprep.subr.mxu0 0.0
        %4824 = vmatpush2.msra.mxu0 0.0
        %4825 = vmatprep.subr.mxu0 0.0
        %4826 = vmatpush2.msra.mxu0 0.0
        %4827 = vmatprep.subr.mxu0 0.0
        %4828 = vmatpush2.msra.mxu0 0.0
        %4829 = vmatprep.subr.mxu0 0.0
        %4830 = vmatpush2.msra.mxu0 0.0
        %4831 = vmatprep.subr.mxu0 0.0
        %4832 = vmatpush2.msra.mxu0 0.0
        %4833 = vmatprep.subr.mxu0 0.0
        %4834 = vmatpush2.msra.mxu0 0.0
        %4835 = vmatprep.subr.mxu0 0.0
        %4836 = vmatpush2.msra.mxu0 0.0
        %4837 = vmatprep.subr.mxu0 0.0
        %4838 = vmatpush2.msra.mxu0 0.0
        %4839 = vmatprep.subr.mxu0 0.0
        %4840 = vmatpush2.msra.mxu0 0.0
        %4841 = vmatprep.subr.mxu0 0.0
        %4842 = vmatpush2.msra.mxu0 0.0
        %4843 = vmatprep.subr.mxu0 0.0
        %4844 = vmatpush2.msra.mxu0 0.0
        %4845 = vmatprep.subr.mxu0 0.0
        %4846 = vmatpush2.msra.mxu0 0.0
        %4847 = vmatprep.subr.mxu0 0.0
        %4848 = vmatpush2.msra.mxu0 0.0
        %4849 = vmatprep.subr.mxu0 0.0
        %4850 = vmatpush2.msra.mxu0 0.0
        %4851 = vmatprep.subr.mxu0 0.0
        %4852 = vmatpush2.msra.mxu0 0.0
        %4853 = vmatprep.subr.mxu0 0.0
        %4854 = vmatpush2.msra.mxu0 0.0
        %4855 = vmatprep.mubr.f32.mxu0 0.0
        %4856 = vmatmul.mubr.f32.gmra.mxu0 %v2072
        %v4857 = vpop.f32.mrf.mxu0
        %v4858 = vadd.f32 0.0, %v4857
        %v4859 = vpop.f32.mrf.mxu0
        %4860 = vmatprep.mubr.f32.mxu0 0.0
        %4861 = vmatmul.mubr.f32.gmra.mxu0 %v2075
        %v4862 = vpop.f32.mrf.mxu0
        %v4863 = vadd.f32 0.0, %v4862
        %v4864 = vpop.f32.mrf.mxu0
        %4865 = vmatprep.mubr.f32.mxu0 0.0
        %4866 = vmatmul.mubr.f32.gmra.mxu0 %v2078
        %v4867 = vpop.f32.mrf.mxu0
        %v4868 = vadd.f32 0.0, %v4867
        %v4869 = vpop.f32.mrf.mxu0
        %4870 = vmatprep.mubr.f32.mxu0 0.0
        %4871 = vmatmul.mubr.f32.gmra.mxu0 %v2081
        %v4872 = vpop.f32.mrf.mxu0
        %v4873 = vadd.f32 0.0, %v4872
        %v4874 = vpop.f32.mrf.mxu0
        %4875 = vmatprep.mubr.f32.mxu0 0.0
        %4876 = vmatmul.mubr.f32.gmra.mxu0 %v2084
        %v4877 = vpop.f32.mrf.mxu0
        %v4878 = vadd.f32 0.0, %v4877
        %v4879 = vpop.f32.mrf.mxu0
        %4880 = vmatprep.mubr.f32.mxu0 0.0
        %4881 = vmatmul.mubr.f32.gmra.mxu0 %v2087
        %v4882 = vpop.f32.mrf.mxu0
        %v4883 = vadd.f32 0.0, %v4882
        %v4884 = vpop.f32.mrf.mxu0
        %4885 = vmatprep.mubr.f32.mxu0 0.0
        %4886 = vmatmul.mubr.f32.gmra.mxu0 %v2090
        %v4887 = vpop.f32.mrf.mxu0
        %v4888 = vadd.f32 0.0, %v4887
        %v4889 = vpop.f32.mrf.mxu0
        %4890 = vmatprep.mubr.f32.mxu0 0.0
        %4891 = vmatmul.mubr.f32.gmra.mxu0 %v2093
        %v4892 = vpop.f32.mrf.mxu0
        %v4893 = vadd.f32 0.0, %v4892
        %v4894 = vpop.f32.mrf.mxu0
        %4895 = vmatprep.mubr.f32.mxu0 0.0
        %4896 = vmatmul.mubr.f32.gmra.mxu0 %v2096
        %v4897 = vpop.f32.mrf.mxu0
        %v4898 = vadd.f32 0.0, %v4897
        %v4899 = vpop.f32.mrf.mxu0
        %4900 = vmatprep.mubr.f32.mxu0 0.0
        %4901 = vmatmul.mubr.f32.gmra.mxu0 %v2099
        %v4902 = vpop.f32.mrf.mxu0
        %v4903 = vadd.f32 0.0, %v4902
        %v4904 = vpop.f32.mrf.mxu0
        %4905 = vmatprep.mubr.f32.mxu0 0.0
        %4906 = vmatmul.mubr.f32.gmra.mxu0 %v2102
        %v4907 = vpop.f32.mrf.mxu0
        %v4908 = vadd.f32 0.0, %v4907
        %v4909 = vpop.f32.mrf.mxu0
        %4910 = vmatprep.mubr.f32.mxu0 0.0
        %4911 = vmatmul.mubr.f32.gmra.mxu0 %v2105
        %v4912 = vpop.f32.mrf.mxu0
        %v4913 = vadd.f32 0.0, %v4912
        %v4914 = vpop.f32.mrf.mxu0
        %4915 = vmatprep.mubr.f32.mxu0 0.0
        %4916 = vmatmul.mubr.f32.gmra.mxu0 %v2108
        %v4917 = vpop.f32.mrf.mxu0
        %v4918 = vadd.f32 0.0, %v4917
        %v4919 = vpop.f32.mrf.mxu0
        %4920 = vmatprep.mubr.f32.mxu0 0.0
        %4921 = vmatmul.mubr.f32.gmra.mxu0 %v2111
        %v4922 = vpop.f32.mrf.mxu0
        %v4923 = vadd.f32 0.0, %v4922
        %v4924 = vpop.f32.mrf.mxu0
        %4925 = vmatprep.mubr.f32.mxu0 0.0
        %4926 = vmatmul.mubr.f32.gmra.mxu0 %v2114
        %v4927 = vpop.f32.mrf.mxu0
        %v4928 = vadd.f32 0.0, %v4927
        %v4929 = vpop.f32.mrf.mxu0
        %4930 = vmatprep.mubr.f32.mxu0 0.0
        %4931 = vmatmul.mubr.f32.gmra.mxu0 %v2117
        %v4932 = vpop.f32.mrf.mxu0
        %v4933 = vadd.f32 0.0, %v4932
        %v4934 = vpop.f32.mrf.mxu0
        %4935 = vdwg.mxu0
        %v4936 = vadd.f32 %v4775, %v4858
        %v4937 = vadd.f32 %v4776, %v4863
        %v4938 = vadd.f32 %v4777, %v4868
        %v4939 = vadd.f32 %v4778, %v4873
        %v4940 = vadd.f32 %v4779, %v4878
        %v4941 = vadd.f32 %v4780, %v4883
        %v4942 = vadd.f32 %v4781, %v4888
        %v4943 = vadd.f32 %v4782, %v4893
        %v4944 = vadd.f32 %v4783, %v4898
        %v4945 = vadd.f32 %v4784, %v4903
        %v4946 = vadd.f32 %v4785, %v4908
        %v4947 = vadd.f32 %v4786, %v4913
        %v4948 = vadd.f32 %v4787, %v4918
        %v4949 = vadd.f32 %v4788, %v4923
        %v4950 = vadd.f32 %v4789, %v4928
        %v4951 = vadd.f32 %v4790, %v4933
        %v4952 = vtanh.pop %v4936
        %v4953 = vtanh.pop %v4937
        %v4954 = vtanh.pop %v4938
        %v4955 = vtanh.pop %v4939
        %v4956 = vtanh.pop %v4940
        %v4957 = vtanh.pop %v4941
        %v4958 = vtanh.pop %v4942
        %v4959 = vtanh.pop %v4943
        %v4960 = vtanh.pop %v4944
        %v4961 = vtanh.pop %v4945
        %v4962 = vtanh.pop %v4946
        %v4963 = vtanh.pop %v4947
        %v4964 = vtanh.pop %v4948
        %v4965 = vtanh.pop %v4949
        %v4966 = vtanh.pop %v4950
        %v4967 = vtanh.pop %v4951
        %v4968 = vmul.f32 %v4952, 0.5
        %v4969 = vmul.f32 %v4953, 0.5
        %v4970 = vmul.f32 %v4954, 0.5
        %v4971 = vmul.f32 %v4955, 0.5
        %v4972 = vadd.f32 %v4968, 0.5
        %v4973 = vadd.f32 %v4969, 0.5
        %v4974 = vadd.f32 %v4970, 0.5
        %v4975 = vadd.f32 %v4971, 0.5
        %v4976 = vmul.f32 %v4956, 0.5
        %v4977 = vmul.f32 %v4957, 0.5
        %v4978 = vmul.f32 %v4958, 0.5
        %v4979 = vmul.f32 %v4959, 0.5
        %v4980 = vadd.f32 %v4976, 0.5
        %v4981 = vadd.f32 %v4977, 0.5
        %v4982 = vadd.f32 %v4978, 0.5
        %v4983 = vadd.f32 %v4979, 0.5
        %v4984 = vmul.f32 %v4964, 0.5
        %v4985 = vmul.f32 %v4965, 0.5
        %v4986 = vmul.f32 %v4966, 0.5
        %v4987 = vmul.f32 %v4967, 0.5
        %v4988 = vadd.f32 %v4984, 0.5
        %v4989 = vadd.f32 %v4985, 0.5
        %v4990 = vadd.f32 %v4986, 0.5
        %v4991 = vadd.f32 %v4987, 0.5
        %v4992 = vmul.f32 %v4980, %v4757
        %v4993 = vmul.f32 %v4981, %v4758
        %v4994 = vmul.f32 %v4982, %v4759
        %v4995 = vmul.f32 %v4983, %v4760
        %v4996 = vmul.f32 %v4972, %v4960
        %v4997 = vmul.f32 %v4973, %v4961
        %v4998 = vmul.f32 %v4974, %v4962
        %v4999 = vmul.f32 %v4975, %v4963
        %v5000 = vadd.f32 %v4992, %v4996
        %v5001 = vadd.f32 %v4993, %v4997
        %v5002 = vadd.f32 %v4994, %v4998
        %v5003 = vadd.f32 %v4995, %v4999
        %v5004 = vtanh.pop %v5000
        %v5005 = vtanh.pop %v5001
        %v5006 = vtanh.pop %v5002
        %v5007 = vtanh.pop %v5003
        %v5008 = vmul.f32 %v4988, %v5004
        %v5009 = vmul.f32 %v4989, %v5005
        %v5010 = vmul.f32 %v4990, %v5006
        %v5011 = vmul.f32 %v4991, %v5007
        %s5012 = scalar_lea.vmem [#allocation3], 352
        %5013 = vst [vmem:[%s5012] sm:$0xff] %v5008
        %5014 = vst [vmem:[%s5012 + $0x8] sm:$0xff] %v5009
        %5015 = vst [vmem:[%s5012 + $0x10] sm:$0xff] %v5010
        %5016 = vst [vmem:[%s5012 + $0x18] sm:$0xff] %v5011
        %s5017 = scalar_lea.vmem [#allocation2], 96
        %v5018 = vld [vmem:[%s5017] sm:$0xff]
        %v5019 = vld [vmem:[%s5017 + $0x80] sm:$0xff]
        %v5020 = vld [vmem:[%s5017 + $0x100] sm:$0xff]
        %v5021 = vld [vmem:[%s5017 + $0x180] sm:$0xff]
        %v5022 = vld [vmem:[%s5017 + $0x200] sm:$0xff]
        %v5023 = vld [vmem:[%s5017 + $0x280] sm:$0xff]
        %v5024 = vld [vmem:[%s5017 + $0x300] sm:$0xff]
        %v5025 = vld [vmem:[%s5017 + $0x380] sm:$0xff]
        %v5026 = vld [vmem:[%s5017 + $0x400] sm:$0xff]
        %v5027 = vld [vmem:[%s5017 + $0x480] sm:$0xff]
        %v5028 = vld [vmem:[%s5017 + $0x500] sm:$0xff]
        %v5029 = vld [vmem:[%s5017 + $0x580] sm:$0xff]
        %v5030 = vld [vmem:[%s5017 + $0x600] sm:$0xff]
        %v5031 = vld [vmem:[%s5017 + $0x680] sm:$0xff]
        %v5032 = vld [vmem:[%s5017 + $0x700] sm:$0xff]
        %v5033 = vld [vmem:[%s5017 + $0x780] sm:$0xff]
        %5034 = vmatprep.subr.mxu0 0.0
        %5035 = vmatpush1.msra.mxu0 0.0
        %5036 = vmatprep.subr.mxu0 0.0
        %5037 = vmatpush1.msra.mxu0 0.0
        %5038 = vmatprep.subr.mxu0 0.0
        %5039 = vmatpush1.msra.mxu0 0.0
        %5040 = vmatprep.subr.mxu0 0.0
        %5041 = vmatpush1.msra.mxu0 0.0
        %5042 = vmatprep.subr.mxu0 0.0
        %5043 = vmatpush1.msra.mxu0 0.0
        %5044 = vmatprep.subr.mxu0 0.0
        %5045 = vmatpush1.msra.mxu0 0.0
        %5046 = vmatprep.subr.mxu0 0.0
        %5047 = vmatpush1.msra.mxu0 0.0
        %5048 = vmatprep.subr.mxu0 0.0
        %5049 = vmatpush1.msra.mxu0 0.0
        %5050 = vmatprep.subr.mxu0 0.0
        %5051 = vmatpush1.msra.mxu0 0.0
        %5052 = vmatprep.subr.mxu0 0.0
        %5053 = vmatpush1.msra.mxu0 0.0
        %5054 = vmatprep.subr.mxu0 0.0
        %5055 = vmatpush1.msra.mxu0 0.0
        %5056 = vmatprep.subr.mxu0 0.0
        %5057 = vmatpush1.msra.mxu0 0.0
        %5058 = vmatprep.subr.mxu0 0.0
        %5059 = vmatpush1.msra.mxu0 %v5011
        %5060 = vmatprep.subr.mxu0 0.0
        %5061 = vmatpush1.msra.mxu0 %v5010
        %5062 = vmatprep.subr.mxu0 0.0
        %5063 = vmatpush1.msra.mxu0 %v5009
        %5064 = vmatprep.subr.mxu0 0.0
        %5065 = vmatpush1.msra.mxu0 %v5008
        %5066 = vmatprep.subr.mxu0 0.0
        %5067 = vmatpush2.msra.mxu0 0.0
        %5068 = vmatprep.subr.mxu0 0.0
        %5069 = vmatpush2.msra.mxu0 0.0
        %5070 = vmatprep.subr.mxu0 0.0
        %5071 = vmatpush2.msra.mxu0 0.0
        %5072 = vmatprep.subr.mxu0 0.0
        %5073 = vmatpush2.msra.mxu0 0.0
        %5074 = vmatprep.subr.mxu0 0.0
        %5075 = vmatpush2.msra.mxu0 0.0
        %5076 = vmatprep.subr.mxu0 0.0
        %5077 = vmatpush2.msra.mxu0 0.0
        %5078 = vmatprep.subr.mxu0 0.0
        %5079 = vmatpush2.msra.mxu0 0.0
        %5080 = vmatprep.subr.mxu0 0.0
        %5081 = vmatpush2.msra.mxu0 0.0
        %5082 = vmatprep.subr.mxu0 0.0
        %5083 = vmatpush2.msra.mxu0 0.0
        %5084 = vmatprep.subr.mxu0 0.0
        %5085 = vmatpush2.msra.mxu0 0.0
        %5086 = vmatprep.subr.mxu0 0.0
        %5087 = vmatpush2.msra.mxu0 0.0
        %5088 = vmatprep.subr.mxu0 0.0
        %5089 = vmatpush2.msra.mxu0 0.0
        %5090 = vmatprep.subr.mxu0 0.0
        %5091 = vmatpush2.msra.mxu0 0.0
        %5092 = vmatprep.subr.mxu0 0.0
        %5093 = vmatpush2.msra.mxu0 0.0
        %5094 = vmatprep.subr.mxu0 0.0
        %5095 = vmatpush2.msra.mxu0 0.0
        %5096 = vmatprep.subr.mxu0 0.0
        %5097 = vmatpush2.msra.mxu0 0.0
        %5098 = vmatprep.mubr.f32.mxu0 0.0
        %5099 = vmatmul.mubr.f32.gmra.mxu0 %v2072
        %v5100 = vpop.f32.mrf.mxu0
        %v5101 = vadd.f32 0.0, %v5100
        %v5102 = vpop.f32.mrf.mxu0
        %5103 = vmatprep.mubr.f32.mxu0 0.0
        %5104 = vmatmul.mubr.f32.gmra.mxu0 %v2075
        %v5105 = vpop.f32.mrf.mxu0
        %v5106 = vadd.f32 0.0, %v5105
        %v5107 = vpop.f32.mrf.mxu0
        %5108 = vmatprep.mubr.f32.mxu0 0.0
        %5109 = vmatmul.mubr.f32.gmra.mxu0 %v2078
        %v5110 = vpop.f32.mrf.mxu0
        %v5111 = vadd.f32 0.0, %v5110
        %v5112 = vpop.f32.mrf.mxu0
        %5113 = vmatprep.mubr.f32.mxu0 0.0
        %5114 = vmatmul.mubr.f32.gmra.mxu0 %v2081
        %v5115 = vpop.f32.mrf.mxu0
        %v5116 = vadd.f32 0.0, %v5115
        %v5117 = vpop.f32.mrf.mxu0
        %5118 = vmatprep.mubr.f32.mxu0 0.0
        %5119 = vmatmul.mubr.f32.gmra.mxu0 %v2084
        %v5120 = vpop.f32.mrf.mxu0
        %v5121 = vadd.f32 0.0, %v5120
        %v5122 = vpop.f32.mrf.mxu0
        %5123 = vmatprep.mubr.f32.mxu0 0.0
        %5124 = vmatmul.mubr.f32.gmra.mxu0 %v2087
        %v5125 = vpop.f32.mrf.mxu0
        %v5126 = vadd.f32 0.0, %v5125
        %v5127 = vpop.f32.mrf.mxu0
        %5128 = vmatprep.mubr.f32.mxu0 0.0
        %5129 = vmatmul.mubr.f32.gmra.mxu0 %v2090
        %v5130 = vpop.f32.mrf.mxu0
        %v5131 = vadd.f32 0.0, %v5130
        %v5132 = vpop.f32.mrf.mxu0
        %5133 = vmatprep.mubr.f32.mxu0 0.0
        %5134 = vmatmul.mubr.f32.gmra.mxu0 %v2093
        %v5135 = vpop.f32.mrf.mxu0
        %v5136 = vadd.f32 0.0, %v5135
        %v5137 = vpop.f32.mrf.mxu0
        %5138 = vmatprep.mubr.f32.mxu0 0.0
        %5139 = vmatmul.mubr.f32.gmra.mxu0 %v2096
        %v5140 = vpop.f32.mrf.mxu0
        %v5141 = vadd.f32 0.0, %v5140
        %v5142 = vpop.f32.mrf.mxu0
        %5143 = vmatprep.mubr.f32.mxu0 0.0
        %5144 = vmatmul.mubr.f32.gmra.mxu0 %v2099
        %v5145 = vpop.f32.mrf.mxu0
        %v5146 = vadd.f32 0.0, %v5145
        %v5147 = vpop.f32.mrf.mxu0
        %5148 = vmatprep.mubr.f32.mxu0 0.0
        %5149 = vmatmul.mubr.f32.gmra.mxu0 %v2102
        %v5150 = vpop.f32.mrf.mxu0
        %v5151 = vadd.f32 0.0, %v5150
        %v5152 = vpop.f32.mrf.mxu0
        %5153 = vmatprep.mubr.f32.mxu0 0.0
        %5154 = vmatmul.mubr.f32.gmra.mxu0 %v2105
        %v5155 = vpop.f32.mrf.mxu0
        %v5156 = vadd.f32 0.0, %v5155
        %v5157 = vpop.f32.mrf.mxu0
        %5158 = vmatprep.mubr.f32.mxu0 0.0
        %5159 = vmatmul.mubr.f32.gmra.mxu0 %v2108
        %v5160 = vpop.f32.mrf.mxu0
        %v5161 = vadd.f32 0.0, %v5160
        %v5162 = vpop.f32.mrf.mxu0
        %5163 = vmatprep.mubr.f32.mxu0 0.0
        %5164 = vmatmul.mubr.f32.gmra.mxu0 %v2111
        %v5165 = vpop.f32.mrf.mxu0
        %v5166 = vadd.f32 0.0, %v5165
        %v5167 = vpop.f32.mrf.mxu0
        %5168 = vmatprep.mubr.f32.mxu0 0.0
        %5169 = vmatmul.mubr.f32.gmra.mxu0 %v2114
        %v5170 = vpop.f32.mrf.mxu0
        %v5171 = vadd.f32 0.0, %v5170
        %v5172 = vpop.f32.mrf.mxu0
        %5173 = vmatprep.mubr.f32.mxu0 0.0
        %5174 = vmatmul.mubr.f32.gmra.mxu0 %v2117
        %v5175 = vpop.f32.mrf.mxu0
        %v5176 = vadd.f32 0.0, %v5175
        %v5177 = vpop.f32.mrf.mxu0
        %5178 = vdwg.mxu0
        %v5179 = vadd.f32 %v5018, %v5101
        %v5180 = vadd.f32 %v5019, %v5106
        %v5181 = vadd.f32 %v5020, %v5111
        %v5182 = vadd.f32 %v5021, %v5116
        %v5183 = vadd.f32 %v5022, %v5121
        %v5184 = vadd.f32 %v5023, %v5126
        %v5185 = vadd.f32 %v5024, %v5131
        %v5186 = vadd.f32 %v5025, %v5136
        %v5187 = vadd.f32 %v5026, %v5141
        %v5188 = vadd.f32 %v5027, %v5146
        %v5189 = vadd.f32 %v5028, %v5151
        %v5190 = vadd.f32 %v5029, %v5156
        %v5191 = vadd.f32 %v5030, %v5161
        %v5192 = vadd.f32 %v5031, %v5166
        %v5193 = vadd.f32 %v5032, %v5171
        %v5194 = vadd.f32 %v5033, %v5176
        %v5195 = vtanh.pop %v5179
        %v5196 = vtanh.pop %v5180
        %v5197 = vtanh.pop %v5181
        %v5198 = vtanh.pop %v5182
        %v5199 = vtanh.pop %v5183
        %v5200 = vtanh.pop %v5184
        %v5201 = vtanh.pop %v5185
        %v5202 = vtanh.pop %v5186
        %v5203 = vtanh.pop %v5187
        %v5204 = vtanh.pop %v5188
        %v5205 = vtanh.pop %v5189
        %v5206 = vtanh.pop %v5190
        %v5207 = vtanh.pop %v5191
        %v5208 = vtanh.pop %v5192
        %v5209 = vtanh.pop %v5193
        %v5210 = vtanh.pop %v5194
        %v5211 = vmul.f32 %v5195, 0.5
        %v5212 = vmul.f32 %v5196, 0.5
        %v5213 = vmul.f32 %v5197, 0.5
        %v5214 = vmul.f32 %v5198, 0.5
        %v5215 = vadd.f32 %v5211, 0.5
        %v5216 = vadd.f32 %v5212, 0.5
        %v5217 = vadd.f32 %v5213, 0.5
        %v5218 = vadd.f32 %v5214, 0.5
        %v5219 = vmul.f32 %v5199, 0.5
        %v5220 = vmul.f32 %v5200, 0.5
        %v5221 = vmul.f32 %v5201, 0.5
        %v5222 = vmul.f32 %v5202, 0.5
        %v5223 = vadd.f32 %v5219, 0.5
        %v5224 = vadd.f32 %v5220, 0.5
        %v5225 = vadd.f32 %v5221, 0.5
        %v5226 = vadd.f32 %v5222, 0.5
        %v5227 = vmul.f32 %v5207, 0.5
        %v5228 = vmul.f32 %v5208, 0.5
        %v5229 = vmul.f32 %v5209, 0.5
        %v5230 = vmul.f32 %v5210, 0.5
        %v5231 = vadd.f32 %v5227, 0.5
        %v5232 = vadd.f32 %v5228, 0.5
        %v5233 = vadd.f32 %v5229, 0.5
        %v5234 = vadd.f32 %v5230, 0.5
        %v5235 = vmul.f32 %v5223, %v5000
        %v5236 = vmul.f32 %v5224, %v5001
        %v5237 = vmul.f32 %v5225, %v5002
        %v5238 = vmul.f32 %v5226, %v5003
        %v5239 = vmul.f32 %v5215, %v5203
        %v5240 = vmul.f32 %v5216, %v5204
        %v5241 = vmul.f32 %v5217, %v5205
        %v5242 = vmul.f32 %v5218, %v5206
        %v5243 = vadd.f32 %v5235, %v5239
        %v5244 = vadd.f32 %v5236, %v5240
        %v5245 = vadd.f32 %v5237, %v5241
        %v5246 = vadd.f32 %v5238, %v5242
        %v5247 = vtanh.pop %v5243
        %v5248 = vtanh.pop %v5244
        %v5249 = vtanh.pop %v5245
        %v5250 = vtanh.pop %v5246
        %v5251 = vmul.f32 %v5231, %v5247
        %v5252 = vmul.f32 %v5232, %v5248
        %v5253 = vmul.f32 %v5233, %v5249
        %v5254 = vmul.f32 %v5234, %v5250
        %s5255 = scalar_lea.vmem [#allocation3], 384
        %5256 = vst [vmem:[%s5255] sm:$0xff] %v5251
        %5257 = vst [vmem:[%s5255 + $0x8] sm:$0xff] %v5252
        %5258 = vst [vmem:[%s5255 + $0x10] sm:$0xff] %v5253
        %5259 = vst [vmem:[%s5255 + $0x18] sm:$0xff] %v5254
        %s5260 = scalar_lea.vmem [#allocation2], 104
        %v5261 = vld [vmem:[%s5260] sm:$0xff]
        %v5262 = vld [vmem:[%s5260 + $0x80] sm:$0xff]
        %v5263 = vld [vmem:[%s5260 + $0x100] sm:$0xff]
        %v5264 = vld [vmem:[%s5260 + $0x180] sm:$0xff]
        %v5265 = vld [vmem:[%s5260 + $0x200] sm:$0xff]
        %v5266 = vld [vmem:[%s5260 + $0x280] sm:$0xff]
        %v5267 = vld [vmem:[%s5260 + $0x300] sm:$0xff]
        %v5268 = vld [vmem:[%s5260 + $0x380] sm:$0xff]
        %v5269 = vld [vmem:[%s5260 + $0x400] sm:$0xff]
        %v5270 = vld [vmem:[%s5260 + $0x480] sm:$0xff]
        %v5271 = vld [vmem:[%s5260 + $0x500] sm:$0xff]
        %v5272 = vld [vmem:[%s5260 + $0x580] sm:$0xff]
        %v5273 = vld [vmem:[%s5260 + $0x600] sm:$0xff]
        %v5274 = vld [vmem:[%s5260 + $0x680] sm:$0xff]
        %v5275 = vld [vmem:[%s5260 + $0x700] sm:$0xff]
        %v5276 = vld [vmem:[%s5260 + $0x780] sm:$0xff]
        %5277 = vmatprep.subr.mxu0 0.0
        %5278 = vmatpush1.msra.mxu0 0.0
        %5279 = vmatprep.subr.mxu0 0.0
        %5280 = vmatpush1.msra.mxu0 0.0
        %5281 = vmatprep.subr.mxu0 0.0
        %5282 = vmatpush1.msra.mxu0 0.0
        %5283 = vmatprep.subr.mxu0 0.0
        %5284 = vmatpush1.msra.mxu0 0.0
        %5285 = vmatprep.subr.mxu0 0.0
        %5286 = vmatpush1.msra.mxu0 0.0
        %5287 = vmatprep.subr.mxu0 0.0
        %5288 = vmatpush1.msra.mxu0 0.0
        %5289 = vmatprep.subr.mxu0 0.0
        %5290 = vmatpush1.msra.mxu0 0.0
        %5291 = vmatprep.subr.mxu0 0.0
        %5292 = vmatpush1.msra.mxu0 0.0
        %5293 = vmatprep.subr.mxu0 0.0
        %5294 = vmatpush1.msra.mxu0 0.0
        %5295 = vmatprep.subr.mxu0 0.0
        %5296 = vmatpush1.msra.mxu0 0.0
        %5297 = vmatprep.subr.mxu0 0.0
        %5298 = vmatpush1.msra.mxu0 0.0
        %5299 = vmatprep.subr.mxu0 0.0
        %5300 = vmatpush1.msra.mxu0 0.0
        %5301 = vmatprep.subr.mxu0 0.0
        %5302 = vmatpush1.msra.mxu0 %v5254
        %5303 = vmatprep.subr.mxu0 0.0
        %5304 = vmatpush1.msra.mxu0 %v5253
        %5305 = vmatprep.subr.mxu0 0.0
        %5306 = vmatpush1.msra.mxu0 %v5252
        %5307 = vmatprep.subr.mxu0 0.0
        %5308 = vmatpush1.msra.mxu0 %v5251
        %5309 = vmatprep.subr.mxu0 0.0
        %5310 = vmatpush2.msra.mxu0 0.0
        %5311 = vmatprep.subr.mxu0 0.0
        %5312 = vmatpush2.msra.mxu0 0.0
        %5313 = vmatprep.subr.mxu0 0.0
        %5314 = vmatpush2.msra.mxu0 0.0
        %5315 = vmatprep.subr.mxu0 0.0
        %5316 = vmatpush2.msra.mxu0 0.0
        %5317 = vmatprep.subr.mxu0 0.0
        %5318 = vmatpush2.msra.mxu0 0.0
        %5319 = vmatprep.subr.mxu0 0.0
        %5320 = vmatpush2.msra.mxu0 0.0
        %5321 = vmatprep.subr.mxu0 0.0
        %5322 = vmatpush2.msra.mxu0 0.0
        %5323 = vmatprep.subr.mxu0 0.0
        %5324 = vmatpush2.msra.mxu0 0.0
        %5325 = vmatprep.subr.mxu0 0.0
        %5326 = vmatpush2.msra.mxu0 0.0
        %5327 = vmatprep.subr.mxu0 0.0
        %5328 = vmatpush2.msra.mxu0 0.0
        %5329 = vmatprep.subr.mxu0 0.0
        %5330 = vmatpush2.msra.mxu0 0.0
        %5331 = vmatprep.subr.mxu0 0.0
        %5332 = vmatpush2.msra.mxu0 0.0
        %5333 = vmatprep.subr.mxu0 0.0
        %5334 = vmatpush2.msra.mxu0 0.0
        %5335 = vmatprep.subr.mxu0 0.0
        %5336 = vmatpush2.msra.mxu0 0.0
        %5337 = vmatprep.subr.mxu0 0.0
        %5338 = vmatpush2.msra.mxu0 0.0
        %5339 = vmatprep.subr.mxu0 0.0
        %5340 = vmatpush2.msra.mxu0 0.0
        %5341 = vmatprep.mubr.f32.mxu0 0.0
        %5342 = vmatmul.mubr.f32.gmra.mxu0 %v2072
        %v5343 = vpop.f32.mrf.mxu0
        %v5344 = vadd.f32 0.0, %v5343
        %v5345 = vpop.f32.mrf.mxu0
        %5346 = vmatprep.mubr.f32.mxu0 0.0
        %5347 = vmatmul.mubr.f32.gmra.mxu0 %v2075
        %v5348 = vpop.f32.mrf.mxu0
        %v5349 = vadd.f32 0.0, %v5348
        %v5350 = vpop.f32.mrf.mxu0
        %5351 = vmatprep.mubr.f32.mxu0 0.0
        %5352 = vmatmul.mubr.f32.gmra.mxu0 %v2078
        %v5353 = vpop.f32.mrf.mxu0
        %v5354 = vadd.f32 0.0, %v5353
        %v5355 = vpop.f32.mrf.mxu0
        %5356 = vmatprep.mubr.f32.mxu0 0.0
        %5357 = vmatmul.mubr.f32.gmra.mxu0 %v2081
        %v5358 = vpop.f32.mrf.mxu0
        %v5359 = vadd.f32 0.0, %v5358
        %v5360 = vpop.f32.mrf.mxu0
        %5361 = vmatprep.mubr.f32.mxu0 0.0
        %5362 = vmatmul.mubr.f32.gmra.mxu0 %v2084
        %v5363 = vpop.f32.mrf.mxu0
        %v5364 = vadd.f32 0.0, %v5363
        %v5365 = vpop.f32.mrf.mxu0
        %5366 = vmatprep.mubr.f32.mxu0 0.0
        %5367 = vmatmul.mubr.f32.gmra.mxu0 %v2087
        %v5368 = vpop.f32.mrf.mxu0
        %v5369 = vadd.f32 0.0, %v5368
        %v5370 = vpop.f32.mrf.mxu0
        %5371 = vmatprep.mubr.f32.mxu0 0.0
        %5372 = vmatmul.mubr.f32.gmra.mxu0 %v2090
        %v5373 = vpop.f32.mrf.mxu0
        %v5374 = vadd.f32 0.0, %v5373
        %v5375 = vpop.f32.mrf.mxu0
        %5376 = vmatprep.mubr.f32.mxu0 0.0
        %5377 = vmatmul.mubr.f32.gmra.mxu0 %v2093
        %v5378 = vpop.f32.mrf.mxu0
        %v5379 = vadd.f32 0.0, %v5378
        %v5380 = vpop.f32.mrf.mxu0
        %5381 = vmatprep.mubr.f32.mxu0 0.0
        %5382 = vmatmul.mubr.f32.gmra.mxu0 %v2096
        %v5383 = vpop.f32.mrf.mxu0
        %v5384 = vadd.f32 0.0, %v5383
        %v5385 = vpop.f32.mrf.mxu0
        %5386 = vmatprep.mubr.f32.mxu0 0.0
        %5387 = vmatmul.mubr.f32.gmra.mxu0 %v2099
        %v5388 = vpop.f32.mrf.mxu0
        %v5389 = vadd.f32 0.0, %v5388
        %v5390 = vpop.f32.mrf.mxu0
        %5391 = vmatprep.mubr.f32.mxu0 0.0
        %5392 = vmatmul.mubr.f32.gmra.mxu0 %v2102
        %v5393 = vpop.f32.mrf.mxu0
        %v5394 = vadd.f32 0.0, %v5393
        %v5395 = vpop.f32.mrf.mxu0
        %5396 = vmatprep.mubr.f32.mxu0 0.0
        %5397 = vmatmul.mubr.f32.gmra.mxu0 %v2105
        %v5398 = vpop.f32.mrf.mxu0
        %v5399 = vadd.f32 0.0, %v5398
        %v5400 = vpop.f32.mrf.mxu0
        %5401 = vmatprep.mubr.f32.mxu0 0.0
        %5402 = vmatmul.mubr.f32.gmra.mxu0 %v2108
        %v5403 = vpop.f32.mrf.mxu0
        %v5404 = vadd.f32 0.0, %v5403
        %v5405 = vpop.f32.mrf.mxu0
        %5406 = vmatprep.mubr.f32.mxu0 0.0
        %5407 = vmatmul.mubr.f32.gmra.mxu0 %v2111
        %v5408 = vpop.f32.mrf.mxu0
        %v5409 = vadd.f32 0.0, %v5408
        %v5410 = vpop.f32.mrf.mxu0
        %5411 = vmatprep.mubr.f32.mxu0 0.0
        %5412 = vmatmul.mubr.f32.gmra.mxu0 %v2114
        %v5413 = vpop.f32.mrf.mxu0
        %v5414 = vadd.f32 0.0, %v5413
        %v5415 = vpop.f32.mrf.mxu0
        %5416 = vmatprep.mubr.f32.mxu0 0.0
        %5417 = vmatmul.mubr.f32.gmra.mxu0 %v2117
        %v5418 = vpop.f32.mrf.mxu0
        %v5419 = vadd.f32 0.0, %v5418
        %v5420 = vpop.f32.mrf.mxu0
        %5421 = vdwg.mxu0
        %v5422 = vadd.f32 %v5261, %v5344
        %v5423 = vadd.f32 %v5262, %v5349
        %v5424 = vadd.f32 %v5263, %v5354
        %v5425 = vadd.f32 %v5264, %v5359
        %v5426 = vadd.f32 %v5265, %v5364
        %v5427 = vadd.f32 %v5266, %v5369
        %v5428 = vadd.f32 %v5267, %v5374
        %v5429 = vadd.f32 %v5268, %v5379
        %v5430 = vadd.f32 %v5269, %v5384
        %v5431 = vadd.f32 %v5270, %v5389
        %v5432 = vadd.f32 %v5271, %v5394
        %v5433 = vadd.f32 %v5272, %v5399
        %v5434 = vadd.f32 %v5273, %v5404
        %v5435 = vadd.f32 %v5274, %v5409
        %v5436 = vadd.f32 %v5275, %v5414
        %v5437 = vadd.f32 %v5276, %v5419
        %v5438 = vtanh.pop %v5422
        %v5439 = vtanh.pop %v5423
        %v5440 = vtanh.pop %v5424
        %v5441 = vtanh.pop %v5425
        %v5442 = vtanh.pop %v5426
        %v5443 = vtanh.pop %v5427
        %v5444 = vtanh.pop %v5428
        %v5445 = vtanh.pop %v5429
        %v5446 = vtanh.pop %v5430
        %v5447 = vtanh.pop %v5431
        %v5448 = vtanh.pop %v5432
        %v5449 = vtanh.pop %v5433
        %v5450 = vtanh.pop %v5434
        %v5451 = vtanh.pop %v5435
        %v5452 = vtanh.pop %v5436
        %v5453 = vtanh.pop %v5437
        %v5454 = vmul.f32 %v5438, 0.5
        %v5455 = vmul.f32 %v5439, 0.5
        %v5456 = vmul.f32 %v5440, 0.5
        %v5457 = vmul.f32 %v5441, 0.5
        %v5458 = vadd.f32 %v5454, 0.5
        %v5459 = vadd.f32 %v5455, 0.5
        %v5460 = vadd.f32 %v5456, 0.5
        %v5461 = vadd.f32 %v5457, 0.5
        %v5462 = vmul.f32 %v5442, 0.5
        %v5463 = vmul.f32 %v5443, 0.5
        %v5464 = vmul.f32 %v5444, 0.5
        %v5465 = vmul.f32 %v5445, 0.5
        %v5466 = vadd.f32 %v5462, 0.5
        %v5467 = vadd.f32 %v5463, 0.5
        %v5468 = vadd.f32 %v5464, 0.5
        %v5469 = vadd.f32 %v5465, 0.5
        %v5470 = vmul.f32 %v5450, 0.5
        %v5471 = vmul.f32 %v5451, 0.5
        %v5472 = vmul.f32 %v5452, 0.5
        %v5473 = vmul.f32 %v5453, 0.5
        %v5474 = vadd.f32 %v5470, 0.5
        %v5475 = vadd.f32 %v5471, 0.5
        %v5476 = vadd.f32 %v5472, 0.5
        %v5477 = vadd.f32 %v5473, 0.5
        %v5478 = vmul.f32 %v5466, %v5243
        %v5479 = vmul.f32 %v5467, %v5244
        %v5480 = vmul.f32 %v5468, %v5245
        %v5481 = vmul.f32 %v5469, %v5246
        %v5482 = vmul.f32 %v5458, %v5446
        %v5483 = vmul.f32 %v5459, %v5447
        %v5484 = vmul.f32 %v5460, %v5448
        %v5485 = vmul.f32 %v5461, %v5449
        %v5486 = vadd.f32 %v5478, %v5482
        %v5487 = vadd.f32 %v5479, %v5483
        %v5488 = vadd.f32 %v5480, %v5484
        %v5489 = vadd.f32 %v5481, %v5485
        %v5490 = vtanh.pop %v5486
        %v5491 = vtanh.pop %v5487
        %v5492 = vtanh.pop %v5488
        %v5493 = vtanh.pop %v5489
        %v5494 = vmul.f32 %v5474, %v5490
        %v5495 = vmul.f32 %v5475, %v5491
        %v5496 = vmul.f32 %v5476, %v5492
        %v5497 = vmul.f32 %v5477, %v5493
        %s5498 = scalar_lea.vmem [#allocation3], 416
        %5499 = vst [vmem:[%s5498] sm:$0xff] %v5494
        %5500 = vst [vmem:[%s5498 + $0x8] sm:$0xff] %v5495
        %5501 = vst [vmem:[%s5498 + $0x10] sm:$0xff] %v5496
        %5502 = vst [vmem:[%s5498 + $0x18] sm:$0xff] %v5497
        %s5503 = scalar_lea.vmem [#allocation2], 112
        %v5504 = vld [vmem:[%s5503] sm:$0xff]
        %v5505 = vld [vmem:[%s5503 + $0x80] sm:$0xff]
        %v5506 = vld [vmem:[%s5503 + $0x100] sm:$0xff]
        %v5507 = vld [vmem:[%s5503 + $0x180] sm:$0xff]
        %v5508 = vld [vmem:[%s5503 + $0x200] sm:$0xff]
        %v5509 = vld [vmem:[%s5503 + $0x280] sm:$0xff]
        %v5510 = vld [vmem:[%s5503 + $0x300] sm:$0xff]
        %v5511 = vld [vmem:[%s5503 + $0x380] sm:$0xff]
        %v5512 = vld [vmem:[%s5503 + $0x400] sm:$0xff]
        %v5513 = vld [vmem:[%s5503 + $0x480] sm:$0xff]
        %v5514 = vld [vmem:[%s5503 + $0x500] sm:$0xff]
        %v5515 = vld [vmem:[%s5503 + $0x580] sm:$0xff]
        %v5516 = vld [vmem:[%s5503 + $0x600] sm:$0xff]
        %v5517 = vld [vmem:[%s5503 + $0x680] sm:$0xff]
        %v5518 = vld [vmem:[%s5503 + $0x700] sm:$0xff]
        %v5519 = vld [vmem:[%s5503 + $0x780] sm:$0xff]
        %5520 = vmatprep.subr.mxu0 0.0
        %5521 = vmatpush1.msra.mxu0 0.0
        %5522 = vmatprep.subr.mxu0 0.0
        %5523 = vmatpush1.msra.mxu0 0.0
        %5524 = vmatprep.subr.mxu0 0.0
        %5525 = vmatpush1.msra.mxu0 0.0
        %5526 = vmatprep.subr.mxu0 0.0
        %5527 = vmatpush1.msra.mxu0 0.0
        %5528 = vmatprep.subr.mxu0 0.0
        %5529 = vmatpush1.msra.mxu0 0.0
        %5530 = vmatprep.subr.mxu0 0.0
        %5531 = vmatpush1.msra.mxu0 0.0
        %5532 = vmatprep.subr.mxu0 0.0
        %5533 = vmatpush1.msra.mxu0 0.0
        %5534 = vmatprep.subr.mxu0 0.0
        %5535 = vmatpush1.msra.mxu0 0.0
        %5536 = vmatprep.subr.mxu0 0.0
        %5537 = vmatpush1.msra.mxu0 0.0
        %5538 = vmatprep.subr.mxu0 0.0
        %5539 = vmatpush1.msra.mxu0 0.0
        %5540 = vmatprep.subr.mxu0 0.0
        %5541 = vmatpush1.msra.mxu0 0.0
        %5542 = vmatprep.subr.mxu0 0.0
        %5543 = vmatpush1.msra.mxu0 0.0
        %5544 = vmatprep.subr.mxu0 0.0
        %5545 = vmatpush1.msra.mxu0 %v5497
        %5546 = vmatprep.subr.mxu0 0.0
        %5547 = vmatpush1.msra.mxu0 %v5496
        %5548 = vmatprep.subr.mxu0 0.0
        %5549 = vmatpush1.msra.mxu0 %v5495
        %5550 = vmatprep.subr.mxu0 0.0
        %5551 = vmatpush1.msra.mxu0 %v5494
        %5552 = vmatprep.subr.mxu0 0.0
        %5553 = vmatpush2.msra.mxu0 0.0
        %5554 = vmatprep.subr.mxu0 0.0
        %5555 = vmatpush2.msra.mxu0 0.0
        %5556 = vmatprep.subr.mxu0 0.0
        %5557 = vmatpush2.msra.mxu0 0.0
        %5558 = vmatprep.subr.mxu0 0.0
        %5559 = vmatpush2.msra.mxu0 0.0
        %5560 = vmatprep.subr.mxu0 0.0
        %5561 = vmatpush2.msra.mxu0 0.0
        %5562 = vmatprep.subr.mxu0 0.0
        %5563 = vmatpush2.msra.mxu0 0.0
        %5564 = vmatprep.subr.mxu0 0.0
        %5565 = vmatpush2.msra.mxu0 0.0
        %5566 = vmatprep.subr.mxu0 0.0
        %5567 = vmatpush2.msra.mxu0 0.0
        %5568 = vmatprep.subr.mxu0 0.0
        %5569 = vmatpush2.msra.mxu0 0.0
        %5570 = vmatprep.subr.mxu0 0.0
        %5571 = vmatpush2.msra.mxu0 0.0
        %5572 = vmatprep.subr.mxu0 0.0
        %5573 = vmatpush2.msra.mxu0 0.0
        %5574 = vmatprep.subr.mxu0 0.0
        %5575 = vmatpush2.msra.mxu0 0.0
        %5576 = vmatprep.subr.mxu0 0.0
        %5577 = vmatpush2.msra.mxu0 0.0
        %5578 = vmatprep.subr.mxu0 0.0
        %5579 = vmatpush2.msra.mxu0 0.0
        %5580 = vmatprep.subr.mxu0 0.0
        %5581 = vmatpush2.msra.mxu0 0.0
        %5582 = vmatprep.subr.mxu0 0.0
        %5583 = vmatpush2.msra.mxu0 0.0
        %5584 = vmatprep.mubr.f32.mxu0 0.0
        %5585 = vmatmul.mubr.f32.gmra.mxu0 %v2072
        %v5586 = vpop.f32.mrf.mxu0
        %v5587 = vadd.f32 0.0, %v5586
        %v5588 = vpop.f32.mrf.mxu0
        %5589 = vmatprep.mubr.f32.mxu0 0.0
        %5590 = vmatmul.mubr.f32.gmra.mxu0 %v2075
        %v5591 = vpop.f32.mrf.mxu0
        %v5592 = vadd.f32 0.0, %v5591
        %v5593 = vpop.f32.mrf.mxu0
        %5594 = vmatprep.mubr.f32.mxu0 0.0
        %5595 = vmatmul.mubr.f32.gmra.mxu0 %v2078
        %v5596 = vpop.f32.mrf.mxu0
        %v5597 = vadd.f32 0.0, %v5596
        %v5598 = vpop.f32.mrf.mxu0
        %5599 = vmatprep.mubr.f32.mxu0 0.0
        %5600 = vmatmul.mubr.f32.gmra.mxu0 %v2081
        %v5601 = vpop.f32.mrf.mxu0
        %v5602 = vadd.f32 0.0, %v5601
        %v5603 = vpop.f32.mrf.mxu0
        %5604 = vmatprep.mubr.f32.mxu0 0.0
        %5605 = vmatmul.mubr.f32.gmra.mxu0 %v2084
        %v5606 = vpop.f32.mrf.mxu0
        %v5607 = vadd.f32 0.0, %v5606
        %v5608 = vpop.f32.mrf.mxu0
        %5609 = vmatprep.mubr.f32.mxu0 0.0
        %5610 = vmatmul.mubr.f32.gmra.mxu0 %v2087
        %v5611 = vpop.f32.mrf.mxu0
        %v5612 = vadd.f32 0.0, %v5611
        %v5613 = vpop.f32.mrf.mxu0
        %5614 = vmatprep.mubr.f32.mxu0 0.0
        %5615 = vmatmul.mubr.f32.gmra.mxu0 %v2090
        %v5616 = vpop.f32.mrf.mxu0
        %v5617 = vadd.f32 0.0, %v5616
        %v5618 = vpop.f32.mrf.mxu0
        %5619 = vmatprep.mubr.f32.mxu0 0.0
        %5620 = vmatmul.mubr.f32.gmra.mxu0 %v2093
        %v5621 = vpop.f32.mrf.mxu0
        %v5622 = vadd.f32 0.0, %v5621
        %v5623 = vpop.f32.mrf.mxu0
        %5624 = vmatprep.mubr.f32.mxu0 0.0
        %5625 = vmatmul.mubr.f32.gmra.mxu0 %v2096
        %v5626 = vpop.f32.mrf.mxu0
        %v5627 = vadd.f32 0.0, %v5626
        %v5628 = vpop.f32.mrf.mxu0
        %5629 = vmatprep.mubr.f32.mxu0 0.0
        %5630 = vmatmul.mubr.f32.gmra.mxu0 %v2099
        %v5631 = vpop.f32.mrf.mxu0
        %v5632 = vadd.f32 0.0, %v5631
        %v5633 = vpop.f32.mrf.mxu0
        %5634 = vmatprep.mubr.f32.mxu0 0.0
        %5635 = vmatmul.mubr.f32.gmra.mxu0 %v2102
        %v5636 = vpop.f32.mrf.mxu0
        %v5637 = vadd.f32 0.0, %v5636
        %v5638 = vpop.f32.mrf.mxu0
        %5639 = vmatprep.mubr.f32.mxu0 0.0
        %5640 = vmatmul.mubr.f32.gmra.mxu0 %v2105
        %v5641 = vpop.f32.mrf.mxu0
        %v5642 = vadd.f32 0.0, %v5641
        %v5643 = vpop.f32.mrf.mxu0
        %5644 = vmatprep.mubr.f32.mxu0 0.0
        %5645 = vmatmul.mubr.f32.gmra.mxu0 %v2108
        %v5646 = vpop.f32.mrf.mxu0
        %v5647 = vadd.f32 0.0, %v5646
        %v5648 = vpop.f32.mrf.mxu0
        %5649 = vmatprep.mubr.f32.mxu0 0.0
        %5650 = vmatmul.mubr.f32.gmra.mxu0 %v2111
        %v5651 = vpop.f32.mrf.mxu0
        %v5652 = vadd.f32 0.0, %v5651
        %v5653 = vpop.f32.mrf.mxu0
        %5654 = vmatprep.mubr.f32.mxu0 0.0
        %5655 = vmatmul.mubr.f32.gmra.mxu0 %v2114
        %v5656 = vpop.f32.mrf.mxu0
        %v5657 = vadd.f32 0.0, %v5656
        %v5658 = vpop.f32.mrf.mxu0
        %5659 = vmatprep.mubr.f32.mxu0 0.0
        %5660 = vmatmul.mubr.f32.gmra.mxu0 %v2117
        %v5661 = vpop.f32.mrf.mxu0
        %v5662 = vadd.f32 0.0, %v5661
        %v5663 = vpop.f32.mrf.mxu0
        %5664 = vdwg.mxu0
        %v5665 = vadd.f32 %v5504, %v5587
        %v5666 = vadd.f32 %v5505, %v5592
        %v5667 = vadd.f32 %v5506, %v5597
        %v5668 = vadd.f32 %v5507, %v5602
        %v5669 = vadd.f32 %v5508, %v5607
        %v5670 = vadd.f32 %v5509, %v5612
        %v5671 = vadd.f32 %v5510, %v5617
        %v5672 = vadd.f32 %v5511, %v5622
        %v5673 = vadd.f32 %v5512, %v5627
        %v5674 = vadd.f32 %v5513, %v5632
        %v5675 = vadd.f32 %v5514, %v5637
        %v5676 = vadd.f32 %v5515, %v5642
        %v5677 = vadd.f32 %v5516, %v5647
        %v5678 = vadd.f32 %v5517, %v5652
        %v5679 = vadd.f32 %v5518, %v5657
        %v5680 = vadd.f32 %v5519, %v5662
        %v5681 = vtanh.pop %v5665
        %v5682 = vtanh.pop %v5666
        %v5683 = vtanh.pop %v5667
        %v5684 = vtanh.pop %v5668
        %v5685 = vtanh.pop %v5669
        %v5686 = vtanh.pop %v5670
        %v5687 = vtanh.pop %v5671
        %v5688 = vtanh.pop %v5672
        %v5689 = vtanh.pop %v5673
        %v5690 = vtanh.pop %v5674
        %v5691 = vtanh.pop %v5675
        %v5692 = vtanh.pop %v5676
        %v5693 = vtanh.pop %v5677
        %v5694 = vtanh.pop %v5678
        %v5695 = vtanh.pop %v5679
        %v5696 = vtanh.pop %v5680
        %v5697 = vmul.f32 %v5681, 0.5
        %v5698 = vmul.f32 %v5682, 0.5
        %v5699 = vmul.f32 %v5683, 0.5
        %v5700 = vmul.f32 %v5684, 0.5
        %v5701 = vadd.f32 %v5697, 0.5
        %v5702 = vadd.f32 %v5698, 0.5
        %v5703 = vadd.f32 %v5699, 0.5
        %v5704 = vadd.f32 %v5700, 0.5
        %v5705 = vmul.f32 %v5685, 0.5
        %v5706 = vmul.f32 %v5686, 0.5
        %v5707 = vmul.f32 %v5687, 0.5
        %v5708 = vmul.f32 %v5688, 0.5
        %v5709 = vadd.f32 %v5705, 0.5
        %v5710 = vadd.f32 %v5706, 0.5
        %v5711 = vadd.f32 %v5707, 0.5
        %v5712 = vadd.f32 %v5708, 0.5
        %v5713 = vmul.f32 %v5693, 0.5
        %v5714 = vmul.f32 %v5694, 0.5
        %v5715 = vmul.f32 %v5695, 0.5
        %v5716 = vmul.f32 %v5696, 0.5
        %v5717 = vadd.f32 %v5713, 0.5
        %v5718 = vadd.f32 %v5714, 0.5
        %v5719 = vadd.f32 %v5715, 0.5
        %v5720 = vadd.f32 %v5716, 0.5
        %v5721 = vmul.f32 %v5709, %v5486
        %v5722 = vmul.f32 %v5710, %v5487
        %v5723 = vmul.f32 %v5711, %v5488
        %v5724 = vmul.f32 %v5712, %v5489
        %v5725 = vmul.f32 %v5701, %v5689
        %v5726 = vmul.f32 %v5702, %v5690
        %v5727 = vmul.f32 %v5703, %v5691
        %v5728 = vmul.f32 %v5704, %v5692
        %v5729 = vadd.f32 %v5721, %v5725
        %v5730 = vadd.f32 %v5722, %v5726
        %v5731 = vadd.f32 %v5723, %v5727
        %v5732 = vadd.f32 %v5724, %v5728
        %v5733 = vtanh.pop %v5729
        %v5734 = vtanh.pop %v5730
        %v5735 = vtanh.pop %v5731
        %v5736 = vtanh.pop %v5732
        %v5737 = vmul.f32 %v5717, %v5733
        %v5738 = vmul.f32 %v5718, %v5734
        %v5739 = vmul.f32 %v5719, %v5735
        %v5740 = vmul.f32 %v5720, %v5736
        %s5741 = scalar_lea.vmem [#allocation3], 448
        %5742 = vst [vmem:[%s5741] sm:$0xff] %v5737
        %5743 = vst [vmem:[%s5741 + $0x8] sm:$0xff] %v5738
        %5744 = vst [vmem:[%s5741 + $0x10] sm:$0xff] %v5739
        %5745 = vst [vmem:[%s5741 + $0x18] sm:$0xff] %v5740
        %s5746 = scalar_lea.vmem [#allocation2], 120
        %v5747 = vld [vmem:[%s5746] sm:$0xff]
        %v5748 = vld [vmem:[%s5746 + $0x80] sm:$0xff]
        %v5749 = vld [vmem:[%s5746 + $0x100] sm:$0xff]
        %v5750 = vld [vmem:[%s5746 + $0x180] sm:$0xff]
        %v5751 = vld [vmem:[%s5746 + $0x200] sm:$0xff]
        %v5752 = vld [vmem:[%s5746 + $0x280] sm:$0xff]
        %v5753 = vld [vmem:[%s5746 + $0x300] sm:$0xff]
        %v5754 = vld [vmem:[%s5746 + $0x380] sm:$0xff]
        %v5755 = vld [vmem:[%s5746 + $0x400] sm:$0xff]
        %v5756 = vld [vmem:[%s5746 + $0x480] sm:$0xff]
        %v5757 = vld [vmem:[%s5746 + $0x500] sm:$0xff]
        %v5758 = vld [vmem:[%s5746 + $0x580] sm:$0xff]
        %v5759 = vld [vmem:[%s5746 + $0x600] sm:$0xff]
        %v5760 = vld [vmem:[%s5746 + $0x680] sm:$0xff]
        %v5761 = vld [vmem:[%s5746 + $0x700] sm:$0xff]
        %v5762 = vld [vmem:[%s5746 + $0x780] sm:$0xff]
        %5763 = vmatprep.subr.mxu0 0.0
        %5764 = vmatpush1.msra.mxu0 0.0
        %5765 = vmatprep.subr.mxu0 0.0
        %5766 = vmatpush1.msra.mxu0 0.0
        %5767 = vmatprep.subr.mxu0 0.0
        %5768 = vmatpush1.msra.mxu0 0.0
        %5769 = vmatprep.subr.mxu0 0.0
        %5770 = vmatpush1.msra.mxu0 0.0
        %5771 = vmatprep.subr.mxu0 0.0
        %5772 = vmatpush1.msra.mxu0 0.0
        %5773 = vmatprep.subr.mxu0 0.0
        %5774 = vmatpush1.msra.mxu0 0.0
        %5775 = vmatprep.subr.mxu0 0.0
        %5776 = vmatpush1.msra.mxu0 0.0
        %5777 = vmatprep.subr.mxu0 0.0
        %5778 = vmatpush1.msra.mxu0 0.0
        %5779 = vmatprep.subr.mxu0 0.0
        %5780 = vmatpush1.msra.mxu0 0.0
        %5781 = vmatprep.subr.mxu0 0.0
        %5782 = vmatpush1.msra.mxu0 0.0
        %5783 = vmatprep.subr.mxu0 0.0
        %5784 = vmatpush1.msra.mxu0 0.0
        %5785 = vmatprep.subr.mxu0 0.0
        %5786 = vmatpush1.msra.mxu0 0.0
        %5787 = vmatprep.subr.mxu0 0.0
        %5788 = vmatpush1.msra.mxu0 %v5740
        %5789 = vmatprep.subr.mxu0 0.0
        %5790 = vmatpush1.msra.mxu0 %v5739
        %5791 = vmatprep.subr.mxu0 0.0
        %5792 = vmatpush1.msra.mxu0 %v5738
        %5793 = vmatprep.subr.mxu0 0.0
        %5794 = vmatpush1.msra.mxu0 %v5737
        %5795 = vmatprep.subr.mxu0 0.0
        %5796 = vmatpush2.msra.mxu0 0.0
        %5797 = vmatprep.subr.mxu0 0.0
        %5798 = vmatpush2.msra.mxu0 0.0
        %5799 = vmatprep.subr.mxu0 0.0
        %5800 = vmatpush2.msra.mxu0 0.0
        %5801 = vmatprep.subr.mxu0 0.0
        %5802 = vmatpush2.msra.mxu0 0.0
        %5803 = vmatprep.subr.mxu0 0.0
        %5804 = vmatpush2.msra.mxu0 0.0
        %5805 = vmatprep.subr.mxu0 0.0
        %5806 = vmatpush2.msra.mxu0 0.0
        %5807 = vmatprep.subr.mxu0 0.0
        %5808 = vmatpush2.msra.mxu0 0.0
        %5809 = vmatprep.subr.mxu0 0.0
        %5810 = vmatpush2.msra.mxu0 0.0
        %5811 = vmatprep.subr.mxu0 0.0
        %5812 = vmatpush2.msra.mxu0 0.0
        %5813 = vmatprep.subr.mxu0 0.0
        %5814 = vmatpush2.msra.mxu0 0.0
        %5815 = vmatprep.subr.mxu0 0.0
        %5816 = vmatpush2.msra.mxu0 0.0
        %5817 = vmatprep.subr.mxu0 0.0
        %5818 = vmatpush2.msra.mxu0 0.0
        %5819 = vmatprep.subr.mxu0 0.0
        %5820 = vmatpush2.msra.mxu0 0.0
        %5821 = vmatprep.subr.mxu0 0.0
        %5822 = vmatpush2.msra.mxu0 0.0
        %5823 = vmatprep.subr.mxu0 0.0
        %5824 = vmatpush2.msra.mxu0 0.0
        %5825 = vmatprep.subr.mxu0 0.0
        %5826 = vmatpush2.msra.mxu0 0.0
        %5827 = vmatprep.mubr.f32.mxu0 0.0
        %5828 = vmatmul.mubr.f32.gmra.mxu0 %v2072
        %v5829 = vpop.f32.mrf.mxu0
        %v5830 = vadd.f32 0.0, %v5829
        %v5831 = vpop.f32.mrf.mxu0
        %5832 = vmatprep.mubr.f32.mxu0 0.0
        %5833 = vmatmul.mubr.f32.gmra.mxu0 %v2075
        %v5834 = vpop.f32.mrf.mxu0
        %v5835 = vadd.f32 0.0, %v5834
        %v5836 = vpop.f32.mrf.mxu0
        %5837 = vmatprep.mubr.f32.mxu0 0.0
        %5838 = vmatmul.mubr.f32.gmra.mxu0 %v2078
        %v5839 = vpop.f32.mrf.mxu0
        %v5840 = vadd.f32 0.0, %v5839
        %v5841 = vpop.f32.mrf.mxu0
        %5842 = vmatprep.mubr.f32.mxu0 0.0
        %5843 = vmatmul.mubr.f32.gmra.mxu0 %v2081
        %v5844 = vpop.f32.mrf.mxu0
        %v5845 = vadd.f32 0.0, %v5844
        %v5846 = vpop.f32.mrf.mxu0
        %5847 = vmatprep.mubr.f32.mxu0 0.0
        %5848 = vmatmul.mubr.f32.gmra.mxu0 %v2084
        %v5849 = vpop.f32.mrf.mxu0
        %v5850 = vadd.f32 0.0, %v5849
        %v5851 = vpop.f32.mrf.mxu0
        %5852 = vmatprep.mubr.f32.mxu0 0.0
        %5853 = vmatmul.mubr.f32.gmra.mxu0 %v2087
        %v5854 = vpop.f32.mrf.mxu0
        %v5855 = vadd.f32 0.0, %v5854
        %v5856 = vpop.f32.mrf.mxu0
        %5857 = vmatprep.mubr.f32.mxu0 0.0
        %5858 = vmatmul.mubr.f32.gmra.mxu0 %v2090
        %v5859 = vpop.f32.mrf.mxu0
        %v5860 = vadd.f32 0.0, %v5859
        %v5861 = vpop.f32.mrf.mxu0
        %5862 = vmatprep.mubr.f32.mxu0 0.0
        %5863 = vmatmul.mubr.f32.gmra.mxu0 %v2093
        %v5864 = vpop.f32.mrf.mxu0
        %v5865 = vadd.f32 0.0, %v5864
        %v5866 = vpop.f32.mrf.mxu0
        %5867 = vmatprep.mubr.f32.mxu0 0.0
        %5868 = vmatmul.mubr.f32.gmra.mxu0 %v2096
        %v5869 = vpop.f32.mrf.mxu0
        %v5870 = vadd.f32 0.0, %v5869
        %v5871 = vpop.f32.mrf.mxu0
        %5872 = vmatprep.mubr.f32.mxu0 0.0
        %5873 = vmatmul.mubr.f32.gmra.mxu0 %v2099
        %v5874 = vpop.f32.mrf.mxu0
        %v5875 = vadd.f32 0.0, %v5874
        %v5876 = vpop.f32.mrf.mxu0
        %5877 = vmatprep.mubr.f32.mxu0 0.0
        %5878 = vmatmul.mubr.f32.gmra.mxu0 %v2102
        %v5879 = vpop.f32.mrf.mxu0
        %v5880 = vadd.f32 0.0, %v5879
        %v5881 = vpop.f32.mrf.mxu0
        %5882 = vmatprep.mubr.f32.mxu0 0.0
        %5883 = vmatmul.mubr.f32.gmra.mxu0 %v2105
        %v5884 = vpop.f32.mrf.mxu0
        %v5885 = vadd.f32 0.0, %v5884
        %v5886 = vpop.f32.mrf.mxu0
        %5887 = vmatprep.mubr.f32.mxu0 0.0
        %5888 = vmatmul.mubr.f32.gmra.mxu0 %v2108
        %v5889 = vpop.f32.mrf.mxu0
        %v5890 = vadd.f32 0.0, %v5889
        %v5891 = vpop.f32.mrf.mxu0
        %5892 = vmatprep.mubr.f32.mxu0 0.0
        %5893 = vmatmul.mubr.f32.gmra.mxu0 %v2111
        %v5894 = vpop.f32.mrf.mxu0
        %v5895 = vadd.f32 0.0, %v5894
        %v5896 = vpop.f32.mrf.mxu0
        %5897 = vmatprep.mubr.f32.mxu0 0.0
        %5898 = vmatmul.mubr.f32.gmra.mxu0 %v2114
        %v5899 = vpop.f32.mrf.mxu0
        %v5900 = vadd.f32 0.0, %v5899
        %v5901 = vpop.f32.mrf.mxu0
        %5902 = vmatprep.mubr.f32.mxu0 0.0
        %5903 = vmatmul.mubr.f32.gmra.mxu0 %v2117
        %v5904 = vpop.f32.mrf.mxu0
        %v5905 = vadd.f32 0.0, %v5904
        %v5906 = vpop.f32.mrf.mxu0
        %5907 = vdwg.mxu0
        %v5908 = vadd.f32 %v5747, %v5830
        %v5909 = vadd.f32 %v5748, %v5835
        %v5910 = vadd.f32 %v5749, %v5840
        %v5911 = vadd.f32 %v5750, %v5845
        %v5912 = vadd.f32 %v5751, %v5850
        %v5913 = vadd.f32 %v5752, %v5855
        %v5914 = vadd.f32 %v5753, %v5860
        %v5915 = vadd.f32 %v5754, %v5865
        %v5916 = vadd.f32 %v5755, %v5870
        %v5917 = vadd.f32 %v5756, %v5875
        %v5918 = vadd.f32 %v5757, %v5880
        %v5919 = vadd.f32 %v5758, %v5885
        %v5920 = vadd.f32 %v5759, %v5890
        %v5921 = vadd.f32 %v5760, %v5895
        %v5922 = vadd.f32 %v5761, %v5900
        %v5923 = vadd.f32 %v5762, %v5905
        %v5924 = vtanh.pop %v5908
        %v5925 = vtanh.pop %v5909
        %v5926 = vtanh.pop %v5910
        %v5927 = vtanh.pop %v5911
        %v5928 = vtanh.pop %v5912
        %v5929 = vtanh.pop %v5913
        %v5930 = vtanh.pop %v5914
        %v5931 = vtanh.pop %v5915
        %v5932 = vtanh.pop %v5916
        %v5933 = vtanh.pop %v5917
        %v5934 = vtanh.pop %v5918
        %v5935 = vtanh.pop %v5919
        %v5936 = vtanh.pop %v5920
        %v5937 = vtanh.pop %v5921
        %v5938 = vtanh.pop %v5922
        %v5939 = vtanh.pop %v5923
        %v5940 = vmul.f32 %v5924, 0.5
        %v5941 = vmul.f32 %v5925, 0.5
        %v5942 = vmul.f32 %v5926, 0.5
        %v5943 = vmul.f32 %v5927, 0.5
        %v5944 = vadd.f32 %v5940, 0.5
        %v5945 = vadd.f32 %v5941, 0.5
        %v5946 = vadd.f32 %v5942, 0.5
        %v5947 = vadd.f32 %v5943, 0.5
        %v5948 = vmul.f32 %v5928, 0.5
        %v5949 = vmul.f32 %v5929, 0.5
        %v5950 = vmul.f32 %v5930, 0.5
        %v5951 = vmul.f32 %v5931, 0.5
        %v5952 = vadd.f32 %v5948, 0.5
        %v5953 = vadd.f32 %v5949, 0.5
        %v5954 = vadd.f32 %v5950, 0.5
        %v5955 = vadd.f32 %v5951, 0.5
        %v5956 = vmul.f32 %v5936, 0.5
        %v5957 = vmul.f32 %v5937, 0.5
        %v5958 = vmul.f32 %v5938, 0.5
        %v5959 = vmul.f32 %v5939, 0.5
        %v5960 = vadd.f32 %v5956, 0.5
        %v5961 = vadd.f32 %v5957, 0.5
        %v5962 = vadd.f32 %v5958, 0.5
        %v5963 = vadd.f32 %v5959, 0.5
        %v5964 = vmul.f32 %v5952, %v5729
        %v5965 = vmul.f32 %v5953, %v5730
        %v5966 = vmul.f32 %v5954, %v5731
        %v5967 = vmul.f32 %v5955, %v5732
        %v5968 = vmul.f32 %v5944, %v5932
        %v5969 = vmul.f32 %v5945, %v5933
        %v5970 = vmul.f32 %v5946, %v5934
        %v5971 = vmul.f32 %v5947, %v5935
        %v5972 = vadd.f32 %v5964, %v5968
        %v5973 = vadd.f32 %v5965, %v5969
        %v5974 = vadd.f32 %v5966, %v5970
        %v5975 = vadd.f32 %v5967, %v5971
        %v5976 = vtanh.pop %v5972
        %v5977 = vtanh.pop %v5973
        %v5978 = vtanh.pop %v5974
        %v5979 = vtanh.pop %v5975
        %v5980 = vmul.f32 %v5960, %v5976
        %v5981 = vmul.f32 %v5961, %v5977
        %v5982 = vmul.f32 %v5962, %v5978
        %v5983 = vmul.f32 %v5963, %v5979
        %s5984 = scalar_lea.vmem [#allocation3], 480
        %5985 = vst [vmem:[%s5984] sm:$0xff] %v5980
        %5986 = vst [vmem:[%s5984 + $0x8] sm:$0xff] %v5981
        %5987 = vst [vmem:[%s5984 + $0x10] sm:$0xff] %v5982
        %5988 = vst [vmem:[%s5984 + $0x18] sm:$0xff] %v5983
        %v5989 = vld [vmem:[%s4] sm:$0xff]
        %v5990 = vld [vmem:[%s4 + $0x8] sm:$0xff]
        %v5991 = vld [vmem:[%s4 + $0x10] sm:$0xff]
        %v5992 = vld [vmem:[%s4 + $0x18] sm:$0xff]
        %v5993 = vld [vmem:[%s4 + $0x20] sm:$0xff]
        %v5994 = vld [vmem:[%s4 + $0x28] sm:$0xff]
        %v5995 = vld [vmem:[%s4 + $0x30] sm:$0xff]
        %v5996 = vld [vmem:[%s4 + $0x38] sm:$0xff]
        %v5997 = vld [vmem:[#allocation3] sm:$0xff]
        %v5998 = vld [vmem:[#allocation3 + $0x8] sm:$0xff]
        %v5999 = vld [vmem:[#allocation3 + $0x10] sm:$0xff]
        %v6000 = vld [vmem:[#allocation3 + $0x18] sm:$0xff]
        %v6001 = vld [vmem:[#allocation3 + $0x20] sm:$0xff]
        %v6002 = vld [vmem:[#allocation3 + $0x28] sm:$0xff]
        %v6003 = vld [vmem:[#allocation3 + $0x30] sm:$0xff]
        %v6004 = vld [vmem:[#allocation3 + $0x38] sm:$0xff]
        %v6005 = vld [vmem:[#allocation3 + $0x40] sm:$0xff]
        %v6006 = vld [vmem:[#allocation3 + $0x48] sm:$0xff]
        %v6007 = vld [vmem:[#allocation3 + $0x50] sm:$0xff]
        %v6008 = vld [vmem:[#allocation3 + $0x58] sm:$0xff]
        %v6009 = vld [vmem:[#allocation3 + $0x60] sm:$0xff]
        %v6010 = vld [vmem:[#allocation3 + $0x68] sm:$0xff]
        %v6011 = vld [vmem:[#allocation3 + $0x70] sm:$0xff]
        %v6012 = vld [vmem:[#allocation3 + $0x78] sm:$0xff]
        %v6013 = vld [vmem:[#allocation3 + $0x80] sm:$0xff]
        %v6014 = vld [vmem:[#allocation3 + $0x88] sm:$0xff]
        %v6015 = vld [vmem:[#allocation3 + $0x90] sm:$0xff]
        %v6016 = vld [vmem:[#allocation3 + $0x98] sm:$0xff]
        %v6017 = vld [vmem:[#allocation3 + $0xa0] sm:$0xff]
        %v6018 = vld [vmem:[#allocation3 + $0xa8] sm:$0xff]
        %v6019 = vld [vmem:[#allocation3 + $0xb0] sm:$0xff]
        %v6020 = vld [vmem:[#allocation3 + $0xb8] sm:$0xff]
        %v6021 = vld [vmem:[#allocation3 + $0xc0] sm:$0xff]
        %v6022 = vld [vmem:[#allocation3 + $0xc8] sm:$0xff]
        %v6023 = vld [vmem:[#allocation3 + $0xd0] sm:$0xff]
        %v6024 = vld [vmem:[#allocation3 + $0xd8] sm:$0xff]
        %v6025 = vld [vmem:[#allocation3 + $0xe0] sm:$0xff]
        %v6026 = vld [vmem:[#allocation3 + $0xe8] sm:$0xff]
        %v6027 = vld [vmem:[#allocation3 + $0xf0] sm:$0xff]
        %v6028 = vld [vmem:[#allocation3 + $0xf8] sm:$0xff]
        %v6029 = vld [vmem:[#allocation3 + $0x100] sm:$0xff]
        %v6030 = vld [vmem:[#allocation3 + $0x108] sm:$0xff]
        %v6031 = vld [vmem:[#allocation3 + $0x110] sm:$0xff]
        %v6032 = vld [vmem:[#allocation3 + $0x118] sm:$0xff]
        %v6033 = vld [vmem:[#allocation3 + $0x120] sm:$0xff]
        %v6034 = vld [vmem:[#allocation3 + $0x128] sm:$0xff]
        %v6035 = vld [vmem:[#allocation3 + $0x130] sm:$0xff]
        %v6036 = vld [vmem:[#allocation3 + $0x138] sm:$0xff]
        %v6037 = vld [vmem:[#allocation3 + $0x140] sm:$0xff]
        %v6038 = vld [vmem:[#allocation3 + $0x148] sm:$0xff]
        %v6039 = vld [vmem:[#allocation3 + $0x150] sm:$0xff]
        %v6040 = vld [vmem:[#allocation3 + $0x158] sm:$0xff]
        %v6041 = vld [vmem:[#allocation3 + $0x160] sm:$0xff]
        %v6042 = vld [vmem:[#allocation3 + $0x168] sm:$0xff]
        %v6043 = vld [vmem:[#allocation3 + $0x170] sm:$0xff]
        %v6044 = vld [vmem:[#allocation3 + $0x178] sm:$0xff]
        %v6045 = vld [vmem:[#allocation3 + $0x180] sm:$0xff]
        %v6046 = vld [vmem:[#allocation3 + $0x188] sm:$0xff]
        %v6047 = vld [vmem:[#allocation3 + $0x190] sm:$0xff]
        %v6048 = vld [vmem:[#allocation3 + $0x198] sm:$0xff]
        %v6049 = vld [vmem:[#allocation3 + $0x1a0] sm:$0xff]
        %v6050 = vld [vmem:[#allocation3 + $0x1a8] sm:$0xff]
        %v6051 = vld [vmem:[#allocation3 + $0x1b0] sm:$0xff]
        %v6052 = vld [vmem:[#allocation3 + $0x1b8] sm:$0xff]
        %v6053 = vld [vmem:[#allocation3 + $0x1c0] sm:$0xff]
        %v6054 = vld [vmem:[#allocation3 + $0x1c8] sm:$0xff]
        %v6055 = vld [vmem:[#allocation3 + $0x1d0] sm:$0xff]
        %v6056 = vld [vmem:[#allocation3 + $0x1d8] sm:$0xff]
        %v6057 = vld [vmem:[#allocation3 + $0x1e0] sm:$0xff]
        %v6058 = vld [vmem:[#allocation3 + $0x1e8] sm:$0xff]
        %v6059 = vld [vmem:[#allocation3 + $0x1f0] sm:$0xff]
        %v6060 = vld [vmem:[#allocation3 + $0x1f8] sm:$0xff]
        %v6061 = vld [vmem:[%s5] sm:$0xff]
        %v6062 = vld [vmem:[%s5 + $0x8] sm:$0xff]
        %6064 = vset.pattern.permute.xlu0 0
        %6065 = vperm.xlu0 %6064, %v6061
        %v6066 = vpop.permute.xlu0 %6065
        %6069 = vset.pattern.permute.xlu0 0
        %6070 = vperm.xlu0 %6069, %v6062
        %v6071 = vpop.permute.xlu0 %6070
        %6073 = vmatprep.subr.mxu0 0.0
        %6074 = vmatpush1.msra.mxu0 %v6012
        %6075 = vmatprep.subr.mxu0 0.0
        %6076 = vmatpush1.msra.mxu0 %v6011
        %6077 = vmatprep.subr.mxu0 0.0
        %6078 = vmatpush1.msra.mxu0 %v6010
        %6079 = vmatprep.subr.mxu0 0.0
        %6080 = vmatpush1.msra.mxu0 %v6009
        %6081 = vmatprep.subr.mxu0 0.0
        %6082 = vmatpush1.msra.mxu0 %v6008
        %6083 = vmatprep.subr.mxu0 0.0
        %6084 = vmatpush1.msra.mxu0 %v6007
        %6085 = vmatprep.subr.mxu0 0.0
        %6086 = vmatpush1.msra.mxu0 %v6006
        %6087 = vmatprep.subr.mxu0 0.0
        %6088 = vmatpush1.msra.mxu0 %v6005
        %6089 = vmatprep.subr.mxu0 0.0
        %6090 = vmatpush1.msra.mxu0 %v6004
        %6091 = vmatprep.subr.mxu0 0.0
        %6092 = vmatpush1.msra.mxu0 %v6003
        %6093 = vmatprep.subr.mxu0 0.0
        %6094 = vmatpush1.msra.mxu0 %v6002
        %6095 = vmatprep.subr.mxu0 0.0
        %6096 = vmatpush1.msra.mxu0 %v6001
        %6097 = vmatprep.subr.mxu0 0.0
        %6098 = vmatpush1.msra.mxu0 %v6000
        %6099 = vmatprep.subr.mxu0 0.0
        %6100 = vmatpush1.msra.mxu0 %v5999
        %6101 = vmatprep.subr.mxu0 0.0
        %6102 = vmatpush1.msra.mxu0 %v5998
        %6103 = vmatprep.subr.mxu0 0.0
        %6104 = vmatpush1.msra.mxu0 %v5997
        %6105 = vmatprep.subr.mxu0 0.0
        %6106 = vmatpush2.msra.mxu0 %v6028
        %6107 = vmatprep.subr.mxu0 0.0
        %6108 = vmatpush2.msra.mxu0 %v6027
        %6109 = vmatprep.subr.mxu0 0.0
        %6110 = vmatpush2.msra.mxu0 %v6026
        %6111 = vmatprep.subr.mxu0 0.0
        %6112 = vmatpush2.msra.mxu0 %v6025
        %6113 = vmatprep.subr.mxu0 0.0
        %6114 = vmatpush2.msra.mxu0 %v6024
        %6115 = vmatprep.subr.mxu0 0.0
        %6116 = vmatpush2.msra.mxu0 %v6023
        %6117 = vmatprep.subr.mxu0 0.0
        %6118 = vmatpush2.msra.mxu0 %v6022
        %6119 = vmatprep.subr.mxu0 0.0
        %6120 = vmatpush2.msra.mxu0 %v6021
        %6121 = vmatprep.subr.mxu0 0.0
        %6122 = vmatpush2.msra.mxu0 %v6020
        %6123 = vmatprep.subr.mxu0 0.0
        %6124 = vmatpush2.msra.mxu0 %v6019
        %6125 = vmatprep.subr.mxu0 0.0
        %6126 = vmatpush2.msra.mxu0 %v6018
        %6127 = vmatprep.subr.mxu0 0.0
        %6128 = vmatpush2.msra.mxu0 %v6017
        %6129 = vmatprep.subr.mxu0 0.0
        %6130 = vmatpush2.msra.mxu0 %v6016
        %6131 = vmatprep.subr.mxu0 0.0
        %6132 = vmatpush2.msra.mxu0 %v6015
        %6133 = vmatprep.subr.mxu0 0.0
        %6134 = vmatpush2.msra.mxu0 %v6014
        %6135 = vmatprep.subr.mxu0 0.0
        %6136 = vmatpush2.msra.mxu0 %v6013
        %6137 = vmatprep.mubr.f32.mxu0 %v5990
        %6138 = vmatmul.mubr.f32.gmra.mxu0 %v5989
        %v6139 = vpop.f32.mrf.mxu0
        %v6140 = vadd.f32 %v6066, %v6139
        %v6141 = vpop.f32.mrf.mxu0
        %6142 = vmatprep.mubr.f32.mxu0 %v5994
        %6143 = vmatmul.mubr.f32.gmra.mxu0 %v5993
        %v6144 = vpop.f32.mrf.mxu0
        %v6145 = vadd.f32 %v6071, %v6144
        %v6146 = vpop.f32.mrf.mxu0
        %6147 = vdwg.mxu0
        %6148 = vmatprep.subr.mxu0 0.0
        %6149 = vmatpush1.msra.mxu0 %v6044
        %6150 = vmatprep.subr.mxu0 0.0
        %6151 = vmatpush1.msra.mxu0 %v6043
        %6152 = vmatprep.subr.mxu0 0.0
        %6153 = vmatpush1.msra.mxu0 %v6042
        %6154 = vmatprep.subr.mxu0 0.0
        %6155 = vmatpush1.msra.mxu0 %v6041
        %6156 = vmatprep.subr.mxu0 0.0
        %6157 = vmatpush1.msra.mxu0 %v6040
        %6158 = vmatprep.subr.mxu0 0.0
        %6159 = vmatpush1.msra.mxu0 %v6039
        %6160 = vmatprep.subr.mxu0 0.0
        %6161 = vmatpush1.msra.mxu0 %v6038
        %6162 = vmatprep.subr.mxu0 0.0
        %6163 = vmatpush1.msra.mxu0 %v6037
        %6164 = vmatprep.subr.mxu0 0.0
        %6165 = vmatpush1.msra.mxu0 %v6036
        %6166 = vmatprep.subr.mxu0 0.0
        %6167 = vmatpush1.msra.mxu0 %v6035
        %6168 = vmatprep.subr.mxu0 0.0
        %6169 = vmatpush1.msra.mxu0 %v6034
        %6170 = vmatprep.subr.mxu0 0.0
        %6171 = vmatpush1.msra.mxu0 %v6033
        %6172 = vmatprep.subr.mxu0 0.0
        %6173 = vmatpush1.msra.mxu0 %v6032
        %6174 = vmatprep.subr.mxu0 0.0
        %6175 = vmatpush1.msra.mxu0 %v6031
        %6176 = vmatprep.subr.mxu0 0.0
        %6177 = vmatpush1.msra.mxu0 %v6030
        %6178 = vmatprep.subr.mxu0 0.0
        %6179 = vmatpush1.msra.mxu0 %v6029
        %6180 = vmatprep.subr.mxu0 0.0
        %6181 = vmatpush2.msra.mxu0 %v6060
        %6182 = vmatprep.subr.mxu0 0.0
        %6183 = vmatpush2.msra.mxu0 %v6059
        %6184 = vmatprep.subr.mxu0 0.0
        %6185 = vmatpush2.msra.mxu0 %v6058
        %6186 = vmatprep.subr.mxu0 0.0
        %6187 = vmatpush2.msra.mxu0 %v6057
        %6188 = vmatprep.subr.mxu0 0.0
        %6189 = vmatpush2.msra.mxu0 %v6056
        %6190 = vmatprep.subr.mxu0 0.0
        %6191 = vmatpush2.msra.mxu0 %v6055
        %6192 = vmatprep.subr.mxu0 0.0
        %6193 = vmatpush2.msra.mxu0 %v6054
        %6194 = vmatprep.subr.mxu0 0.0
        %6195 = vmatpush2.msra.mxu0 %v6053
        %6196 = vmatprep.subr.mxu0 0.0
        %6197 = vmatpush2.msra.mxu0 %v6052
        %6198 = vmatprep.subr.mxu0 0.0
        %6199 = vmatpush2.msra.mxu0 %v6051
        %6200 = vmatprep.subr.mxu0 0.0
        %6201 = vmatpush2.msra.mxu0 %v6050
        %6202 = vmatprep.subr.mxu0 0.0
        %6203 = vmatpush2.msra.mxu0 %v6049
        %6204 = vmatprep.subr.mxu0 0.0
        %6205 = vmatpush2.msra.mxu0 %v6048
        %6206 = vmatprep.subr.mxu0 0.0
        %6207 = vmatpush2.msra.mxu0 %v6047
        %6208 = vmatprep.subr.mxu0 0.0
        %6209 = vmatpush2.msra.mxu0 %v6046
        %6210 = vmatprep.subr.mxu0 0.0
        %6211 = vmatpush2.msra.mxu0 %v6045
        %6212 = vmatprep.mubr.f32.mxu0 %v5992
        %6213 = vmatmul.mubr.f32.gmra.mxu0 %v5991
        %v6214 = vpop.f32.mrf.mxu0
        %v6215 = vadd.f32 %v6140, %v6214
        %v6216 = vpop.f32.mrf.mxu0
        %6217 = vmatprep.mubr.f32.mxu0 %v5996
        %6218 = vmatmul.mubr.f32.gmra.mxu0 %v5995
        %v6219 = vpop.f32.mrf.mxu0
        %v6220 = vadd.f32 %v6145, %v6219
        %v6221 = vpop.f32.mrf.mxu0
        %6222 = vdwg.mxu0
        %v6223 = vmax.f32 %v6215, 0.0
        %v6224 = vmax.f32 %v6220, 0.0
        %v6225 = vmax.f32 %v6223, %v6224
        %v6226 = vrot.slane %v6225, 4
        %v6227 = vmax.f32 %v6225, %v6226
        %v6228 = vrot.slane %v6227, 2
        %v6229 = vmax.f32 %v6227, %v6228
        %v6230 = vrot.slane %v6229, 1
        %v6231 = vmax.f32 %v6229, %v6230
        %v6232 = vsub.f32 %v6223, %v6231
        %v6233 = vsub.f32 %v6224, %v6231
        %v6234 = vmul.f32 %v6232, 1.442695
        %v6235 = vpow.pop %v6234
        %v6236 = vmul.f32 %v6233, 1.442695
        %v6237 = vpow.pop %v6236
        %v6238 = vadd.f32 %v6235, %v6237
        %v6239 = vrot.slane %v6238, 4
        %v6240 = vadd.f32 %v6238, %v6239
        %v6241 = vrot.slane %v6240, 2
        %v6242 = vadd.f32 %v6240, %v6241
        %v6243 = vrot.slane %v6242, 1
        %v6244 = vadd.f32 %v6242, %v6243
        %v6245 = vrcp.pop %v6244
        %v6246 = vmul.f32 %v6235, %v6245
        %v6247 = vmul.f32 %v6237, %v6245
        %v6248 = vld [vmem:[#allocation3] sm:$0xff]
        %v6249 = vld [vmem:[#allocation3 + $0x8] sm:$0xff]
        %v6250 = vld [vmem:[#allocation3 + $0x10] sm:$0xff]
        %v6251 = vld [vmem:[#allocation3 + $0x18] sm:$0xff]
        %v6252 = vlaneseq
        %v6253 = vshrl.u32 %v6252, 7
        %v6254 = vsub.s32 0, %v6253
        %v6255 = vrot.slane %v6246, %v6254
        %v6256 = vmul.f32 %v6248, %v6255
        %v6257 = vmul.f32 %v6249, %v6255
        %v6258 = vmul.f32 %v6250, %v6255
        %v6259 = vmul.f32 %v6251, %v6255
        %v6260 = vadd.f32 %v6256, 0.0
        %v6261 = vadd.f32 %v6257, 0.0
        %v6262 = vadd.f32 %v6258, 0.0
        %v6263 = vadd.f32 %v6259, 0.0
        %v6264 = vld [vmem:[#allocation3 + $0x20] sm:$0xff]
        %v6265 = vld [vmem:[#allocation3 + $0x28] sm:$0xff]
        %v6266 = vld [vmem:[#allocation3 + $0x30] sm:$0xff]
        %v6267 = vld [vmem:[#allocation3 + $0x38] sm:$0xff]
        %v6268 = vlaneseq
        %v6269 = vshrl.u32 %v6268, 7
        %v6270 = vsub.s32 1, %v6269
        %v6271 = vrot.slane %v6246, %v6270
        %v6272 = vmul.f32 %v6264, %v6271
        %v6273 = vmul.f32 %v6265, %v6271
        %v6274 = vmul.f32 %v6266, %v6271
        %v6275 = vmul.f32 %v6267, %v6271
        %v6276 = vadd.f32 %v6260, %v6272
        %v6277 = vadd.f32 %v6261, %v6273
        %v6278 = vadd.f32 %v6262, %v6274
        %v6279 = vadd.f32 %v6263, %v6275
        %v6280 = vld [vmem:[#allocation3 + $0x40] sm:$0xff]
        %v6281 = vld [vmem:[#allocation3 + $0x48] sm:$0xff]
        %v6282 = vld [vmem:[#allocation3 + $0x50] sm:$0xff]
        %v6283 = vld [vmem:[#allocation3 + $0x58] sm:$0xff]
        %v6284 = vlaneseq
        %v6285 = vshrl.u32 %v6284, 7
        %v6286 = vsub.s32 2, %v6285
        %v6287 = vrot.slane %v6246, %v6286
        %v6288 = vmul.f32 %v6280, %v6287
        %v6289 = vmul.f32 %v6281, %v6287
        %v6290 = vmul.f32 %v6282, %v6287
        %v6291 = vmul.f32 %v6283, %v6287
        %v6292 = vadd.f32 %v6276, %v6288
        %v6293 = vadd.f32 %v6277, %v6289
        %v6294 = vadd.f32 %v6278, %v6290
        %v6295 = vadd.f32 %v6279, %v6291
        %v6296 = vld [vmem:[#allocation3 + $0x60] sm:$0xff]
        %v6297 = vld [vmem:[#allocation3 + $0x68] sm:$0xff]
        %v6298 = vld [vmem:[#allocation3 + $0x70] sm:$0xff]
        %v6299 = vld [vmem:[#allocation3 + $0x78] sm:$0xff]
        %v6300 = vlaneseq
        %v6301 = vshrl.u32 %v6300, 7
        %v6302 = vsub.s32 3, %v6301
        %v6303 = vrot.slane %v6246, %v6302
        %v6304 = vmul.f32 %v6296, %v6303
        %v6305 = vmul.f32 %v6297, %v6303
        %v6306 = vmul.f32 %v6298, %v6303
        %v6307 = vmul.f32 %v6299, %v6303
        %v6308 = vadd.f32 %v6292, %v6304
        %v6309 = vadd.f32 %v6293, %v6305
        %v6310 = vadd.f32 %v6294, %v6306
        %v6311 = vadd.f32 %v6295, %v6307
        %v6312 = vld [vmem:[#allocation3 + $0x80] sm:$0xff]
        %v6313 = vld [vmem:[#allocation3 + $0x88] sm:$0xff]
        %v6314 = vld [vmem:[#allocation3 + $0x90] sm:$0xff]
        %v6315 = vld [vmem:[#allocation3 + $0x98] sm:$0xff]
        %v6316 = vlaneseq
        %v6317 = vshrl.u32 %v6316, 7
        %v6318 = vsub.s32 4, %v6317
        %v6319 = vrot.slane %v6246, %v6318
        %v6320 = vmul.f32 %v6312, %v6319
        %v6321 = vmul.f32 %v6313, %v6319
        %v6322 = vmul.f32 %v6314, %v6319
        %v6323 = vmul.f32 %v6315, %v6319
        %v6324 = vadd.f32 %v6308, %v6320
        %v6325 = vadd.f32 %v6309, %v6321
        %v6326 = vadd.f32 %v6310, %v6322
        %v6327 = vadd.f32 %v6311, %v6323
        %v6328 = vld [vmem:[#allocation3 + $0xa0] sm:$0xff]
        %v6329 = vld [vmem:[#allocation3 + $0xa8] sm:$0xff]
        %v6330 = vld [vmem:[#allocation3 + $0xb0] sm:$0xff]
        %v6331 = vld [vmem:[#allocation3 + $0xb8] sm:$0xff]
        %v6332 = vlaneseq
        %v6333 = vshrl.u32 %v6332, 7
        %v6334 = vsub.s32 5, %v6333
        %v6335 = vrot.slane %v6246, %v6334
        %v6336 = vmul.f32 %v6328, %v6335
        %v6337 = vmul.f32 %v6329, %v6335
        %v6338 = vmul.f32 %v6330, %v6335
        %v6339 = vmul.f32 %v6331, %v6335
        %v6340 = vadd.f32 %v6324, %v6336
        %v6341 = vadd.f32 %v6325, %v6337
        %v6342 = vadd.f32 %v6326, %v6338
        %v6343 = vadd.f32 %v6327, %v6339
        %v6344 = vld [vmem:[#allocation3 + $0xc0] sm:$0xff]
        %v6345 = vld [vmem:[#allocation3 + $0xc8] sm:$0xff]
        %v6346 = vld [vmem:[#allocation3 + $0xd0] sm:$0xff]
        %v6347 = vld [vmem:[#allocation3 + $0xd8] sm:$0xff]
        %v6348 = vlaneseq
        %v6349 = vshrl.u32 %v6348, 7
        %v6350 = vsub.s32 6, %v6349
        %v6351 = vrot.slane %v6246, %v6350
        %v6352 = vmul.f32 %v6344, %v6351
        %v6353 = vmul.f32 %v6345, %v6351
        %v6354 = vmul.f32 %v6346, %v6351
        %v6355 = vmul.f32 %v6347, %v6351
        %v6356 = vadd.f32 %v6340, %v6352
        %v6357 = vadd.f32 %v6341, %v6353
        %v6358 = vadd.f32 %v6342, %v6354
        %v6359 = vadd.f32 %v6343, %v6355
        %v6360 = vld [vmem:[#allocation3 + $0xe0] sm:$0xff]
        %v6361 = vld [vmem:[#allocation3 + $0xe8] sm:$0xff]
        %v6362 = vld [vmem:[#allocation3 + $0xf0] sm:$0xff]
        %v6363 = vld [vmem:[#allocation3 + $0xf8] sm:$0xff]
        %v6364 = vlaneseq
        %v6365 = vshrl.u32 %v6364, 7
        %v6366 = vsub.s32 7, %v6365
        %v6367 = vrot.slane %v6246, %v6366
        %v6368 = vmul.f32 %v6360, %v6367
        %v6369 = vmul.f32 %v6361, %v6367
        %v6370 = vmul.f32 %v6362, %v6367
        %v6371 = vmul.f32 %v6363, %v6367
        %v6372 = vadd.f32 %v6356, %v6368
        %v6373 = vadd.f32 %v6357, %v6369
        %v6374 = vadd.f32 %v6358, %v6370
        %v6375 = vadd.f32 %v6359, %v6371
        %v6376 = vld [vmem:[#allocation3 + $0x100] sm:$0xff]
        %v6377 = vld [vmem:[#allocation3 + $0x108] sm:$0xff]
        %v6378 = vld [vmem:[#allocation3 + $0x110] sm:$0xff]
        %v6379 = vld [vmem:[#allocation3 + $0x118] sm:$0xff]
        %v6380 = vlaneseq
        %v6381 = vshrl.u32 %v6380, 7
        %v6382 = vsub.s32 0, %v6381
        %v6383 = vrot.slane %v6247, %v6382
        %v6384 = vmul.f32 %v6376, %v6383
        %v6385 = vmul.f32 %v6377, %v6383
        %v6386 = vmul.f32 %v6378, %v6383
        %v6387 = vmul.f32 %v6379, %v6383
        %v6388 = vadd.f32 %v6372, %v6384
        %v6389 = vadd.f32 %v6373, %v6385
        %v6390 = vadd.f32 %v6374, %v6386
        %v6391 = vadd.f32 %v6375, %v6387
        %v6392 = vld [vmem:[#allocation3 + $0x120] sm:$0xff]
        %v6393 = vld [vmem:[#allocation3 + $0x128] sm:$0xff]
        %v6394 = vld [vmem:[#allocation3 + $0x130] sm:$0xff]
        %v6395 = vld [vmem:[#allocation3 + $0x138] sm:$0xff]
        %v6396 = vlaneseq
        %v6397 = vshrl.u32 %v6396, 7
        %v6398 = vsub.s32 1, %v6397
        %v6399 = vrot.slane %v6247, %v6398
        %v6400 = vmul.f32 %v6392, %v6399
        %v6401 = vmul.f32 %v6393, %v6399
        %v6402 = vmul.f32 %v6394, %v6399
        %v6403 = vmul.f32 %v6395, %v6399
        %v6404 = vadd.f32 %v6388, %v6400
        %v6405 = vadd.f32 %v6389, %v6401
        %v6406 = vadd.f32 %v6390, %v6402
        %v6407 = vadd.f32 %v6391, %v6403
        %v6408 = vld [vmem:[#allocation3 + $0x140] sm:$0xff]
        %v6409 = vld [vmem:[#allocation3 + $0x148] sm:$0xff]
        %v6410 = vld [vmem:[#allocation3 + $0x150] sm:$0xff]
        %v6411 = vld [vmem:[#allocation3 + $0x158] sm:$0xff]
        %v6412 = vlaneseq
        %v6413 = vshrl.u32 %v6412, 7
        %v6414 = vsub.s32 2, %v6413
        %v6415 = vrot.slane %v6247, %v6414
        %v6416 = vmul.f32 %v6408, %v6415
        %v6417 = vmul.f32 %v6409, %v6415
        %v6418 = vmul.f32 %v6410, %v6415
        %v6419 = vmul.f32 %v6411, %v6415
        %v6420 = vadd.f32 %v6404, %v6416
        %v6421 = vadd.f32 %v6405, %v6417
        %v6422 = vadd.f32 %v6406, %v6418
        %v6423 = vadd.f32 %v6407, %v6419
        %v6424 = vld [vmem:[#allocation3 + $0x160] sm:$0xff]
        %v6425 = vld [vmem:[#allocation3 + $0x168] sm:$0xff]
        %v6426 = vld [vmem:[#allocation3 + $0x170] sm:$0xff]
        %v6427 = vld [vmem:[#allocation3 + $0x178] sm:$0xff]
        %v6428 = vlaneseq
        %v6429 = vshrl.u32 %v6428, 7
        %v6430 = vsub.s32 3, %v6429
        %v6431 = vrot.slane %v6247, %v6430
        %v6432 = vmul.f32 %v6424, %v6431
        %v6433 = vmul.f32 %v6425, %v6431
        %v6434 = vmul.f32 %v6426, %v6431
        %v6435 = vmul.f32 %v6427, %v6431
        %v6436 = vadd.f32 %v6420, %v6432
        %v6437 = vadd.f32 %v6421, %v6433
        %v6438 = vadd.f32 %v6422, %v6434
        %v6439 = vadd.f32 %v6423, %v6435
        %v6440 = vld [vmem:[#allocation3 + $0x180] sm:$0xff]
        %v6441 = vld [vmem:[#allocation3 + $0x188] sm:$0xff]
        %v6442 = vld [vmem:[#allocation3 + $0x190] sm:$0xff]
        %v6443 = vld [vmem:[#allocation3 + $0x198] sm:$0xff]
        %v6444 = vlaneseq
        %v6445 = vshrl.u32 %v6444, 7
        %v6446 = vsub.s32 4, %v6445
        %v6447 = vrot.slane %v6247, %v6446
        %v6448 = vmul.f32 %v6440, %v6447
        %v6449 = vmul.f32 %v6441, %v6447
        %v6450 = vmul.f32 %v6442, %v6447
        %v6451 = vmul.f32 %v6443, %v6447
        %v6452 = vadd.f32 %v6436, %v6448
        %v6453 = vadd.f32 %v6437, %v6449
        %v6454 = vadd.f32 %v6438, %v6450
        %v6455 = vadd.f32 %v6439, %v6451
        %v6456 = vld [vmem:[#allocation3 + $0x1a0] sm:$0xff]
        %v6457 = vld [vmem:[#allocation3 + $0x1a8] sm:$0xff]
        %v6458 = vld [vmem:[#allocation3 + $0x1b0] sm:$0xff]
        %v6459 = vld [vmem:[#allocation3 + $0x1b8] sm:$0xff]
        %v6460 = vlaneseq
        %v6461 = vshrl.u32 %v6460, 7
        %v6462 = vsub.s32 5, %v6461
        %v6463 = vrot.slane %v6247, %v6462
        %v6464 = vmul.f32 %v6456, %v6463
        %v6465 = vmul.f32 %v6457, %v6463
        %v6466 = vmul.f32 %v6458, %v6463
        %v6467 = vmul.f32 %v6459, %v6463
        %v6468 = vadd.f32 %v6452, %v6464
        %v6469 = vadd.f32 %v6453, %v6465
        %v6470 = vadd.f32 %v6454, %v6466
        %v6471 = vadd.f32 %v6455, %v6467
        %v6472 = vld [vmem:[#allocation3 + $0x1c0] sm:$0xff]
        %v6473 = vld [vmem:[#allocation3 + $0x1c8] sm:$0xff]
        %v6474 = vld [vmem:[#allocation3 + $0x1d0] sm:$0xff]
        %v6475 = vld [vmem:[#allocation3 + $0x1d8] sm:$0xff]
        %v6476 = vlaneseq
        %v6477 = vshrl.u32 %v6476, 7
        %v6478 = vsub.s32 6, %v6477
        %v6479 = vrot.slane %v6247, %v6478
        %v6480 = vmul.f32 %v6472, %v6479
        %v6481 = vmul.f32 %v6473, %v6479
        %v6482 = vmul.f32 %v6474, %v6479
        %v6483 = vmul.f32 %v6475, %v6479
        %v6484 = vadd.f32 %v6468, %v6480
        %v6485 = vadd.f32 %v6469, %v6481
        %v6486 = vadd.f32 %v6470, %v6482
        %v6487 = vadd.f32 %v6471, %v6483
        %v6488 = vlaneseq
        %v6489 = vshrl.u32 %v6488, 7
        %v6490 = vsub.s32 7, %v6489
        %v6491 = vrot.slane %v6247, %v6490
        %v6492 = vmul.f32 %v6057, %v6491
        %v6493 = vmul.f32 %v6058, %v6491
        %v6494 = vmul.f32 %v6059, %v6491
        %v6495 = vmul.f32 %v6060, %v6491
        %v6496 = vadd.f32 %v6484, %v6492
        %v6497 = vadd.f32 %v6485, %v6493
        %v6498 = vadd.f32 %v6486, %v6494
        %v6499 = vadd.f32 %v6487, %v6495
        %6500 = vst [vmem:[%s269] sm:$0xff] %v6496
        %6501 = vst [vmem:[%s269 + $0x8] sm:$0xff] %v6497
        %6502 = vst [vmem:[%s269 + $0x10] sm:$0xff] %v6498
        %6503 = vst [vmem:[%s269 + $0x18] sm:$0xff] %v6499
        %s6504 = sand.u32 %s162, 1
        %s6505 = scalar_lea.sflag [#allocation6], %s6504
        %s6506 = sand.u32 %s162, 1
        %s6507 = smul.addr %s6506, 32
        %s6508 = scalar_lea.vmem [#allocation7], %s6507
        // Predicated region
        $region49: #{tpu_custom_call.1} parent=43 // pred_check
          %p6509 = pneg %p172
        $region50: #{tpu_custom_call.1} parent=43 // pred_check_branch
          %6511 = sbr.rel (%p6509) target = $region52
        $region51: #{tpu_custom_call.1} parent=43 // pred_region
          %s6513 = ssub.s32 512, 512
          %6514 = vsyncadd %s6505, %s6513
          %s6515 = smul.addr %s23, 128
          %s6516 = scalar_lea.hbm %s6, %s6515
          %s6517 = sshll.u32 %s6508, 4
          %s6518 = int_to_ptr.vmem [resolvable:$true] %s6517
          %6523 = dma.vmem_to_hbm [thread:$0]  %s6518, 512, %s6516, %s6505, 128, 256, 8
        $region52: #{tpu_custom_call.1} parent=43 // pred_fallthru
          _
      $region44: #{tpu_custom_call.1} parent=5 // pred_fallthru
        _
      %p6524 = scmp.le.s32.totalorder 2, %s18
      // Predicated region
      $region53: #{tpu_custom_call.1} parent=5 // pred_check
        %p6525 = pneg %p6524
      $region54: #{tpu_custom_call.1} parent=5 // pred_check_branch
        %6527 = sbr.rel (%p6525) target = $region56
      $region55: #{tpu_custom_call.1} parent=5 // pred_region
        %s6528 = ssub.s32 %s18, 2
        // Predicated region
        $region57: #{tpu_custom_call.1} parent=55 // pred_check
          %p6529 = pneg %p178
        $region58: #{tpu_custom_call.1} parent=55 // pred_check_branch
          %6531 = sbr.rel (%p6529) target = $region60
        $region59: #{tpu_custom_call.1} parent=55 // pred_region
          %s6532 = sand.u32 %s163, 1
          %s6533 = scalar_lea.sflag [#allocation6], %s6532
          %s6534 = sand.u32 %s163, 1
          %s6535 = smul.addr %s6534, 32
          %s6536 = scalar_lea.vmem [#allocation7], %s6535
          %6537 = dma.done %s6533, 512
        $region60: #{tpu_custom_call.1} parent=55 // pred_fallthru
          _
      $region56: #{tpu_custom_call.1} parent=5 // pred_fallthru
        _
    $region6: #{tpu_custom_call.1} parent=1 // loop_footer
      %s22 = sadd.s32 1, %s18
    $region7: #{tpu_custom_call.1} parent=1 // loop_footer_branch
      %17 = sbr.rel target = $region3
    $region8: #{tpu_custom_call.1} parent=1 // loop_exit
      _
    %6538 = vsyncpa [#allocation5], 1
    %s6539 = scalar_lea.sflag [#allocation5], 1
    %6540 = vsyncpa %s6539, 1
    %6541 = vsyncpa [#allocation6], 1
    %s6542 = scalar_lea.sflag [#allocation6], 1
    %6543 = vsyncpa %s6542, 1

</llo_original>
